<compile_context>
chip_gen: v7x
topology: tpu7x:2x2x1
jax: 0.10.0
libtpu: 0.0.40
codegen_flags: <defaults>
</compile_context>

<pallas_src>
import functools

import jax
import jax.numpy as jnp
from jax import lax
from jax.experimental import pallas as pl
from jax.experimental.pallas import tpu as pltpu

EPS = 1e-5  # nn.BatchNorm2d default eps


def _vmem_limit_bytes(blocks):
    """blocks: iterable of (shape, dtype). 2x for double buffering + headroom."""
    total = 0
    for shape, dtype in blocks:
        n = 1
        for d in shape:
            n *= int(d)
        total += n * jnp.dtype(dtype).itemsize
    return int(min(128 * 1024 * 1024,
                   max(32 * 1024 * 1024, 2 * total + 8 * 1024 * 1024)))


# ----------------------------------------------------------------------------
# 3x3 conv kernels: single K=9*Cin MXU dot, fused BN stats (+ fused 1x1 skip)
# ----------------------------------------------------------------------------

def _conv_tile(xp_ref, w_ref, b_ref):
    """Single-dot 3x3 conv for one (cout-tile, batch) grid step.

    xp_ref : (1, H+2, W+2, Cin) bf16 padded image
    w_ref  : (9*Cin, Tn)        bf16, rows ordered (ky, kx, cin)
    b_ref  : (1, Tn)            f32
    Returns (h_f32 (H*W, Tn), centre_tap (H*W, Cin) bf16).
    """
    Hp, Wp, cin = xp_ref.shape[1], xp_ref.shape[2], xp_ref.shape[3]
    H, W = Hp - 2, Wp - 2
    taps = [xp_ref[0, ky:ky + H, kx:kx + W, :].reshape(H * W, cin)
            for ky in range(3) for kx in range(3)]
    patch = jnp.concatenate(taps, axis=-1)                     # (H*W, 9*Cin)
    h = jnp.dot(patch, w_ref[...], preferred_element_type=jnp.float32)
    return h + b_ref[...], taps[4]                             # taps[4] = centre


def _accum_stats(h, sum_ref, ssq_ref):
    """Accumulate per-channel sum / sumsq across the inner (batch) grid axis."""
    @pl.when(pl.program_id(1) == 0)
    def _():
        sum_ref[...] = jnp.zeros_like(sum_ref)
        ssq_ref[...] = jnp.zeros_like(ssq_ref)
    sum_ref[...] += jnp.sum(h, axis=0, keepdims=True)
    ssq_ref[...] += jnp.sum(h * h, axis=0, keepdims=True)


def _conv3x3_stats_kernel(xp_ref, w_ref, b_ref, out_ref, sum_ref, ssq_ref):
    h, _ = _conv_tile(xp_ref, w_ref, b_ref)
    out_ref[0] = h.astype(out_ref.dtype)
    _accum_stats(h, sum_ref, ssq_ref)


def _conv3x3_skip_stats_kernel(xp_ref, w_ref, b_ref, ws_ref, bs_ref,
                               out_ref, id_ref, sum_ref, ssq_ref):
    h, centre = _conv_tile(xp_ref, w_ref, b_ref)
    out_ref[0] = h.astype(out_ref.dtype)
    _accum_stats(h, sum_ref, ssq_ref)
    # fused 1x1 skip conv on the centre (un-shifted) window of the same input
    ident = jnp.dot(centre, ws_ref[...], preferred_element_type=jnp.float32)
    id_ref[0] = (ident + bs_ref[...]).astype(id_ref.dtype)


def conv3x3(xp, w, b, skip_w=None, skip_b=None, *, out_dtype=jnp.bfloat16):
    """3x3 'same' conv with fused BN statistics (+ optional fused 1x1 skip).

    xp : (N, H+2, W+2, Cin) bf16 zero-padded input
    w  : (9*Cin, Cout) bf16   b: (1, Cout) f32
    Returns (h, [identity,] sum, sumsq) with
      h / identity : (N, H*W, Cout) out_dtype
      sum / sumsq  : (1, Cout) f32  per-channel stats of h over all N*H*W rows.
    """
    N, Hp, Wp, Cin = xp.shape
    H, W = Hp - 2, Wp - 2
    Cout = w.shape[-1]
    assert w.shape[0] == 9 * Cin
    assert W % 8 == 0, "W must be a multiple of 8 for cheap window reshapes"

    if Cout % 256 == 0:
        Tn = 256
    elif Cout % 128 == 0:
        Tn = 128
    else:
        Tn = Cout
    n_j = Cout // Tn
    # j (cout tiles) outer & parallel, batch i inner & arbitrary (stats carry).
    grid = (n_j, N)

    in_specs = [
        pl.BlockSpec((1, Hp, Wp, Cin), lambda j, i: (i, 0, 0, 0)),
        pl.BlockSpec((9 * Cin, Tn), lambda j, i: (0, j)),
        pl.BlockSpec((1, Tn), lambda j, i: (0, j)),
    ]
    args = [xp, w, b]

    conv_out = jax.ShapeDtypeStruct((N, H * W, Cout), out_dtype)
    stat_out = jax.ShapeDtypeStruct((1, Cout), jnp.float32)
    conv_spec = pl.BlockSpec((1, H * W, Tn), lambda j, i: (i, 0, j))
    stat_spec = pl.BlockSpec((1, Tn), lambda j, i: (0, j))

    blocks = [((1, Hp, Wp, Cin), xp.dtype), ((9 * Cin, Tn), w.dtype),
              ((1, Tn), jnp.float32), ((1, H * W, Tn), out_dtype),
              ((1, Tn), jnp.float32), ((1, Tn), jnp.float32)]

    if skip_w is None:
        kernel = _conv3x3_stats_kernel
        out_shape = (conv_out, stat_out, stat_out)
        out_specs = (conv_spec, stat_spec, stat_spec)
    else:
        in_specs += [pl.BlockSpec((Cin, Tn), lambda j, i: (0, j)),
                     pl.BlockSpec((1, Tn), lambda j, i: (0, j))]
        args += [skip_w, skip_b]
        blocks += [((Cin, Tn), skip_w.dtype), ((1, Tn), jnp.float32),
                   ((1, H * W, Tn), out_dtype)]
        kernel = _conv3x3_skip_stats_kernel
        out_shape = (conv_out, conv_out, stat_out, stat_out)
        out_specs = (conv_spec, conv_spec, stat_spec, stat_spec)

    return pl.pallas_call(
        kernel,
        out_shape=out_shape,
        grid=grid,
        in_specs=in_specs,
        out_specs=out_specs,
        compiler_params=pltpu.CompilerParams(
            dimension_semantics=("parallel", "arbitrary"),
            vmem_limit_bytes=_vmem_limit_bytes(blocks)),
    )(*args)


# ----------------------------------------------------------------------------
# Single-pass BatchNorm (training stats precomputed by conv) + ReLU (+ add)
# ----------------------------------------------------------------------------

def _bn_scale_shift(sum_ref, ssq_ref, g_ref, b_ref, scale_sc, shift_sc,
                    inv_count):
    mean = sum_ref[...] * inv_count
    var = jnp.maximum(ssq_ref[...] * inv_count - mean * mean, 0.0)  # biased var
    scale = g_ref[...] * lax.rsqrt(var + EPS)
    scale_sc[...] = scale
    shift_sc[...] = b_ref[...] - mean * scale


def _bn_relu_kernel(sum_ref, ssq_ref, g_ref, b_ref, x_ref, o_ref,
                    scale_sc, shift_sc, *, inv_count):
    @pl.when(pl.program_id(0) == 0)
    def _():
        _bn_scale_shift(sum_ref, ssq_ref, g_ref, b_ref, scale_sc, shift_sc,
                        inv_count)
    y = x_ref[...].astype(jnp.float32) * scale_sc[...] + shift_sc[...]
    o_ref[...] = jnp.maximum(y, 0.0).astype(o_ref.dtype)


def _bn_add_relu_kernel(sum_ref, ssq_ref, g_ref, b_ref, x_ref, res_ref, o_ref,
                        scale_sc, shift_sc, *, inv_count):
    @pl.when(pl.program_id(0) == 0)
    def _():
        _bn_scale_shift(sum_ref, ssq_ref, g_ref, b_ref, scale_sc, shift_sc,
                        inv_count)
    y = x_ref[...].astype(jnp.float32) * scale_sc[...] + shift_sc[...]
    y = y + res_ref[...].astype(jnp.float32)
    o_ref[...] = jnp.maximum(y, 0.0).astype(o_ref.dtype)


def _pick_row_tile(M, C, *, cap_bytes=4 * 1024 * 1024):
    """Largest multiple-of-8 divisor of M whose (tm, C) f32 tile fits cap."""
    cap = max(8, (cap_bytes // (C * 4)) // 8 * 8)
    if M <= cap:
        return M
    t = cap
    while t >= 8:
        if M % t == 0:
            return t
        t -= 8
    return M  # fallback: single full block


def batch_norm_act(x2d, sum_c, ssq_c, gamma, beta, residual=None, *,
                   count, out_dtype=jnp.float32):
    """relu(bn(x) (+ residual)) with per-channel sum/sumsq precomputed."""
    M, C = x2d.shape
    tm = _pick_row_tile(M, C)
    n_tiles = M // tm
    inv_count = 1.0 / float(count)

    stat_spec = pl.BlockSpec((1, C), lambda i: (0, 0))
    row_spec = pl.BlockSpec((tm, C), lambda i: (i, 0))
    in_specs = [stat_spec, stat_spec, stat_spec, stat_spec, row_spec]
    args = [sum_c, ssq_c, gamma, beta, x2d]
    blocks = [((1, C), jnp.float32)] * 4 + [((tm, C), x2d.dtype),
                                            ((tm, C), out_dtype)]

    if residual is None:
        kernel = functools.partial(_bn_relu_kernel, inv_count=inv_count)
    else:
        in_specs.append(row_spec)
        args.append(residual)
        blocks.append(((tm, C), residual.dtype))
        kernel = functools.partial(_bn_add_relu_kernel, inv_count=inv_count)

    return pl.pallas_call(
        kernel,
        out_shape=jax.ShapeDtypeStruct((M, C), out_dtype),
        grid=(n_tiles,),
        in_specs=in_specs,
        out_specs=row_spec,
        scratch_shapes=[pltpu.VMEM((1, C), jnp.float32),
                        pltpu.VMEM((1, C), jnp.float32)],
        compiler_params=pltpu.CompilerParams(
            dimension_semantics=("arbitrary",),
            vmem_limit_bytes=_vmem_limit_bytes(blocks)),
    )(*args)


# ----------------------------------------------------------------------------
# ResidualBlock forward (mirrors the PyTorch module)
# ----------------------------------------------------------------------------

def residual_block(params, x_nhwc):
    N, H, W, _ = x_nhwc.shape
    Cout = params["bn1"]["gamma"].shape[-1]
    M = N * H * W
    pad = ((0, 0), (1, 1), (1, 1), (0, 0))

    xp1 = jnp.pad(x_nhwc, pad).astype(jnp.bfloat16)
    h1, identity, s1, q1 = conv3x3(
        xp1, params["conv1"]["w"], params["conv1"]["b"],
        skip_w=params["skip"]["w"], skip_b=params["skip"]["b"],
        out_dtype=jnp.bfloat16)
    a1 = batch_norm_act(h1.reshape(M, Cout), s1, q1,
                        params["bn1"]["gamma"], params["bn1"]["beta"],
                        count=M, out_dtype=jnp.bfloat16)

    xp2 = jnp.pad(a1.reshape(N, H, W, Cout), pad)   # already bf16
    h2, s2, q2 = conv3x3(xp2, params["conv2"]["w"], params["conv2"]["b"],
                         out_dtype=jnp.bfloat16)
    out = batch_norm_act(h2.reshape(M, Cout), s2, q2,
                         params["bn2"]["gamma"], params["bn2"]["beta"],
                         residual=identity.reshape(M, Cout),
                         count=M, out_dtype=jnp.float32)
    return out.reshape(N, H, W, Cout)


def residual_block_forward(params, x_nchw):
    x = jnp.transpose(x_nchw, (0, 2, 3, 1))   # NCHW -> NHWC (channels on lanes)
    y = residual_block(params, x)
    return jnp.transpose(y, (0, 3, 1, 2))     # back to NCHW


# ----------------------------------------------------------------------------
# Deterministic parameter init (weights pre-reshaped for K=9*Cin, pre-cast bf16)
# ----------------------------------------------------------------------------

def init_residual_block(key, in_channels, out_channels):
    def conv_init(k, kh, kw, cin, cout):
        kw_key, kb_key = jax.random.split(k)
        bound = 1.0 / float((kh * kw * cin) ** 0.5)  # torch Conv2d default range
        w = jax.random.uniform(kw_key, (kh, kw, cin, cout), jnp.float32,
                               -bound, bound)
        bvec = jax.random.uniform(kb_key, (cout,), jnp.float32, -bound, bound)
        return w, bvec

    k1, k2, k3 = jax.random.split(key, 3)
    w1, b1 = conv_init(k1, 3, 3, in_channels, out_channels)
    w2, b2 = conv_init(k2, 3, 3, out_channels, out_channels)
    ws, bs = conv_init(k3, 1, 1, in_channels, out_channels)
    return {
        "conv1": {"w": w1.reshape(9 * in_channels, out_channels).astype(jnp.bfloat16),
                  "b": b1.reshape(1, out_channels)},
        "conv2": {"w": w2.reshape(9 * out_channels, out_channels).astype(jnp.bfloat16),
                  "b": b2.reshape(1, out_channels)},
        "skip": {"w": ws.reshape(in_channels, out_channels).astype(jnp.bfloat16),
                 "b": bs.reshape(1, out_channels)},
        "bn1": {"gamma": jnp.ones((1, out_channels), jnp.float32),
                "beta": jnp.zeros((1, out_channels), jnp.float32)},
        "bn2": {"gamma": jnp.ones((1, out_channels), jnp.float32),
                "beta": jnp.zeros((1, out_channels), jnp.float32)},
    }


# ----------------------------------------------------------------------------
# Pure-JAX reference (for correctness checking only)
# ----------------------------------------------------------------------------

def _reference_forward(params, x_nchw):
    x = jnp.transpose(x_nchw, (0, 2, 3, 1))
    cout = params["conv1"]["w"].shape[1]

    def conv3x3_ref(inp, w_flat, b):
        ci = w_flat.shape[0] // 9
        w = w_flat.astype(jnp.float32).reshape(3, 3, ci, cout)
        y = lax.conv_general_dilated(inp, w, (1, 1), "SAME",
                                     dimension_numbers=("NHWC", "HWIO", "NHWC"))
        return y + b.reshape(1, 1, 1, -1)

    def bn_ref(h, g, bt):
        mean = jnp.mean(h, axis=(0, 1, 2), keepdims=True)
        var = jnp.mean((h - mean) ** 2, axis=(0, 1, 2), keepdims=True)
        return ((h - mean) * lax.rsqrt(var + EPS) * g.reshape(1, 1, 1, -1)
                + bt.reshape(1, 1, 1, -1))

    identity = (jnp.einsum("nhwc,co->nhwo", x,
                           params["skip"]["w"].astype(jnp.float32))
                + params["skip"]["b"].reshape(1, 1, 1, -1))
    h1 = conv3x3_ref(x, params["conv1"]["w"], params["conv1"]["b"])
    a1 = jax.nn.relu(bn_ref(h1, params["bn1"]["gamma"], params["bn1"]["beta"]))
    h2 = conv3x3_ref(a1, params["conv2"]["w"], params["conv2"]["b"])
    out = jax.nn.relu(bn_ref(h2, params["bn2"]["gamma"], params["bn2"]["beta"])
                      + identity)
    return jnp.transpose(out, (0, 3, 1, 2))


# ----------------------------------------------------------------------------
# Main
# ----------------------------------------------------------------------------

if __name__ == "__main__":
    key = jax.random.PRNGKey(0)
    k_params, k_x = jax.random.split(key)

    in_channels, out_channels = 4, 8
    params = init_residual_block(k_params, in_channels, out_channels)
    x = jax.random.normal(k_x, (2, in_channels, 16, 16), jnp.float32)  # NCHW

    fwd = jax.jit(residual_block_forward)
    out = jax.block_until_ready(fwd(params, x))

    assert out.shape == (2, out_channels, 16, 16), out.shape
    assert out.dtype == jnp.float32
    assert bool(jnp.all(jnp.isfinite(out)))

    # Correctness vs a pure-JAX reference (bf16 MXU operands / bf16
    # intermediates => loose tolerance).
    ref = jax.block_until_ready(jax.jit(_reference_forward)(params, x))
    max_err = float(jnp.max(jnp.abs(out - ref)))
    assert max_err < 1e-1, f"kernel vs reference max abs err {max_err}"

    print("KERNEL_OK")
</pallas_src>

<mosaic_0001>
module attributes {stable_mosaic.version = 11 : i64} {
  func.func @_bn_relu_kernel(%arg0: i32, %arg1: memref<1x8xf32, #tpu.memory_space<vmem>>, %arg2: memref<1x8xf32, #tpu.memory_space<vmem>>, %arg3: memref<1x8xf32, #tpu.memory_space<vmem>>, %arg4: memref<1x8xf32, #tpu.memory_space<vmem>>, %arg5: memref<512x8xbf16, #tpu.memory_space<vmem>>, %arg6: memref<512x8xbf16, #tpu.memory_space<vmem>>, %arg7: memref<1x8xf32, #tpu.memory_space<vmem>>, %arg8: memref<1x8xf32, #tpu.memory_space<vmem>>) attributes {dimension_semantics = [#tpu.dimension_semantics<arbitrary>], iteration_bounds = array<i64: 1>, scalar_prefetch = 0 : i64, scratch_operands = 2 : i64, tpu.core_type = #tpu.core_type<tc>, window_params = [{pipeline_mode = #tpu.pipeline_mode<synchronous>, transform_indices = @transform_0, window_bounds = array<i64: 1, 8>}, {pipeline_mode = #tpu.pipeline_mode<synchronous>, transform_indices = @transform_1, window_bounds = array<i64: 1, 8>}, {pipeline_mode = #tpu.pipeline_mode<synchronous>, transform_indices = @transform_2, window_bounds = array<i64: 1, 8>}, {pipeline_mode = #tpu.pipeline_mode<synchronous>, transform_indices = @transform_3, window_bounds = array<i64: 1, 8>}, {transform_indices = @transform_4, window_bounds = array<i64: 512, 8>}, {transform_indices = @transform_5, window_bounds = array<i64: 512, 8>}]} {
    %c0_i32 = arith.constant 0 : i32
    %0 = arith.cmpi eq, %arg0, %c0_i32 : i32
    %1 = arith.extui %0 : i1 to i32
    %c0_i32_0 = arith.constant 0 : i32
    %2 = arith.cmpi ne, %1, %c0_i32_0 : i32
    scf.if %2 {
      %c0_8 = arith.constant 0 : index
      %c0_9 = arith.constant 0 : index
      %15 = vector.load %arg1[%c0_8, %c0_9] : memref<1x8xf32, #tpu.memory_space<vmem>>, vector<1x8xf32>
      %cst_10 = arith.constant 0.001953125 : f32
      %16 = vector.broadcast %cst_10 : f32 to vector<1x8xf32>
      %17 = arith.mulf %15, %16 : vector<1x8xf32>
      %c0_11 = arith.constant 0 : index
      %c0_12 = arith.constant 0 : index
      %18 = vector.load %arg2[%c0_11, %c0_12] : memref<1x8xf32, #tpu.memory_space<vmem>>, vector<1x8xf32>
      %cst_13 = arith.constant 0.001953125 : f32
      %19 = vector.broadcast %cst_13 : f32 to vector<1x8xf32>
      %20 = arith.mulf %18, %19 : vector<1x8xf32>
      %21 = arith.mulf %17, %17 : vector<1x8xf32>
      %22 = arith.subf %20, %21 : vector<1x8xf32>
      %cst_14 = arith.constant 0.000000e+00 : f32
      %23 = vector.broadcast %cst_14 : f32 to vector<1x8xf32>
      %24 = arith.maximumf %22, %23 : vector<1x8xf32>
      %c0_15 = arith.constant 0 : index
      %c0_16 = arith.constant 0 : index
      %25 = vector.load %arg3[%c0_15, %c0_16] : memref<1x8xf32, #tpu.memory_space<vmem>>, vector<1x8xf32>
      %cst_17 = arith.constant 9.99999974E-6 : f32
      %26 = vector.broadcast %cst_17 : f32 to vector<1x8xf32>
      %27 = arith.addf %24, %26 : vector<1x8xf32>
      %28 = math.rsqrt %27 : vector<1x8xf32>
      %29 = arith.mulf %25, %28 : vector<1x8xf32>
      %c0_18 = arith.constant 0 : index
      %c0_19 = arith.constant 0 : index
      %30 = vector.load %arg7[%c0_18, %c0_19] : memref<1x8xf32, #tpu.memory_space<vmem>>, vector<1x8xf32>
      tpu.vector_store %arg7[%c0_18, %c0_19], %29 {strides = array<i32>} : memref<1x8xf32, #tpu.memory_space<vmem>>, vector<1x8xf32>,
      %c0_20 = arith.constant 0 : index
      %c0_21 = arith.constant 0 : index
      %31 = vector.load %arg4[%c0_20, %c0_21] : memref<1x8xf32, #tpu.memory_space<vmem>>, vector<1x8xf32>
      %32 = arith.mulf %17, %29 : vector<1x8xf32>
      %33 = arith.subf %31, %32 : vector<1x8xf32>
      %c0_22 = arith.constant 0 : index
      %c0_23 = arith.constant 0 : index
      %34 = vector.load %arg8[%c0_22, %c0_23] : memref<1x8xf32, #tpu.memory_space<vmem>>, vector<1x8xf32>
      tpu.vector_store %arg8[%c0_22, %c0_23], %33 {strides = array<i32>} : memref<1x8xf32, #tpu.memory_space<vmem>>, vector<1x8xf32>,
    } else {
    }
    %c0 = arith.constant 0 : index
    %c0_1 = arith.constant 0 : index
    %3 = vector.load %arg5[%c0, %c0_1] : memref<512x8xbf16, #tpu.memory_space<vmem>>, vector<512x8xbf16>
    %4 = arith.extf %3 : vector<512x8xbf16> to vector<512x8xf32>
    %c0_2 = arith.constant 0 : index
    %c0_3 = arith.constant 0 : index
    %5 = vector.load %arg7[%c0_2, %c0_3] : memref<1x8xf32, #tpu.memory_space<vmem>>, vector<1x8xf32>
    %6 = vector.broadcast %5 : vector<1x8xf32> to vector<512x8xf32>
    %7 = arith.mulf %4, %6 : vector<512x8xf32>
    %c0_4 = arith.constant 0 : index
    %c0_5 = arith.constant 0 : index
    %8 = vector.load %arg8[%c0_4, %c0_5] : memref<1x8xf32, #tpu.memory_space<vmem>>, vector<1x8xf32>
    %9 = vector.broadcast %8 : vector<1x8xf32> to vector<512x8xf32>
    %10 = arith.addf %7, %9 : vector<512x8xf32>
    %cst = arith.constant 0.000000e+00 : f32
    %11 = vector.broadcast %cst : f32 to vector<512x8xf32>
    %12 = arith.maximumf %10, %11 : vector<512x8xf32>
    %13 = arith.truncf %12 : vector<512x8xf32> to vector<512x8xbf16>
    %c0_6 = arith.constant 0 : index
    %c0_7 = arith.constant 0 : index
    %14 = vector.load %arg6[%c0_6, %c0_7] : memref<512x8xbf16, #tpu.memory_space<vmem>>, vector<512x8xbf16>
    tpu.vector_store %arg6[%c0_6, %c0_7], %13 {strides = array<i32>} : memref<512x8xbf16, #tpu.memory_space<vmem>>, vector<512x8xbf16>,
    return
  }
  func.func @transform_0(%arg0: i32) -> (i32, i32) {
    %c0_i32 = arith.constant 0 : i32
    %c0_i32_0 = arith.constant 0 : i32
    %c0_i32_1 = arith.constant 0 : i32
    return %c0_i32, %c0_i32_0 : i32, i32
  }
  func.func @transform_1(%arg0: i32) -> (i32, i32) {
    %c0_i32 = arith.constant 0 : i32
    %c0_i32_0 = arith.constant 0 : i32
    %c0_i32_1 = arith.constant 0 : i32
    return %c0_i32, %c0_i32_0 : i32, i32
  }
  func.func @transform_2(%arg0: i32) -> (i32, i32) {
    %c0_i32 = arith.constant 0 : i32
    %c0_i32_0 = arith.constant 0 : i32
    %c0_i32_1 = arith.constant 0 : i32
    return %c0_i32, %c0_i32_0 : i32, i32
  }
  func.func @transform_3(%arg0: i32) -> (i32, i32) {
    %c0_i32 = arith.constant 0 : i32
    %c0_i32_0 = arith.constant 0 : i32
    %c0_i32_1 = arith.constant 0 : i32
    return %c0_i32, %c0_i32_0 : i32, i32
  }
  func.func @transform_4(%arg0: i32) -> (i32, i32) {
    %c0_i32 = arith.constant 0 : i32
    %c0_i32_0 = arith.constant 0 : i32
    return %arg0, %c0_i32 : i32, i32
  }
  func.func @transform_5(%arg0: i32) -> (i32, i32) {
    %c0_i32 = arith.constant 0 : i32
    %c0_i32_0 = arith.constant 0 : i32
    return %arg0, %c0_i32 : i32, i32
  }
}

module attributes {stable_mosaic.version = 11 : i64} {
  func.func @_conv3x3_skip_stats_kernel(%arg0: i32, %arg1: i32, %arg2: memref<1x18x18x4xbf16, #tpu.memory_space<vmem>>, %arg3: memref<36x8xbf16, #tpu.memory_space<vmem>>, %arg4: memref<1x8xf32, #tpu.memory_space<vmem>>, %arg5: memref<4x8xbf16, #tpu.memory_space<vmem>>, %arg6: memref<1x8xf32, #tpu.memory_space<vmem>>, %arg7: memref<1x256x8xbf16, #tpu.memory_space<vmem>>, %arg8: memref<1x256x8xbf16, #tpu.memory_space<vmem>>, %arg9: memref<1x8xf32, #tpu.memory_space<vmem>>, %arg10: memref<1x8xf32, #tpu.memory_space<vmem>>) attributes {dimension_semantics = [#tpu.dimension_semantics<parallel>, #tpu.dimension_semantics<arbitrary>], iteration_bounds = array<i64: 1, 2>, scalar_prefetch = 0 : i64, scratch_operands = 0 : i64, tpu.core_type = #tpu.core_type<tc>, window_params = [{transform_indices = @transform_0, window_bounds = array<i64: 1, 18, 18, 4>}, {transform_indices = @transform_1, window_bounds = array<i64: 36, 8>}, {transform_indices = @transform_2, window_bounds = array<i64: 1, 8>}, {transform_indices = @transform_3, window_bounds = array<i64: 4, 8>}, {transform_indices = @transform_4, window_bounds = array<i64: 1, 8>}, {transform_indices = @transform_5, window_bounds = array<i64: 1, 256, 8>}, {transform_indices = @transform_6, window_bounds = array<i64: 1, 256, 8>}, {transform_indices = @transform_7, window_bounds = array<i64: 1, 8>}, {transform_indices = @transform_8, window_bounds = array<i64: 1, 8>}]} {
    %c0 = arith.constant 0 : index
    %c0_0 = arith.constant 0 : index
    %c0_1 = arith.constant 0 : index
    %c0_2 = arith.constant 0 : index
    %0 = vector.load %arg2[%c0, %c0_0, %c0_1, %c0_2] : memref<1x18x18x4xbf16, #tpu.memory_space<vmem>>, vector<1x16x16x4xbf16>
    %1 = vector.shape_cast %0 : vector<1x16x16x4xbf16> to vector<16x16x4xbf16>
    %2 = vector.shape_cast %1 : vector<16x16x4xbf16> to vector<256x4xbf16>
    %c0_3 = arith.constant 0 : index
    %c0_4 = arith.constant 0 : index
    %c1 = arith.constant 1 : index
    %c0_5 = arith.constant 0 : index
    %3 = vector.load %arg2[%c0_3, %c0_4, %c1, %c0_5] : memref<1x18x18x4xbf16, #tpu.memory_space<vmem>>, vector<1x16x16x4xbf16>
    %4 = vector.shape_cast %3 : vector<1x16x16x4xbf16> to vector<16x16x4xbf16>
    %5 = vector.shape_cast %4 : vector<16x16x4xbf16> to vector<256x4xbf16>
    %c0_6 = arith.constant 0 : index
    %c0_7 = arith.constant 0 : index
    %c2 = arith.constant 2 : index
    %c0_8 = arith.constant 0 : index
    %6 = vector.load %arg2[%c0_6, %c0_7, %c2, %c0_8] : memref<1x18x18x4xbf16, #tpu.memory_space<vmem>>, vector<1x16x16x4xbf16>
    %7 = vector.shape_cast %6 : vector<1x16x16x4xbf16> to vector<16x16x4xbf16>
    %8 = vector.shape_cast %7 : vector<16x16x4xbf16> to vector<256x4xbf16>
    %c0_9 = arith.constant 0 : index
    %c1_10 = arith.constant 1 : index
    %c0_11 = arith.constant 0 : index
    %c0_12 = arith.constant 0 : index
    %9 = vector.load %arg2[%c0_9, %c1_10, %c0_11, %c0_12] : memref<1x18x18x4xbf16, #tpu.memory_space<vmem>>, vector<1x16x16x4xbf16>
    %10 = vector.shape_cast %9 : vector<1x16x16x4xbf16> to vector<16x16x4xbf16>
    %11 = vector.shape_cast %10 : vector<16x16x4xbf16> to vector<256x4xbf16>
    %c0_13 = arith.constant 0 : index
    %c1_14 = arith.constant 1 : index
    %c1_15 = arith.constant 1 : index
    %c0_16 = arith.constant 0 : index
    %12 = vector.load %arg2[%c0_13, %c1_14, %c1_15, %c0_16] : memref<1x18x18x4xbf16, #tpu.memory_space<vmem>>, vector<1x16x16x4xbf16>
    %13 = vector.shape_cast %12 : vector<1x16x16x4xbf16> to vector<16x16x4xbf16>
    %14 = vector.shape_cast %13 : vector<16x16x4xbf16> to vector<256x4xbf16>
    %c0_17 = arith.constant 0 : index
    %c1_18 = arith.constant 1 : index
    %c2_19 = arith.constant 2 : index
    %c0_20 = arith.constant 0 : index
    %15 = vector.load %arg2[%c0_17, %c1_18, %c2_19, %c0_20] : memref<1x18x18x4xbf16, #tpu.memory_space<vmem>>, vector<1x16x16x4xbf16>
    %16 = vector.shape_cast %15 : vector<1x16x16x4xbf16> to vector<16x16x4xbf16>
    %17 = vector.shape_cast %16 : vector<16x16x4xbf16> to vector<256x4xbf16>
    %c0_21 = arith.constant 0 : index
    %c2_22 = arith.constant 2 : index
    %c0_23 = arith.constant 0 : index
    %c0_24 = arith.constant 0 : index
    %18 = vector.load %arg2[%c0_21, %c2_22, %c0_23, %c0_24] : memref<1x18x18x4xbf16, #tpu.memory_space<vmem>>, vector<1x16x16x4xbf16>
    %19 = vector.shape_cast %18 : vector<1x16x16x4xbf16> to vector<16x16x4xbf16>
    %20 = vector.shape_cast %19 : vector<16x16x4xbf16> to vector<256x4xbf16>
    %c0_25 = arith.constant 0 : index
    %c2_26 = arith.constant 2 : index
    %c1_27 = arith.constant 1 : index
    %c0_28 = arith.constant 0 : index
    %21 = vector.load %arg2[%c0_25, %c2_26, %c1_27, %c0_28] : memref<1x18x18x4xbf16, #tpu.memory_space<vmem>>, vector<1x16x16x4xbf16>
    %22 = vector.shape_cast %21 : vector<1x16x16x4xbf16> to vector<16x16x4xbf16>
    %23 = vector.shape_cast %22 : vector<16x16x4xbf16> to vector<256x4xbf16>
    %c0_29 = arith.constant 0 : index
    %c2_30 = arith.constant 2 : index
    %c2_31 = arith.constant 2 : index
    %c0_32 = arith.constant 0 : index
    %24 = vector.load %arg2[%c0_29, %c2_30, %c2_31, %c0_32] : memref<1x18x18x4xbf16, #tpu.memory_space<vmem>>, vector<1x16x16x4xbf16>
    %25 = vector.shape_cast %24 : vector<1x16x16x4xbf16> to vector<16x16x4xbf16>
    %26 = vector.shape_cast %25 : vector<16x16x4xbf16> to vector<256x4xbf16>
    %27 = tpu.concatenate %2, %5, %8, %11, %14, %17, %20, %23, %26 in 1 : vector<256x4xbf16>, vector<256x4xbf16>, vector<256x4xbf16>, vector<256x4xbf16>, vector<256x4xbf16>, vector<256x4xbf16>, vector<256x4xbf16>, vector<256x4xbf16>, vector<256x4xbf16> -> vector<256x36xbf16>
    %c0_33 = arith.constant 0 : index
    %c0_34 = arith.constant 0 : index
    %28 = vector.load %arg3[%c0_33, %c0_34] : memref<36x8xbf16, #tpu.memory_space<vmem>>, vector<36x8xbf16>
    %cst = arith.constant dense<0.000000e+00> : vector<256x8xf32>
    %29 = tpu.matmul %27, %28, %cst {dimension_numbers = #tpu.dot_dimension_numbers<[1], [0], [0], [1], [0, 0, 1, 1], [], []>} : vector<256x36xbf16>, vector<36x8xbf16>, vector<256x8xf32> -> vector<256x8xf32>
    %c0_35 = arith.constant 0 : index
    %c0_36 = arith.constant 0 : index
    %30 = vector.load %arg4[%c0_35, %c0_36] : memref<1x8xf32, #tpu.memory_space<vmem>>, vector<1x8xf32>
    %31 = vector.broadcast %30 : vector<1x8xf32> to vector<256x8xf32>
    %32 = arith.addf %29, %31 : vector<256x8xf32>
    %33 = arith.truncf %32 : vector<256x8xf32> to vector<256x8xbf16>
    %c0_37 = arith.constant 0 : index
    %c0_38 = arith.constant 0 : index
    %c0_39 = arith.constant 0 : index
    %34 = vector.load %arg7[%c0_37, %c0_38, %c0_39] : memref<1x256x8xbf16, #tpu.memory_space<vmem>>, vector<1x256x8xbf16>
    %35 = vector.shape_cast %34 : vector<1x256x8xbf16> to vector<256x8xbf16>
    %36 = vector.shape_cast %33 : vector<256x8xbf16> to vector<1x256x8xbf16>
    tpu.vector_store %arg7[%c0_37, %c0_38, %c0_39], %36 {strides = array<i32>} : memref<1x256x8xbf16, #tpu.memory_space<vmem>>, vector<1x256x8xbf16>,
    %c0_i32 = arith.constant 0 : i32
    %37 = arith.cmpi eq, %arg1, %c0_i32 : i32
    %38 = arith.extui %37 : i1 to i32
    %c0_i32_40 = arith.constant 0 : i32
    %39 = arith.cmpi ne, %38, %c0_i32_40 : i32
    scf.if %39 {
      %cst_59 = arith.constant 0.000000e+00 : f32
      %60 = vector.broadcast %cst_59 : f32 to vector<1x8xf32>
      %c0_60 = arith.constant 0 : index
      %c0_61 = arith.constant 0 : index
      %61 = vector.load %arg9[%c0_60, %c0_61] : memref<1x8xf32, #tpu.memory_space<vmem>>, vector<1x8xf32>
      tpu.vector_store %arg9[%c0_60, %c0_61], %60 {strides = array<i32>} : memref<1x8xf32, #tpu.memory_space<vmem>>, vector<1x8xf32>,
      %cst_62 = arith.constant 0.000000e+00 : f32
      %62 = vector.broadcast %cst_62 : f32 to vector<1x8xf32>
      %c0_63 = arith.constant 0 : index
      %c0_64 = arith.constant 0 : index
      %63 = vector.load %arg10[%c0_63, %c0_64] : memref<1x8xf32, #tpu.memory_space<vmem>>, vector<1x8xf32>
      tpu.vector_store %arg10[%c0_63, %c0_64], %62 {strides = array<i32>} : memref<1x8xf32, #tpu.memory_space<vmem>>, vector<1x8xf32>,
    } else {
    }
    %c0_41 = arith.constant 0 : index
    %c0_42 = arith.constant 0 : index
    %40 = vector.load %arg9[%c0_41, %c0_42] : memref<1x8xf32, #tpu.memory_space<vmem>>, vector<1x8xf32>
    %cst_43 = arith.constant dense<0.000000e+00> : vector<8xf32>
    %41 = vector.multi_reduction <add>, %32, %cst_43 [0] : vector<256x8xf32> to vector<8xf32>
    %42 = vector.shape_cast %41 : vector<8xf32> to vector<1x8xf32>
    %43 = arith.addf %40, %42 : vector<1x8xf32>
    %c0_44 = arith.constant 0 : index
    %c0_45 = arith.constant 0 : index
    %44 = vector.load %arg9[%c0_44, %c0_45] : memref<1x8xf32, #tpu.memory_space<vmem>>, vector<1x8xf32>
    tpu.vector_store %arg9[%c0_44, %c0_45], %43 {strides = array<i32>} : memref<1x8xf32, #tpu.memory_space<vmem>>, vector<1x8xf32>,
    %c0_46 = arith.constant 0 : index
    %c0_47 = arith.constant 0 : index
    %45 = vector.load %arg10[%c0_46, %c0_47] : memref<1x8xf32, #tpu.memory_space<vmem>>, vector<1x8xf32>
    %46 = arith.mulf %32, %32 : vector<256x8xf32>
    %cst_48 = arith.constant dense<0.000000e+00> : vector<8xf32>
    %47 = vector.multi_reduction <add>, %46, %cst_48 [0] : vector<256x8xf32> to vector<8xf32>
    %48 = vector.shape_cast %47 : vector<8xf32> to vector<1x8xf32>
    %49 = arith.addf %45, %48 : vector<1x8xf32>
    %c0_49 = arith.constant 0 : index
    %c0_50 = arith.constant 0 : index
    %50 = vector.load %arg10[%c0_49, %c0_50] : memref<1x8xf32, #tpu.memory_space<vmem>>, vector<1x8xf32>
    tpu.vector_store %arg10[%c0_49, %c0_50], %49 {strides = array<i32>} : memref<1x8xf32, #tpu.memory_space<vmem>>, vector<1x8xf32>,
    %c0_51 = arith.constant 0 : index
    %c0_52 = arith.constant 0 : index
    %51 = vector.load %arg5[%c0_51, %c0_52] : memref<4x8xbf16, #tpu.memory_space<vmem>>, vector<4x8xbf16>
    %cst_53 = arith.constant dense<0.000000e+00> : vector<256x8xf32>
    %52 = tpu.matmul %14, %51, %cst_53 {dimension_numbers = #tpu.dot_dimension_numbers<[1], [0], [0], [1], [0, 0, 1, 1], [], []>} : vector<256x4xbf16>, vector<4x8xbf16>, vector<256x8xf32> -> vector<256x8xf32>
    %c0_54 = arith.constant 0 : index
    %c0_55 = arith.constant 0 : index
    %53 = vector.load %arg6[%c0_54, %c0_55] : memref<1x8xf32, #tpu.memory_space<vmem>>, vector<1x8xf32>
    %54 = vector.broadcast %53 : vector<1x8xf32> to vector<256x8xf32>
    %55 = arith.addf %52, %54 : vector<256x8xf32>
    %56 = arith.truncf %55 : vector<256x8xf32> to vector<256x8xbf16>
    %c0_56 = arith.constant 0 : index
    %c0_57 = arith.constant 0 : index
    %c0_58 = arith.constant 0 : index
    %57 = vector.load %arg8[%c0_56, %c0_57, %c0_58] : memref<1x256x8xbf16, #tpu.memory_space<vmem>>, vector<1x256x8xbf16>
    %58 = vector.shape_cast %57 : vector<1x256x8xbf16> to vector<256x8xbf16>
    %59 = vector.shape_cast %56 : vector<256x8xbf16> to vector<1x256x8xbf16>
    tpu.vector_store %arg8[%c0_56, %c0_57, %c0_58], %59 {strides = array<i32>} : memref<1x256x8xbf16, #tpu.memory_space<vmem>>, vector<1x256x8xbf16>,
    return
  }
  func.func @transform_0(%arg0: i32, %arg1: i32) -> (i32, i32, i32, i32) {
    %c0_i32 = arith.constant 0 : i32
    %c0_i32_0 = arith.constant 0 : i32
    %c0_i32_1 = arith.constant 0 : i32
    %c0_i32_2 = arith.constant 0 : i32
    return %arg1, %c0_i32, %c0_i32_0, %c0_i32_1 : i32, i32, i32, i32
  }
  func.func @transform_1(%arg0: i32, %arg1: i32) -> (i32, i32) {
    %c0_i32 = arith.constant 0 : i32
    %c0_i32_0 = arith.constant 0 : i32
    return %c0_i32, %arg0 : i32, i32
  }
  func.func @transform_2(%arg0: i32, %arg1: i32) -> (i32, i32) {
    %c0_i32 = arith.constant 0 : i32
    %c0_i32_0 = arith.constant 0 : i32
    return %c0_i32, %arg0 : i32, i32
  }
  func.func @transform_3(%arg0: i32, %arg1: i32) -> (i32, i32) {
    %c0_i32 = arith.constant 0 : i32
    %c0_i32_0 = arith.constant 0 : i32
    return %c0_i32, %arg0 : i32, i32
  }
  func.func @transform_4(%arg0: i32, %arg1: i32) -> (i32, i32) {
    %c0_i32 = arith.constant 0 : i32
    %c0_i32_0 = arith.constant 0 : i32
    return %c0_i32, %arg0 : i32, i32
  }
  func.func @transform_5(%arg0: i32, %arg1: i32) -> (i32, i32, i32) {
    %c0_i32 = arith.constant 0 : i32
    %c0_i32_0 = arith.constant 0 : i32
    return %arg1, %c0_i32, %arg0 : i32, i32, i32
  }
  func.func @transform_6(%arg0: i32, %arg1: i32) -> (i32, i32, i32) {
    %c0_i32 = arith.constant 0 : i32
    %c0_i32_0 = arith.constant 0 : i32
    return %arg1, %c0_i32, %arg0 : i32, i32, i32
  }
  func.func @transform_7(%arg0: i32, %arg1: i32) -> (i32, i32) {
    %c0_i32 = arith.constant 0 : i32
    %c0_i32_0 = arith.constant 0 : i32
    return %c0_i32, %arg0 : i32, i32
  }
  func.func @transform_8(%arg0: i32, %arg1: i32) -> (i32, i32) {
    %c0_i32 = arith.constant 0 : i32
    %c0_i32_0 = arith.constant 0 : i32
    return %c0_i32, %arg0 : i32, i32
  }
}

module attributes {stable_mosaic.version = 11 : i64} {
  func.func @_conv3x3_stats_kernel(%arg0: i32, %arg1: i32, %arg2: memref<1x18x18x8xbf16, #tpu.memory_space<vmem>>, %arg3: memref<72x8xbf16, #tpu.memory_space<vmem>>, %arg4: memref<1x8xf32, #tpu.memory_space<vmem>>, %arg5: memref<1x256x8xbf16, #tpu.memory_space<vmem>>, %arg6: memref<1x8xf32, #tpu.memory_space<vmem>>, %arg7: memref<1x8xf32, #tpu.memory_space<vmem>>) attributes {dimension_semantics = [#tpu.dimension_semantics<parallel>, #tpu.dimension_semantics<arbitrary>], iteration_bounds = array<i64: 1, 2>, scalar_prefetch = 0 : i64, scratch_operands = 0 : i64, tpu.core_type = #tpu.core_type<tc>, window_params = [{transform_indices = @transform_0, window_bounds = array<i64: 1, 18, 18, 8>}, {transform_indices = @transform_1, window_bounds = array<i64: 72, 8>}, {transform_indices = @transform_2, window_bounds = array<i64: 1, 8>}, {transform_indices = @transform_3, window_bounds = array<i64: 1, 256, 8>}, {transform_indices = @transform_4, window_bounds = array<i64: 1, 8>}, {transform_indices = @transform_5, window_bounds = array<i64: 1, 8>}]} {
    %c0 = arith.constant 0 : index
    %c0_0 = arith.constant 0 : index
    %c0_1 = arith.constant 0 : index
    %c0_2 = arith.constant 0 : index
    %0 = vector.load %arg2[%c0, %c0_0, %c0_1, %c0_2] : memref<1x18x18x8xbf16, #tpu.memory_space<vmem>>, vector<1x16x16x8xbf16>
    %1 = vector.shape_cast %0 : vector<1x16x16x8xbf16> to vector<16x16x8xbf16>
    %2 = vector.shape_cast %1 : vector<16x16x8xbf16> to vector<256x8xbf16>
    %c0_3 = arith.constant 0 : index
    %c0_4 = arith.constant 0 : index
    %c1 = arith.constant 1 : index
    %c0_5 = arith.constant 0 : index
    %3 = vector.load %arg2[%c0_3, %c0_4, %c1, %c0_5] : memref<1x18x18x8xbf16, #tpu.memory_space<vmem>>, vector<1x16x16x8xbf16>
    %4 = vector.shape_cast %3 : vector<1x16x16x8xbf16> to vector<16x16x8xbf16>
    %5 = vector.shape_cast %4 : vector<16x16x8xbf16> to vector<256x8xbf16>
    %c0_6 = arith.constant 0 : index
    %c0_7 = arith.constant 0 : index
    %c2 = arith.constant 2 : index
    %c0_8 = arith.constant 0 : index
    %6 = vector.load %arg2[%c0_6, %c0_7, %c2, %c0_8] : memref<1x18x18x8xbf16, #tpu.memory_space<vmem>>, vector<1x16x16x8xbf16>
    %7 = vector.shape_cast %6 : vector<1x16x16x8xbf16> to vector<16x16x8xbf16>
    %8 = vector.shape_cast %7 : vector<16x16x8xbf16> to vector<256x8xbf16>
    %c0_9 = arith.constant 0 : index
    %c1_10 = arith.constant 1 : index
    %c0_11 = arith.constant 0 : index
    %c0_12 = arith.constant 0 : index
    %9 = vector.load %arg2[%c0_9, %c1_10, %c0_11, %c0_12] : memref<1x18x18x8xbf16, #tpu.memory_space<vmem>>, vector<1x16x16x8xbf16>
    %10 = vector.shape_cast %9 : vector<1x16x16x8xbf16> to vector<16x16x8xbf16>
    %11 = vector.shape_cast %10 : vector<16x16x8xbf16> to vector<256x8xbf16>
    %c0_13 = arith.constant 0 : index
    %c1_14 = arith.constant 1 : index
    %c1_15 = arith.constant 1 : index
    %c0_16 = arith.constant 0 : index
    %12 = vector.load %arg2[%c0_13, %c1_14, %c1_15, %c0_16] : memref<1x18x18x8xbf16, #tpu.memory_space<vmem>>, vector<1x16x16x8xbf16>
    %13 = vector.shape_cast %12 : vector<1x16x16x8xbf16> to vector<16x16x8xbf16>
    %14 = vector.shape_cast %13 : vector<16x16x8xbf16> to vector<256x8xbf16>
    %c0_17 = arith.constant 0 : index
    %c1_18 = arith.constant 1 : index
    %c2_19 = arith.constant 2 : index
    %c0_20 = arith.constant 0 : index
    %15 = vector.load %arg2[%c0_17, %c1_18, %c2_19, %c0_20] : memref<1x18x18x8xbf16, #tpu.memory_space<vmem>>, vector<1x16x16x8xbf16>
    %16 = vector.shape_cast %15 : vector<1x16x16x8xbf16> to vector<16x16x8xbf16>
    %17 = vector.shape_cast %16 : vector<16x16x8xbf16> to vector<256x8xbf16>
    %c0_21 = arith.constant 0 : index
    %c2_22 = arith.constant 2 : index
    %c0_23 = arith.constant 0 : index
    %c0_24 = arith.constant 0 : index
    %18 = vector.load %arg2[%c0_21, %c2_22, %c0_23, %c0_24] : memref<1x18x18x8xbf16, #tpu.memory_space<vmem>>, vector<1x16x16x8xbf16>
    %19 = vector.shape_cast %18 : vector<1x16x16x8xbf16> to vector<16x16x8xbf16>
    %20 = vector.shape_cast %19 : vector<16x16x8xbf16> to vector<256x8xbf16>
    %c0_25 = arith.constant 0 : index
    %c2_26 = arith.constant 2 : index
    %c1_27 = arith.constant 1 : index
    %c0_28 = arith.constant 0 : index
    %21 = vector.load %arg2[%c0_25, %c2_26, %c1_27, %c0_28] : memref<1x18x18x8xbf16, #tpu.memory_space<vmem>>, vector<1x16x16x8xbf16>
    %22 = vector.shape_cast %21 : vector<1x16x16x8xbf16> to vector<16x16x8xbf16>
    %23 = vector.shape_cast %22 : vector<16x16x8xbf16> to vector<256x8xbf16>
    %c0_29 = arith.constant 0 : index
    %c2_30 = arith.constant 2 : index
    %c2_31 = arith.constant 2 : index
    %c0_32 = arith.constant 0 : index
    %24 = vector.load %arg2[%c0_29, %c2_30, %c2_31, %c0_32] : memref<1x18x18x8xbf16, #tpu.memory_space<vmem>>, vector<1x16x16x8xbf16>
    %25 = vector.shape_cast %24 : vector<1x16x16x8xbf16> to vector<16x16x8xbf16>
    %26 = vector.shape_cast %25 : vector<16x16x8xbf16> to vector<256x8xbf16>
    %27 = tpu.concatenate %2, %5, %8, %11, %14, %17, %20, %23, %26 in 1 : vector<256x8xbf16>, vector<256x8xbf16>, vector<256x8xbf16>, vector<256x8xbf16>, vector<256x8xbf16>, vector<256x8xbf16>, vector<256x8xbf16>, vector<256x8xbf16>, vector<256x8xbf16> -> vector<256x72xbf16>
    %c0_33 = arith.constant 0 : index
    %c0_34 = arith.constant 0 : index
    %28 = vector.load %arg3[%c0_33, %c0_34] : memref<72x8xbf16, #tpu.memory_space<vmem>>, vector<72x8xbf16>
    %cst = arith.constant dense<0.000000e+00> : vector<256x8xf32>
    %29 = tpu.matmul %27, %28, %cst {dimension_numbers = #tpu.dot_dimension_numbers<[1], [0], [0], [1], [0, 0, 1, 1], [], []>} : vector<256x72xbf16>, vector<72x8xbf16>, vector<256x8xf32> -> vector<256x8xf32>
    %c0_35 = arith.constant 0 : index
    %c0_36 = arith.constant 0 : index
    %30 = vector.load %arg4[%c0_35, %c0_36] : memref<1x8xf32, #tpu.memory_space<vmem>>, vector<1x8xf32>
    %31 = vector.broadcast %30 : vector<1x8xf32> to vector<256x8xf32>
    %32 = arith.addf %29, %31 : vector<256x8xf32>
    %33 = arith.truncf %32 : vector<256x8xf32> to vector<256x8xbf16>
    %c0_37 = arith.constant 0 : index
    %c0_38 = arith.constant 0 : index
    %c0_39 = arith.constant 0 : index
    %34 = vector.load %arg5[%c0_37, %c0_38, %c0_39] : memref<1x256x8xbf16, #tpu.memory_space<vmem>>, vector<1x256x8xbf16>
    %35 = vector.shape_cast %34 : vector<1x256x8xbf16> to vector<256x8xbf16>
    %36 = vector.shape_cast %33 : vector<256x8xbf16> to vector<1x256x8xbf16>
    tpu.vector_store %arg5[%c0_37, %c0_38, %c0_39], %36 {strides = array<i32>} : memref<1x256x8xbf16, #tpu.memory_space<vmem>>, vector<1x256x8xbf16>,
    %c0_i32 = arith.constant 0 : i32
    %37 = arith.cmpi eq, %arg1, %c0_i32 : i32
    %38 = arith.extui %37 : i1 to i32
    %c0_i32_40 = arith.constant 0 : i32
    %39 = arith.cmpi ne, %38, %c0_i32_40 : i32
    scf.if %39 {
      %cst_51 = arith.constant 0.000000e+00 : f32
      %51 = vector.broadcast %cst_51 : f32 to vector<1x8xf32>
      %c0_52 = arith.constant 0 : index
      %c0_53 = arith.constant 0 : index
      %52 = vector.load %arg6[%c0_52, %c0_53] : memref<1x8xf32, #tpu.memory_space<vmem>>, vector<1x8xf32>
      tpu.vector_store %arg6[%c0_52, %c0_53], %51 {strides = array<i32>} : memref<1x8xf32, #tpu.memory_space<vmem>>, vector<1x8xf32>,
      %cst_54 = arith.constant 0.000000e+00 : f32
      %53 = vector.broadcast %cst_54 : f32 to vector<1x8xf32>
      %c0_55 = arith.constant 0 : index
      %c0_56 = arith.constant 0 : index
      %54 = vector.load %arg7[%c0_55, %c0_56] : memref<1x8xf32, #tpu.memory_space<vmem>>, vector<1x8xf32>
      tpu.vector_store %arg7[%c0_55, %c0_56], %53 {strides = array<i32>} : memref<1x8xf32, #tpu.memory_space<vmem>>, vector<1x8xf32>,
    } else {
    }
    %c0_41 = arith.constant 0 : index
    %c0_42 = arith.constant 0 : index
    %40 = vector.load %arg6[%c0_41, %c0_42] : memref<1x8xf32, #tpu.memory_space<vmem>>, vector<1x8xf32>
    %cst_43 = arith.constant dense<0.000000e+00> : vector<8xf32>
    %41 = vector.multi_reduction <add>, %32, %cst_43 [0] : vector<256x8xf32> to vector<8xf32>
    %42 = vector.shape_cast %41 : vector<8xf32> to vector<1x8xf32>
    %43 = arith.addf %40, %42 : vector<1x8xf32>
    %c0_44 = arith.constant 0 : index
    %c0_45 = arith.constant 0 : index
    %44 = vector.load %arg6[%c0_44, %c0_45] : memref<1x8xf32, #tpu.memory_space<vmem>>, vector<1x8xf32>
    tpu.vector_store %arg6[%c0_44, %c0_45], %43 {strides = array<i32>} : memref<1x8xf32, #tpu.memory_space<vmem>>, vector<1x8xf32>,
    %c0_46 = arith.constant 0 : index
    %c0_47 = arith.constant 0 : index
    %45 = vector.load %arg7[%c0_46, %c0_47] : memref<1x8xf32, #tpu.memory_space<vmem>>, vector<1x8xf32>
    %46 = arith.mulf %32, %32 : vector<256x8xf32>
    %cst_48 = arith.constant dense<0.000000e+00> : vector<8xf32>
    %47 = vector.multi_reduction <add>, %46, %cst_48 [0] : vector<256x8xf32> to vector<8xf32>
    %48 = vector.shape_cast %47 : vector<8xf32> to vector<1x8xf32>
    %49 = arith.addf %45, %48 : vector<1x8xf32>
    %c0_49 = arith.constant 0 : index
    %c0_50 = arith.constant 0 : index
    %50 = vector.load %arg7[%c0_49, %c0_50] : memref<1x8xf32, #tpu.memory_space<vmem>>, vector<1x8xf32>
    tpu.vector_store %arg7[%c0_49, %c0_50], %49 {strides = array<i32>} : memref<1x8xf32, #tpu.memory_space<vmem>>, vector<1x8xf32>,
    return
  }
  func.func @transform_0(%arg0: i32, %arg1: i32) -> (i32, i32, i32, i32) {
    %c0_i32 = arith.constant 0 : i32
    %c0_i32_0 = arith.constant 0 : i32
    %c0_i32_1 = arith.constant 0 : i32
    %c0_i32_2 = arith.constant 0 : i32
    return %arg1, %c0_i32, %c0_i32_0, %c0_i32_1 : i32, i32, i32, i32
  }
  func.func @transform_1(%arg0: i32, %arg1: i32) -> (i32, i32) {
    %c0_i32 = arith.constant 0 : i32
    %c0_i32_0 = arith.constant 0 : i32
    return %c0_i32, %arg0 : i32, i32
  }
  func.func @transform_2(%arg0: i32, %arg1: i32) -> (i32, i32) {
    %c0_i32 = arith.constant 0 : i32
    %c0_i32_0 = arith.constant 0 : i32
    return %c0_i32, %arg0 : i32, i32
  }
  func.func @transform_3(%arg0: i32, %arg1: i32) -> (i32, i32, i32) {
    %c0_i32 = arith.constant 0 : i32
    %c0_i32_0 = arith.constant 0 : i32
    return %arg1, %c0_i32, %arg0 : i32, i32, i32
  }
  func.func @transform_4(%arg0: i32, %arg1: i32) -> (i32, i32) {
    %c0_i32 = arith.constant 0 : i32
    %c0_i32_0 = arith.constant 0 : i32
    return %c0_i32, %arg0 : i32, i32
  }
  func.func @transform_5(%arg0: i32, %arg1: i32) -> (i32, i32) {
    %c0_i32 = arith.constant 0 : i32
    %c0_i32_0 = arith.constant 0 : i32
    return %c0_i32, %arg0 : i32, i32
  }
}

module attributes {stable_mosaic.version = 11 : i64} {
  func.func @_bn_add_relu_kernel(%arg0: i32, %arg1: memref<1x8xf32, #tpu.memory_space<vmem>>, %arg2: memref<1x8xf32, #tpu.memory_space<vmem>>, %arg3: memref<1x8xf32, #tpu.memory_space<vmem>>, %arg4: memref<1x8xf32, #tpu.memory_space<vmem>>, %arg5: memref<512x8xbf16, #tpu.memory_space<vmem>>, %arg6: memref<512x8xbf16, #tpu.memory_space<vmem>>, %arg7: memref<512x8xf32, #tpu.memory_space<vmem>>, %arg8: memref<1x8xf32, #tpu.memory_space<vmem>>, %arg9: memref<1x8xf32, #tpu.memory_space<vmem>>) attributes {dimension_semantics = [#tpu.dimension_semantics<arbitrary>], iteration_bounds = array<i64: 1>, scalar_prefetch = 0 : i64, scratch_operands = 2 : i64, tpu.core_type = #tpu.core_type<tc>, window_params = [{pipeline_mode = #tpu.pipeline_mode<synchronous>, transform_indices = @transform_0, window_bounds = array<i64: 1, 8>}, {pipeline_mode = #tpu.pipeline_mode<synchronous>, transform_indices = @transform_1, window_bounds = array<i64: 1, 8>}, {pipeline_mode = #tpu.pipeline_mode<synchronous>, transform_indices = @transform_2, window_bounds = array<i64: 1, 8>}, {pipeline_mode = #tpu.pipeline_mode<synchronous>, transform_indices = @transform_3, window_bounds = array<i64: 1, 8>}, {transform_indices = @transform_4, window_bounds = array<i64: 512, 8>}, {transform_indices = @transform_5, window_bounds = array<i64: 512, 8>}, {transform_indices = @transform_6, window_bounds = array<i64: 512, 8>}]} {
    %c0_i32 = arith.constant 0 : i32
    %0 = arith.cmpi eq, %arg0, %c0_i32 : i32
    %1 = arith.extui %0 : i1 to i32
    %c0_i32_0 = arith.constant 0 : i32
    %2 = arith.cmpi ne, %1, %c0_i32_0 : i32
    scf.if %2 {
      %c0_10 = arith.constant 0 : index
      %c0_11 = arith.constant 0 : index
      %17 = vector.load %arg1[%c0_10, %c0_11] : memref<1x8xf32, #tpu.memory_space<vmem>>, vector<1x8xf32>
      %cst_12 = arith.constant 0.001953125 : f32
      %18 = vector.broadcast %cst_12 : f32 to vector<1x8xf32>
      %19 = arith.mulf %17, %18 : vector<1x8xf32>
      %c0_13 = arith.constant 0 : index
      %c0_14 = arith.constant 0 : index
      %20 = vector.load %arg2[%c0_13, %c0_14] : memref<1x8xf32, #tpu.memory_space<vmem>>, vector<1x8xf32>
      %cst_15 = arith.constant 0.001953125 : f32
      %21 = vector.broadcast %cst_15 : f32 to vector<1x8xf32>
      %22 = arith.mulf %20, %21 : vector<1x8xf32>
      %23 = arith.mulf %19, %19 : vector<1x8xf32>
      %24 = arith.subf %22, %23 : vector<1x8xf32>
      %cst_16 = arith.constant 0.000000e+00 : f32
      %25 = vector.broadcast %cst_16 : f32 to vector<1x8xf32>
      %26 = arith.maximumf %24, %25 : vector<1x8xf32>
      %c0_17 = arith.constant 0 : index
      %c0_18 = arith.constant 0 : index
      %27 = vector.load %arg3[%c0_17, %c0_18] : memref<1x8xf32, #tpu.memory_space<vmem>>, vector<1x8xf32>
      %cst_19 = arith.constant 9.99999974E-6 : f32
      %28 = vector.broadcast %cst_19 : f32 to vector<1x8xf32>
      %29 = arith.addf %26, %28 : vector<1x8xf32>
      %30 = math.rsqrt %29 : vector<1x8xf32>
      %31 = arith.mulf %27, %30 : vector<1x8xf32>
      %c0_20 = arith.constant 0 : index
      %c0_21 = arith.constant 0 : index
      %32 = vector.load %arg8[%c0_20, %c0_21] : memref<1x8xf32, #tpu.memory_space<vmem>>, vector<1x8xf32>
      tpu.vector_store %arg8[%c0_20, %c0_21], %31 {strides = array<i32>} : memref<1x8xf32, #tpu.memory_space<vmem>>, vector<1x8xf32>,
      %c0_22 = arith.constant 0 : index
      %c0_23 = arith.constant 0 : index
      %33 = vector.load %arg4[%c0_22, %c0_23] : memref<1x8xf32, #tpu.memory_space<vmem>>, vector<1x8xf32>
      %34 = arith.mulf %19, %31 : vector<1x8xf32>
      %35 = arith.subf %33, %34 : vector<1x8xf32>
      %c0_24 = arith.constant 0 : index
      %c0_25 = arith.constant 0 : index
      %36 = vector.load %arg9[%c0_24, %c0_25] : memref<1x8xf32, #tpu.memory_space<vmem>>, vector<1x8xf32>
      tpu.vector_store %arg9[%c0_24, %c0_25], %35 {strides = array<i32>} : memref<1x8xf32, #tpu.memory_space<vmem>>, vector<1x8xf32>,
    } else {
    }
    %c0 = arith.constant 0 : index
    %c0_1 = arith.constant 0 : index
    %3 = vector.load %arg5[%c0, %c0_1] : memref<512x8xbf16, #tpu.memory_space<vmem>>, vector<512x8xbf16>
    %4 = arith.extf %3 : vector<512x8xbf16> to vector<512x8xf32>
    %c0_2 = arith.constant 0 : index
    %c0_3 = arith.constant 0 : index
    %5 = vector.load %arg8[%c0_2, %c0_3] : memref<1x8xf32, #tpu.memory_space<vmem>>, vector<1x8xf32>
    %6 = vector.broadcast %5 : vector<1x8xf32> to vector<512x8xf32>
    %7 = arith.mulf %4, %6 : vector<512x8xf32>
    %c0_4 = arith.constant 0 : index
    %c0_5 = arith.constant 0 : index
    %8 = vector.load %arg9[%c0_4, %c0_5] : memref<1x8xf32, #tpu.memory_space<vmem>>, vector<1x8xf32>
    %9 = vector.broadcast %8 : vector<1x8xf32> to vector<512x8xf32>
    %10 = arith.addf %7, %9 : vector<512x8xf32>
    %c0_6 = arith.constant 0 : index
    %c0_7 = arith.constant 0 : index
    %11 = vector.load %arg6[%c0_6, %c0_7] : memref<512x8xbf16, #tpu.memory_space<vmem>>, vector<512x8xbf16>
    %12 = arith.extf %11 : vector<512x8xbf16> to vector<512x8xf32>
    %13 = arith.addf %10, %12 : vector<512x8xf32>
    %cst = arith.constant 0.000000e+00 : f32
    %14 = vector.broadcast %cst : f32 to vector<512x8xf32>
    %15 = arith.maximumf %13, %14 : vector<512x8xf32>
    %c0_8 = arith.constant 0 : index
    %c0_9 = arith.constant 0 : index
    %16 = vector.load %arg7[%c0_8, %c0_9] : memref<512x8xf32, #tpu.memory_space<vmem>>, vector<512x8xf32>
    tpu.vector_store %arg7[%c0_8, %c0_9], %15 {strides = array<i32>} : memref<512x8xf32, #tpu.memory_space<vmem>>, vector<512x8xf32>,
    return
  }
  func.func @transform_0(%arg0: i32) -> (i32, i32) {
    %c0_i32 = arith.constant 0 : i32
    %c0_i32_0 = arith.constant 0 : i32
    %c0_i32_1 = arith.constant 0 : i32
    return %c0_i32, %c0_i32_0 : i32, i32
  }
  func.func @transform_1(%arg0: i32) -> (i32, i32) {
    %c0_i32 = arith.constant 0 : i32
    %c0_i32_0 = arith.constant 0 : i32
    %c0_i32_1 = arith.constant 0 : i32
    return %c0_i32, %c0_i32_0 : i32, i32
  }
  func.func @transform_2(%arg0: i32) -> (i32, i32) {
    %c0_i32 = arith.constant 0 : i32
    %c0_i32_0 = arith.constant 0 : i32
    %c0_i32_1 = arith.constant 0 : i32
    return %c0_i32, %c0_i32_0 : i32, i32
  }
  func.func @transform_3(%arg0: i32) -> (i32, i32) {
    %c0_i32 = arith.constant 0 : i32
    %c0_i32_0 = arith.constant 0 : i32
    %c0_i32_1 = arith.constant 0 : i32
    return %c0_i32, %c0_i32_0 : i32, i32
  }
  func.func @transform_4(%arg0: i32) -> (i32, i32) {
    %c0_i32 = arith.constant 0 : i32
    %c0_i32_0 = arith.constant 0 : i32
    return %arg0, %c0_i32 : i32, i32
  }
  func.func @transform_5(%arg0: i32) -> (i32, i32) {
    %c0_i32 = arith.constant 0 : i32
    %c0_i32_0 = arith.constant 0 : i32
    return %arg0, %c0_i32 : i32, i32
  }
  func.func @transform_6(%arg0: i32) -> (i32, i32) {
    %c0_i32 = arith.constant 0 : i32
    %c0_i32_0 = arith.constant 0 : i32
    return %arg0, %c0_i32 : i32, i32
  }
}

</mosaic_0001>

<llo_original>
// kernel: residual_block_forward.5
$region0: #{residual_block_forward.5}
  #allocation0 [shape = 'u32[]', space=smem, size = 0x4, offset = 0x4, fixed_abs, tag = 'smem constant byte address 0x4 - core index']
  #allocation1 [shape = 'u32[144,128]{1,0:T(1,128)}', space=vmem, size = 0x12000, scoped, tag = 'internal scratch']
  #allocation2 [shape = 'f32[1,8]{1,0:T(1,128)}', space=vmem, size = 0x200, scoped, tag = 'scratch operand']
  #allocation3 [shape = 'f32[1,8]{1,0:T(1,128)}', space=vmem, size = 0x200, scoped, tag = 'scratch operand']
  %s0 = inlined_call_operand.vmem [shape: f32[1,8], index: 0, kind: input, shape index: {}]
  %s1 = inlined_call_operand.vmem [shape: f32[1,8], index: 1, kind: input, shape index: {}]
  %s2 = inlined_call_operand.vmem [shape: f32[1,8], index: 2, kind: input, shape index: {}]
  %s3 = inlined_call_operand.vmem [shape: f32[1,8], index: 3, kind: input, shape index: {}]
  %s4 = inlined_call_operand.vmem [shape: bf16[512,8], index: 4, kind: input, shape index: {}]
  %s5 = inlined_call_operand.vmem [shape: bf16[512,8], index: 5, kind: output, shape index: {}]
  %s6 = sld [smem:[#allocation0]]
  $region34: #{residual_block_forward.5} parent=0
    _
  %s8 = ssub.s32 1, %s6
  %s9 = scalar_select 0, %s8, %s6
  // Predicated region
  $region2: #{residual_block_forward.5} parent=0 // pred_check
    _
  $region3: #{residual_block_forward.5} parent=0 // pred_check_branch
    %11 = sbr.rel (0) target = $region5
  $region4: #{residual_block_forward.5} parent=0 // pred_region
    _
  $region5: #{residual_block_forward.5} parent=0 // pred_fallthru
    _
  // Predicated region
  $region6: #{residual_block_forward.5} parent=0 // pred_check
    _
  $region7: #{residual_block_forward.5} parent=0 // pred_check_branch
    %13 = sbr.rel (0) target = $region9
  $region8: #{residual_block_forward.5} parent=0 // pred_region
    _
  $region9: #{residual_block_forward.5} parent=0 // pred_fallthru
    _
  // Predicated region
  $region10: #{residual_block_forward.5} parent=0 // pred_check
    _
  $region11: #{residual_block_forward.5} parent=0 // pred_check_branch
    %15 = sbr.rel (0) target = $region13
  $region12: #{residual_block_forward.5} parent=0 // pred_region
    _
  $region13: #{residual_block_forward.5} parent=0 // pred_fallthru
    _
  // Predicated region
  $region14: #{residual_block_forward.5} parent=0 // pred_check
    _
  $region15: #{residual_block_forward.5} parent=0 // pred_check_branch
    %17 = sbr.rel (0) target = $region17
  $region16: #{residual_block_forward.5} parent=0 // pred_region
    _
  $region17: #{residual_block_forward.5} parent=0 // pred_fallthru
    _
  // Predicated region
  $region18: #{residual_block_forward.5} parent=0 // pred_check
    _
  $region19: #{residual_block_forward.5} parent=0 // pred_check_branch
    %19 = sbr.rel (0) target = $region21
  $region20: #{residual_block_forward.5} parent=0 // pred_region
    _
  $region21: #{residual_block_forward.5} parent=0 // pred_fallthru
    _
  %p20 = scmp.eq.s32.totalorder 0, 0
  // Predicated region
  $region22: #{residual_block_forward.5} parent=0 // pred_check
    %p21 = pneg %p20
  $region23: #{residual_block_forward.5} parent=0 // pred_check_branch
    %23 = sbr.rel (%p21) target = $region25
  $region24: #{residual_block_forward.5} parent=0 // pred_region
    %v24 = vld [vmem:[%s0] sm:$0x1]
    %v25 = vmul.f32 %v24, 0.001953125
    %v26 = vld [vmem:[%s1] sm:$0x1]
    %v27 = vmul.f32 %v26, 0.001953125
    %v28 = vmul.f32 %v25, %v25
    %v29 = vsub.f32 %v27, %v28
    %v30 = vmax.f32 %v29, 0.0
    %v31 = vld [vmem:[%s2] sm:$0x1]
    %v32 = vadd.f32 %v30, 1e-05
    %v33 = vrsqrt.pop %v32
    %v34 = vmul.f32 %v31, %v33
    %vm35 = vcmask 57344
    %36 = vst.msk [vmem:[#allocation2] sm:$0x1] %vm35, %v34
    %v37 = vld [vmem:[%s3] sm:$0x1]
    %v38 = vmul.f32 %v25, %v34
    %v39 = vsub.f32 %v37, %v38
    %40 = vst.msk [vmem:[#allocation3] sm:$0x1] %vm35, %v39
  $region25: #{residual_block_forward.5} parent=0 // pred_fallthru
    _
  %v41 = vld [vmem:[%s4] sm:$0xf]
  %v42 = vld [vmem:[%s4 + $0x4] sm:$0xf]
  %v43 = vld [vmem:[%s4 + $0x8] sm:$0xf]
  %v44 = vld [vmem:[%s4 + $0xc] sm:$0xf]
  %v45 = vld [vmem:[%s4 + $0x10] sm:$0xf]
  %v46 = vld [vmem:[%s4 + $0x14] sm:$0xf]
  %v47 = vld [vmem:[%s4 + $0x18] sm:$0xf]
  %v48 = vld [vmem:[%s4 + $0x1c] sm:$0xf]
  %v49 = vld [vmem:[%s4 + $0x20] sm:$0xf]
  %v50 = vld [vmem:[%s4 + $0x24] sm:$0xf]
  %v51 = vld [vmem:[%s4 + $0x28] sm:$0xf]
  %v52 = vld [vmem:[%s4 + $0x2c] sm:$0xf]
  %v53 = vld [vmem:[%s4 + $0x30] sm:$0xf]
  %v54 = vld [vmem:[%s4 + $0x34] sm:$0xf]
  %v55 = vld [vmem:[%s4 + $0x38] sm:$0xf]
  %v56 = vld [vmem:[%s4 + $0x3c] sm:$0xf]
  %v57 = vld [vmem:[%s4 + $0x40] sm:$0xf]
  %v58 = vld [vmem:[%s4 + $0x44] sm:$0xf]
  %v59 = vld [vmem:[%s4 + $0x48] sm:$0xf]
  %v60 = vld [vmem:[%s4 + $0x4c] sm:$0xf]
  %v61 = vld [vmem:[%s4 + $0x50] sm:$0xf]
  %v62 = vld [vmem:[%s4 + $0x54] sm:$0xf]
  %v63 = vld [vmem:[%s4 + $0x58] sm:$0xf]
  %v64 = vld [vmem:[%s4 + $0x5c] sm:$0xf]
  %v65 = vld [vmem:[%s4 + $0x60] sm:$0xf]
  %v66 = vld [vmem:[%s4 + $0x64] sm:$0xf]
  %v67 = vld [vmem:[%s4 + $0x68] sm:$0xf]
  %v68 = vld [vmem:[%s4 + $0x6c] sm:$0xf]
  %v69 = vld [vmem:[%s4 + $0x70] sm:$0xf]
  %v70 = vld [vmem:[%s4 + $0x74] sm:$0xf]
  %v71 = vld [vmem:[%s4 + $0x78] sm:$0xf]
  %v72 = vld [vmem:[%s4 + $0x7c] sm:$0xf]
  %v73 = vld [vmem:[%s4 + $0x80] sm:$0xf]
  %v74 = vld [vmem:[%s4 + $0x84] sm:$0xf]
  %v75 = vld [vmem:[%s4 + $0x88] sm:$0xf]
  %v76 = vld [vmem:[%s4 + $0x8c] sm:$0xf]
  %v77 = vld [vmem:[%s4 + $0x90] sm:$0xf]
  %v78 = vld [vmem:[%s4 + $0x94] sm:$0xf]
  %v79 = vld [vmem:[%s4 + $0x98] sm:$0xf]
  %v80 = vld [vmem:[%s4 + $0x9c] sm:$0xf]
  %v81 = vld [vmem:[%s4 + $0xa0] sm:$0xf]
  %v82 = vld [vmem:[%s4 + $0xa4] sm:$0xf]
  %v83 = vld [vmem:[%s4 + $0xa8] sm:$0xf]
  %v84 = vld [vmem:[%s4 + $0xac] sm:$0xf]
  %v85 = vld [vmem:[%s4 + $0xb0] sm:$0xf]
  %v86 = vld [vmem:[%s4 + $0xb4] sm:$0xf]
  %v87 = vld [vmem:[%s4 + $0xb8] sm:$0xf]
  %v88 = vld [vmem:[%s4 + $0xbc] sm:$0xf]
  %v89 = vld [vmem:[%s4 + $0xc0] sm:$0xf]
  %v90 = vld [vmem:[%s4 + $0xc4] sm:$0xf]
  %v91 = vld [vmem:[%s4 + $0xc8] sm:$0xf]
  %v92 = vld [vmem:[%s4 + $0xcc] sm:$0xf]
  %v93 = vld [vmem:[%s4 + $0xd0] sm:$0xf]
  %v94 = vld [vmem:[%s4 + $0xd4] sm:$0xf]
  %v95 = vld [vmem:[%s4 + $0xd8] sm:$0xf]
  %v96 = vld [vmem:[%s4 + $0xdc] sm:$0xf]
  %v97 = vld [vmem:[%s4 + $0xe0] sm:$0xf]
  %v98 = vld [vmem:[%s4 + $0xe4] sm:$0xf]
  %v99 = vld [vmem:[%s4 + $0xe8] sm:$0xf]
  %v100 = vld [vmem:[%s4 + $0xec] sm:$0xf]
  %v101 = vld [vmem:[%s4 + $0xf0] sm:$0xf]
  %v102 = vld [vmem:[%s4 + $0xf4] sm:$0xf]
  %v103 = vld [vmem:[%s4 + $0xf8] sm:$0xf]
  %v104 = vld [vmem:[%s4 + $0xfc] sm:$0xf]
  %v105 = vunpack.c.l.bf16 %v41
  %v106 = vunpack.c.l.bf16 %v42
  %v107 = vunpack.c.l.bf16 %v43
  %v108 = vunpack.c.l.bf16 %v44
  %v109 = vunpack.c.l.bf16 %v45
  %v110 = vunpack.c.l.bf16 %v46
  %v111 = vunpack.c.l.bf16 %v47
  %v112 = vunpack.c.l.bf16 %v48
  %v113 = vunpack.c.l.bf16 %v49
  %v114 = vunpack.c.l.bf16 %v50
  %v115 = vunpack.c.l.bf16 %v51
  %v116 = vunpack.c.l.bf16 %v52
  %v117 = vunpack.c.l.bf16 %v53
  %v118 = vunpack.c.l.bf16 %v54
  %v119 = vunpack.c.l.bf16 %v55
  %v120 = vunpack.c.l.bf16 %v56
  %v121 = vunpack.c.l.bf16 %v57
  %v122 = vunpack.c.l.bf16 %v58
  %v123 = vunpack.c.l.bf16 %v59
  %v124 = vunpack.c.l.bf16 %v60
  %v125 = vunpack.c.l.bf16 %v61
  %v126 = vunpack.c.l.bf16 %v62
  %v127 = vunpack.c.l.bf16 %v63
  %v128 = vunpack.c.l.bf16 %v64
  %v129 = vunpack.c.l.bf16 %v65
  %v130 = vunpack.c.l.bf16 %v66
  %v131 = vunpack.c.l.bf16 %v67
  %v132 = vunpack.c.l.bf16 %v68
  %v133 = vunpack.c.l.bf16 %v69
  %v134 = vunpack.c.l.bf16 %v70
  %v135 = vunpack.c.l.bf16 %v71
  %v136 = vunpack.c.l.bf16 %v72
  %v137 = vunpack.c.l.bf16 %v73
  %v138 = vunpack.c.l.bf16 %v74
  %v139 = vunpack.c.l.bf16 %v75
  %v140 = vunpack.c.l.bf16 %v76
  %v141 = vunpack.c.l.bf16 %v77
  %v142 = vunpack.c.l.bf16 %v78
  %v143 = vunpack.c.l.bf16 %v79
  %v144 = vunpack.c.l.bf16 %v80
  %v145 = vunpack.c.l.bf16 %v81
  %v146 = vunpack.c.l.bf16 %v82
  %v147 = vunpack.c.l.bf16 %v83
  %v148 = vunpack.c.l.bf16 %v84
  %v149 = vunpack.c.l.bf16 %v85
  %v150 = vunpack.c.l.bf16 %v86
  %v151 = vunpack.c.l.bf16 %v87
  %v152 = vunpack.c.l.bf16 %v88
  %v153 = vunpack.c.l.bf16 %v89
  %v154 = vunpack.c.l.bf16 %v90
  %v155 = vunpack.c.l.bf16 %v91
  %v156 = vunpack.c.l.bf16 %v92
  %v157 = vunpack.c.l.bf16 %v93
  %v158 = vunpack.c.l.bf16 %v94
  %v159 = vunpack.c.l.bf16 %v95
  %v160 = vunpack.c.l.bf16 %v96
  %v161 = vunpack.c.l.bf16 %v97
  %v162 = vunpack.c.l.bf16 %v98
  %v163 = vunpack.c.l.bf16 %v99
  %v164 = vunpack.c.l.bf16 %v100
  %v165 = vunpack.c.l.bf16 %v101
  %v166 = vunpack.c.l.bf16 %v102
  %v167 = vunpack.c.l.bf16 %v103
  %v168 = vunpack.c.l.bf16 %v104
  %v169 = vld [vmem:[#allocation2] sm:$0x1]
  %v171 = vlaneseq
  %v172 = vshrl.u32 %v171, 7
  %v173 = vsub.s32 0, %v172
  %v174 = vrot.slane %v169, %v173
  %v176 = vmul.f32 %v105, %v174
  %v177 = vmul.f32 %v106, %v174
  %v178 = vmul.f32 %v107, %v174
  %v179 = vmul.f32 %v108, %v174
  %v180 = vmul.f32 %v109, %v174
  %v181 = vmul.f32 %v110, %v174
  %v182 = vmul.f32 %v111, %v174
  %v183 = vmul.f32 %v112, %v174
  %v184 = vmul.f32 %v113, %v174
  %v185 = vmul.f32 %v114, %v174
  %v186 = vmul.f32 %v115, %v174
  %v187 = vmul.f32 %v116, %v174
  %v188 = vmul.f32 %v117, %v174
  %v189 = vmul.f32 %v118, %v174
  %v190 = vmul.f32 %v119, %v174
  %v191 = vmul.f32 %v120, %v174
  %v192 = vmul.f32 %v121, %v174
  %v193 = vmul.f32 %v122, %v174
  %v194 = vmul.f32 %v123, %v174
  %v195 = vmul.f32 %v124, %v174
  %v196 = vmul.f32 %v125, %v174
  %v197 = vmul.f32 %v126, %v174
  %v198 = vmul.f32 %v127, %v174
  %v199 = vmul.f32 %v128, %v174
  %v200 = vmul.f32 %v129, %v174
  %v201 = vmul.f32 %v130, %v174
  %v202 = vmul.f32 %v131, %v174
  %v203 = vmul.f32 %v132, %v174
  %v204 = vmul.f32 %v133, %v174
  %v205 = vmul.f32 %v134, %v174
  %v206 = vmul.f32 %v135, %v174
  %v207 = vmul.f32 %v136, %v174
  %v208 = vmul.f32 %v137, %v174
  %v209 = vmul.f32 %v138, %v174
  %v210 = vmul.f32 %v139, %v174
  %v211 = vmul.f32 %v140, %v174
  %v212 = vmul.f32 %v141, %v174
  %v213 = vmul.f32 %v142, %v174
  %v214 = vmul.f32 %v143, %v174
  %v215 = vmul.f32 %v144, %v174
  %v216 = vmul.f32 %v145, %v174
  %v217 = vmul.f32 %v146, %v174
  %v218 = vmul.f32 %v147, %v174
  %v219 = vmul.f32 %v148, %v174
  %v220 = vmul.f32 %v149, %v174
  %v221 = vmul.f32 %v150, %v174
  %v222 = vmul.f32 %v151, %v174
  %v223 = vmul.f32 %v152, %v174
  %v224 = vmul.f32 %v153, %v174
  %v225 = vmul.f32 %v154, %v174
  %v226 = vmul.f32 %v155, %v174
  %v227 = vmul.f32 %v156, %v174
  %v228 = vmul.f32 %v157, %v174
  %v229 = vmul.f32 %v158, %v174
  %v230 = vmul.f32 %v159, %v174
  %v231 = vmul.f32 %v160, %v174
  %v232 = vmul.f32 %v161, %v174
  %v233 = vmul.f32 %v162, %v174
  %v234 = vmul.f32 %v163, %v174
  %v235 = vmul.f32 %v164, %v174
  %v236 = vmul.f32 %v165, %v174
  %v237 = vmul.f32 %v166, %v174
  %v238 = vmul.f32 %v167, %v174
  %v239 = vmul.f32 %v168, %v174
  %v240 = vld [vmem:[#allocation3] sm:$0x1]
  %v242 = vlaneseq
  %v243 = vshrl.u32 %v242, 7
  %v244 = vsub.s32 0, %v243
  %v245 = vrot.slane %v240, %v244
  %v247 = vadd.f32 %v176, %v245
  %v248 = vadd.f32 %v177, %v245
  %v249 = vadd.f32 %v178, %v245
  %v250 = vadd.f32 %v179, %v245
  %v251 = vadd.f32 %v180, %v245
  %v252 = vadd.f32 %v181, %v245
  %v253 = vadd.f32 %v182, %v245
  %v254 = vadd.f32 %v183, %v245
  %v255 = vadd.f32 %v184, %v245
  %v256 = vadd.f32 %v185, %v245
  %v257 = vadd.f32 %v186, %v245
  %v258 = vadd.f32 %v187, %v245
  %v259 = vadd.f32 %v188, %v245
  %v260 = vadd.f32 %v189, %v245
  %v261 = vadd.f32 %v190, %v245
  %v262 = vadd.f32 %v191, %v245
  %v263 = vadd.f32 %v192, %v245
  %v264 = vadd.f32 %v193, %v245
  %v265 = vadd.f32 %v194, %v245
  %v266 = vadd.f32 %v195, %v245
  %v267 = vadd.f32 %v196, %v245
  %v268 = vadd.f32 %v197, %v245
  %v269 = vadd.f32 %v198, %v245
  %v270 = vadd.f32 %v199, %v245
  %v271 = vadd.f32 %v200, %v245
  %v272 = vadd.f32 %v201, %v245
  %v273 = vadd.f32 %v202, %v245
  %v274 = vadd.f32 %v203, %v245
  %v275 = vadd.f32 %v204, %v245
  %v276 = vadd.f32 %v205, %v245
  %v277 = vadd.f32 %v206, %v245
  %v278 = vadd.f32 %v207, %v245
  %v279 = vadd.f32 %v208, %v245
  %v280 = vadd.f32 %v209, %v245
  %v281 = vadd.f32 %v210, %v245
  %v282 = vadd.f32 %v211, %v245
  %v283 = vadd.f32 %v212, %v245
  %v284 = vadd.f32 %v213, %v245
  %v285 = vadd.f32 %v214, %v245
  %v286 = vadd.f32 %v215, %v245
  %v287 = vadd.f32 %v216, %v245
  %v288 = vadd.f32 %v217, %v245
  %v289 = vadd.f32 %v218, %v245
  %v290 = vadd.f32 %v219, %v245
  %v291 = vadd.f32 %v220, %v245
  %v292 = vadd.f32 %v221, %v245
  %v293 = vadd.f32 %v222, %v245
  %v294 = vadd.f32 %v223, %v245
  %v295 = vadd.f32 %v224, %v245
  %v296 = vadd.f32 %v225, %v245
  %v297 = vadd.f32 %v226, %v245
  %v298 = vadd.f32 %v227, %v245
  %v299 = vadd.f32 %v228, %v245
  %v300 = vadd.f32 %v229, %v245
  %v301 = vadd.f32 %v230, %v245
  %v302 = vadd.f32 %v231, %v245
  %v303 = vadd.f32 %v232, %v245
  %v304 = vadd.f32 %v233, %v245
  %v305 = vadd.f32 %v234, %v245
  %v306 = vadd.f32 %v235, %v245
  %v307 = vadd.f32 %v236, %v245
  %v308 = vadd.f32 %v237, %v245
  %v309 = vadd.f32 %v238, %v245
  %v310 = vadd.f32 %v239, %v245
  %v311 = vmax.f32 %v247, 0.0
  %v312 = vmax.f32 %v248, 0.0
  %v313 = vmax.f32 %v249, 0.0
  %v314 = vmax.f32 %v250, 0.0
  %v315 = vmax.f32 %v251, 0.0
  %v316 = vmax.f32 %v252, 0.0
  %v317 = vmax.f32 %v253, 0.0
  %v318 = vmax.f32 %v254, 0.0
  %v319 = vmax.f32 %v255, 0.0
  %v320 = vmax.f32 %v256, 0.0
  %v321 = vmax.f32 %v257, 0.0
  %v322 = vmax.f32 %v258, 0.0
  %v323 = vmax.f32 %v259, 0.0
  %v324 = vmax.f32 %v260, 0.0
  %v325 = vmax.f32 %v261, 0.0
  %v326 = vmax.f32 %v262, 0.0
  %v327 = vmax.f32 %v263, 0.0
  %v328 = vmax.f32 %v264, 0.0
  %v329 = vmax.f32 %v265, 0.0
  %v330 = vmax.f32 %v266, 0.0
  %v331 = vmax.f32 %v267, 0.0
  %v332 = vmax.f32 %v268, 0.0
  %v333 = vmax.f32 %v269, 0.0
  %v334 = vmax.f32 %v270, 0.0
  %v335 = vmax.f32 %v271, 0.0
  %v336 = vmax.f32 %v272, 0.0
  %v337 = vmax.f32 %v273, 0.0
  %v338 = vmax.f32 %v274, 0.0
  %v339 = vmax.f32 %v275, 0.0
  %v340 = vmax.f32 %v276, 0.0
  %v341 = vmax.f32 %v277, 0.0
  %v342 = vmax.f32 %v278, 0.0
  %v343 = vmax.f32 %v279, 0.0
  %v344 = vmax.f32 %v280, 0.0
  %v345 = vmax.f32 %v281, 0.0
  %v346 = vmax.f32 %v282, 0.0
  %v347 = vmax.f32 %v283, 0.0
  %v348 = vmax.f32 %v284, 0.0
  %v349 = vmax.f32 %v285, 0.0
  %v350 = vmax.f32 %v286, 0.0
  %v351 = vmax.f32 %v287, 0.0
  %v352 = vmax.f32 %v288, 0.0
  %v353 = vmax.f32 %v289, 0.0
  %v354 = vmax.f32 %v290, 0.0
  %v355 = vmax.f32 %v291, 0.0
  %v356 = vmax.f32 %v292, 0.0
  %v357 = vmax.f32 %v293, 0.0
  %v358 = vmax.f32 %v294, 0.0
  %v359 = vmax.f32 %v295, 0.0
  %v360 = vmax.f32 %v296, 0.0
  %v361 = vmax.f32 %v297, 0.0
  %v362 = vmax.f32 %v298, 0.0
  %v363 = vmax.f32 %v299, 0.0
  %v364 = vmax.f32 %v300, 0.0
  %v365 = vmax.f32 %v301, 0.0
  %v366 = vmax.f32 %v302, 0.0
  %v367 = vmax.f32 %v303, 0.0
  %v368 = vmax.f32 %v304, 0.0
  %v369 = vmax.f32 %v305, 0.0
  %v370 = vmax.f32 %v306, 0.0
  %v371 = vmax.f32 %v307, 0.0
  %v372 = vmax.f32 %v308, 0.0
  %v373 = vmax.f32 %v309, 0.0
  %v374 = vmax.f32 %v310, 0.0
  %v375 = vpack.c.bf16 %v312, %v311
  %v376 = vpack.c.bf16 %v314, %v313
  %v377 = vpack.c.bf16 %v316, %v315
  %v378 = vpack.c.bf16 %v318, %v317
  %v379 = vpack.c.bf16 %v320, %v319
  %v380 = vpack.c.bf16 %v322, %v321
  %v381 = vpack.c.bf16 %v324, %v323
  %v382 = vpack.c.bf16 %v326, %v325
  %v383 = vpack.c.bf16 %v328, %v327
  %v384 = vpack.c.bf16 %v330, %v329
  %v385 = vpack.c.bf16 %v332, %v331
  %v386 = vpack.c.bf16 %v334, %v333
  %v387 = vpack.c.bf16 %v336, %v335
  %v388 = vpack.c.bf16 %v338, %v337
  %v389 = vpack.c.bf16 %v340, %v339
  %v390 = vpack.c.bf16 %v342, %v341
  %v391 = vpack.c.bf16 %v344, %v343
  %v392 = vpack.c.bf16 %v346, %v345
  %v393 = vpack.c.bf16 %v348, %v347
  %v394 = vpack.c.bf16 %v350, %v349
  %v395 = vpack.c.bf16 %v352, %v351
  %v396 = vpack.c.bf16 %v354, %v353
  %v397 = vpack.c.bf16 %v356, %v355
  %v398 = vpack.c.bf16 %v358, %v357
  %v399 = vpack.c.bf16 %v360, %v359
  %v400 = vpack.c.bf16 %v362, %v361
  %v401 = vpack.c.bf16 %v364, %v363
  %v402 = vpack.c.bf16 %v366, %v365
  %v403 = vpack.c.bf16 %v368, %v367
  %v404 = vpack.c.bf16 %v370, %v369
  %v405 = vpack.c.bf16 %v372, %v371
  %v406 = vpack.c.bf16 %v374, %v373
  %v439 = vunpack.c.l.b16 %v375
  %v440 = vunpack.c.h.b16 %v375
  %v441 = vunpack.c.l.b16 %v376
  %v442 = vunpack.c.h.b16 %v376
  %v443 = vunpack.c.l.b16 %v377
  %v444 = vunpack.c.h.b16 %v377
  %v445 = vunpack.c.l.b16 %v378
  %v446 = vunpack.c.h.b16 %v378
  %v447 = vunpack.c.l.b16 %v379
  %v448 = vunpack.c.h.b16 %v379
  %v449 = vunpack.c.l.b16 %v380
  %v450 = vunpack.c.h.b16 %v380
  %v451 = vunpack.c.l.b16 %v381
  %v452 = vunpack.c.h.b16 %v381
  %v453 = vunpack.c.l.b16 %v382
  %v454 = vunpack.c.h.b16 %v382
  %v455 = vunpack.c.l.b16 %v383
  %v456 = vunpack.c.h.b16 %v383
  %v457 = vunpack.c.l.b16 %v384
  %v458 = vunpack.c.h.b16 %v384
  %v459 = vunpack.c.l.b16 %v385
  %v460 = vunpack.c.h.b16 %v385
  %v461 = vunpack.c.l.b16 %v386
  %v462 = vunpack.c.h.b16 %v386
  %v463 = vunpack.c.l.b16 %v387
  %v464 = vunpack.c.h.b16 %v387
  %v465 = vunpack.c.l.b16 %v388
  %v466 = vunpack.c.h.b16 %v388
  %v467 = vunpack.c.l.b16 %v389
  %v468 = vunpack.c.h.b16 %v389
  %v469 = vunpack.c.l.b16 %v390
  %v470 = vunpack.c.h.b16 %v390
  %v471 = vunpack.c.l.b16 %v391
  %v472 = vunpack.c.h.b16 %v391
  %v473 = vunpack.c.l.b16 %v392
  %v474 = vunpack.c.h.b16 %v392
  %v475 = vunpack.c.l.b16 %v393
  %v476 = vunpack.c.h.b16 %v393
  %v477 = vunpack.c.l.b16 %v394
  %v478 = vunpack.c.h.b16 %v394
  %v479 = vunpack.c.l.b16 %v395
  %v480 = vunpack.c.h.b16 %v395
  %v481 = vunpack.c.l.b16 %v396
  %v482 = vunpack.c.h.b16 %v396
  %v483 = vunpack.c.l.b16 %v397
  %v484 = vunpack.c.h.b16 %v397
  %v485 = vunpack.c.l.b16 %v398
  %v486 = vunpack.c.h.b16 %v398
  %v487 = vunpack.c.l.b16 %v399
  %v488 = vunpack.c.h.b16 %v399
  %v489 = vunpack.c.l.b16 %v400
  %v490 = vunpack.c.h.b16 %v400
  %v491 = vunpack.c.l.b16 %v401
  %v492 = vunpack.c.h.b16 %v401
  %v493 = vunpack.c.l.b16 %v402
  %v494 = vunpack.c.h.b16 %v402
  %v495 = vunpack.c.l.b16 %v403
  %v496 = vunpack.c.h.b16 %v403
  %v497 = vunpack.c.l.b16 %v404
  %v498 = vunpack.c.h.b16 %v404
  %v499 = vunpack.c.l.b16 %v405
  %v500 = vunpack.c.h.b16 %v405
  %v501 = vunpack.c.l.b16 %v406
  %v502 = vunpack.c.h.b16 %v406
  %v503 = vpack.c.b16 %v439, %v439
  %v504 = vpack.c.b16 %v440, %v440
  %v505 = vpack.c.b16 %v441, %v441
  %v506 = vpack.c.b16 %v442, %v442
  %v507 = vpack.c.b16 %v443, %v443
  %v508 = vpack.c.b16 %v444, %v444
  %v509 = vpack.c.b16 %v445, %v445
  %v510 = vpack.c.b16 %v446, %v446
  %v511 = vpack.c.b16 %v447, %v447
  %v512 = vpack.c.b16 %v448, %v448
  %v513 = vpack.c.b16 %v449, %v449
  %v514 = vpack.c.b16 %v450, %v450
  %v515 = vpack.c.b16 %v451, %v451
  %v516 = vpack.c.b16 %v452, %v452
  %v517 = vpack.c.b16 %v453, %v453
  %v518 = vpack.c.b16 %v454, %v454
  %v519 = vpack.c.b16 %v455, %v455
  %v520 = vpack.c.b16 %v456, %v456
  %v521 = vpack.c.b16 %v457, %v457
  %v522 = vpack.c.b16 %v458, %v458
  %v523 = vpack.c.b16 %v459, %v459
  %v524 = vpack.c.b16 %v460, %v460
  %v525 = vpack.c.b16 %v461, %v461
  %v526 = vpack.c.b16 %v462, %v462
  %v527 = vpack.c.b16 %v463, %v463
  %v528 = vpack.c.b16 %v464, %v464
  %v529 = vpack.c.b16 %v465, %v465
  %v530 = vpack.c.b16 %v466, %v466
  %v531 = vpack.c.b16 %v467, %v467
  %v532 = vpack.c.b16 %v468, %v468
  %v533 = vpack.c.b16 %v469, %v469
  %v534 = vpack.c.b16 %v470, %v470
  %v535 = vpack.c.b16 %v471, %v471
  %v536 = vpack.c.b16 %v472, %v472
  %v537 = vpack.c.b16 %v473, %v473
  %v538 = vpack.c.b16 %v474, %v474
  %v539 = vpack.c.b16 %v475, %v475
  %v540 = vpack.c.b16 %v476, %v476
  %v541 = vpack.c.b16 %v477, %v477
  %v542 = vpack.c.b16 %v478, %v478
  %v543 = vpack.c.b16 %v479, %v479
  %v544 = vpack.c.b16 %v480, %v480
  %v545 = vpack.c.b16 %v481, %v481
  %v546 = vpack.c.b16 %v482, %v482
  %v547 = vpack.c.b16 %v483, %v483
  %v548 = vpack.c.b16 %v484, %v484
  %v549 = vpack.c.b16 %v485, %v485
  %v550 = vpack.c.b16 %v486, %v486
  %v551 = vpack.c.b16 %v487, %v487
  %v552 = vpack.c.b16 %v488, %v488
  %v553 = vpack.c.b16 %v489, %v489
  %v554 = vpack.c.b16 %v490, %v490
  %v555 = vpack.c.b16 %v491, %v491
  %v556 = vpack.c.b16 %v492, %v492
  %v557 = vpack.c.b16 %v493, %v493
  %v558 = vpack.c.b16 %v494, %v494
  %v559 = vpack.c.b16 %v495, %v495
  %v560 = vpack.c.b16 %v496, %v496
  %v561 = vpack.c.b16 %v497, %v497
  %v562 = vpack.c.b16 %v498, %v498
  %v563 = vpack.c.b16 %v499, %v499
  %v564 = vpack.c.b16 %v500, %v500
  %v565 = vpack.c.b16 %v501, %v501
  %v566 = vpack.c.b16 %v502, %v502
  %vm631 = vcmask 60416
  %632 = vst.msk [vmem:[%s5] sm:$0xf] %vm631, %v503
  %633 = vst.msk [vmem:[%s5 + $0x4] sm:$0xf] %vm631, %v504
  %634 = vst.msk [vmem:[%s5 + $0x8] sm:$0xf] %vm631, %v505
  %635 = vst.msk [vmem:[%s5 + $0xc] sm:$0xf] %vm631, %v506
  %636 = vst.msk [vmem:[%s5 + $0x10] sm:$0xf] %vm631, %v507
  %637 = vst.msk [vmem:[%s5 + $0x14] sm:$0xf] %vm631, %v508
  %638 = vst.msk [vmem:[%s5 + $0x18] sm:$0xf] %vm631, %v509
  %639 = vst.msk [vmem:[%s5 + $0x1c] sm:$0xf] %vm631, %v510
  %640 = vst.msk [vmem:[%s5 + $0x20] sm:$0xf] %vm631, %v511
  %641 = vst.msk [vmem:[%s5 + $0x24] sm:$0xf] %vm631, %v512
  %642 = vst.msk [vmem:[%s5 + $0x28] sm:$0xf] %vm631, %v513
  %643 = vst.msk [vmem:[%s5 + $0x2c] sm:$0xf] %vm631, %v514
  %644 = vst.msk [vmem:[%s5 + $0x30] sm:$0xf] %vm631, %v515
  %645 = vst.msk [vmem:[%s5 + $0x34] sm:$0xf] %vm631, %v516
  %646 = vst.msk [vmem:[%s5 + $0x38] sm:$0xf] %vm631, %v517
  %647 = vst.msk [vmem:[%s5 + $0x3c] sm:$0xf] %vm631, %v518
  %648 = vst.msk [vmem:[%s5 + $0x40] sm:$0xf] %vm631, %v519
  %649 = vst.msk [vmem:[%s5 + $0x44] sm:$0xf] %vm631, %v520
  %650 = vst.msk [vmem:[%s5 + $0x48] sm:$0xf] %vm631, %v521
  %651 = vst.msk [vmem:[%s5 + $0x4c] sm:$0xf] %vm631, %v522
  %652 = vst.msk [vmem:[%s5 + $0x50] sm:$0xf] %vm631, %v523
  %653 = vst.msk [vmem:[%s5 + $0x54] sm:$0xf] %vm631, %v524
  %654 = vst.msk [vmem:[%s5 + $0x58] sm:$0xf] %vm631, %v525
  %655 = vst.msk [vmem:[%s5 + $0x5c] sm:$0xf] %vm631, %v526
  %656 = vst.msk [vmem:[%s5 + $0x60] sm:$0xf] %vm631, %v527
  %657 = vst.msk [vmem:[%s5 + $0x64] sm:$0xf] %vm631, %v528
  %658 = vst.msk [vmem:[%s5 + $0x68] sm:$0xf] %vm631, %v529
  %659 = vst.msk [vmem:[%s5 + $0x6c] sm:$0xf] %vm631, %v530
  %660 = vst.msk [vmem:[%s5 + $0x70] sm:$0xf] %vm631, %v531
  %661 = vst.msk [vmem:[%s5 + $0x74] sm:$0xf] %vm631, %v532
  %662 = vst.msk [vmem:[%s5 + $0x78] sm:$0xf] %vm631, %v533
  %663 = vst.msk [vmem:[%s5 + $0x7c] sm:$0xf] %vm631, %v534
  %664 = vst.msk [vmem:[%s5 + $0x80] sm:$0xf] %vm631, %v535
  %665 = vst.msk [vmem:[%s5 + $0x84] sm:$0xf] %vm631, %v536
  %666 = vst.msk [vmem:[%s5 + $0x88] sm:$0xf] %vm631, %v537
  %667 = vst.msk [vmem:[%s5 + $0x8c] sm:$0xf] %vm631, %v538
  %668 = vst.msk [vmem:[%s5 + $0x90] sm:$0xf] %vm631, %v539
  %669 = vst.msk [vmem:[%s5 + $0x94] sm:$0xf] %vm631, %v540
  %670 = vst.msk [vmem:[%s5 + $0x98] sm:$0xf] %vm631, %v541
  %671 = vst.msk [vmem:[%s5 + $0x9c] sm:$0xf] %vm631, %v542
  %672 = vst.msk [vmem:[%s5 + $0xa0] sm:$0xf] %vm631, %v543
  %673 = vst.msk [vmem:[%s5 + $0xa4] sm:$0xf] %vm631, %v544
  %674 = vst.msk [vmem:[%s5 + $0xa8] sm:$0xf] %vm631, %v545
  %675 = vst.msk [vmem:[%s5 + $0xac] sm:$0xf] %vm631, %v546
  %676 = vst.msk [vmem:[%s5 + $0xb0] sm:$0xf] %vm631, %v547
  %677 = vst.msk [vmem:[%s5 + $0xb4] sm:$0xf] %vm631, %v548
  %678 = vst.msk [vmem:[%s5 + $0xb8] sm:$0xf] %vm631, %v549
  %679 = vst.msk [vmem:[%s5 + $0xbc] sm:$0xf] %vm631, %v550
  %680 = vst.msk [vmem:[%s5 + $0xc0] sm:$0xf] %vm631, %v551
  %681 = vst.msk [vmem:[%s5 + $0xc4] sm:$0xf] %vm631, %v552
  %682 = vst.msk [vmem:[%s5 + $0xc8] sm:$0xf] %vm631, %v553
  %683 = vst.msk [vmem:[%s5 + $0xcc] sm:$0xf] %vm631, %v554
  %684 = vst.msk [vmem:[%s5 + $0xd0] sm:$0xf] %vm631, %v555
  %685 = vst.msk [vmem:[%s5 + $0xd4] sm:$0xf] %vm631, %v556
  %686 = vst.msk [vmem:[%s5 + $0xd8] sm:$0xf] %vm631, %v557
  %687 = vst.msk [vmem:[%s5 + $0xdc] sm:$0xf] %vm631, %v558
  %688 = vst.msk [vmem:[%s5 + $0xe0] sm:$0xf] %vm631, %v559
  %689 = vst.msk [vmem:[%s5 + $0xe4] sm:$0xf] %vm631, %v560
  %690 = vst.msk [vmem:[%s5 + $0xe8] sm:$0xf] %vm631, %v561
  %691 = vst.msk [vmem:[%s5 + $0xec] sm:$0xf] %vm631, %v562
  %692 = vst.msk [vmem:[%s5 + $0xf0] sm:$0xf] %vm631, %v563
  %693 = vst.msk [vmem:[%s5 + $0xf4] sm:$0xf] %vm631, %v564
  %694 = vst.msk [vmem:[%s5 + $0xf8] sm:$0xf] %vm631, %v565
  %695 = vst.msk [vmem:[%s5 + $0xfc] sm:$0xf] %vm631, %v566
  // Predicated region
  $region26: #{residual_block_forward.5} parent=0 // pred_check
    _
  $region27: #{residual_block_forward.5} parent=0 // pred_check_branch
    %697 = sbr.rel (0) target = $region29
  $region28: #{residual_block_forward.5} parent=0 // pred_region
    _
  $region29: #{residual_block_forward.5} parent=0 // pred_fallthru
    _
  // Predicated region
  $region30: #{residual_block_forward.5} parent=0 // pred_check
    _
  $region31: #{residual_block_forward.5} parent=0 // pred_check_branch
    %699 = sbr.rel (0) target = $region33
  $region32: #{residual_block_forward.5} parent=0 // pred_region
    _
  $region33: #{residual_block_forward.5} parent=0 // pred_fallthru
    _

// kernel: residual_block_forward.7
$region0: #{residual_block_forward.7}
  #allocation0 [shape = 'u32[]', space=smem, size = 0x4, offset = 0x4, fixed_abs, tag = 'smem constant byte address 0x4 - core index']
  #allocation1 [shape = 'u32[144,128]{1,0:T(1,128)}', space=vmem, size = 0x12000, scoped, tag = 'internal scratch']
  #allocation2 [shape = 'f32[1,8]{1,0:T(1,128)}', space=vmem, size = 0x200, scoped, tag = 'scratch operand']
  #allocation3 [shape = 'f32[1,8]{1,0:T(1,128)}', space=vmem, size = 0x200, scoped, tag = 'scratch operand']
  %s0 = inlined_call_operand.vmem [shape: f32[1,8], index: 0, kind: input, shape index: {}]
  %s1 = inlined_call_operand.vmem [shape: f32[1,8], index: 1, kind: input, shape index: {}]
  %s2 = inlined_call_operand.vmem [shape: f32[1,8], index: 2, kind: input, shape index: {}]
  %s3 = inlined_call_operand.vmem [shape: f32[1,8], index: 3, kind: input, shape index: {}]
  %s4 = inlined_call_operand.vmem [shape: bf16[512,8], index: 4, kind: input, shape index: {}]
  %s5 = inlined_call_operand.vmem [shape: bf16[512,8], index: 5, kind: input, shape index: {}]
  %s6 = inlined_call_operand.vmem [shape: f32[512,8], index: 6, kind: output, shape index: {}]
  %s7 = sld [smem:[#allocation0]]
  $region38: #{residual_block_forward.7} parent=0
    _
  %s9 = ssub.s32 1, %s7
  %s10 = scalar_select 0, %s9, %s7
  // Predicated region
  $region2: #{residual_block_forward.7} parent=0 // pred_check
    _
  $region3: #{residual_block_forward.7} parent=0 // pred_check_branch
    %12 = sbr.rel (0) target = $region5
  $region4: #{residual_block_forward.7} parent=0 // pred_region
    _
  $region5: #{residual_block_forward.7} parent=0 // pred_fallthru
    _
  // Predicated region
  $region6: #{residual_block_forward.7} parent=0 // pred_check
    _
  $region7: #{residual_block_forward.7} parent=0 // pred_check_branch
    %14 = sbr.rel (0) target = $region9
  $region8: #{residual_block_forward.7} parent=0 // pred_region
    _
  $region9: #{residual_block_forward.7} parent=0 // pred_fallthru
    _
  // Predicated region
  $region10: #{residual_block_forward.7} parent=0 // pred_check
    _
  $region11: #{residual_block_forward.7} parent=0 // pred_check_branch
    %16 = sbr.rel (0) target = $region13
  $region12: #{residual_block_forward.7} parent=0 // pred_region
    _
  $region13: #{residual_block_forward.7} parent=0 // pred_fallthru
    _
  // Predicated region
  $region14: #{residual_block_forward.7} parent=0 // pred_check
    _
  $region15: #{residual_block_forward.7} parent=0 // pred_check_branch
    %18 = sbr.rel (0) target = $region17
  $region16: #{residual_block_forward.7} parent=0 // pred_region
    _
  $region17: #{residual_block_forward.7} parent=0 // pred_fallthru
    _
  // Predicated region
  $region18: #{residual_block_forward.7} parent=0 // pred_check
    _
  $region19: #{residual_block_forward.7} parent=0 // pred_check_branch
    %20 = sbr.rel (0) target = $region21
  $region20: #{residual_block_forward.7} parent=0 // pred_region
    _
  $region21: #{residual_block_forward.7} parent=0 // pred_fallthru
    _
  // Predicated region
  $region22: #{residual_block_forward.7} parent=0 // pred_check
    _
  $region23: #{residual_block_forward.7} parent=0 // pred_check_branch
    %22 = sbr.rel (0) target = $region25
  $region24: #{residual_block_forward.7} parent=0 // pred_region
    _
  $region25: #{residual_block_forward.7} parent=0 // pred_fallthru
    _
  %p23 = scmp.eq.s32.totalorder 0, 0
  // Predicated region
  $region26: #{residual_block_forward.7} parent=0 // pred_check
    %p24 = pneg %p23
  $region27: #{residual_block_forward.7} parent=0 // pred_check_branch
    %26 = sbr.rel (%p24) target = $region29
  $region28: #{residual_block_forward.7} parent=0 // pred_region
    %v27 = vld [vmem:[%s0] sm:$0x1]
    %v28 = vmul.f32 %v27, 0.001953125
    %v29 = vld [vmem:[%s1] sm:$0x1]
    %v30 = vmul.f32 %v29, 0.001953125
    %v31 = vmul.f32 %v28, %v28
    %v32 = vsub.f32 %v30, %v31
    %v33 = vmax.f32 %v32, 0.0
    %v34 = vld [vmem:[%s2] sm:$0x1]
    %v35 = vadd.f32 %v33, 1e-05
    %v36 = vrsqrt.pop %v35
    %v37 = vmul.f32 %v34, %v36
    %vm38 = vcmask 57344
    %39 = vst.msk [vmem:[#allocation2] sm:$0x1] %vm38, %v37
    %v40 = vld [vmem:[%s3] sm:$0x1]
    %v41 = vmul.f32 %v28, %v37
    %v42 = vsub.f32 %v40, %v41
    %43 = vst.msk [vmem:[#allocation3] sm:$0x1] %vm38, %v42
  $region29: #{residual_block_forward.7} parent=0 // pred_fallthru
    _
  %v44 = vld [vmem:[%s4] sm:$0xf]
  %v45 = vld [vmem:[%s4 + $0x4] sm:$0xf]
  %v46 = vld [vmem:[%s4 + $0x8] sm:$0xf]
  %v47 = vld [vmem:[%s4 + $0xc] sm:$0xf]
  %v48 = vld [vmem:[%s4 + $0x10] sm:$0xf]
  %v49 = vld [vmem:[%s4 + $0x14] sm:$0xf]
  %v50 = vld [vmem:[%s4 + $0x18] sm:$0xf]
  %v51 = vld [vmem:[%s4 + $0x1c] sm:$0xf]
  %v52 = vld [vmem:[%s4 + $0x20] sm:$0xf]
  %v53 = vld [vmem:[%s4 + $0x24] sm:$0xf]
  %v54 = vld [vmem:[%s4 + $0x28] sm:$0xf]
  %v55 = vld [vmem:[%s4 + $0x2c] sm:$0xf]
  %v56 = vld [vmem:[%s4 + $0x30] sm:$0xf]
  %v57 = vld [vmem:[%s4 + $0x34] sm:$0xf]
  %v58 = vld [vmem:[%s4 + $0x38] sm:$0xf]
  %v59 = vld [vmem:[%s4 + $0x3c] sm:$0xf]
  %v60 = vld [vmem:[%s4 + $0x40] sm:$0xf]
  %v61 = vld [vmem:[%s4 + $0x44] sm:$0xf]
  %v62 = vld [vmem:[%s4 + $0x48] sm:$0xf]
  %v63 = vld [vmem:[%s4 + $0x4c] sm:$0xf]
  %v64 = vld [vmem:[%s4 + $0x50] sm:$0xf]
  %v65 = vld [vmem:[%s4 + $0x54] sm:$0xf]
  %v66 = vld [vmem:[%s4 + $0x58] sm:$0xf]
  %v67 = vld [vmem:[%s4 + $0x5c] sm:$0xf]
  %v68 = vld [vmem:[%s4 + $0x60] sm:$0xf]
  %v69 = vld [vmem:[%s4 + $0x64] sm:$0xf]
  %v70 = vld [vmem:[%s4 + $0x68] sm:$0xf]
  %v71 = vld [vmem:[%s4 + $0x6c] sm:$0xf]
  %v72 = vld [vmem:[%s4 + $0x70] sm:$0xf]
  %v73 = vld [vmem:[%s4 + $0x74] sm:$0xf]
  %v74 = vld [vmem:[%s4 + $0x78] sm:$0xf]
  %v75 = vld [vmem:[%s4 + $0x7c] sm:$0xf]
  %v76 = vld [vmem:[%s4 + $0x80] sm:$0xf]
  %v77 = vld [vmem:[%s4 + $0x84] sm:$0xf]
  %v78 = vld [vmem:[%s4 + $0x88] sm:$0xf]
  %v79 = vld [vmem:[%s4 + $0x8c] sm:$0xf]
  %v80 = vld [vmem:[%s4 + $0x90] sm:$0xf]
  %v81 = vld [vmem:[%s4 + $0x94] sm:$0xf]
  %v82 = vld [vmem:[%s4 + $0x98] sm:$0xf]
  %v83 = vld [vmem:[%s4 + $0x9c] sm:$0xf]
  %v84 = vld [vmem:[%s4 + $0xa0] sm:$0xf]
  %v85 = vld [vmem:[%s4 + $0xa4] sm:$0xf]
  %v86 = vld [vmem:[%s4 + $0xa8] sm:$0xf]
  %v87 = vld [vmem:[%s4 + $0xac] sm:$0xf]
  %v88 = vld [vmem:[%s4 + $0xb0] sm:$0xf]
  %v89 = vld [vmem:[%s4 + $0xb4] sm:$0xf]
  %v90 = vld [vmem:[%s4 + $0xb8] sm:$0xf]
  %v91 = vld [vmem:[%s4 + $0xbc] sm:$0xf]
  %v92 = vld [vmem:[%s4 + $0xc0] sm:$0xf]
  %v93 = vld [vmem:[%s4 + $0xc4] sm:$0xf]
  %v94 = vld [vmem:[%s4 + $0xc8] sm:$0xf]
  %v95 = vld [vmem:[%s4 + $0xcc] sm:$0xf]
  %v96 = vld [vmem:[%s4 + $0xd0] sm:$0xf]
  %v97 = vld [vmem:[%s4 + $0xd4] sm:$0xf]
  %v98 = vld [vmem:[%s4 + $0xd8] sm:$0xf]
  %v99 = vld [vmem:[%s4 + $0xdc] sm:$0xf]
  %v100 = vld [vmem:[%s4 + $0xe0] sm:$0xf]
  %v101 = vld [vmem:[%s4 + $0xe4] sm:$0xf]
  %v102 = vld [vmem:[%s4 + $0xe8] sm:$0xf]
  %v103 = vld [vmem:[%s4 + $0xec] sm:$0xf]
  %v104 = vld [vmem:[%s4 + $0xf0] sm:$0xf]
  %v105 = vld [vmem:[%s4 + $0xf4] sm:$0xf]
  %v106 = vld [vmem:[%s4 + $0xf8] sm:$0xf]
  %v107 = vld [vmem:[%s4 + $0xfc] sm:$0xf]
  %v108 = vunpack.c.l.bf16 %v44
  %v109 = vunpack.c.l.bf16 %v45
  %v110 = vunpack.c.l.bf16 %v46
  %v111 = vunpack.c.l.bf16 %v47
  %v112 = vunpack.c.l.bf16 %v48
  %v113 = vunpack.c.l.bf16 %v49
  %v114 = vunpack.c.l.bf16 %v50
  %v115 = vunpack.c.l.bf16 %v51
  %v116 = vunpack.c.l.bf16 %v52
  %v117 = vunpack.c.l.bf16 %v53
  %v118 = vunpack.c.l.bf16 %v54
  %v119 = vunpack.c.l.bf16 %v55
  %v120 = vunpack.c.l.bf16 %v56
  %v121 = vunpack.c.l.bf16 %v57
  %v122 = vunpack.c.l.bf16 %v58
  %v123 = vunpack.c.l.bf16 %v59
  %v124 = vunpack.c.l.bf16 %v60
  %v125 = vunpack.c.l.bf16 %v61
  %v126 = vunpack.c.l.bf16 %v62
  %v127 = vunpack.c.l.bf16 %v63
  %v128 = vunpack.c.l.bf16 %v64
  %v129 = vunpack.c.l.bf16 %v65
  %v130 = vunpack.c.l.bf16 %v66
  %v131 = vunpack.c.l.bf16 %v67
  %v132 = vunpack.c.l.bf16 %v68
  %v133 = vunpack.c.l.bf16 %v69
  %v134 = vunpack.c.l.bf16 %v70
  %v135 = vunpack.c.l.bf16 %v71
  %v136 = vunpack.c.l.bf16 %v72
  %v137 = vunpack.c.l.bf16 %v73
  %v138 = vunpack.c.l.bf16 %v74
  %v139 = vunpack.c.l.bf16 %v75
  %v140 = vunpack.c.l.bf16 %v76
  %v141 = vunpack.c.l.bf16 %v77
  %v142 = vunpack.c.l.bf16 %v78
  %v143 = vunpack.c.l.bf16 %v79
  %v144 = vunpack.c.l.bf16 %v80
  %v145 = vunpack.c.l.bf16 %v81
  %v146 = vunpack.c.l.bf16 %v82
  %v147 = vunpack.c.l.bf16 %v83
  %v148 = vunpack.c.l.bf16 %v84
  %v149 = vunpack.c.l.bf16 %v85
  %v150 = vunpack.c.l.bf16 %v86
  %v151 = vunpack.c.l.bf16 %v87
  %v152 = vunpack.c.l.bf16 %v88
  %v153 = vunpack.c.l.bf16 %v89
  %v154 = vunpack.c.l.bf16 %v90
  %v155 = vunpack.c.l.bf16 %v91
  %v156 = vunpack.c.l.bf16 %v92
  %v157 = vunpack.c.l.bf16 %v93
  %v158 = vunpack.c.l.bf16 %v94
  %v159 = vunpack.c.l.bf16 %v95
  %v160 = vunpack.c.l.bf16 %v96
  %v161 = vunpack.c.l.bf16 %v97
  %v162 = vunpack.c.l.bf16 %v98
  %v163 = vunpack.c.l.bf16 %v99
  %v164 = vunpack.c.l.bf16 %v100
  %v165 = vunpack.c.l.bf16 %v101
  %v166 = vunpack.c.l.bf16 %v102
  %v167 = vunpack.c.l.bf16 %v103
  %v168 = vunpack.c.l.bf16 %v104
  %v169 = vunpack.c.l.bf16 %v105
  %v170 = vunpack.c.l.bf16 %v106
  %v171 = vunpack.c.l.bf16 %v107
  %v172 = vld [vmem:[#allocation2] sm:$0x1]
  %v174 = vlaneseq
  %v175 = vshrl.u32 %v174, 7
  %v176 = vsub.s32 0, %v175
  %v177 = vrot.slane %v172, %v176
  %v179 = vmul.f32 %v108, %v177
  %v180 = vmul.f32 %v109, %v177
  %v181 = vmul.f32 %v110, %v177
  %v182 = vmul.f32 %v111, %v177
  %v183 = vmul.f32 %v112, %v177
  %v184 = vmul.f32 %v113, %v177
  %v185 = vmul.f32 %v114, %v177
  %v186 = vmul.f32 %v115, %v177
  %v187 = vmul.f32 %v116, %v177
  %v188 = vmul.f32 %v117, %v177
  %v189 = vmul.f32 %v118, %v177
  %v190 = vmul.f32 %v119, %v177
  %v191 = vmul.f32 %v120, %v177
  %v192 = vmul.f32 %v121, %v177
  %v193 = vmul.f32 %v122, %v177
  %v194 = vmul.f32 %v123, %v177
  %v195 = vmul.f32 %v124, %v177
  %v196 = vmul.f32 %v125, %v177
  %v197 = vmul.f32 %v126, %v177
  %v198 = vmul.f32 %v127, %v177
  %v199 = vmul.f32 %v128, %v177
  %v200 = vmul.f32 %v129, %v177
  %v201 = vmul.f32 %v130, %v177
  %v202 = vmul.f32 %v131, %v177
  %v203 = vmul.f32 %v132, %v177
  %v204 = vmul.f32 %v133, %v177
  %v205 = vmul.f32 %v134, %v177
  %v206 = vmul.f32 %v135, %v177
  %v207 = vmul.f32 %v136, %v177
  %v208 = vmul.f32 %v137, %v177
  %v209 = vmul.f32 %v138, %v177
  %v210 = vmul.f32 %v139, %v177
  %v211 = vmul.f32 %v140, %v177
  %v212 = vmul.f32 %v141, %v177
  %v213 = vmul.f32 %v142, %v177
  %v214 = vmul.f32 %v143, %v177
  %v215 = vmul.f32 %v144, %v177
  %v216 = vmul.f32 %v145, %v177
  %v217 = vmul.f32 %v146, %v177
  %v218 = vmul.f32 %v147, %v177
  %v219 = vmul.f32 %v148, %v177
  %v220 = vmul.f32 %v149, %v177
  %v221 = vmul.f32 %v150, %v177
  %v222 = vmul.f32 %v151, %v177
  %v223 = vmul.f32 %v152, %v177
  %v224 = vmul.f32 %v153, %v177
  %v225 = vmul.f32 %v154, %v177
  %v226 = vmul.f32 %v155, %v177
  %v227 = vmul.f32 %v156, %v177
  %v228 = vmul.f32 %v157, %v177
  %v229 = vmul.f32 %v158, %v177
  %v230 = vmul.f32 %v159, %v177
  %v231 = vmul.f32 %v160, %v177
  %v232 = vmul.f32 %v161, %v177
  %v233 = vmul.f32 %v162, %v177
  %v234 = vmul.f32 %v163, %v177
  %v235 = vmul.f32 %v164, %v177
  %v236 = vmul.f32 %v165, %v177
  %v237 = vmul.f32 %v166, %v177
  %v238 = vmul.f32 %v167, %v177
  %v239 = vmul.f32 %v168, %v177
  %v240 = vmul.f32 %v169, %v177
  %v241 = vmul.f32 %v170, %v177
  %v242 = vmul.f32 %v171, %v177
  %v243 = vld [vmem:[#allocation3] sm:$0x1]
  %v245 = vlaneseq
  %v246 = vshrl.u32 %v245, 7
  %v247 = vsub.s32 0, %v246
  %v248 = vrot.slane %v243, %v247
  %v250 = vadd.f32 %v179, %v248
  %v251 = vadd.f32 %v180, %v248
  %v252 = vadd.f32 %v181, %v248
  %v253 = vadd.f32 %v182, %v248
  %v254 = vadd.f32 %v183, %v248
  %v255 = vadd.f32 %v184, %v248
  %v256 = vadd.f32 %v185, %v248
  %v257 = vadd.f32 %v186, %v248
  %v258 = vadd.f32 %v187, %v248
  %v259 = vadd.f32 %v188, %v248
  %v260 = vadd.f32 %v189, %v248
  %v261 = vadd.f32 %v190, %v248
  %v262 = vadd.f32 %v191, %v248
  %v263 = vadd.f32 %v192, %v248
  %v264 = vadd.f32 %v193, %v248
  %v265 = vadd.f32 %v194, %v248
  %v266 = vadd.f32 %v195, %v248
  %v267 = vadd.f32 %v196, %v248
  %v268 = vadd.f32 %v197, %v248
  %v269 = vadd.f32 %v198, %v248
  %v270 = vadd.f32 %v199, %v248
  %v271 = vadd.f32 %v200, %v248
  %v272 = vadd.f32 %v201, %v248
  %v273 = vadd.f32 %v202, %v248
  %v274 = vadd.f32 %v203, %v248
  %v275 = vadd.f32 %v204, %v248
  %v276 = vadd.f32 %v205, %v248
  %v277 = vadd.f32 %v206, %v248
  %v278 = vadd.f32 %v207, %v248
  %v279 = vadd.f32 %v208, %v248
  %v280 = vadd.f32 %v209, %v248
  %v281 = vadd.f32 %v210, %v248
  %v282 = vadd.f32 %v211, %v248
  %v283 = vadd.f32 %v212, %v248
  %v284 = vadd.f32 %v213, %v248
  %v285 = vadd.f32 %v214, %v248
  %v286 = vadd.f32 %v215, %v248
  %v287 = vadd.f32 %v216, %v248
  %v288 = vadd.f32 %v217, %v248
  %v289 = vadd.f32 %v218, %v248
  %v290 = vadd.f32 %v219, %v248
  %v291 = vadd.f32 %v220, %v248
  %v292 = vadd.f32 %v221, %v248
  %v293 = vadd.f32 %v222, %v248
  %v294 = vadd.f32 %v223, %v248
  %v295 = vadd.f32 %v224, %v248
  %v296 = vadd.f32 %v225, %v248
  %v297 = vadd.f32 %v226, %v248
  %v298 = vadd.f32 %v227, %v248
  %v299 = vadd.f32 %v228, %v248
  %v300 = vadd.f32 %v229, %v248
  %v301 = vadd.f32 %v230, %v248
  %v302 = vadd.f32 %v231, %v248
  %v303 = vadd.f32 %v232, %v248
  %v304 = vadd.f32 %v233, %v248
  %v305 = vadd.f32 %v234, %v248
  %v306 = vadd.f32 %v235, %v248
  %v307 = vadd.f32 %v236, %v248
  %v308 = vadd.f32 %v237, %v248
  %v309 = vadd.f32 %v238, %v248
  %v310 = vadd.f32 %v239, %v248
  %v311 = vadd.f32 %v240, %v248
  %v312 = vadd.f32 %v241, %v248
  %v313 = vadd.f32 %v242, %v248
  %v314 = vld [vmem:[%s5] sm:$0xf]
  %v315 = vld [vmem:[%s5 + $0x4] sm:$0xf]
  %v316 = vld [vmem:[%s5 + $0x8] sm:$0xf]
  %v317 = vld [vmem:[%s5 + $0xc] sm:$0xf]
  %v318 = vld [vmem:[%s5 + $0x10] sm:$0xf]
  %v319 = vld [vmem:[%s5 + $0x14] sm:$0xf]
  %v320 = vld [vmem:[%s5 + $0x18] sm:$0xf]
  %v321 = vld [vmem:[%s5 + $0x1c] sm:$0xf]
  %v322 = vld [vmem:[%s5 + $0x20] sm:$0xf]
  %v323 = vld [vmem:[%s5 + $0x24] sm:$0xf]
  %v324 = vld [vmem:[%s5 + $0x28] sm:$0xf]
  %v325 = vld [vmem:[%s5 + $0x2c] sm:$0xf]
  %v326 = vld [vmem:[%s5 + $0x30] sm:$0xf]
  %v327 = vld [vmem:[%s5 + $0x34] sm:$0xf]
  %v328 = vld [vmem:[%s5 + $0x38] sm:$0xf]
  %v329 = vld [vmem:[%s5 + $0x3c] sm:$0xf]
  %v330 = vld [vmem:[%s5 + $0x40] sm:$0xf]
  %v331 = vld [vmem:[%s5 + $0x44] sm:$0xf]
  %v332 = vld [vmem:[%s5 + $0x48] sm:$0xf]
  %v333 = vld [vmem:[%s5 + $0x4c] sm:$0xf]
  %v334 = vld [vmem:[%s5 + $0x50] sm:$0xf]
  %v335 = vld [vmem:[%s5 + $0x54] sm:$0xf]
  %v336 = vld [vmem:[%s5 + $0x58] sm:$0xf]
  %v337 = vld [vmem:[%s5 + $0x5c] sm:$0xf]
  %v338 = vld [vmem:[%s5 + $0x60] sm:$0xf]
  %v339 = vld [vmem:[%s5 + $0x64] sm:$0xf]
  %v340 = vld [vmem:[%s5 + $0x68] sm:$0xf]
  %v341 = vld [vmem:[%s5 + $0x6c] sm:$0xf]
  %v342 = vld [vmem:[%s5 + $0x70] sm:$0xf]
  %v343 = vld [vmem:[%s5 + $0x74] sm:$0xf]
  %v344 = vld [vmem:[%s5 + $0x78] sm:$0xf]
  %v345 = vld [vmem:[%s5 + $0x7c] sm:$0xf]
  %v346 = vld [vmem:[%s5 + $0x80] sm:$0xf]
  %v347 = vld [vmem:[%s5 + $0x84] sm:$0xf]
  %v348 = vld [vmem:[%s5 + $0x88] sm:$0xf]
  %v349 = vld [vmem:[%s5 + $0x8c] sm:$0xf]
  %v350 = vld [vmem:[%s5 + $0x90] sm:$0xf]
  %v351 = vld [vmem:[%s5 + $0x94] sm:$0xf]
  %v352 = vld [vmem:[%s5 + $0x98] sm:$0xf]
  %v353 = vld [vmem:[%s5 + $0x9c] sm:$0xf]
  %v354 = vld [vmem:[%s5 + $0xa0] sm:$0xf]
  %v355 = vld [vmem:[%s5 + $0xa4] sm:$0xf]
  %v356 = vld [vmem:[%s5 + $0xa8] sm:$0xf]
  %v357 = vld [vmem:[%s5 + $0xac] sm:$0xf]
  %v358 = vld [vmem:[%s5 + $0xb0] sm:$0xf]
  %v359 = vld [vmem:[%s5 + $0xb4] sm:$0xf]
  %v360 = vld [vmem:[%s5 + $0xb8] sm:$0xf]
  %v361 = vld [vmem:[%s5 + $0xbc] sm:$0xf]
  %v362 = vld [vmem:[%s5 + $0xc0] sm:$0xf]
  %v363 = vld [vmem:[%s5 + $0xc4] sm:$0xf]
  %v364 = vld [vmem:[%s5 + $0xc8] sm:$0xf]
  %v365 = vld [vmem:[%s5 + $0xcc] sm:$0xf]
  %v366 = vld [vmem:[%s5 + $0xd0] sm:$0xf]
  %v367 = vld [vmem:[%s5 + $0xd4] sm:$0xf]
  %v368 = vld [vmem:[%s5 + $0xd8] sm:$0xf]
  %v369 = vld [vmem:[%s5 + $0xdc] sm:$0xf]
  %v370 = vld [vmem:[%s5 + $0xe0] sm:$0xf]
  %v371 = vld [vmem:[%s5 + $0xe4] sm:$0xf]
  %v372 = vld [vmem:[%s5 + $0xe8] sm:$0xf]
  %v373 = vld [vmem:[%s5 + $0xec] sm:$0xf]
  %v374 = vld [vmem:[%s5 + $0xf0] sm:$0xf]
  %v375 = vld [vmem:[%s5 + $0xf4] sm:$0xf]
  %v376 = vld [vmem:[%s5 + $0xf8] sm:$0xf]
  %v377 = vld [vmem:[%s5 + $0xfc] sm:$0xf]
  %v378 = vunpack.c.l.bf16 %v314
  %v379 = vunpack.c.l.bf16 %v315
  %v380 = vunpack.c.l.bf16 %v316
  %v381 = vunpack.c.l.bf16 %v317
  %v382 = vunpack.c.l.bf16 %v318
  %v383 = vunpack.c.l.bf16 %v319
  %v384 = vunpack.c.l.bf16 %v320
  %v385 = vunpack.c.l.bf16 %v321
  %v386 = vunpack.c.l.bf16 %v322
  %v387 = vunpack.c.l.bf16 %v323
  %v388 = vunpack.c.l.bf16 %v324
  %v389 = vunpack.c.l.bf16 %v325
  %v390 = vunpack.c.l.bf16 %v326
  %v391 = vunpack.c.l.bf16 %v327
  %v392 = vunpack.c.l.bf16 %v328
  %v393 = vunpack.c.l.bf16 %v329
  %v394 = vunpack.c.l.bf16 %v330
  %v395 = vunpack.c.l.bf16 %v331
  %v396 = vunpack.c.l.bf16 %v332
  %v397 = vunpack.c.l.bf16 %v333
  %v398 = vunpack.c.l.bf16 %v334
  %v399 = vunpack.c.l.bf16 %v335
  %v400 = vunpack.c.l.bf16 %v336
  %v401 = vunpack.c.l.bf16 %v337
  %v402 = vunpack.c.l.bf16 %v338
  %v403 = vunpack.c.l.bf16 %v339
  %v404 = vunpack.c.l.bf16 %v340
  %v405 = vunpack.c.l.bf16 %v341
  %v406 = vunpack.c.l.bf16 %v342
  %v407 = vunpack.c.l.bf16 %v343
  %v408 = vunpack.c.l.bf16 %v344
  %v409 = vunpack.c.l.bf16 %v345
  %v410 = vunpack.c.l.bf16 %v346
  %v411 = vunpack.c.l.bf16 %v347
  %v412 = vunpack.c.l.bf16 %v348
  %v413 = vunpack.c.l.bf16 %v349
  %v414 = vunpack.c.l.bf16 %v350
  %v415 = vunpack.c.l.bf16 %v351
  %v416 = vunpack.c.l.bf16 %v352
  %v417 = vunpack.c.l.bf16 %v353
  %v418 = vunpack.c.l.bf16 %v354
  %v419 = vunpack.c.l.bf16 %v355
  %v420 = vunpack.c.l.bf16 %v356
  %v421 = vunpack.c.l.bf16 %v357
  %v422 = vunpack.c.l.bf16 %v358
  %v423 = vunpack.c.l.bf16 %v359
  %v424 = vunpack.c.l.bf16 %v360
  %v425 = vunpack.c.l.bf16 %v361
  %v426 = vunpack.c.l.bf16 %v362
  %v427 = vunpack.c.l.bf16 %v363
  %v428 = vunpack.c.l.bf16 %v364
  %v429 = vunpack.c.l.bf16 %v365
  %v430 = vunpack.c.l.bf16 %v366
  %v431 = vunpack.c.l.bf16 %v367
  %v432 = vunpack.c.l.bf16 %v368
  %v433 = vunpack.c.l.bf16 %v369
  %v434 = vunpack.c.l.bf16 %v370
  %v435 = vunpack.c.l.bf16 %v371
  %v436 = vunpack.c.l.bf16 %v372
  %v437 = vunpack.c.l.bf16 %v373
  %v438 = vunpack.c.l.bf16 %v374
  %v439 = vunpack.c.l.bf16 %v375
  %v440 = vunpack.c.l.bf16 %v376
  %v441 = vunpack.c.l.bf16 %v377
  %v442 = vadd.f32 %v250, %v378
  %v443 = vadd.f32 %v251, %v379
  %v444 = vadd.f32 %v252, %v380
  %v445 = vadd.f32 %v253, %v381
  %v446 = vadd.f32 %v254, %v382
  %v447 = vadd.f32 %v255, %v383
  %v448 = vadd.f32 %v256, %v384
  %v449 = vadd.f32 %v257, %v385
  %v450 = vadd.f32 %v258, %v386
  %v451 = vadd.f32 %v259, %v387
  %v452 = vadd.f32 %v260, %v388
  %v453 = vadd.f32 %v261, %v389
  %v454 = vadd.f32 %v262, %v390
  %v455 = vadd.f32 %v263, %v391
  %v456 = vadd.f32 %v264, %v392
  %v457 = vadd.f32 %v265, %v393
  %v458 = vadd.f32 %v266, %v394
  %v459 = vadd.f32 %v267, %v395
  %v460 = vadd.f32 %v268, %v396
  %v461 = vadd.f32 %v269, %v397
  %v462 = vadd.f32 %v270, %v398
  %v463 = vadd.f32 %v271, %v399
  %v464 = vadd.f32 %v272, %v400
  %v465 = vadd.f32 %v273, %v401
  %v466 = vadd.f32 %v274, %v402
  %v467 = vadd.f32 %v275, %v403
  %v468 = vadd.f32 %v276, %v404
  %v469 = vadd.f32 %v277, %v405
  %v470 = vadd.f32 %v278, %v406
  %v471 = vadd.f32 %v279, %v407
  %v472 = vadd.f32 %v280, %v408
  %v473 = vadd.f32 %v281, %v409
  %v474 = vadd.f32 %v282, %v410
  %v475 = vadd.f32 %v283, %v411
  %v476 = vadd.f32 %v284, %v412
  %v477 = vadd.f32 %v285, %v413
  %v478 = vadd.f32 %v286, %v414
  %v479 = vadd.f32 %v287, %v415
  %v480 = vadd.f32 %v288, %v416
  %v481 = vadd.f32 %v289, %v417
  %v482 = vadd.f32 %v290, %v418
  %v483 = vadd.f32 %v291, %v419
  %v484 = vadd.f32 %v292, %v420
  %v485 = vadd.f32 %v293, %v421
  %v486 = vadd.f32 %v294, %v422
  %v487 = vadd.f32 %v295, %v423
  %v488 = vadd.f32 %v296, %v424
  %v489 = vadd.f32 %v297, %v425
  %v490 = vadd.f32 %v298, %v426
  %v491 = vadd.f32 %v299, %v427
  %v492 = vadd.f32 %v300, %v428
  %v493 = vadd.f32 %v301, %v429
  %v494 = vadd.f32 %v302, %v430
  %v495 = vadd.f32 %v303, %v431
  %v496 = vadd.f32 %v304, %v432
  %v497 = vadd.f32 %v305, %v433
  %v498 = vadd.f32 %v306, %v434
  %v499 = vadd.f32 %v307, %v435
  %v500 = vadd.f32 %v308, %v436
  %v501 = vadd.f32 %v309, %v437
  %v502 = vadd.f32 %v310, %v438
  %v503 = vadd.f32 %v311, %v439
  %v504 = vadd.f32 %v312, %v440
  %v505 = vadd.f32 %v313, %v441
  %v506 = vmax.f32 %v442, 0.0
  %v507 = vmax.f32 %v443, 0.0
  %v508 = vmax.f32 %v444, 0.0
  %v509 = vmax.f32 %v445, 0.0
  %v510 = vmax.f32 %v446, 0.0
  %v511 = vmax.f32 %v447, 0.0
  %v512 = vmax.f32 %v448, 0.0
  %v513 = vmax.f32 %v449, 0.0
  %v514 = vmax.f32 %v450, 0.0
  %v515 = vmax.f32 %v451, 0.0
  %v516 = vmax.f32 %v452, 0.0
  %v517 = vmax.f32 %v453, 0.0
  %v518 = vmax.f32 %v454, 0.0
  %v519 = vmax.f32 %v455, 0.0
  %v520 = vmax.f32 %v456, 0.0
  %v521 = vmax.f32 %v457, 0.0
  %v522 = vmax.f32 %v458, 0.0
  %v523 = vmax.f32 %v459, 0.0
  %v524 = vmax.f32 %v460, 0.0
  %v525 = vmax.f32 %v461, 0.0
  %v526 = vmax.f32 %v462, 0.0
  %v527 = vmax.f32 %v463, 0.0
  %v528 = vmax.f32 %v464, 0.0
  %v529 = vmax.f32 %v465, 0.0
  %v530 = vmax.f32 %v466, 0.0
  %v531 = vmax.f32 %v467, 0.0
  %v532 = vmax.f32 %v468, 0.0
  %v533 = vmax.f32 %v469, 0.0
  %v534 = vmax.f32 %v470, 0.0
  %v535 = vmax.f32 %v471, 0.0
  %v536 = vmax.f32 %v472, 0.0
  %v537 = vmax.f32 %v473, 0.0
  %v538 = vmax.f32 %v474, 0.0
  %v539 = vmax.f32 %v475, 0.0
  %v540 = vmax.f32 %v476, 0.0
  %v541 = vmax.f32 %v477, 0.0
  %v542 = vmax.f32 %v478, 0.0
  %v543 = vmax.f32 %v479, 0.0
  %v544 = vmax.f32 %v480, 0.0
  %v545 = vmax.f32 %v481, 0.0
  %v546 = vmax.f32 %v482, 0.0
  %v547 = vmax.f32 %v483, 0.0
  %v548 = vmax.f32 %v484, 0.0
  %v549 = vmax.f32 %v485, 0.0
  %v550 = vmax.f32 %v486, 0.0
  %v551 = vmax.f32 %v487, 0.0
  %v552 = vmax.f32 %v488, 0.0
  %v553 = vmax.f32 %v489, 0.0
  %v554 = vmax.f32 %v490, 0.0
  %v555 = vmax.f32 %v491, 0.0
  %v556 = vmax.f32 %v492, 0.0
  %v557 = vmax.f32 %v493, 0.0
  %v558 = vmax.f32 %v494, 0.0
  %v559 = vmax.f32 %v495, 0.0
  %v560 = vmax.f32 %v496, 0.0
  %v561 = vmax.f32 %v497, 0.0
  %v562 = vmax.f32 %v498, 0.0
  %v563 = vmax.f32 %v499, 0.0
  %v564 = vmax.f32 %v500, 0.0
  %v565 = vmax.f32 %v501, 0.0
  %v566 = vmax.f32 %v502, 0.0
  %v567 = vmax.f32 %v503, 0.0
  %v568 = vmax.f32 %v504, 0.0
  %v569 = vmax.f32 %v505, 0.0
  %vm570 = vcmask 64512
  %571 = vst.msk [vmem:[%s6] sm:$0xff] %vm570, %v506
  %572 = vst.msk [vmem:[%s6 + $0x8] sm:$0xff] %vm570, %v507
  %573 = vst.msk [vmem:[%s6 + $0x10] sm:$0xff] %vm570, %v508
  %574 = vst.msk [vmem:[%s6 + $0x18] sm:$0xff] %vm570, %v509
  %575 = vst.msk [vmem:[%s6 + $0x20] sm:$0xff] %vm570, %v510
  %576 = vst.msk [vmem:[%s6 + $0x28] sm:$0xff] %vm570, %v511
  %577 = vst.msk [vmem:[%s6 + $0x30] sm:$0xff] %vm570, %v512
  %578 = vst.msk [vmem:[%s6 + $0x38] sm:$0xff] %vm570, %v513
  %579 = vst.msk [vmem:[%s6 + $0x40] sm:$0xff] %vm570, %v514
  %580 = vst.msk [vmem:[%s6 + $0x48] sm:$0xff] %vm570, %v515
  %581 = vst.msk [vmem:[%s6 + $0x50] sm:$0xff] %vm570, %v516
  %582 = vst.msk [vmem:[%s6 + $0x58] sm:$0xff] %vm570, %v517
  %583 = vst.msk [vmem:[%s6 + $0x60] sm:$0xff] %vm570, %v518
  %584 = vst.msk [vmem:[%s6 + $0x68] sm:$0xff] %vm570, %v519
  %585 = vst.msk [vmem:[%s6 + $0x70] sm:$0xff] %vm570, %v520
  %586 = vst.msk [vmem:[%s6 + $0x78] sm:$0xff] %vm570, %v521
  %587 = vst.msk [vmem:[%s6 + $0x80] sm:$0xff] %vm570, %v522
  %588 = vst.msk [vmem:[%s6 + $0x88] sm:$0xff] %vm570, %v523
  %589 = vst.msk [vmem:[%s6 + $0x90] sm:$0xff] %vm570, %v524
  %590 = vst.msk [vmem:[%s6 + $0x98] sm:$0xff] %vm570, %v525
  %591 = vst.msk [vmem:[%s6 + $0xa0] sm:$0xff] %vm570, %v526
  %592 = vst.msk [vmem:[%s6 + $0xa8] sm:$0xff] %vm570, %v527
  %593 = vst.msk [vmem:[%s6 + $0xb0] sm:$0xff] %vm570, %v528
  %594 = vst.msk [vmem:[%s6 + $0xb8] sm:$0xff] %vm570, %v529
  %595 = vst.msk [vmem:[%s6 + $0xc0] sm:$0xff] %vm570, %v530
  %596 = vst.msk [vmem:[%s6 + $0xc8] sm:$0xff] %vm570, %v531
  %597 = vst.msk [vmem:[%s6 + $0xd0] sm:$0xff] %vm570, %v532
  %598 = vst.msk [vmem:[%s6 + $0xd8] sm:$0xff] %vm570, %v533
  %599 = vst.msk [vmem:[%s6 + $0xe0] sm:$0xff] %vm570, %v534
  %600 = vst.msk [vmem:[%s6 + $0xe8] sm:$0xff] %vm570, %v535
  %601 = vst.msk [vmem:[%s6 + $0xf0] sm:$0xff] %vm570, %v536
  %602 = vst.msk [vmem:[%s6 + $0xf8] sm:$0xff] %vm570, %v537
  %603 = vst.msk [vmem:[%s6 + $0x100] sm:$0xff] %vm570, %v538
  %604 = vst.msk [vmem:[%s6 + $0x108] sm:$0xff] %vm570, %v539
  %605 = vst.msk [vmem:[%s6 + $0x110] sm:$0xff] %vm570, %v540
  %606 = vst.msk [vmem:[%s6 + $0x118] sm:$0xff] %vm570, %v541
  %607 = vst.msk [vmem:[%s6 + $0x120] sm:$0xff] %vm570, %v542
  %608 = vst.msk [vmem:[%s6 + $0x128] sm:$0xff] %vm570, %v543
  %609 = vst.msk [vmem:[%s6 + $0x130] sm:$0xff] %vm570, %v544
  %610 = vst.msk [vmem:[%s6 + $0x138] sm:$0xff] %vm570, %v545
  %611 = vst.msk [vmem:[%s6 + $0x140] sm:$0xff] %vm570, %v546
  %612 = vst.msk [vmem:[%s6 + $0x148] sm:$0xff] %vm570, %v547
  %613 = vst.msk [vmem:[%s6 + $0x150] sm:$0xff] %vm570, %v548
  %614 = vst.msk [vmem:[%s6 + $0x158] sm:$0xff] %vm570, %v549
  %615 = vst.msk [vmem:[%s6 + $0x160] sm:$0xff] %vm570, %v550
  %616 = vst.msk [vmem:[%s6 + $0x168] sm:$0xff] %vm570, %v551
  %617 = vst.msk [vmem:[%s6 + $0x170] sm:$0xff] %vm570, %v552
  %618 = vst.msk [vmem:[%s6 + $0x178] sm:$0xff] %vm570, %v553
  %619 = vst.msk [vmem:[%s6 + $0x180] sm:$0xff] %vm570, %v554
  %620 = vst.msk [vmem:[%s6 + $0x188] sm:$0xff] %vm570, %v555
  %621 = vst.msk [vmem:[%s6 + $0x190] sm:$0xff] %vm570, %v556
  %622 = vst.msk [vmem:[%s6 + $0x198] sm:$0xff] %vm570, %v557
  %623 = vst.msk [vmem:[%s6 + $0x1a0] sm:$0xff] %vm570, %v558
  %624 = vst.msk [vmem:[%s6 + $0x1a8] sm:$0xff] %vm570, %v559
  %625 = vst.msk [vmem:[%s6 + $0x1b0] sm:$0xff] %vm570, %v560
  %626 = vst.msk [vmem:[%s6 + $0x1b8] sm:$0xff] %vm570, %v561
  %627 = vst.msk [vmem:[%s6 + $0x1c0] sm:$0xff] %vm570, %v562
  %628 = vst.msk [vmem:[%s6 + $0x1c8] sm:$0xff] %vm570, %v563
  %629 = vst.msk [vmem:[%s6 + $0x1d0] sm:$0xff] %vm570, %v564
  %630 = vst.msk [vmem:[%s6 + $0x1d8] sm:$0xff] %vm570, %v565
  %631 = vst.msk [vmem:[%s6 + $0x1e0] sm:$0xff] %vm570, %v566
  %632 = vst.msk [vmem:[%s6 + $0x1e8] sm:$0xff] %vm570, %v567
  %633 = vst.msk [vmem:[%s6 + $0x1f0] sm:$0xff] %vm570, %v568
  %634 = vst.msk [vmem:[%s6 + $0x1f8] sm:$0xff] %vm570, %v569
  // Predicated region
  $region30: #{residual_block_forward.7} parent=0 // pred_check
    _
  $region31: #{residual_block_forward.7} parent=0 // pred_check_branch
    %636 = sbr.rel (0) target = $region33
  $region32: #{residual_block_forward.7} parent=0 // pred_region
    _
  $region33: #{residual_block_forward.7} parent=0 // pred_fallthru
    _
  // Predicated region
  $region34: #{residual_block_forward.7} parent=0 // pred_check
    _
  $region35: #{residual_block_forward.7} parent=0 // pred_check_branch
    %638 = sbr.rel (0) target = $region37
  $region36: #{residual_block_forward.7} parent=0 // pred_region
    _
  $region37: #{residual_block_forward.7} parent=0 // pred_fallthru
    _

// kernel: residual_block_forward.4
$region0: #{residual_block_forward.4}
  #allocation0 [shape = 'u32[]', space=smem, size = 0x4, offset = 0x4, fixed_abs, tag = 'smem constant byte address 0x4 - core index']
  #allocation1 [shape = 'u32[144,128]{1,0:T(1,128)}', space=vmem, size = 0x12000, scoped, tag = 'internal scratch']
  %s0 = inlined_call_operand.vmem [shape: bf16[2,18,18,4], index: 0, kind: input, shape index: {}]
  %s1 = inlined_call_operand.vmem [shape: bf16[36,8], index: 1, kind: input, shape index: {}]
  %s2 = inlined_call_operand.vmem [shape: f32[1,8], index: 2, kind: input, shape index: {}]
  %s3 = inlined_call_operand.vmem [shape: bf16[4,8], index: 3, kind: input, shape index: {}]
  %s4 = inlined_call_operand.vmem [shape: f32[1,8], index: 4, kind: input, shape index: {}]
  %s5 = inlined_call_operand.vmem [shape: bf16[2,256,8], index: 5, kind: output, shape index: {0}]
  %s6 = inlined_call_operand.vmem [shape: bf16[2,256,8], index: 6, kind: output, shape index: {1}]
  %s7 = inlined_call_operand.vmem [shape: f32[1,8], index: 7, kind: output, shape index: {2}]
  %s8 = inlined_call_operand.vmem [shape: f32[1,8], index: 8, kind: output, shape index: {3}]
  %9 = xla_tuple %s5, %s6, %s7, %s8
  %s10 = sld [smem:[#allocation0]]
  $region81: #{residual_block_forward.4} parent=0
    _
  %s12 = ssub.s32 1, %s10
  %s13 = scalar_select 0, %s12, %s10
  loop: start=0, step=1, limit=4
  $region2: #{residual_block_forward.4} parent=0 // loop_pre_header
    _
  $region3: #{residual_block_forward.4} parent=0 // loop_header
    %s15 = sphi 0, %s19
    %p16 = scmp.ge.s32.totalorder %s15, 4
    %s22 = sphi 0, %s34
    %s23 = sphi 0, %s30
    %s24 = sphi 0, %s22
    %s25 = sphi 0, %s23
    %s26 = sphi 0, %s24
    %s27 = sphi 0, %s25
    %s37 = sphi 0, %s39
    %s40 = sphi 0, %s37
    %s41 = sphi 0, %s40
    %s57 = sphi 0, %s41
    %s63 = sphi 0, %s65
    %s66 = sphi 0, %s63
    %s67 = sphi 0, %s66
    %s83 = sphi 0, %s67
    %s89 = sphi 0, %s91
    %s92 = sphi 0, %s89
    %s93 = sphi 0, %s92
    %s109 = sphi 0, %s93
    %s115 = sphi 0, %s117
    %s118 = sphi 0, %s115
    %s119 = sphi 0, %s118
    %s135 = sphi 0, %s119
    %s141 = sphi 0, %s143
    %s144 = sphi 0, %s141
    %s145 = sphi 0, %s144
    %s161 = sphi 0, %s145
    %s169 = sphi 0, %s171
    %s172 = sphi 0, %s169
    %s173 = sphi 0, %s172
    %s189 = sphi 0, %s173
    %s197 = sphi 0, %s199
    %s200 = sphi 0, %s197
    %s201 = sphi 0, %s200
    %s217 = sphi 0, %s201
    %s223 = sphi 0, %s225
    %s226 = sphi 0, %s223
    %s227 = sphi 0, %s226
    %s243 = sphi 0, %s227
    %s249 = sphi 0, %s251
    %s252 = sphi 0, %s249
    %s253 = sphi 0, %s252
    %s269 = sphi 0, %s253
  $region4: #{residual_block_forward.4} parent=0 // loop_header_branch
    %18 = sbr.rel (%p16) target = $region8
  $region5: #{residual_block_forward.4} parent=0 // loop_body
    %s20 = ssub.s32 %s15, 1
    %s21 = ssub.s32 %s15, 2
    %s28 = sadd.s32 1, %s23
    %p29 = scmp.ge.s32.totalorder %s28, 2
    %s30 = scalar_select %p29, 0, %s28
    %s31 = sadd.s32 1, %s22
    %s32 = scalar_select %p29, %s31, %s22
    %p33 = scmp.ge.s32.totalorder %s32, 1
    %s34 = scalar_select %p33, 0, %s32
    %s35 = ssub.s32 %s23, %s30
    %p36 = scmp.eq.s32.totalorder %s35, 0
    %s38 = sadd.s32 %s37, 1
    %s39 = scalar_select %p36, %s37, %s38
    %p42 = pneg %p36
    %p43 = scmp.eq.s32.totalorder %s15, 1
    %p44 = por %p42, %p43
    %p45 = scmp.ne.s32.totalorder %s37, %s40
    %p46 = scmp.eq.s32.totalorder %s15, 0
    %p47 = por %p45, %p46
    %p48 = scmp.ne.s32.totalorder %s37, %s40
    %p49 = scmp.eq.s32.totalorder %s20, 1
    %p50 = por %p48, %p49
    %p51 = scmp.ne.s32.totalorder %s40, %s41
    %p52 = scmp.eq.s32.totalorder %s20, 0
    %p53 = por %p51, %p52
    %p54 = scmp.ne.s32.totalorder %s40, %s41
    %p55 = scmp.eq.s32.totalorder %s21, 1
    %p56 = por %p54, %p55
    %p58 = scmp.ne.s32.totalorder %s41, %s57
    %p59 = scmp.eq.s32.totalorder %s21, 0
    %p60 = por %p58, %p59
    %s61 = ssub.s32 %s22, %s34
    %p62 = scmp.eq.s32.totalorder %s61, 0
    %s64 = sadd.s32 %s63, 1
    %s65 = scalar_select %p62, %s63, %s64
    %p68 = pneg %p62
    %p69 = scmp.eq.s32.totalorder %s15, 1
    %p70 = por %p68, %p69
    %p71 = scmp.ne.s32.totalorder %s63, %s66
    %p72 = scmp.eq.s32.totalorder %s15, 0
    %p73 = por %p71, %p72
    %p74 = scmp.ne.s32.totalorder %s63, %s66
    %p75 = scmp.eq.s32.totalorder %s20, 1
    %p76 = por %p74, %p75
    %p77 = scmp.ne.s32.totalorder %s66, %s67
    %p78 = scmp.eq.s32.totalorder %s20, 0
    %p79 = por %p77, %p78
    %p80 = scmp.ne.s32.totalorder %s66, %s67
    %p81 = scmp.eq.s32.totalorder %s21, 1
    %p82 = por %p80, %p81
    %p84 = scmp.ne.s32.totalorder %s67, %s83
    %p85 = scmp.eq.s32.totalorder %s21, 0
    %p86 = por %p84, %p85
    %s87 = ssub.s32 %s22, %s34
    %p88 = scmp.eq.s32.totalorder %s87, 0
    %s90 = sadd.s32 %s89, 1
    %s91 = scalar_select %p88, %s89, %s90
    %p94 = pneg %p88
    %p95 = scmp.eq.s32.totalorder %s15, 1
    %p96 = por %p94, %p95
    %p97 = scmp.ne.s32.totalorder %s89, %s92
    %p98 = scmp.eq.s32.totalorder %s15, 0
    %p99 = por %p97, %p98
    %p100 = scmp.ne.s32.totalorder %s89, %s92
    %p101 = scmp.eq.s32.totalorder %s20, 1
    %p102 = por %p100, %p101
    %p103 = scmp.ne.s32.totalorder %s92, %s93
    %p104 = scmp.eq.s32.totalorder %s20, 0
    %p105 = por %p103, %p104
    %p106 = scmp.ne.s32.totalorder %s92, %s93
    %p107 = scmp.eq.s32.totalorder %s21, 1
    %p108 = por %p106, %p107
    %p110 = scmp.ne.s32.totalorder %s93, %s109
    %p111 = scmp.eq.s32.totalorder %s21, 0
    %p112 = por %p110, %p111
    %s113 = ssub.s32 %s22, %s34
    %p114 = scmp.eq.s32.totalorder %s113, 0
    %s116 = sadd.s32 %s115, 1
    %s117 = scalar_select %p114, %s115, %s116
    %p120 = pneg %p114
    %p121 = scmp.eq.s32.totalorder %s15, 1
    %p122 = por %p120, %p121
    %p123 = scmp.ne.s32.totalorder %s115, %s118
    %p124 = scmp.eq.s32.totalorder %s15, 0
    %p125 = por %p123, %p124
    %p126 = scmp.ne.s32.totalorder %s115, %s118
    %p127 = scmp.eq.s32.totalorder %s20, 1
    %p128 = por %p126, %p127
    %p129 = scmp.ne.s32.totalorder %s118, %s119
    %p130 = scmp.eq.s32.totalorder %s20, 0
    %p131 = por %p129, %p130
    %p132 = scmp.ne.s32.totalorder %s118, %s119
    %p133 = scmp.eq.s32.totalorder %s21, 1
    %p134 = por %p132, %p133
    %p136 = scmp.ne.s32.totalorder %s119, %s135
    %p137 = scmp.eq.s32.totalorder %s21, 0
    %p138 = por %p136, %p137
    %s139 = ssub.s32 %s22, %s34
    %p140 = scmp.eq.s32.totalorder %s139, 0
    %s142 = sadd.s32 %s141, 1
    %s143 = scalar_select %p140, %s141, %s142
    %p146 = pneg %p140
    %p147 = scmp.eq.s32.totalorder %s15, 1
    %p148 = por %p146, %p147
    %p149 = scmp.ne.s32.totalorder %s141, %s144
    %p150 = scmp.eq.s32.totalorder %s15, 0
    %p151 = por %p149, %p150
    %p152 = scmp.ne.s32.totalorder %s141, %s144
    %p153 = scmp.eq.s32.totalorder %s20, 1
    %p154 = por %p152, %p153
    %p155 = scmp.ne.s32.totalorder %s144, %s145
    %p156 = scmp.eq.s32.totalorder %s20, 0
    %p157 = por %p155, %p156
    %p158 = scmp.ne.s32.totalorder %s144, %s145
    %p159 = scmp.eq.s32.totalorder %s21, 1
    %p160 = por %p158, %p159
    %p162 = scmp.ne.s32.totalorder %s145, %s161
    %p163 = scmp.eq.s32.totalorder %s21, 0
    %p164 = por %p162, %p163
    %s165 = ssub.s32 %s23, %s30
    %s166 = ssub.s32 %s22, %s34
    %s167 = sor.u32 %s165, %s166
    %p168 = scmp.eq.s32.totalorder %s167, 0
    %s170 = sadd.s32 %s169, 1
    %s171 = scalar_select %p168, %s169, %s170
    %p174 = pneg %p168
    %p175 = scmp.eq.s32.totalorder %s15, 1
    %p176 = por %p174, %p175
    %p177 = scmp.ne.s32.totalorder %s169, %s172
    %p178 = scmp.eq.s32.totalorder %s15, 0
    %p179 = por %p177, %p178
    %p180 = scmp.ne.s32.totalorder %s169, %s172
    %p181 = scmp.eq.s32.totalorder %s20, 1
    %p182 = por %p180, %p181
    %p183 = scmp.ne.s32.totalorder %s172, %s173
    %p184 = scmp.eq.s32.totalorder %s20, 0
    %p185 = por %p183, %p184
    %p186 = scmp.ne.s32.totalorder %s172, %s173
    %p187 = scmp.eq.s32.totalorder %s21, 1
    %p188 = por %p186, %p187
    %p190 = scmp.ne.s32.totalorder %s173, %s189
    %p191 = scmp.eq.s32.totalorder %s21, 0
    %p192 = por %p190, %p191
    %s193 = ssub.s32 %s23, %s30
    %s194 = ssub.s32 %s22, %s34
    %s195 = sor.u32 %s193, %s194
    %p196 = scmp.eq.s32.totalorder %s195, 0
    %s198 = sadd.s32 %s197, 1
    %s199 = scalar_select %p196, %s197, %s198
    %p202 = pneg %p196
    %p203 = scmp.eq.s32.totalorder %s15, 1
    %p204 = por %p202, %p203
    %p205 = scmp.ne.s32.totalorder %s197, %s200
    %p206 = scmp.eq.s32.totalorder %s15, 0
    %p207 = por %p205, %p206
    %p208 = scmp.ne.s32.totalorder %s197, %s200
    %p209 = scmp.eq.s32.totalorder %s20, 1
    %p210 = por %p208, %p209
    %p211 = scmp.ne.s32.totalorder %s200, %s201
    %p212 = scmp.eq.s32.totalorder %s20, 0
    %p213 = por %p211, %p212
    %p214 = scmp.ne.s32.totalorder %s200, %s201
    %p215 = scmp.eq.s32.totalorder %s21, 1
    %p216 = por %p214, %p215
    %p218 = scmp.ne.s32.totalorder %s201, %s217
    %p219 = scmp.eq.s32.totalorder %s21, 0
    %p220 = por %p218, %p219
    %s221 = ssub.s32 %s22, %s34
    %p222 = scmp.eq.s32.totalorder %s221, 0
    %s224 = sadd.s32 %s223, 1
    %s225 = scalar_select %p222, %s223, %s224
    %p228 = pneg %p222
    %p229 = scmp.eq.s32.totalorder %s15, 1
    %p230 = por %p228, %p229
    %p231 = scmp.ne.s32.totalorder %s223, %s226
    %p232 = scmp.eq.s32.totalorder %s15, 0
    %p233 = por %p231, %p232
    %p234 = scmp.ne.s32.totalorder %s223, %s226
    %p235 = scmp.eq.s32.totalorder %s20, 1
    %p236 = por %p234, %p235
    %p237 = scmp.ne.s32.totalorder %s226, %s227
    %p238 = scmp.eq.s32.totalorder %s20, 0
    %p239 = por %p237, %p238
    %p240 = scmp.ne.s32.totalorder %s226, %s227
    %p241 = scmp.eq.s32.totalorder %s21, 1
    %p242 = por %p240, %p241
    %p244 = scmp.ne.s32.totalorder %s227, %s243
    %p245 = scmp.eq.s32.totalorder %s21, 0
    %p246 = por %p244, %p245
    %s247 = ssub.s32 %s22, %s34
    %p248 = scmp.eq.s32.totalorder %s247, 0
    %s250 = sadd.s32 %s249, 1
    %s251 = scalar_select %p248, %s249, %s250
    %p254 = pneg %p248
    %p255 = scmp.eq.s32.totalorder %s15, 1
    %p256 = por %p254, %p255
    %p257 = scmp.ne.s32.totalorder %s249, %s252
    %p258 = scmp.eq.s32.totalorder %s15, 0
    %p259 = por %p257, %p258
    %p260 = scmp.ne.s32.totalorder %s249, %s252
    %p261 = scmp.eq.s32.totalorder %s20, 1
    %p262 = por %p260, %p261
    %p263 = scmp.ne.s32.totalorder %s252, %s253
    %p264 = scmp.eq.s32.totalorder %s20, 0
    %p265 = por %p263, %p264
    %p266 = scmp.ne.s32.totalorder %s252, %s253
    %p267 = scmp.eq.s32.totalorder %s21, 1
    %p268 = por %p266, %p267
    %p270 = scmp.ne.s32.totalorder %s253, %s269
    %p271 = scmp.eq.s32.totalorder %s21, 0
    %p272 = por %p270, %p271
    %p273 = scmp.le.s32.totalorder 1, %s15
    %p274 = scmp.lt.s32.totalorder %s15, 3
    %p275 = pnand %p273, %p274
    %p276 = pneg %p275
    // Predicated region
    $region9: #{residual_block_forward.4} parent=5 // pred_check
      _
    $region10: #{residual_block_forward.4} parent=5 // pred_check_branch
      %278 = sbr.rel (%p275) target = $region12
    $region11: #{residual_block_forward.4} parent=5 // pred_region
      %s279 = ssub.s32 %s15, 1
      // Predicated region
      $region13: #{residual_block_forward.4} parent=11 // pred_check
        %p280 = pneg %p79
      $region14: #{residual_block_forward.4} parent=11 // pred_check_branch
        %282 = sbr.rel (%p280) target = $region16
      $region15: #{residual_block_forward.4} parent=11 // pred_region
        %p283 = scmp.lt.s32.totalorder %s24, 0
        %s284 = scalar_select %p283, %s24, 0
        %s285 = smul.addr %s284, 4
        %s286 = scalar_lea.vmem %s1, %s285
      $region16: #{residual_block_forward.4} parent=11 // pred_fallthru
        _
      // Predicated region
      $region17: #{residual_block_forward.4} parent=11 // pred_check
        %p287 = pneg %p105
      $region18: #{residual_block_forward.4} parent=11 // pred_check_branch
        %289 = sbr.rel (%p287) target = $region20
      $region19: #{residual_block_forward.4} parent=11 // pred_region
        %p290 = scmp.lt.s32.totalorder %s24, 0
        %s291 = scalar_select %p290, %s24, 0
        %s292 = scalar_lea.vmem %s2, %s291
      $region20: #{residual_block_forward.4} parent=11 // pred_fallthru
        _
      // Predicated region
      $region21: #{residual_block_forward.4} parent=11 // pred_check
        %p293 = pneg %p131
      $region22: #{residual_block_forward.4} parent=11 // pred_check_branch
        %295 = sbr.rel (%p293) target = $region24
      $region23: #{residual_block_forward.4} parent=11 // pred_region
        %p296 = scmp.lt.s32.totalorder %s24, 0
        %s297 = scalar_select %p296, %s24, 0
        %s298 = smul.addr %s297, 2
        %s299 = scalar_lea.vmem %s3, %s298
      $region24: #{residual_block_forward.4} parent=11 // pred_fallthru
        _
      // Predicated region
      $region25: #{residual_block_forward.4} parent=11 // pred_check
        %p300 = pneg %p157
      $region26: #{residual_block_forward.4} parent=11 // pred_check_branch
        %302 = sbr.rel (%p300) target = $region28
      $region27: #{residual_block_forward.4} parent=11 // pred_region
        %p303 = scmp.lt.s32.totalorder %s24, 0
        %s304 = scalar_select %p303, %s24, 0
        %s305 = scalar_lea.vmem %s4, %s304
      $region28: #{residual_block_forward.4} parent=11 // pred_fallthru
        _
    $region12: #{residual_block_forward.4} parent=5 // pred_fallthru
      _
    %p306 = scmp.lt.s32.totalorder %s15, 2
    // Predicated region
    $region29: #{residual_block_forward.4} parent=5 // pred_check
      %p307 = pneg %p306
    $region30: #{residual_block_forward.4} parent=5 // pred_check_branch
      %309 = sbr.rel (%p307) target = $region32
    $region31: #{residual_block_forward.4} parent=5 // pred_region
      // Predicated region
      $region33: #{residual_block_forward.4} parent=31 // pred_check
        %p310 = pneg %p47
      $region34: #{residual_block_forward.4} parent=31 // pred_check_branch
        %312 = sbr.rel (%p310) target = $region36
      $region35: #{residual_block_forward.4} parent=31 // pred_region
        %p313 = scmp.lt.s32.totalorder %s23, 1
        %s314 = scalar_select %p313, %s23, 1
        %s315 = smul.addr %s314, 54
        %s316 = smul.addr %s315, 4
        %s317 = scalar_lea.vmem %s0, %s316
      $region36: #{residual_block_forward.4} parent=31 // pred_fallthru
        _
    $region32: #{residual_block_forward.4} parent=5 // pred_fallthru
      _
    %p318 = scmp.le.s32.totalorder 1, %s15
    %p319 = scmp.lt.s32.totalorder %s15, 3
    %p320 = pnand %p318, %p319
    %p321 = pneg %p320
    // Predicated region
    $region37: #{residual_block_forward.4} parent=5 // pred_check
      _
    $region38: #{residual_block_forward.4} parent=5 // pred_check_branch
      %323 = sbr.rel (%p320) target = $region40
    $region39: #{residual_block_forward.4} parent=5 // pred_region
      %s324 = ssub.s32 %s15, 1
      %p325 = scmp.lt.s32.totalorder %s25, 1
      %s326 = scalar_select %p325, %s25, 1
      %s327 = smul.addr %s326, 54
      %s328 = smul.addr %s327, 4
      %s329 = scalar_lea.vmem %s0, %s328
      %p330 = pneg %p53
      %p331 = pneg %p50
      %p332 = scmp.lt.s32.totalorder %s24, 0
      %s333 = scalar_select %p332, %s24, 0
      %s334 = smul.addr %s333, 4
      %s335 = scalar_lea.vmem %s1, %s334
      %p336 = pneg %p79
      %p337 = pneg %p76
      %p338 = scmp.lt.s32.totalorder %s24, 0
      %s339 = scalar_select %p338, %s24, 0
      %s340 = scalar_lea.vmem %s2, %s339
      %p341 = pneg %p105
      %p342 = pneg %p102
      %p343 = scmp.lt.s32.totalorder %s24, 0
      %s344 = scalar_select %p343, %s24, 0
      %s345 = smul.addr %s344, 2
      %s346 = scalar_lea.vmem %s3, %s345
      %p347 = pneg %p131
      %p348 = pneg %p128
      %p349 = scmp.lt.s32.totalorder %s24, 0
      %s350 = scalar_select %p349, %s24, 0
      %s351 = scalar_lea.vmem %s4, %s350
      %p352 = pneg %p157
      %p353 = pneg %p154
      %p354 = pneg %p185
      %p355 = pneg %p182
      %p356 = scmp.lt.s32.totalorder %s25, 1
      %s357 = scalar_select %p356, %s25, 1
      %p358 = scmp.lt.s32.totalorder %s24, 0
      %s359 = scalar_select %p358, %s24, 0
      %s360 = smul.addr %s357, 32
      %s361 = sadd.s32 %s359, %s360
      %s362 = smul.addr %s361, 4
      %s363 = scalar_lea.vmem %s5, %s362
      %p364 = pneg %p213
      %p365 = pneg %p210
      %p366 = scmp.lt.s32.totalorder %s25, 1
      %s367 = scalar_select %p366, %s25, 1
      %p368 = scmp.lt.s32.totalorder %s24, 0
      %s369 = scalar_select %p368, %s24, 0
      %s370 = smul.addr %s367, 32
      %s371 = sadd.s32 %s369, %s370
      %s372 = smul.addr %s371, 4
      %s373 = scalar_lea.vmem %s6, %s372
      %p374 = pneg %p239
      %p375 = pneg %p236
      %p376 = scmp.lt.s32.totalorder %s24, 0
      %s377 = scalar_select %p376, %s24, 0
      %s378 = scalar_lea.vmem %s7, %s377
      %p379 = pneg %p265
      %p380 = pneg %p262
      %p381 = scmp.lt.s32.totalorder %s24, 0
      %s382 = scalar_select %p381, %s24, 0
      %s383 = scalar_lea.vmem %s8, %s382
      %p384 = scmp.lt.s32.totalorder %s25, 1
      %s385 = scalar_select %p384, %s25, 1
      %s386 = smul.addr %s385, 54
      %s387 = smul.addr %s386, 4
      %s388 = scalar_lea.vmem %s0, %s387
      %p389 = scmp.lt.s32.totalorder %s24, 0
      %s390 = scalar_select %p389, %s24, 0
      %s391 = smul.addr %s390, 4
      %s392 = scalar_lea.vmem %s1, %s391
      %p393 = scmp.lt.s32.totalorder %s24, 0
      %s394 = scalar_select %p393, %s24, 0
      %s395 = scalar_lea.vmem %s2, %s394
      %p396 = scmp.lt.s32.totalorder %s24, 0
      %s397 = scalar_select %p396, %s24, 0
      %s398 = smul.addr %s397, 2
      %s399 = scalar_lea.vmem %s3, %s398
      %p400 = scmp.lt.s32.totalorder %s24, 0
      %s401 = scalar_select %p400, %s24, 0
      %s402 = scalar_lea.vmem %s4, %s401
      %p403 = scmp.lt.s32.totalorder %s25, 1
      %s404 = scalar_select %p403, %s25, 1
      %p405 = scmp.lt.s32.totalorder %s24, 0
      %s406 = scalar_select %p405, %s24, 0
      %s407 = smul.addr %s404, 32
      %s408 = sadd.s32 %s406, %s407
      %s409 = smul.addr %s408, 4
      %s410 = scalar_lea.vmem %s5, %s409
      %p411 = scmp.lt.s32.totalorder %s25, 1
      %s412 = scalar_select %p411, %s25, 1
      %p413 = scmp.lt.s32.totalorder %s24, 0
      %s414 = scalar_select %p413, %s24, 0
      %s415 = smul.addr %s412, 32
      %s416 = sadd.s32 %s414, %s415
      %s417 = smul.addr %s416, 4
      %s418 = scalar_lea.vmem %s6, %s417
      %p419 = scmp.lt.s32.totalorder %s24, 0
      %s420 = scalar_select %p419, %s24, 0
      %s421 = scalar_lea.vmem %s7, %s420
      %p422 = scmp.lt.s32.totalorder %s24, 0
      %s423 = scalar_select %p422, %s24, 0
      %s424 = scalar_lea.vmem %s8, %s423
      %v426 = vld [vmem:[%s388] sm:$0xf]
      %v427 = vld [vmem:[%s388 + $0x4] sm:$0xf]
      %v428 = vld [vmem:[%s388 + $0xc] sm:$0xf]
      %v429 = vld [vmem:[%s388 + $0x10] sm:$0xf]
      %v430 = vld [vmem:[%s388 + $0x18] sm:$0xf]
      %v431 = vld [vmem:[%s388 + $0x1c] sm:$0xf]
      %v432 = vld [vmem:[%s388 + $0x24] sm:$0xf]
      %v433 = vld [vmem:[%s388 + $0x28] sm:$0xf]
      %v434 = vld [vmem:[%s388 + $0x30] sm:$0xf]
      %v435 = vld [vmem:[%s388 + $0x34] sm:$0xf]
      %v436 = vld [vmem:[%s388 + $0x3c] sm:$0xf]
      %v437 = vld [vmem:[%s388 + $0x40] sm:$0xf]
      %v438 = vld [vmem:[%s388 + $0x48] sm:$0xf]
      %v439 = vld [vmem:[%s388 + $0x4c] sm:$0xf]
      %v440 = vld [vmem:[%s388 + $0x54] sm:$0xf]
      %v441 = vld [vmem:[%s388 + $0x58] sm:$0xf]
      %v442 = vld [vmem:[%s388 + $0x60] sm:$0xf]
      %v443 = vld [vmem:[%s388 + $0x64] sm:$0xf]
      %v444 = vld [vmem:[%s388 + $0x6c] sm:$0xf]
      %v445 = vld [vmem:[%s388 + $0x70] sm:$0xf]
      %v446 = vld [vmem:[%s388 + $0x78] sm:$0xf]
      %v447 = vld [vmem:[%s388 + $0x7c] sm:$0xf]
      %v448 = vld [vmem:[%s388 + $0x84] sm:$0xf]
      %v449 = vld [vmem:[%s388 + $0x88] sm:$0xf]
      %v450 = vld [vmem:[%s388 + $0x90] sm:$0xf]
      %v451 = vld [vmem:[%s388 + $0x94] sm:$0xf]
      %v452 = vld [vmem:[%s388 + $0x9c] sm:$0xf]
      %v453 = vld [vmem:[%s388 + $0xa0] sm:$0xf]
      %v454 = vld [vmem:[%s388 + $0xa8] sm:$0xf]
      %v455 = vld [vmem:[%s388 + $0xac] sm:$0xf]
      %v456 = vld [vmem:[%s388 + $0xb4] sm:$0xf]
      %v457 = vld [vmem:[%s388 + $0xb8] sm:$0xf]
      %v458 = vld [vmem:[%s388 + $0x8] sm:$0x1]
      %v459 = vld [vmem:[%s388 + $0x14] sm:$0x1]
      %v460 = vld [vmem:[%s388 + $0x20] sm:$0x1]
      %v461 = vld [vmem:[%s388 + $0x2c] sm:$0x1]
      %v462 = vld [vmem:[%s388 + $0x38] sm:$0x1]
      %v463 = vld [vmem:[%s388 + $0x44] sm:$0x1]
      %v464 = vld [vmem:[%s388 + $0x50] sm:$0x1]
      %v465 = vld [vmem:[%s388 + $0x5c] sm:$0x1]
      %v466 = vld [vmem:[%s388 + $0x68] sm:$0x1]
      %v467 = vld [vmem:[%s388 + $0x74] sm:$0x1]
      %v468 = vld [vmem:[%s388 + $0x80] sm:$0x1]
      %v469 = vld [vmem:[%s388 + $0x8c] sm:$0x1]
      %v470 = vld [vmem:[%s388 + $0x98] sm:$0x1]
      %v471 = vld [vmem:[%s388 + $0xa4] sm:$0x1]
      %v472 = vld [vmem:[%s388 + $0xb0] sm:$0x1]
      %v473 = vld [vmem:[%s388 + $0xbc] sm:$0x1]
      %vm474 = vsmask.f32 3328
      %vm475 = vsmask.f32 7440
      %vm476 = vmor %vm474, %vm475
      %v478 = vshrl.u32 %v426, 16
      %v480 = vrot.slane %v478, 4
      %v481 = vshll.u32 %v426, 16
      %v483 = vrot.slane %v481, 5
      %v484 = vor.u32 %v480, %v483
      %v485 = vrot.slane %v484, 4
      %v487 = vshll.u32 %v427, 16
      %v489 = vrot.slane %v487, 5
      %v490 = vsel %vm476, %v485, %v489
      %v491 = vshrl.u32 %v427, 16
      %v493 = vrot.slane %v491, 4
      %v494 = vor.u32 %v493, %v489
      %v495 = vrot.slane %v494, 4
      %v497 = vshll.u32 %v458, 16
      %v499 = vrot.slane %v497, 5
      %v500 = vsel %vm476, %v495, %v499
      %v502 = vshrl.u32 %v428, 16
      %v504 = vrot.slane %v502, 4
      %v505 = vshll.u32 %v428, 16
      %v507 = vrot.slane %v505, 5
      %v508 = vor.u32 %v504, %v507
      %v509 = vrot.slane %v508, 4
      %v511 = vshll.u32 %v429, 16
      %v513 = vrot.slane %v511, 5
      %v514 = vsel %vm476, %v509, %v513
      %v515 = vshrl.u32 %v429, 16
      %v517 = vrot.slane %v515, 4
      %v518 = vor.u32 %v517, %v513
      %v519 = vrot.slane %v518, 4
      %v521 = vshll.u32 %v459, 16
      %v523 = vrot.slane %v521, 5
      %v524 = vsel %vm476, %v519, %v523
      %v526 = vshrl.u32 %v430, 16
      %v528 = vrot.slane %v526, 4
      %v529 = vshll.u32 %v430, 16
      %v531 = vrot.slane %v529, 5
      %v532 = vor.u32 %v528, %v531
      %v533 = vrot.slane %v532, 4
      %v535 = vshll.u32 %v431, 16
      %v537 = vrot.slane %v535, 5
      %v538 = vsel %vm476, %v533, %v537
      %v539 = vshrl.u32 %v431, 16
      %v541 = vrot.slane %v539, 4
      %v542 = vor.u32 %v541, %v537
      %v543 = vrot.slane %v542, 4
      %v545 = vshll.u32 %v460, 16
      %v547 = vrot.slane %v545, 5
      %v548 = vsel %vm476, %v543, %v547
      %v550 = vshrl.u32 %v432, 16
      %v552 = vrot.slane %v550, 4
      %v553 = vshll.u32 %v432, 16
      %v555 = vrot.slane %v553, 5
      %v556 = vor.u32 %v552, %v555
      %v557 = vrot.slane %v556, 4
      %v559 = vshll.u32 %v433, 16
      %v561 = vrot.slane %v559, 5
      %v562 = vsel %vm476, %v557, %v561
      %v563 = vshrl.u32 %v433, 16
      %v565 = vrot.slane %v563, 4
      %v566 = vor.u32 %v565, %v561
      %v567 = vrot.slane %v566, 4
      %v569 = vshll.u32 %v461, 16
      %v571 = vrot.slane %v569, 5
      %v572 = vsel %vm476, %v567, %v571
      %v574 = vshrl.u32 %v434, 16
      %v576 = vrot.slane %v574, 4
      %v577 = vshll.u32 %v434, 16
      %v579 = vrot.slane %v577, 5
      %v580 = vor.u32 %v576, %v579
      %v581 = vrot.slane %v580, 4
      %v583 = vshll.u32 %v435, 16
      %v585 = vrot.slane %v583, 5
      %v586 = vsel %vm476, %v581, %v585
      %v587 = vshrl.u32 %v435, 16
      %v589 = vrot.slane %v587, 4
      %v590 = vor.u32 %v589, %v585
      %v591 = vrot.slane %v590, 4
      %v593 = vshll.u32 %v462, 16
      %v595 = vrot.slane %v593, 5
      %v596 = vsel %vm476, %v591, %v595
      %v598 = vshrl.u32 %v436, 16
      %v600 = vrot.slane %v598, 4
      %v601 = vshll.u32 %v436, 16
      %v603 = vrot.slane %v601, 5
      %v604 = vor.u32 %v600, %v603
      %v605 = vrot.slane %v604, 4
      %v607 = vshll.u32 %v437, 16
      %v609 = vrot.slane %v607, 5
      %v610 = vsel %vm476, %v605, %v609
      %v611 = vshrl.u32 %v437, 16
      %v613 = vrot.slane %v611, 4
      %v614 = vor.u32 %v613, %v609
      %v615 = vrot.slane %v614, 4
      %v617 = vshll.u32 %v463, 16
      %v619 = vrot.slane %v617, 5
      %v620 = vsel %vm476, %v615, %v619
      %v622 = vshrl.u32 %v438, 16
      %v624 = vrot.slane %v622, 4
      %v625 = vshll.u32 %v438, 16
      %v627 = vrot.slane %v625, 5
      %v628 = vor.u32 %v624, %v627
      %v629 = vrot.slane %v628, 4
      %v631 = vshll.u32 %v439, 16
      %v633 = vrot.slane %v631, 5
      %v634 = vsel %vm476, %v629, %v633
      %v635 = vshrl.u32 %v439, 16
      %v637 = vrot.slane %v635, 4
      %v638 = vor.u32 %v637, %v633
      %v639 = vrot.slane %v638, 4
      %v641 = vshll.u32 %v464, 16
      %v643 = vrot.slane %v641, 5
      %v644 = vsel %vm476, %v639, %v643
      %v646 = vshrl.u32 %v440, 16
      %v648 = vrot.slane %v646, 4
      %v649 = vshll.u32 %v440, 16
      %v651 = vrot.slane %v649, 5
      %v652 = vor.u32 %v648, %v651
      %v653 = vrot.slane %v652, 4
      %v655 = vshll.u32 %v441, 16
      %v657 = vrot.slane %v655, 5
      %v658 = vsel %vm476, %v653, %v657
      %v659 = vshrl.u32 %v441, 16
      %v661 = vrot.slane %v659, 4
      %v662 = vor.u32 %v661, %v657
      %v663 = vrot.slane %v662, 4
      %v665 = vshll.u32 %v465, 16
      %v667 = vrot.slane %v665, 5
      %v668 = vsel %vm476, %v663, %v667
      %v670 = vshrl.u32 %v442, 16
      %v672 = vrot.slane %v670, 4
      %v673 = vshll.u32 %v442, 16
      %v675 = vrot.slane %v673, 5
      %v676 = vor.u32 %v672, %v675
      %v677 = vrot.slane %v676, 4
      %v679 = vshll.u32 %v443, 16
      %v681 = vrot.slane %v679, 5
      %v682 = vsel %vm476, %v677, %v681
      %v683 = vshrl.u32 %v443, 16
      %v685 = vrot.slane %v683, 4
      %v686 = vor.u32 %v685, %v681
      %v687 = vrot.slane %v686, 4
      %v689 = vshll.u32 %v466, 16
      %v691 = vrot.slane %v689, 5
      %v692 = vsel %vm476, %v687, %v691
      %v694 = vshrl.u32 %v444, 16
      %v696 = vrot.slane %v694, 4
      %v697 = vshll.u32 %v444, 16
      %v699 = vrot.slane %v697, 5
      %v700 = vor.u32 %v696, %v699
      %v701 = vrot.slane %v700, 4
      %v703 = vshll.u32 %v445, 16
      %v705 = vrot.slane %v703, 5
      %v706 = vsel %vm476, %v701, %v705
      %v707 = vshrl.u32 %v445, 16
      %v709 = vrot.slane %v707, 4
      %v710 = vor.u32 %v709, %v705
      %v711 = vrot.slane %v710, 4
      %v713 = vshll.u32 %v467, 16
      %v715 = vrot.slane %v713, 5
      %v716 = vsel %vm476, %v711, %v715
      %v718 = vshrl.u32 %v446, 16
      %v720 = vrot.slane %v718, 4
      %v721 = vshll.u32 %v446, 16
      %v723 = vrot.slane %v721, 5
      %v724 = vor.u32 %v720, %v723
      %v725 = vrot.slane %v724, 4
      %v727 = vshll.u32 %v447, 16
      %v729 = vrot.slane %v727, 5
      %v730 = vsel %vm476, %v725, %v729
      %v731 = vshrl.u32 %v447, 16
      %v733 = vrot.slane %v731, 4
      %v734 = vor.u32 %v733, %v729
      %v735 = vrot.slane %v734, 4
      %v737 = vshll.u32 %v468, 16
      %v739 = vrot.slane %v737, 5
      %v740 = vsel %vm476, %v735, %v739
      %v742 = vshrl.u32 %v448, 16
      %v744 = vrot.slane %v742, 4
      %v745 = vshll.u32 %v448, 16
      %v747 = vrot.slane %v745, 5
      %v748 = vor.u32 %v744, %v747
      %v749 = vrot.slane %v748, 4
      %v751 = vshll.u32 %v449, 16
      %v753 = vrot.slane %v751, 5
      %v754 = vsel %vm476, %v749, %v753
      %v755 = vshrl.u32 %v449, 16
      %v757 = vrot.slane %v755, 4
      %v758 = vor.u32 %v757, %v753
      %v759 = vrot.slane %v758, 4
      %v761 = vshll.u32 %v469, 16
      %v763 = vrot.slane %v761, 5
      %v764 = vsel %vm476, %v759, %v763
      %v766 = vshrl.u32 %v450, 16
      %v768 = vrot.slane %v766, 4
      %v769 = vshll.u32 %v450, 16
      %v771 = vrot.slane %v769, 5
      %v772 = vor.u32 %v768, %v771
      %v773 = vrot.slane %v772, 4
      %v775 = vshll.u32 %v451, 16
      %v777 = vrot.slane %v775, 5
      %v778 = vsel %vm476, %v773, %v777
      %v779 = vshrl.u32 %v451, 16
      %v781 = vrot.slane %v779, 4
      %v782 = vor.u32 %v781, %v777
      %v783 = vrot.slane %v782, 4
      %v785 = vshll.u32 %v470, 16
      %v787 = vrot.slane %v785, 5
      %v788 = vsel %vm476, %v783, %v787
      %v790 = vshrl.u32 %v452, 16
      %v792 = vrot.slane %v790, 4
      %v793 = vshll.u32 %v452, 16
      %v795 = vrot.slane %v793, 5
      %v796 = vor.u32 %v792, %v795
      %v797 = vrot.slane %v796, 4
      %v799 = vshll.u32 %v453, 16
      %v801 = vrot.slane %v799, 5
      %v802 = vsel %vm476, %v797, %v801
      %v803 = vshrl.u32 %v453, 16
      %v805 = vrot.slane %v803, 4
      %v806 = vor.u32 %v805, %v801
      %v807 = vrot.slane %v806, 4
      %v809 = vshll.u32 %v471, 16
      %v811 = vrot.slane %v809, 5
      %v812 = vsel %vm476, %v807, %v811
      %v814 = vshrl.u32 %v454, 16
      %v816 = vrot.slane %v814, 4
      %v817 = vshll.u32 %v454, 16
      %v819 = vrot.slane %v817, 5
      %v820 = vor.u32 %v816, %v819
      %v821 = vrot.slane %v820, 4
      %v823 = vshll.u32 %v455, 16
      %v825 = vrot.slane %v823, 5
      %v826 = vsel %vm476, %v821, %v825
      %v827 = vshrl.u32 %v455, 16
      %v829 = vrot.slane %v827, 4
      %v830 = vor.u32 %v829, %v825
      %v831 = vrot.slane %v830, 4
      %v833 = vshll.u32 %v472, 16
      %v835 = vrot.slane %v833, 5
      %v836 = vsel %vm476, %v831, %v835
      %v838 = vshrl.u32 %v456, 16
      %v840 = vrot.slane %v838, 4
      %v841 = vshll.u32 %v456, 16
      %v843 = vrot.slane %v841, 5
      %v844 = vor.u32 %v840, %v843
      %v845 = vrot.slane %v844, 4
      %v847 = vshll.u32 %v457, 16
      %v849 = vrot.slane %v847, 5
      %v850 = vsel %vm476, %v845, %v849
      %v851 = vshrl.u32 %v457, 16
      %v853 = vrot.slane %v851, 4
      %v854 = vor.u32 %v853, %v849
      %v855 = vrot.slane %v854, 4
      %v857 = vshll.u32 %v473, 16
      %v859 = vrot.slane %v857, 5
      %v860 = vsel %vm476, %v855, %v859
      %v861 = vld [vmem:[%s388] sm:$0xe]
      %v862 = vld [vmem:[%s388 + $0xc] sm:$0xe]
      %v863 = vld [vmem:[%s388 + $0x18] sm:$0xe]
      %v864 = vld [vmem:[%s388 + $0x24] sm:$0xe]
      %v865 = vld [vmem:[%s388 + $0x30] sm:$0xe]
      %v866 = vld [vmem:[%s388 + $0x3c] sm:$0xe]
      %v867 = vld [vmem:[%s388 + $0x48] sm:$0xe]
      %v868 = vld [vmem:[%s388 + $0x54] sm:$0xe]
      %v869 = vld [vmem:[%s388 + $0x60] sm:$0xe]
      %v870 = vld [vmem:[%s388 + $0x6c] sm:$0xe]
      %v871 = vld [vmem:[%s388 + $0x78] sm:$0xe]
      %v872 = vld [vmem:[%s388 + $0x84] sm:$0xe]
      %v873 = vld [vmem:[%s388 + $0x90] sm:$0xe]
      %v874 = vld [vmem:[%s388 + $0x9c] sm:$0xe]
      %v875 = vld [vmem:[%s388 + $0xa8] sm:$0xe]
      %v876 = vld [vmem:[%s388 + $0xb4] sm:$0xe]
      %vm925 = vcmask 1042432
      %vm926 = vcmask 1046532
      %vm927 = vmor %vm925, %vm926
      %v928 = vrot.slane %v861, 5
      %v929 = vrot.slane %v928, 4
      %v930 = vrot.slane %v427, 5
      %v931 = vsel %vm927, %v929, %v930
      %v932 = vrot.slane %v930, 4
      %v933 = vrot.slane %v458, 5
      %v934 = vsel %vm927, %v932, %v933
      %v935 = vrot.slane %v862, 5
      %v936 = vrot.slane %v935, 4
      %v937 = vrot.slane %v429, 5
      %v938 = vsel %vm927, %v936, %v937
      %v939 = vrot.slane %v937, 4
      %v940 = vrot.slane %v459, 5
      %v941 = vsel %vm927, %v939, %v940
      %v942 = vrot.slane %v863, 5
      %v943 = vrot.slane %v942, 4
      %v944 = vrot.slane %v431, 5
      %v945 = vsel %vm927, %v943, %v944
      %v946 = vrot.slane %v944, 4
      %v947 = vrot.slane %v460, 5
      %v948 = vsel %vm927, %v946, %v947
      %v949 = vrot.slane %v864, 5
      %v950 = vrot.slane %v949, 4
      %v951 = vrot.slane %v433, 5
      %v952 = vsel %vm927, %v950, %v951
      %v953 = vrot.slane %v951, 4
      %v954 = vrot.slane %v461, 5
      %v955 = vsel %vm927, %v953, %v954
      %v956 = vrot.slane %v865, 5
      %v957 = vrot.slane %v956, 4
      %v958 = vrot.slane %v435, 5
      %v959 = vsel %vm927, %v957, %v958
      %v960 = vrot.slane %v958, 4
      %v961 = vrot.slane %v462, 5
      %v962 = vsel %vm927, %v960, %v961
      %v963 = vrot.slane %v866, 5
      %v964 = vrot.slane %v963, 4
      %v965 = vrot.slane %v437, 5
      %v966 = vsel %vm927, %v964, %v965
      %v967 = vrot.slane %v965, 4
      %v968 = vrot.slane %v463, 5
      %v969 = vsel %vm927, %v967, %v968
      %v970 = vrot.slane %v867, 5
      %v971 = vrot.slane %v970, 4
      %v972 = vrot.slane %v439, 5
      %v973 = vsel %vm927, %v971, %v972
      %v974 = vrot.slane %v972, 4
      %v975 = vrot.slane %v464, 5
      %v976 = vsel %vm927, %v974, %v975
      %v977 = vrot.slane %v868, 5
      %v978 = vrot.slane %v977, 4
      %v979 = vrot.slane %v441, 5
      %v980 = vsel %vm927, %v978, %v979
      %v981 = vrot.slane %v979, 4
      %v982 = vrot.slane %v465, 5
      %v983 = vsel %vm927, %v981, %v982
      %v984 = vrot.slane %v869, 5
      %v985 = vrot.slane %v984, 4
      %v986 = vrot.slane %v443, 5
      %v987 = vsel %vm927, %v985, %v986
      %v988 = vrot.slane %v986, 4
      %v989 = vrot.slane %v466, 5
      %v990 = vsel %vm927, %v988, %v989
      %v991 = vrot.slane %v870, 5
      %v992 = vrot.slane %v991, 4
      %v993 = vrot.slane %v445, 5
      %v994 = vsel %vm927, %v992, %v993
      %v995 = vrot.slane %v993, 4
      %v996 = vrot.slane %v467, 5
      %v997 = vsel %vm927, %v995, %v996
      %v998 = vrot.slane %v871, 5
      %v999 = vrot.slane %v998, 4
      %v1000 = vrot.slane %v447, 5
      %v1001 = vsel %vm927, %v999, %v1000
      %v1002 = vrot.slane %v1000, 4
      %v1003 = vrot.slane %v468, 5
      %v1004 = vsel %vm927, %v1002, %v1003
      %v1005 = vrot.slane %v872, 5
      %v1006 = vrot.slane %v1005, 4
      %v1007 = vrot.slane %v449, 5
      %v1008 = vsel %vm927, %v1006, %v1007
      %v1009 = vrot.slane %v1007, 4
      %v1010 = vrot.slane %v469, 5
      %v1011 = vsel %vm927, %v1009, %v1010
      %v1012 = vrot.slane %v873, 5
      %v1013 = vrot.slane %v1012, 4
      %v1014 = vrot.slane %v451, 5
      %v1015 = vsel %vm927, %v1013, %v1014
      %v1016 = vrot.slane %v1014, 4
      %v1017 = vrot.slane %v470, 5
      %v1018 = vsel %vm927, %v1016, %v1017
      %v1019 = vrot.slane %v874, 5
      %v1020 = vrot.slane %v1019, 4
      %v1021 = vrot.slane %v453, 5
      %v1022 = vsel %vm927, %v1020, %v1021
      %v1023 = vrot.slane %v1021, 4
      %v1024 = vrot.slane %v471, 5
      %v1025 = vsel %vm927, %v1023, %v1024
      %v1026 = vrot.slane %v875, 5
      %v1027 = vrot.slane %v1026, 4
      %v1028 = vrot.slane %v455, 5
      %v1029 = vsel %vm927, %v1027, %v1028
      %v1030 = vrot.slane %v1028, 4
      %v1031 = vrot.slane %v472, 5
      %v1032 = vsel %vm927, %v1030, %v1031
      %v1033 = vrot.slane %v876, 5
      %v1034 = vrot.slane %v1033, 4
      %v1035 = vrot.slane %v457, 5
      %v1036 = vsel %vm927, %v1034, %v1035
      %v1037 = vrot.slane %v1035, 4
      %v1038 = vrot.slane %v473, 5
      %v1039 = vsel %vm927, %v1037, %v1038
      %s1040 = scalar_lea.vmem %s388, 12
      %v1041 = vld [vmem:[%s1040] sm:$0xf]
      %v1042 = vld [vmem:[%s1040 + $0x4] sm:$0xf]
      %v1043 = vld [vmem:[%s1040 + $0xc] sm:$0xf]
      %v1044 = vld [vmem:[%s1040 + $0x10] sm:$0xf]
      %v1045 = vld [vmem:[%s1040 + $0x18] sm:$0xf]
      %v1046 = vld [vmem:[%s1040 + $0x1c] sm:$0xf]
      %v1047 = vld [vmem:[%s1040 + $0x24] sm:$0xf]
      %v1048 = vld [vmem:[%s1040 + $0x28] sm:$0xf]
      %v1049 = vld [vmem:[%s1040 + $0x30] sm:$0xf]
      %v1050 = vld [vmem:[%s1040 + $0x34] sm:$0xf]
      %v1051 = vld [vmem:[%s1040 + $0x3c] sm:$0xf]
      %v1052 = vld [vmem:[%s1040 + $0x40] sm:$0xf]
      %v1053 = vld [vmem:[%s1040 + $0x48] sm:$0xf]
      %v1054 = vld [vmem:[%s1040 + $0x4c] sm:$0xf]
      %v1055 = vld [vmem:[%s1040 + $0x54] sm:$0xf]
      %v1056 = vld [vmem:[%s1040 + $0x58] sm:$0xf]
      %v1057 = vld [vmem:[%s1040 + $0x60] sm:$0xf]
      %v1058 = vld [vmem:[%s1040 + $0x64] sm:$0xf]
      %v1059 = vld [vmem:[%s1040 + $0x6c] sm:$0xf]
      %v1060 = vld [vmem:[%s1040 + $0x70] sm:$0xf]
      %v1061 = vld [vmem:[%s1040 + $0x78] sm:$0xf]
      %v1062 = vld [vmem:[%s1040 + $0x7c] sm:$0xf]
      %v1063 = vld [vmem:[%s1040 + $0x84] sm:$0xf]
      %v1064 = vld [vmem:[%s1040 + $0x88] sm:$0xf]
      %v1065 = vld [vmem:[%s1040 + $0x90] sm:$0xf]
      %v1066 = vld [vmem:[%s1040 + $0x94] sm:$0xf]
      %v1067 = vld [vmem:[%s1040 + $0x9c] sm:$0xf]
      %v1068 = vld [vmem:[%s1040 + $0xa0] sm:$0xf]
      %v1069 = vld [vmem:[%s1040 + $0xa8] sm:$0xf]
      %v1070 = vld [vmem:[%s1040 + $0xac] sm:$0xf]
      %v1071 = vld [vmem:[%s1040 + $0xb4] sm:$0xf]
      %v1072 = vld [vmem:[%s1040 + $0xb8] sm:$0xf]
      %v1073 = vld [vmem:[%s1040 + $0x8] sm:$0x1]
      %v1074 = vld [vmem:[%s1040 + $0x14] sm:$0x1]
      %v1075 = vld [vmem:[%s1040 + $0x20] sm:$0x1]
      %v1076 = vld [vmem:[%s1040 + $0x2c] sm:$0x1]
      %v1077 = vld [vmem:[%s1040 + $0x38] sm:$0x1]
      %v1078 = vld [vmem:[%s1040 + $0x44] sm:$0x1]
      %v1079 = vld [vmem:[%s1040 + $0x50] sm:$0x1]
      %v1080 = vld [vmem:[%s1040 + $0x5c] sm:$0x1]
      %v1081 = vld [vmem:[%s1040 + $0x68] sm:$0x1]
      %v1082 = vld [vmem:[%s1040 + $0x74] sm:$0x1]
      %v1083 = vld [vmem:[%s1040 + $0x80] sm:$0x1]
      %v1084 = vld [vmem:[%s1040 + $0x8c] sm:$0x1]
      %v1085 = vld [vmem:[%s1040 + $0x98] sm:$0x1]
      %v1086 = vld [vmem:[%s1040 + $0xa4] sm:$0x1]
      %v1087 = vld [vmem:[%s1040 + $0xb0] sm:$0x1]
      %v1088 = vld [vmem:[%s1040 + $0xbc] sm:$0x1]
      %v1090 = vshrl.u32 %v1041, 16
      %v1092 = vrot.slane %v1090, 4
      %v1093 = vshll.u32 %v1041, 16
      %v1095 = vrot.slane %v1093, 5
      %v1096 = vor.u32 %v1092, %v1095
      %v1097 = vrot.slane %v1096, 4
      %v1099 = vshll.u32 %v1042, 16
      %v1101 = vrot.slane %v1099, 5
      %v1102 = vsel %vm476, %v1097, %v1101
      %v1103 = vshrl.u32 %v1042, 16
      %v1105 = vrot.slane %v1103, 4
      %v1106 = vor.u32 %v1105, %v1101
      %v1107 = vrot.slane %v1106, 4
      %v1109 = vshll.u32 %v1073, 16
      %v1111 = vrot.slane %v1109, 5
      %v1112 = vsel %vm476, %v1107, %v1111
      %v1114 = vshrl.u32 %v1043, 16
      %v1116 = vrot.slane %v1114, 4
      %v1117 = vshll.u32 %v1043, 16
      %v1119 = vrot.slane %v1117, 5
      %v1120 = vor.u32 %v1116, %v1119
      %v1121 = vrot.slane %v1120, 4
      %v1123 = vshll.u32 %v1044, 16
      %v1125 = vrot.slane %v1123, 5
      %v1126 = vsel %vm476, %v1121, %v1125
      %v1127 = vshrl.u32 %v1044, 16
      %v1129 = vrot.slane %v1127, 4
      %v1130 = vor.u32 %v1129, %v1125
      %v1131 = vrot.slane %v1130, 4
      %v1133 = vshll.u32 %v1074, 16
      %v1135 = vrot.slane %v1133, 5
      %v1136 = vsel %vm476, %v1131, %v1135
      %v1138 = vshrl.u32 %v1045, 16
      %v1140 = vrot.slane %v1138, 4
      %v1141 = vshll.u32 %v1045, 16
      %v1143 = vrot.slane %v1141, 5
      %v1144 = vor.u32 %v1140, %v1143
      %v1145 = vrot.slane %v1144, 4
      %v1147 = vshll.u32 %v1046, 16
      %v1149 = vrot.slane %v1147, 5
      %v1150 = vsel %vm476, %v1145, %v1149
      %v1151 = vshrl.u32 %v1046, 16
      %v1153 = vrot.slane %v1151, 4
      %v1154 = vor.u32 %v1153, %v1149
      %v1155 = vrot.slane %v1154, 4
      %v1157 = vshll.u32 %v1075, 16
      %v1159 = vrot.slane %v1157, 5
      %v1160 = vsel %vm476, %v1155, %v1159
      %v1162 = vshrl.u32 %v1047, 16
      %v1164 = vrot.slane %v1162, 4
      %v1165 = vshll.u32 %v1047, 16
      %v1167 = vrot.slane %v1165, 5
      %v1168 = vor.u32 %v1164, %v1167
      %v1169 = vrot.slane %v1168, 4
      %v1171 = vshll.u32 %v1048, 16
      %v1173 = vrot.slane %v1171, 5
      %v1174 = vsel %vm476, %v1169, %v1173
      %v1175 = vshrl.u32 %v1048, 16
      %v1177 = vrot.slane %v1175, 4
      %v1178 = vor.u32 %v1177, %v1173
      %v1179 = vrot.slane %v1178, 4
      %v1181 = vshll.u32 %v1076, 16
      %v1183 = vrot.slane %v1181, 5
      %v1184 = vsel %vm476, %v1179, %v1183
      %v1186 = vshrl.u32 %v1049, 16
      %v1188 = vrot.slane %v1186, 4
      %v1189 = vshll.u32 %v1049, 16
      %v1191 = vrot.slane %v1189, 5
      %v1192 = vor.u32 %v1188, %v1191
      %v1193 = vrot.slane %v1192, 4
      %v1195 = vshll.u32 %v1050, 16
      %v1197 = vrot.slane %v1195, 5
      %v1198 = vsel %vm476, %v1193, %v1197
      %v1199 = vshrl.u32 %v1050, 16
      %v1201 = vrot.slane %v1199, 4
      %v1202 = vor.u32 %v1201, %v1197
      %v1203 = vrot.slane %v1202, 4
      %v1205 = vshll.u32 %v1077, 16
      %v1207 = vrot.slane %v1205, 5
      %v1208 = vsel %vm476, %v1203, %v1207
      %v1210 = vshrl.u32 %v1051, 16
      %v1212 = vrot.slane %v1210, 4
      %v1213 = vshll.u32 %v1051, 16
      %v1215 = vrot.slane %v1213, 5
      %v1216 = vor.u32 %v1212, %v1215
      %v1217 = vrot.slane %v1216, 4
      %v1219 = vshll.u32 %v1052, 16
      %v1221 = vrot.slane %v1219, 5
      %v1222 = vsel %vm476, %v1217, %v1221
      %v1223 = vshrl.u32 %v1052, 16
      %v1225 = vrot.slane %v1223, 4
      %v1226 = vor.u32 %v1225, %v1221
      %v1227 = vrot.slane %v1226, 4
      %v1229 = vshll.u32 %v1078, 16
      %v1231 = vrot.slane %v1229, 5
      %v1232 = vsel %vm476, %v1227, %v1231
      %v1234 = vshrl.u32 %v1053, 16
      %v1236 = vrot.slane %v1234, 4
      %v1237 = vshll.u32 %v1053, 16
      %v1239 = vrot.slane %v1237, 5
      %v1240 = vor.u32 %v1236, %v1239
      %v1241 = vrot.slane %v1240, 4
      %v1243 = vshll.u32 %v1054, 16
      %v1245 = vrot.slane %v1243, 5
      %v1246 = vsel %vm476, %v1241, %v1245
      %v1247 = vshrl.u32 %v1054, 16
      %v1249 = vrot.slane %v1247, 4
      %v1250 = vor.u32 %v1249, %v1245
      %v1251 = vrot.slane %v1250, 4
      %v1253 = vshll.u32 %v1079, 16
      %v1255 = vrot.slane %v1253, 5
      %v1256 = vsel %vm476, %v1251, %v1255
      %v1258 = vshrl.u32 %v1055, 16
      %v1260 = vrot.slane %v1258, 4
      %v1261 = vshll.u32 %v1055, 16
      %v1263 = vrot.slane %v1261, 5
      %v1264 = vor.u32 %v1260, %v1263
      %v1265 = vrot.slane %v1264, 4
      %v1267 = vshll.u32 %v1056, 16
      %v1269 = vrot.slane %v1267, 5
      %v1270 = vsel %vm476, %v1265, %v1269
      %v1271 = vshrl.u32 %v1056, 16
      %v1273 = vrot.slane %v1271, 4
      %v1274 = vor.u32 %v1273, %v1269
      %v1275 = vrot.slane %v1274, 4
      %v1277 = vshll.u32 %v1080, 16
      %v1279 = vrot.slane %v1277, 5
      %v1280 = vsel %vm476, %v1275, %v1279
      %v1282 = vshrl.u32 %v1057, 16
      %v1284 = vrot.slane %v1282, 4
      %v1285 = vshll.u32 %v1057, 16
      %v1287 = vrot.slane %v1285, 5
      %v1288 = vor.u32 %v1284, %v1287
      %v1289 = vrot.slane %v1288, 4
      %v1291 = vshll.u32 %v1058, 16
      %v1293 = vrot.slane %v1291, 5
      %v1294 = vsel %vm476, %v1289, %v1293
      %v1295 = vshrl.u32 %v1058, 16
      %v1297 = vrot.slane %v1295, 4
      %v1298 = vor.u32 %v1297, %v1293
      %v1299 = vrot.slane %v1298, 4
      %v1301 = vshll.u32 %v1081, 16
      %v1303 = vrot.slane %v1301, 5
      %v1304 = vsel %vm476, %v1299, %v1303
      %v1306 = vshrl.u32 %v1059, 16
      %v1308 = vrot.slane %v1306, 4
      %v1309 = vshll.u32 %v1059, 16
      %v1311 = vrot.slane %v1309, 5
      %v1312 = vor.u32 %v1308, %v1311
      %v1313 = vrot.slane %v1312, 4
      %v1315 = vshll.u32 %v1060, 16
      %v1317 = vrot.slane %v1315, 5
      %v1318 = vsel %vm476, %v1313, %v1317
      %v1319 = vshrl.u32 %v1060, 16
      %v1321 = vrot.slane %v1319, 4
      %v1322 = vor.u32 %v1321, %v1317
      %v1323 = vrot.slane %v1322, 4
      %v1325 = vshll.u32 %v1082, 16
      %v1327 = vrot.slane %v1325, 5
      %v1328 = vsel %vm476, %v1323, %v1327
      %v1330 = vshrl.u32 %v1061, 16
      %v1332 = vrot.slane %v1330, 4
      %v1333 = vshll.u32 %v1061, 16
      %v1335 = vrot.slane %v1333, 5
      %v1336 = vor.u32 %v1332, %v1335
      %v1337 = vrot.slane %v1336, 4
      %v1339 = vshll.u32 %v1062, 16
      %v1341 = vrot.slane %v1339, 5
      %v1342 = vsel %vm476, %v1337, %v1341
      %v1343 = vshrl.u32 %v1062, 16
      %v1345 = vrot.slane %v1343, 4
      %v1346 = vor.u32 %v1345, %v1341
      %v1347 = vrot.slane %v1346, 4
      %v1349 = vshll.u32 %v1083, 16
      %v1351 = vrot.slane %v1349, 5
      %v1352 = vsel %vm476, %v1347, %v1351
      %v1354 = vshrl.u32 %v1063, 16
      %v1356 = vrot.slane %v1354, 4
      %v1357 = vshll.u32 %v1063, 16
      %v1359 = vrot.slane %v1357, 5
      %v1360 = vor.u32 %v1356, %v1359
      %v1361 = vrot.slane %v1360, 4
      %v1363 = vshll.u32 %v1064, 16
      %v1365 = vrot.slane %v1363, 5
      %v1366 = vsel %vm476, %v1361, %v1365
      %v1367 = vshrl.u32 %v1064, 16
      %v1369 = vrot.slane %v1367, 4
      %v1370 = vor.u32 %v1369, %v1365
      %v1371 = vrot.slane %v1370, 4
      %v1373 = vshll.u32 %v1084, 16
      %v1375 = vrot.slane %v1373, 5
      %v1376 = vsel %vm476, %v1371, %v1375
      %v1378 = vshrl.u32 %v1065, 16
      %v1380 = vrot.slane %v1378, 4
      %v1381 = vshll.u32 %v1065, 16
      %v1383 = vrot.slane %v1381, 5
      %v1384 = vor.u32 %v1380, %v1383
      %v1385 = vrot.slane %v1384, 4
      %v1387 = vshll.u32 %v1066, 16
      %v1389 = vrot.slane %v1387, 5
      %v1390 = vsel %vm476, %v1385, %v1389
      %v1391 = vshrl.u32 %v1066, 16
      %v1393 = vrot.slane %v1391, 4
      %v1394 = vor.u32 %v1393, %v1389
      %v1395 = vrot.slane %v1394, 4
      %v1397 = vshll.u32 %v1085, 16
      %v1399 = vrot.slane %v1397, 5
      %v1400 = vsel %vm476, %v1395, %v1399
      %v1402 = vshrl.u32 %v1067, 16
      %v1404 = vrot.slane %v1402, 4
      %v1405 = vshll.u32 %v1067, 16
      %v1407 = vrot.slane %v1405, 5
      %v1408 = vor.u32 %v1404, %v1407
      %v1409 = vrot.slane %v1408, 4
      %v1411 = vshll.u32 %v1068, 16
      %v1413 = vrot.slane %v1411, 5
      %v1414 = vsel %vm476, %v1409, %v1413
      %v1415 = vshrl.u32 %v1068, 16
      %v1417 = vrot.slane %v1415, 4
      %v1418 = vor.u32 %v1417, %v1413
      %v1419 = vrot.slane %v1418, 4
      %v1421 = vshll.u32 %v1086, 16
      %v1423 = vrot.slane %v1421, 5
      %v1424 = vsel %vm476, %v1419, %v1423
      %v1426 = vshrl.u32 %v1069, 16
      %v1428 = vrot.slane %v1426, 4
      %v1429 = vshll.u32 %v1069, 16
      %v1431 = vrot.slane %v1429, 5
      %v1432 = vor.u32 %v1428, %v1431
      %v1433 = vrot.slane %v1432, 4
      %v1435 = vshll.u32 %v1070, 16
      %v1437 = vrot.slane %v1435, 5
      %v1438 = vsel %vm476, %v1433, %v1437
      %v1439 = vshrl.u32 %v1070, 16
      %v1441 = vrot.slane %v1439, 4
      %v1442 = vor.u32 %v1441, %v1437
      %v1443 = vrot.slane %v1442, 4
      %v1445 = vshll.u32 %v1087, 16
      %v1447 = vrot.slane %v1445, 5
      %v1448 = vsel %vm476, %v1443, %v1447
      %v1450 = vshrl.u32 %v1071, 16
      %v1452 = vrot.slane %v1450, 4
      %v1453 = vshll.u32 %v1071, 16
      %v1455 = vrot.slane %v1453, 5
      %v1456 = vor.u32 %v1452, %v1455
      %v1457 = vrot.slane %v1456, 4
      %v1459 = vshll.u32 %v1072, 16
      %v1461 = vrot.slane %v1459, 5
      %v1462 = vsel %vm476, %v1457, %v1461
      %v1463 = vshrl.u32 %v1072, 16
      %v1465 = vrot.slane %v1463, 4
      %v1466 = vor.u32 %v1465, %v1461
      %v1467 = vrot.slane %v1466, 4
      %v1469 = vshll.u32 %v1088, 16
      %v1471 = vrot.slane %v1469, 5
      %v1472 = vsel %vm476, %v1467, %v1471
      %v1473 = vld [vmem:[%s1040] sm:$0xe]
      %v1474 = vld [vmem:[%s1040 + $0xc] sm:$0xe]
      %v1475 = vld [vmem:[%s1040 + $0x18] sm:$0xe]
      %v1476 = vld [vmem:[%s1040 + $0x24] sm:$0xe]
      %v1477 = vld [vmem:[%s1040 + $0x30] sm:$0xe]
      %v1478 = vld [vmem:[%s1040 + $0x3c] sm:$0xe]
      %v1479 = vld [vmem:[%s1040 + $0x48] sm:$0xe]
      %v1480 = vld [vmem:[%s1040 + $0x54] sm:$0xe]
      %v1481 = vld [vmem:[%s1040 + $0x60] sm:$0xe]
      %v1482 = vld [vmem:[%s1040 + $0x6c] sm:$0xe]
      %v1483 = vld [vmem:[%s1040 + $0x78] sm:$0xe]
      %v1484 = vld [vmem:[%s1040 + $0x84] sm:$0xe]
      %v1485 = vld [vmem:[%s1040 + $0x90] sm:$0xe]
      %v1486 = vld [vmem:[%s1040 + $0x9c] sm:$0xe]
      %v1487 = vld [vmem:[%s1040 + $0xa8] sm:$0xe]
      %v1488 = vld [vmem:[%s1040 + $0xb4] sm:$0xe]
      %v1537 = vrot.slane %v1473, 5
      %v1538 = vrot.slane %v1537, 4
      %v1539 = vrot.slane %v1042, 5
      %v1540 = vsel %vm927, %v1538, %v1539
      %v1541 = vrot.slane %v1539, 4
      %v1542 = vrot.slane %v1073, 5
      %v1543 = vsel %vm927, %v1541, %v1542
      %v1544 = vrot.slane %v1474, 5
      %v1545 = vrot.slane %v1544, 4
      %v1546 = vrot.slane %v1044, 5
      %v1547 = vsel %vm927, %v1545, %v1546
      %v1548 = vrot.slane %v1546, 4
      %v1549 = vrot.slane %v1074, 5
      %v1550 = vsel %vm927, %v1548, %v1549
      %v1551 = vrot.slane %v1475, 5
      %v1552 = vrot.slane %v1551, 4
      %v1553 = vrot.slane %v1046, 5
      %v1554 = vsel %vm927, %v1552, %v1553
      %v1555 = vrot.slane %v1553, 4
      %v1556 = vrot.slane %v1075, 5
      %v1557 = vsel %vm927, %v1555, %v1556
      %v1558 = vrot.slane %v1476, 5
      %v1559 = vrot.slane %v1558, 4
      %v1560 = vrot.slane %v1048, 5
      %v1561 = vsel %vm927, %v1559, %v1560
      %v1562 = vrot.slane %v1560, 4
      %v1563 = vrot.slane %v1076, 5
      %v1564 = vsel %vm927, %v1562, %v1563
      %v1565 = vrot.slane %v1477, 5
      %v1566 = vrot.slane %v1565, 4
      %v1567 = vrot.slane %v1050, 5
      %v1568 = vsel %vm927, %v1566, %v1567
      %v1569 = vrot.slane %v1567, 4
      %v1570 = vrot.slane %v1077, 5
      %v1571 = vsel %vm927, %v1569, %v1570
      %v1572 = vrot.slane %v1478, 5
      %v1573 = vrot.slane %v1572, 4
      %v1574 = vrot.slane %v1052, 5
      %v1575 = vsel %vm927, %v1573, %v1574
      %v1576 = vrot.slane %v1574, 4
      %v1577 = vrot.slane %v1078, 5
      %v1578 = vsel %vm927, %v1576, %v1577
      %v1579 = vrot.slane %v1479, 5
      %v1580 = vrot.slane %v1579, 4
      %v1581 = vrot.slane %v1054, 5
      %v1582 = vsel %vm927, %v1580, %v1581
      %v1583 = vrot.slane %v1581, 4
      %v1584 = vrot.slane %v1079, 5
      %v1585 = vsel %vm927, %v1583, %v1584
      %v1586 = vrot.slane %v1480, 5
      %v1587 = vrot.slane %v1586, 4
      %v1588 = vrot.slane %v1056, 5
      %v1589 = vsel %vm927, %v1587, %v1588
      %v1590 = vrot.slane %v1588, 4
      %v1591 = vrot.slane %v1080, 5
      %v1592 = vsel %vm927, %v1590, %v1591
      %v1593 = vrot.slane %v1481, 5
      %v1594 = vrot.slane %v1593, 4
      %v1595 = vrot.slane %v1058, 5
      %v1596 = vsel %vm927, %v1594, %v1595
      %v1597 = vrot.slane %v1595, 4
      %v1598 = vrot.slane %v1081, 5
      %v1599 = vsel %vm927, %v1597, %v1598
      %v1600 = vrot.slane %v1482, 5
      %v1601 = vrot.slane %v1600, 4
      %v1602 = vrot.slane %v1060, 5
      %v1603 = vsel %vm927, %v1601, %v1602
      %v1604 = vrot.slane %v1602, 4
      %v1605 = vrot.slane %v1082, 5
      %v1606 = vsel %vm927, %v1604, %v1605
      %v1607 = vrot.slane %v1483, 5
      %v1608 = vrot.slane %v1607, 4
      %v1609 = vrot.slane %v1062, 5
      %v1610 = vsel %vm927, %v1608, %v1609
      %v1611 = vrot.slane %v1609, 4
      %v1612 = vrot.slane %v1083, 5
      %v1613 = vsel %vm927, %v1611, %v1612
      %v1614 = vrot.slane %v1484, 5
      %v1615 = vrot.slane %v1614, 4
      %v1616 = vrot.slane %v1064, 5
      %v1617 = vsel %vm927, %v1615, %v1616
      %v1618 = vrot.slane %v1616, 4
      %v1619 = vrot.slane %v1084, 5
      %v1620 = vsel %vm927, %v1618, %v1619
      %v1621 = vrot.slane %v1485, 5
      %v1622 = vrot.slane %v1621, 4
      %v1623 = vrot.slane %v1066, 5
      %v1624 = vsel %vm927, %v1622, %v1623
      %v1625 = vrot.slane %v1623, 4
      %v1626 = vrot.slane %v1085, 5
      %v1627 = vsel %vm927, %v1625, %v1626
      %v1628 = vrot.slane %v1486, 5
      %v1629 = vrot.slane %v1628, 4
      %v1630 = vrot.slane %v1068, 5
      %v1631 = vsel %vm927, %v1629, %v1630
      %v1632 = vrot.slane %v1630, 4
      %v1633 = vrot.slane %v1086, 5
      %v1634 = vsel %vm927, %v1632, %v1633
      %v1635 = vrot.slane %v1487, 5
      %v1636 = vrot.slane %v1635, 4
      %v1637 = vrot.slane %v1070, 5
      %v1638 = vsel %vm927, %v1636, %v1637
      %v1639 = vrot.slane %v1637, 4
      %v1640 = vrot.slane %v1087, 5
      %v1641 = vsel %vm927, %v1639, %v1640
      %v1642 = vrot.slane %v1488, 5
      %v1643 = vrot.slane %v1642, 4
      %v1644 = vrot.slane %v1072, 5
      %v1645 = vsel %vm927, %v1643, %v1644
      %v1646 = vrot.slane %v1644, 4
      %v1647 = vrot.slane %v1088, 5
      %v1648 = vsel %vm927, %v1646, %v1647
      %s1649 = scalar_lea.vmem %s388, 24
      %v1650 = vld [vmem:[%s1649] sm:$0xf]
      %v1651 = vld [vmem:[%s1649 + $0x4] sm:$0xf]
      %v1652 = vld [vmem:[%s1649 + $0xc] sm:$0xf]
      %v1653 = vld [vmem:[%s1649 + $0x10] sm:$0xf]
      %v1654 = vld [vmem:[%s1649 + $0x18] sm:$0xf]
      %v1655 = vld [vmem:[%s1649 + $0x1c] sm:$0xf]
      %v1656 = vld [vmem:[%s1649 + $0x24] sm:$0xf]
      %v1657 = vld [vmem:[%s1649 + $0x28] sm:$0xf]
      %v1658 = vld [vmem:[%s1649 + $0x30] sm:$0xf]
      %v1659 = vld [vmem:[%s1649 + $0x34] sm:$0xf]
      %v1660 = vld [vmem:[%s1649 + $0x3c] sm:$0xf]
      %v1661 = vld [vmem:[%s1649 + $0x40] sm:$0xf]
      %v1662 = vld [vmem:[%s1649 + $0x48] sm:$0xf]
      %v1663 = vld [vmem:[%s1649 + $0x4c] sm:$0xf]
      %v1664 = vld [vmem:[%s1649 + $0x54] sm:$0xf]
      %v1665 = vld [vmem:[%s1649 + $0x58] sm:$0xf]
      %v1666 = vld [vmem:[%s1649 + $0x60] sm:$0xf]
      %v1667 = vld [vmem:[%s1649 + $0x64] sm:$0xf]
      %v1668 = vld [vmem:[%s1649 + $0x6c] sm:$0xf]
      %v1669 = vld [vmem:[%s1649 + $0x70] sm:$0xf]
      %v1670 = vld [vmem:[%s1649 + $0x78] sm:$0xf]
      %v1671 = vld [vmem:[%s1649 + $0x7c] sm:$0xf]
      %v1672 = vld [vmem:[%s1649 + $0x84] sm:$0xf]
      %v1673 = vld [vmem:[%s1649 + $0x88] sm:$0xf]
      %v1674 = vld [vmem:[%s1649 + $0x90] sm:$0xf]
      %v1675 = vld [vmem:[%s1649 + $0x94] sm:$0xf]
      %v1676 = vld [vmem:[%s1649 + $0x9c] sm:$0xf]
      %v1677 = vld [vmem:[%s1649 + $0xa0] sm:$0xf]
      %v1678 = vld [vmem:[%s1649 + $0xa8] sm:$0xf]
      %v1679 = vld [vmem:[%s1649 + $0xac] sm:$0xf]
      %v1680 = vld [vmem:[%s1649 + $0xb4] sm:$0xf]
      %v1681 = vld [vmem:[%s1649 + $0xb8] sm:$0xf]
      %v1682 = vld [vmem:[%s1649 + $0x8] sm:$0x1]
      %v1683 = vld [vmem:[%s1649 + $0x14] sm:$0x1]
      %v1684 = vld [vmem:[%s1649 + $0x20] sm:$0x1]
      %v1685 = vld [vmem:[%s1649 + $0x2c] sm:$0x1]
      %v1686 = vld [vmem:[%s1649 + $0x38] sm:$0x1]
      %v1687 = vld [vmem:[%s1649 + $0x44] sm:$0x1]
      %v1688 = vld [vmem:[%s1649 + $0x50] sm:$0x1]
      %v1689 = vld [vmem:[%s1649 + $0x5c] sm:$0x1]
      %v1690 = vld [vmem:[%s1649 + $0x68] sm:$0x1]
      %v1691 = vld [vmem:[%s1649 + $0x74] sm:$0x1]
      %v1692 = vld [vmem:[%s1649 + $0x80] sm:$0x1]
      %v1693 = vld [vmem:[%s1649 + $0x8c] sm:$0x1]
      %v1694 = vld [vmem:[%s1649 + $0x98] sm:$0x1]
      %v1695 = vld [vmem:[%s1649 + $0xa4] sm:$0x1]
      %v1696 = vld [vmem:[%s1649 + $0xb0] sm:$0x1]
      %v1697 = vld [vmem:[%s1649 + $0xbc] sm:$0x1]
      %v1699 = vshrl.u32 %v1650, 16
      %v1701 = vrot.slane %v1699, 4
      %v1702 = vshll.u32 %v1650, 16
      %v1704 = vrot.slane %v1702, 5
      %v1705 = vor.u32 %v1701, %v1704
      %v1706 = vrot.slane %v1705, 4
      %v1708 = vshll.u32 %v1651, 16
      %v1710 = vrot.slane %v1708, 5
      %v1711 = vsel %vm476, %v1706, %v1710
      %v1712 = vshrl.u32 %v1651, 16
      %v1714 = vrot.slane %v1712, 4
      %v1715 = vor.u32 %v1714, %v1710
      %v1716 = vrot.slane %v1715, 4
      %v1718 = vshll.u32 %v1682, 16
      %v1720 = vrot.slane %v1718, 5
      %v1721 = vsel %vm476, %v1716, %v1720
      %v1723 = vshrl.u32 %v1652, 16
      %v1725 = vrot.slane %v1723, 4
      %v1726 = vshll.u32 %v1652, 16
      %v1728 = vrot.slane %v1726, 5
      %v1729 = vor.u32 %v1725, %v1728
      %v1730 = vrot.slane %v1729, 4
      %v1732 = vshll.u32 %v1653, 16
      %v1734 = vrot.slane %v1732, 5
      %v1735 = vsel %vm476, %v1730, %v1734
      %v1736 = vshrl.u32 %v1653, 16
      %v1738 = vrot.slane %v1736, 4
      %v1739 = vor.u32 %v1738, %v1734
      %v1740 = vrot.slane %v1739, 4
      %v1742 = vshll.u32 %v1683, 16
      %v1744 = vrot.slane %v1742, 5
      %v1745 = vsel %vm476, %v1740, %v1744
      %v1747 = vshrl.u32 %v1654, 16
      %v1749 = vrot.slane %v1747, 4
      %v1750 = vshll.u32 %v1654, 16
      %v1752 = vrot.slane %v1750, 5
      %v1753 = vor.u32 %v1749, %v1752
      %v1754 = vrot.slane %v1753, 4
      %v1756 = vshll.u32 %v1655, 16
      %v1758 = vrot.slane %v1756, 5
      %v1759 = vsel %vm476, %v1754, %v1758
      %v1760 = vshrl.u32 %v1655, 16
      %v1762 = vrot.slane %v1760, 4
      %v1763 = vor.u32 %v1762, %v1758
      %v1764 = vrot.slane %v1763, 4
      %v1766 = vshll.u32 %v1684, 16
      %v1768 = vrot.slane %v1766, 5
      %v1769 = vsel %vm476, %v1764, %v1768
      %v1771 = vshrl.u32 %v1656, 16
      %v1773 = vrot.slane %v1771, 4
      %v1774 = vshll.u32 %v1656, 16
      %v1776 = vrot.slane %v1774, 5
      %v1777 = vor.u32 %v1773, %v1776
      %v1778 = vrot.slane %v1777, 4
      %v1780 = vshll.u32 %v1657, 16
      %v1782 = vrot.slane %v1780, 5
      %v1783 = vsel %vm476, %v1778, %v1782
      %v1784 = vshrl.u32 %v1657, 16
      %v1786 = vrot.slane %v1784, 4
      %v1787 = vor.u32 %v1786, %v1782
      %v1788 = vrot.slane %v1787, 4
      %v1790 = vshll.u32 %v1685, 16
      %v1792 = vrot.slane %v1790, 5
      %v1793 = vsel %vm476, %v1788, %v1792
      %v1795 = vshrl.u32 %v1658, 16
      %v1797 = vrot.slane %v1795, 4
      %v1798 = vshll.u32 %v1658, 16
      %v1800 = vrot.slane %v1798, 5
      %v1801 = vor.u32 %v1797, %v1800
      %v1802 = vrot.slane %v1801, 4
      %v1804 = vshll.u32 %v1659, 16
      %v1806 = vrot.slane %v1804, 5
      %v1807 = vsel %vm476, %v1802, %v1806
      %v1808 = vshrl.u32 %v1659, 16
      %v1810 = vrot.slane %v1808, 4
      %v1811 = vor.u32 %v1810, %v1806
      %v1812 = vrot.slane %v1811, 4
      %v1814 = vshll.u32 %v1686, 16
      %v1816 = vrot.slane %v1814, 5
      %v1817 = vsel %vm476, %v1812, %v1816
      %v1819 = vshrl.u32 %v1660, 16
      %v1821 = vrot.slane %v1819, 4
      %v1822 = vshll.u32 %v1660, 16
      %v1824 = vrot.slane %v1822, 5
      %v1825 = vor.u32 %v1821, %v1824
      %v1826 = vrot.slane %v1825, 4
      %v1828 = vshll.u32 %v1661, 16
      %v1830 = vrot.slane %v1828, 5
      %v1831 = vsel %vm476, %v1826, %v1830
      %v1832 = vshrl.u32 %v1661, 16
      %v1834 = vrot.slane %v1832, 4
      %v1835 = vor.u32 %v1834, %v1830
      %v1836 = vrot.slane %v1835, 4
      %v1838 = vshll.u32 %v1687, 16
      %v1840 = vrot.slane %v1838, 5
      %v1841 = vsel %vm476, %v1836, %v1840
      %v1843 = vshrl.u32 %v1662, 16
      %v1845 = vrot.slane %v1843, 4
      %v1846 = vshll.u32 %v1662, 16
      %v1848 = vrot.slane %v1846, 5
      %v1849 = vor.u32 %v1845, %v1848
      %v1850 = vrot.slane %v1849, 4
      %v1852 = vshll.u32 %v1663, 16
      %v1854 = vrot.slane %v1852, 5
      %v1855 = vsel %vm476, %v1850, %v1854
      %v1856 = vshrl.u32 %v1663, 16
      %v1858 = vrot.slane %v1856, 4
      %v1859 = vor.u32 %v1858, %v1854
      %v1860 = vrot.slane %v1859, 4
      %v1862 = vshll.u32 %v1688, 16
      %v1864 = vrot.slane %v1862, 5
      %v1865 = vsel %vm476, %v1860, %v1864
      %v1867 = vshrl.u32 %v1664, 16
      %v1869 = vrot.slane %v1867, 4
      %v1870 = vshll.u32 %v1664, 16
      %v1872 = vrot.slane %v1870, 5
      %v1873 = vor.u32 %v1869, %v1872
      %v1874 = vrot.slane %v1873, 4
      %v1876 = vshll.u32 %v1665, 16
      %v1878 = vrot.slane %v1876, 5
      %v1879 = vsel %vm476, %v1874, %v1878
      %v1880 = vshrl.u32 %v1665, 16
      %v1882 = vrot.slane %v1880, 4
      %v1883 = vor.u32 %v1882, %v1878
      %v1884 = vrot.slane %v1883, 4
      %v1886 = vshll.u32 %v1689, 16
      %v1888 = vrot.slane %v1886, 5
      %v1889 = vsel %vm476, %v1884, %v1888
      %v1891 = vshrl.u32 %v1666, 16
      %v1893 = vrot.slane %v1891, 4
      %v1894 = vshll.u32 %v1666, 16
      %v1896 = vrot.slane %v1894, 5
      %v1897 = vor.u32 %v1893, %v1896
      %v1898 = vrot.slane %v1897, 4
      %v1900 = vshll.u32 %v1667, 16
      %v1902 = vrot.slane %v1900, 5
      %v1903 = vsel %vm476, %v1898, %v1902
      %v1904 = vshrl.u32 %v1667, 16
      %v1906 = vrot.slane %v1904, 4
      %v1907 = vor.u32 %v1906, %v1902
      %v1908 = vrot.slane %v1907, 4
      %v1910 = vshll.u32 %v1690, 16
      %v1912 = vrot.slane %v1910, 5
      %v1913 = vsel %vm476, %v1908, %v1912
      %v1915 = vshrl.u32 %v1668, 16
      %v1917 = vrot.slane %v1915, 4
      %v1918 = vshll.u32 %v1668, 16
      %v1920 = vrot.slane %v1918, 5
      %v1921 = vor.u32 %v1917, %v1920
      %v1922 = vrot.slane %v1921, 4
      %v1924 = vshll.u32 %v1669, 16
      %v1926 = vrot.slane %v1924, 5
      %v1927 = vsel %vm476, %v1922, %v1926
      %v1928 = vshrl.u32 %v1669, 16
      %v1930 = vrot.slane %v1928, 4
      %v1931 = vor.u32 %v1930, %v1926
      %v1932 = vrot.slane %v1931, 4
      %v1934 = vshll.u32 %v1691, 16
      %v1936 = vrot.slane %v1934, 5
      %v1937 = vsel %vm476, %v1932, %v1936
      %v1939 = vshrl.u32 %v1670, 16
      %v1941 = vrot.slane %v1939, 4
      %v1942 = vshll.u32 %v1670, 16
      %v1944 = vrot.slane %v1942, 5
      %v1945 = vor.u32 %v1941, %v1944
      %v1946 = vrot.slane %v1945, 4
      %v1948 = vshll.u32 %v1671, 16
      %v1950 = vrot.slane %v1948, 5
      %v1951 = vsel %vm476, %v1946, %v1950
      %v1952 = vshrl.u32 %v1671, 16
      %v1954 = vrot.slane %v1952, 4
      %v1955 = vor.u32 %v1954, %v1950
      %v1956 = vrot.slane %v1955, 4
      %v1958 = vshll.u32 %v1692, 16
      %v1960 = vrot.slane %v1958, 5
      %v1961 = vsel %vm476, %v1956, %v1960
      %v1963 = vshrl.u32 %v1672, 16
      %v1965 = vrot.slane %v1963, 4
      %v1966 = vshll.u32 %v1672, 16
      %v1968 = vrot.slane %v1966, 5
      %v1969 = vor.u32 %v1965, %v1968
      %v1970 = vrot.slane %v1969, 4
      %v1972 = vshll.u32 %v1673, 16
      %v1974 = vrot.slane %v1972, 5
      %v1975 = vsel %vm476, %v1970, %v1974
      %v1976 = vshrl.u32 %v1673, 16
      %v1978 = vrot.slane %v1976, 4
      %v1979 = vor.u32 %v1978, %v1974
      %v1980 = vrot.slane %v1979, 4
      %v1982 = vshll.u32 %v1693, 16
      %v1984 = vrot.slane %v1982, 5
      %v1985 = vsel %vm476, %v1980, %v1984
      %v1987 = vshrl.u32 %v1674, 16
      %v1989 = vrot.slane %v1987, 4
      %v1990 = vshll.u32 %v1674, 16
      %v1992 = vrot.slane %v1990, 5
      %v1993 = vor.u32 %v1989, %v1992
      %v1994 = vrot.slane %v1993, 4
      %v1996 = vshll.u32 %v1675, 16
      %v1998 = vrot.slane %v1996, 5
      %v1999 = vsel %vm476, %v1994, %v1998
      %v2000 = vshrl.u32 %v1675, 16
      %v2002 = vrot.slane %v2000, 4
      %v2003 = vor.u32 %v2002, %v1998
      %v2004 = vrot.slane %v2003, 4
      %v2006 = vshll.u32 %v1694, 16
      %v2008 = vrot.slane %v2006, 5
      %v2009 = vsel %vm476, %v2004, %v2008
      %v2011 = vshrl.u32 %v1676, 16
      %v2013 = vrot.slane %v2011, 4
      %v2014 = vshll.u32 %v1676, 16
      %v2016 = vrot.slane %v2014, 5
      %v2017 = vor.u32 %v2013, %v2016
      %v2018 = vrot.slane %v2017, 4
      %v2020 = vshll.u32 %v1677, 16
      %v2022 = vrot.slane %v2020, 5
      %v2023 = vsel %vm476, %v2018, %v2022
      %v2024 = vshrl.u32 %v1677, 16
      %v2026 = vrot.slane %v2024, 4
      %v2027 = vor.u32 %v2026, %v2022
      %v2028 = vrot.slane %v2027, 4
      %v2030 = vshll.u32 %v1695, 16
      %v2032 = vrot.slane %v2030, 5
      %v2033 = vsel %vm476, %v2028, %v2032
      %v2035 = vshrl.u32 %v1678, 16
      %v2037 = vrot.slane %v2035, 4
      %v2038 = vshll.u32 %v1678, 16
      %v2040 = vrot.slane %v2038, 5
      %v2041 = vor.u32 %v2037, %v2040
      %v2042 = vrot.slane %v2041, 4
      %v2044 = vshll.u32 %v1679, 16
      %v2046 = vrot.slane %v2044, 5
      %v2047 = vsel %vm476, %v2042, %v2046
      %v2048 = vshrl.u32 %v1679, 16
      %v2050 = vrot.slane %v2048, 4
      %v2051 = vor.u32 %v2050, %v2046
      %v2052 = vrot.slane %v2051, 4
      %v2054 = vshll.u32 %v1696, 16
      %v2056 = vrot.slane %v2054, 5
      %v2057 = vsel %vm476, %v2052, %v2056
      %v2059 = vshrl.u32 %v1680, 16
      %v2061 = vrot.slane %v2059, 4
      %v2062 = vshll.u32 %v1680, 16
      %v2064 = vrot.slane %v2062, 5
      %v2065 = vor.u32 %v2061, %v2064
      %v2066 = vrot.slane %v2065, 4
      %v2068 = vshll.u32 %v1681, 16
      %v2070 = vrot.slane %v2068, 5
      %v2071 = vsel %vm476, %v2066, %v2070
      %v2072 = vshrl.u32 %v1681, 16
      %v2074 = vrot.slane %v2072, 4
      %v2075 = vor.u32 %v2074, %v2070
      %v2076 = vrot.slane %v2075, 4
      %v2078 = vshll.u32 %v1697, 16
      %v2080 = vrot.slane %v2078, 5
      %v2081 = vsel %vm476, %v2076, %v2080
      %v2082 = vld [vmem:[%s1649] sm:$0xe]
      %v2083 = vld [vmem:[%s1649 + $0xc] sm:$0xe]
      %v2084 = vld [vmem:[%s1649 + $0x18] sm:$0xe]
      %v2085 = vld [vmem:[%s1649 + $0x24] sm:$0xe]
      %v2086 = vld [vmem:[%s1649 + $0x30] sm:$0xe]
      %v2087 = vld [vmem:[%s1649 + $0x3c] sm:$0xe]
      %v2088 = vld [vmem:[%s1649 + $0x48] sm:$0xe]
      %v2089 = vld [vmem:[%s1649 + $0x54] sm:$0xe]
      %v2090 = vld [vmem:[%s1649 + $0x60] sm:$0xe]
      %v2091 = vld [vmem:[%s1649 + $0x6c] sm:$0xe]
      %v2092 = vld [vmem:[%s1649 + $0x78] sm:$0xe]
      %v2093 = vld [vmem:[%s1649 + $0x84] sm:$0xe]
      %v2094 = vld [vmem:[%s1649 + $0x90] sm:$0xe]
      %v2095 = vld [vmem:[%s1649 + $0x9c] sm:$0xe]
      %v2096 = vld [vmem:[%s1649 + $0xa8] sm:$0xe]
      %v2097 = vld [vmem:[%s1649 + $0xb4] sm:$0xe]
      %v2146 = vrot.slane %v2082, 5
      %v2147 = vrot.slane %v2146, 4
      %v2148 = vrot.slane %v1651, 5
      %v2149 = vsel %vm927, %v2147, %v2148
      %v2150 = vrot.slane %v2148, 4
      %v2151 = vrot.slane %v1682, 5
      %v2152 = vsel %vm927, %v2150, %v2151
      %v2153 = vrot.slane %v2083, 5
      %v2154 = vrot.slane %v2153, 4
      %v2155 = vrot.slane %v1653, 5
      %v2156 = vsel %vm927, %v2154, %v2155
      %v2157 = vrot.slane %v2155, 4
      %v2158 = vrot.slane %v1683, 5
      %v2159 = vsel %vm927, %v2157, %v2158
      %v2160 = vrot.slane %v2084, 5
      %v2161 = vrot.slane %v2160, 4
      %v2162 = vrot.slane %v1655, 5
      %v2163 = vsel %vm927, %v2161, %v2162
      %v2164 = vrot.slane %v2162, 4
      %v2165 = vrot.slane %v1684, 5
      %v2166 = vsel %vm927, %v2164, %v2165
      %v2167 = vrot.slane %v2085, 5
      %v2168 = vrot.slane %v2167, 4
      %v2169 = vrot.slane %v1657, 5
      %v2170 = vsel %vm927, %v2168, %v2169
      %v2171 = vrot.slane %v2169, 4
      %v2172 = vrot.slane %v1685, 5
      %v2173 = vsel %vm927, %v2171, %v2172
      %v2174 = vrot.slane %v2086, 5
      %v2175 = vrot.slane %v2174, 4
      %v2176 = vrot.slane %v1659, 5
      %v2177 = vsel %vm927, %v2175, %v2176
      %v2178 = vrot.slane %v2176, 4
      %v2179 = vrot.slane %v1686, 5
      %v2180 = vsel %vm927, %v2178, %v2179
      %v2181 = vrot.slane %v2087, 5
      %v2182 = vrot.slane %v2181, 4
      %v2183 = vrot.slane %v1661, 5
      %v2184 = vsel %vm927, %v2182, %v2183
      %v2185 = vrot.slane %v2183, 4
      %v2186 = vrot.slane %v1687, 5
      %v2187 = vsel %vm927, %v2185, %v2186
      %v2188 = vrot.slane %v2088, 5
      %v2189 = vrot.slane %v2188, 4
      %v2190 = vrot.slane %v1663, 5
      %v2191 = vsel %vm927, %v2189, %v2190
      %v2192 = vrot.slane %v2190, 4
      %v2193 = vrot.slane %v1688, 5
      %v2194 = vsel %vm927, %v2192, %v2193
      %v2195 = vrot.slane %v2089, 5
      %v2196 = vrot.slane %v2195, 4
      %v2197 = vrot.slane %v1665, 5
      %v2198 = vsel %vm927, %v2196, %v2197
      %v2199 = vrot.slane %v2197, 4
      %v2200 = vrot.slane %v1689, 5
      %v2201 = vsel %vm927, %v2199, %v2200
      %v2202 = vrot.slane %v2090, 5
      %v2203 = vrot.slane %v2202, 4
      %v2204 = vrot.slane %v1667, 5
      %v2205 = vsel %vm927, %v2203, %v2204
      %v2206 = vrot.slane %v2204, 4
      %v2207 = vrot.slane %v1690, 5
      %v2208 = vsel %vm927, %v2206, %v2207
      %v2209 = vrot.slane %v2091, 5
      %v2210 = vrot.slane %v2209, 4
      %v2211 = vrot.slane %v1669, 5
      %v2212 = vsel %vm927, %v2210, %v2211
      %v2213 = vrot.slane %v2211, 4
      %v2214 = vrot.slane %v1691, 5
      %v2215 = vsel %vm927, %v2213, %v2214
      %v2216 = vrot.slane %v2092, 5
      %v2217 = vrot.slane %v2216, 4
      %v2218 = vrot.slane %v1671, 5
      %v2219 = vsel %vm927, %v2217, %v2218
      %v2220 = vrot.slane %v2218, 4
      %v2221 = vrot.slane %v1692, 5
      %v2222 = vsel %vm927, %v2220, %v2221
      %v2223 = vrot.slane %v2093, 5
      %v2224 = vrot.slane %v2223, 4
      %v2225 = vrot.slane %v1673, 5
      %v2226 = vsel %vm927, %v2224, %v2225
      %v2227 = vrot.slane %v2225, 4
      %v2228 = vrot.slane %v1693, 5
      %v2229 = vsel %vm927, %v2227, %v2228
      %v2230 = vrot.slane %v2094, 5
      %v2231 = vrot.slane %v2230, 4
      %v2232 = vrot.slane %v1675, 5
      %v2233 = vsel %vm927, %v2231, %v2232
      %v2234 = vrot.slane %v2232, 4
      %v2235 = vrot.slane %v1694, 5
      %v2236 = vsel %vm927, %v2234, %v2235
      %v2237 = vrot.slane %v2095, 5
      %v2238 = vrot.slane %v2237, 4
      %v2239 = vrot.slane %v1677, 5
      %v2240 = vsel %vm927, %v2238, %v2239
      %v2241 = vrot.slane %v2239, 4
      %v2242 = vrot.slane %v1695, 5
      %v2243 = vsel %vm927, %v2241, %v2242
      %v2244 = vrot.slane %v2096, 5
      %v2245 = vrot.slane %v2244, 4
      %v2246 = vrot.slane %v1679, 5
      %v2247 = vsel %vm927, %v2245, %v2246
      %v2248 = vrot.slane %v2246, 4
      %v2249 = vrot.slane %v1696, 5
      %v2250 = vsel %vm927, %v2248, %v2249
      %v2251 = vrot.slane %v2097, 5
      %v2252 = vrot.slane %v2251, 4
      %v2253 = vrot.slane %v1681, 5
      %v2254 = vsel %vm927, %v2252, %v2253
      %v2255 = vrot.slane %v2253, 4
      %v2256 = vrot.slane %v1697, 5
      %v2257 = vsel %vm927, %v2255, %v2256
      %v2274 = vunpack.c.l.b16 %v426
      %v2275 = vunpack.c.l.b16 %v427
      %v2276 = vunpack.c.l.b16 %v428
      %v2277 = vunpack.c.l.b16 %v429
      %v2278 = vunpack.c.l.b16 %v430
      %v2279 = vunpack.c.l.b16 %v431
      %v2280 = vunpack.c.l.b16 %v432
      %v2281 = vunpack.c.l.b16 %v433
      %v2282 = vunpack.c.l.b16 %v434
      %v2283 = vunpack.c.l.b16 %v435
      %v2284 = vunpack.c.l.b16 %v436
      %v2285 = vunpack.c.l.b16 %v437
      %v2286 = vunpack.c.l.b16 %v438
      %v2287 = vunpack.c.l.b16 %v439
      %v2288 = vunpack.c.l.b16 %v440
      %v2289 = vunpack.c.l.b16 %v441
      %v2290 = vunpack.c.l.b16 %v442
      %v2291 = vunpack.c.l.b16 %v443
      %v2292 = vunpack.c.l.b16 %v444
      %v2293 = vunpack.c.l.b16 %v445
      %v2294 = vunpack.c.l.b16 %v446
      %v2295 = vunpack.c.l.b16 %v447
      %v2296 = vunpack.c.l.b16 %v448
      %v2297 = vunpack.c.l.b16 %v449
      %v2298 = vunpack.c.l.b16 %v450
      %v2299 = vunpack.c.l.b16 %v451
      %v2300 = vunpack.c.l.b16 %v452
      %v2301 = vunpack.c.l.b16 %v453
      %v2302 = vunpack.c.l.b16 %v454
      %v2303 = vunpack.c.l.b16 %v455
      %v2304 = vunpack.c.l.b16 %v456
      %v2305 = vunpack.c.l.b16 %v457
      %v2306 = vpack.c.b16 %v2275, %v2274
      %v2307 = vpack.c.b16 %v2277, %v2276
      %v2308 = vpack.c.b16 %v2279, %v2278
      %v2309 = vpack.c.b16 %v2281, %v2280
      %v2310 = vpack.c.b16 %v2283, %v2282
      %v2311 = vpack.c.b16 %v2285, %v2284
      %v2312 = vpack.c.b16 %v2287, %v2286
      %v2313 = vpack.c.b16 %v2289, %v2288
      %v2314 = vpack.c.b16 %v2291, %v2290
      %v2315 = vpack.c.b16 %v2293, %v2292
      %v2316 = vpack.c.b16 %v2295, %v2294
      %v2317 = vpack.c.b16 %v2297, %v2296
      %v2318 = vpack.c.b16 %v2299, %v2298
      %v2319 = vpack.c.b16 %v2301, %v2300
      %v2320 = vpack.c.b16 %v2303, %v2302
      %v2321 = vpack.c.b16 %v2305, %v2304
      %v2322 = vunpack.c.l.b16 %v490
      %v2323 = vunpack.c.l.b16 %v500
      %v2324 = vunpack.c.l.b16 %v514
      %v2325 = vunpack.c.l.b16 %v524
      %v2326 = vunpack.c.l.b16 %v538
      %v2327 = vunpack.c.l.b16 %v548
      %v2328 = vunpack.c.l.b16 %v562
      %v2329 = vunpack.c.l.b16 %v572
      %v2330 = vunpack.c.l.b16 %v586
      %v2331 = vunpack.c.l.b16 %v596
      %v2332 = vunpack.c.l.b16 %v610
      %v2333 = vunpack.c.l.b16 %v620
      %v2334 = vunpack.c.l.b16 %v634
      %v2335 = vunpack.c.l.b16 %v644
      %v2336 = vunpack.c.l.b16 %v658
      %v2337 = vunpack.c.l.b16 %v668
      %v2338 = vunpack.c.l.b16 %v682
      %v2339 = vunpack.c.l.b16 %v692
      %v2340 = vunpack.c.l.b16 %v706
      %v2341 = vunpack.c.l.b16 %v716
      %v2342 = vunpack.c.l.b16 %v730
      %v2343 = vunpack.c.l.b16 %v740
      %v2344 = vunpack.c.l.b16 %v754
      %v2345 = vunpack.c.l.b16 %v764
      %v2346 = vunpack.c.l.b16 %v778
      %v2347 = vunpack.c.l.b16 %v788
      %v2348 = vunpack.c.l.b16 %v802
      %v2349 = vunpack.c.l.b16 %v812
      %v2350 = vunpack.c.l.b16 %v826
      %v2351 = vunpack.c.l.b16 %v836
      %v2352 = vunpack.c.l.b16 %v850
      %v2353 = vunpack.c.l.b16 %v860
      %v2354 = vpack.c.b16 %v2323, %v2322
      %v2355 = vpack.c.b16 %v2325, %v2324
      %v2356 = vpack.c.b16 %v2327, %v2326
      %v2357 = vpack.c.b16 %v2329, %v2328
      %v2358 = vpack.c.b16 %v2331, %v2330
      %v2359 = vpack.c.b16 %v2333, %v2332
      %v2360 = vpack.c.b16 %v2335, %v2334
      %v2361 = vpack.c.b16 %v2337, %v2336
      %v2362 = vpack.c.b16 %v2339, %v2338
      %v2363 = vpack.c.b16 %v2341, %v2340
      %v2364 = vpack.c.b16 %v2343, %v2342
      %v2365 = vpack.c.b16 %v2345, %v2344
      %v2366 = vpack.c.b16 %v2347, %v2346
      %v2367 = vpack.c.b16 %v2349, %v2348
      %v2368 = vpack.c.b16 %v2351, %v2350
      %v2369 = vpack.c.b16 %v2353, %v2352
      %2370 = vrot.lane.b32.xlu0 %v2354, 4
      %v2371 = vpop.permute.xlu0 %2370
      %2372 = vrot.lane.b32.xlu0 %v2355, 4
      %v2373 = vpop.permute.xlu0 %2372
      %2374 = vrot.lane.b32.xlu0 %v2356, 4
      %v2375 = vpop.permute.xlu0 %2374
      %2376 = vrot.lane.b32.xlu0 %v2357, 4
      %v2377 = vpop.permute.xlu0 %2376
      %2378 = vrot.lane.b32.xlu0 %v2358, 4
      %v2379 = vpop.permute.xlu0 %2378
      %2380 = vrot.lane.b32.xlu0 %v2359, 4
      %v2381 = vpop.permute.xlu0 %2380
      %2382 = vrot.lane.b32.xlu0 %v2360, 4
      %v2383 = vpop.permute.xlu0 %2382
      %2384 = vrot.lane.b32.xlu0 %v2361, 4
      %v2385 = vpop.permute.xlu0 %2384
      %2386 = vrot.lane.b32.xlu0 %v2362, 4
      %v2387 = vpop.permute.xlu0 %2386
      %2388 = vrot.lane.b32.xlu0 %v2363, 4
      %v2389 = vpop.permute.xlu0 %2388
      %2390 = vrot.lane.b32.xlu0 %v2364, 4
      %v2391 = vpop.permute.xlu0 %2390
      %2392 = vrot.lane.b32.xlu0 %v2365, 4
      %v2393 = vpop.permute.xlu0 %2392
      %2394 = vrot.lane.b32.xlu0 %v2366, 4
      %v2395 = vpop.permute.xlu0 %2394
      %2396 = vrot.lane.b32.xlu0 %v2367, 4
      %v2397 = vpop.permute.xlu0 %2396
      %2398 = vrot.lane.b32.xlu0 %v2368, 4
      %v2399 = vpop.permute.xlu0 %2398
      %2400 = vrot.lane.b32.xlu0 %v2369, 4
      %v2401 = vpop.permute.xlu0 %2400
      %v2402 = vunpack.c.l.b16 %v931
      %v2403 = vunpack.c.l.b16 %v934
      %v2404 = vunpack.c.l.b16 %v938
      %v2405 = vunpack.c.l.b16 %v941
      %v2406 = vunpack.c.l.b16 %v945
      %v2407 = vunpack.c.l.b16 %v948
      %v2408 = vunpack.c.l.b16 %v952
      %v2409 = vunpack.c.l.b16 %v955
      %v2410 = vunpack.c.l.b16 %v959
      %v2411 = vunpack.c.l.b16 %v962
      %v2412 = vunpack.c.l.b16 %v966
      %v2413 = vunpack.c.l.b16 %v969
      %v2414 = vunpack.c.l.b16 %v973
      %v2415 = vunpack.c.l.b16 %v976
      %v2416 = vunpack.c.l.b16 %v980
      %v2417 = vunpack.c.l.b16 %v983
      %v2418 = vunpack.c.l.b16 %v987
      %v2419 = vunpack.c.l.b16 %v990
      %v2420 = vunpack.c.l.b16 %v994
      %v2421 = vunpack.c.l.b16 %v997
      %v2422 = vunpack.c.l.b16 %v1001
      %v2423 = vunpack.c.l.b16 %v1004
      %v2424 = vunpack.c.l.b16 %v1008
      %v2425 = vunpack.c.l.b16 %v1011
      %v2426 = vunpack.c.l.b16 %v1015
      %v2427 = vunpack.c.l.b16 %v1018
      %v2428 = vunpack.c.l.b16 %v1022
      %v2429 = vunpack.c.l.b16 %v1025
      %v2430 = vunpack.c.l.b16 %v1029
      %v2431 = vunpack.c.l.b16 %v1032
      %v2432 = vunpack.c.l.b16 %v1036
      %v2433 = vunpack.c.l.b16 %v1039
      %v2434 = vpack.c.b16 %v2403, %v2402
      %v2435 = vpack.c.b16 %v2405, %v2404
      %v2436 = vpack.c.b16 %v2407, %v2406
      %v2437 = vpack.c.b16 %v2409, %v2408
      %v2438 = vpack.c.b16 %v2411, %v2410
      %v2439 = vpack.c.b16 %v2413, %v2412
      %v2440 = vpack.c.b16 %v2415, %v2414
      %v2441 = vpack.c.b16 %v2417, %v2416
      %v2442 = vpack.c.b16 %v2419, %v2418
      %v2443 = vpack.c.b16 %v2421, %v2420
      %v2444 = vpack.c.b16 %v2423, %v2422
      %v2445 = vpack.c.b16 %v2425, %v2424
      %v2446 = vpack.c.b16 %v2427, %v2426
      %v2447 = vpack.c.b16 %v2429, %v2428
      %v2448 = vpack.c.b16 %v2431, %v2430
      %v2449 = vpack.c.b16 %v2433, %v2432
      %2450 = vrot.lane.b32.xlu0 %v2434, 8
      %v2451 = vpop.permute.xlu0 %2450
      %2452 = vrot.lane.b32.xlu0 %v2435, 8
      %v2453 = vpop.permute.xlu0 %2452
      %2454 = vrot.lane.b32.xlu0 %v2436, 8
      %v2455 = vpop.permute.xlu0 %2454
      %2456 = vrot.lane.b32.xlu0 %v2437, 8
      %v2457 = vpop.permute.xlu0 %2456
      %2458 = vrot.lane.b32.xlu0 %v2438, 8
      %v2459 = vpop.permute.xlu0 %2458
      %2460 = vrot.lane.b32.xlu0 %v2439, 8
      %v2461 = vpop.permute.xlu0 %2460
      %2462 = vrot.lane.b32.xlu0 %v2440, 8
      %v2463 = vpop.permute.xlu0 %2462
      %2464 = vrot.lane.b32.xlu0 %v2441, 8
      %v2465 = vpop.permute.xlu0 %2464
      %2466 = vrot.lane.b32.xlu0 %v2442, 8
      %v2467 = vpop.permute.xlu0 %2466
      %2468 = vrot.lane.b32.xlu0 %v2443, 8
      %v2469 = vpop.permute.xlu0 %2468
      %2470 = vrot.lane.b32.xlu0 %v2444, 8
      %v2471 = vpop.permute.xlu0 %2470
      %2472 = vrot.lane.b32.xlu0 %v2445, 8
      %v2473 = vpop.permute.xlu0 %2472
      %2474 = vrot.lane.b32.xlu0 %v2446, 8
      %v2475 = vpop.permute.xlu0 %2474
      %2476 = vrot.lane.b32.xlu0 %v2447, 8
      %v2477 = vpop.permute.xlu0 %2476
      %2478 = vrot.lane.b32.xlu0 %v2448, 8
      %v2479 = vpop.permute.xlu0 %2478
      %2480 = vrot.lane.b32.xlu0 %v2449, 8
      %v2481 = vpop.permute.xlu0 %2480
      %v2498 = vunpack.c.l.b16 %v1041
      %v2499 = vunpack.c.l.b16 %v1042
      %v2500 = vunpack.c.l.b16 %v1043
      %v2501 = vunpack.c.l.b16 %v1044
      %v2502 = vunpack.c.l.b16 %v1045
      %v2503 = vunpack.c.l.b16 %v1046
      %v2504 = vunpack.c.l.b16 %v1047
      %v2505 = vunpack.c.l.b16 %v1048
      %v2506 = vunpack.c.l.b16 %v1049
      %v2507 = vunpack.c.l.b16 %v1050
      %v2508 = vunpack.c.l.b16 %v1051
      %v2509 = vunpack.c.l.b16 %v1052
      %v2510 = vunpack.c.l.b16 %v1053
      %v2511 = vunpack.c.l.b16 %v1054
      %v2512 = vunpack.c.l.b16 %v1055
      %v2513 = vunpack.c.l.b16 %v1056
      %v2514 = vunpack.c.l.b16 %v1057
      %v2515 = vunpack.c.l.b16 %v1058
      %v2516 = vunpack.c.l.b16 %v1059
      %v2517 = vunpack.c.l.b16 %v1060
      %v2518 = vunpack.c.l.b16 %v1061
      %v2519 = vunpack.c.l.b16 %v1062
      %v2520 = vunpack.c.l.b16 %v1063
      %v2521 = vunpack.c.l.b16 %v1064
      %v2522 = vunpack.c.l.b16 %v1065
      %v2523 = vunpack.c.l.b16 %v1066
      %v2524 = vunpack.c.l.b16 %v1067
      %v2525 = vunpack.c.l.b16 %v1068
      %v2526 = vunpack.c.l.b16 %v1069
      %v2527 = vunpack.c.l.b16 %v1070
      %v2528 = vunpack.c.l.b16 %v1071
      %v2529 = vunpack.c.l.b16 %v1072
      %v2530 = vpack.c.b16 %v2499, %v2498
      %v2531 = vpack.c.b16 %v2501, %v2500
      %v2532 = vpack.c.b16 %v2503, %v2502
      %v2533 = vpack.c.b16 %v2505, %v2504
      %v2534 = vpack.c.b16 %v2507, %v2506
      %v2535 = vpack.c.b16 %v2509, %v2508
      %v2536 = vpack.c.b16 %v2511, %v2510
      %v2537 = vpack.c.b16 %v2513, %v2512
      %v2538 = vpack.c.b16 %v2515, %v2514
      %v2539 = vpack.c.b16 %v2517, %v2516
      %v2540 = vpack.c.b16 %v2519, %v2518
      %v2541 = vpack.c.b16 %v2521, %v2520
      %v2542 = vpack.c.b16 %v2523, %v2522
      %v2543 = vpack.c.b16 %v2525, %v2524
      %v2544 = vpack.c.b16 %v2527, %v2526
      %v2545 = vpack.c.b16 %v2529, %v2528
      %2546 = vrot.lane.b32.xlu0 %v2530, 12
      %v2547 = vpop.permute.xlu0 %2546
      %2548 = vrot.lane.b32.xlu0 %v2531, 12
      %v2549 = vpop.permute.xlu0 %2548
      %2550 = vrot.lane.b32.xlu0 %v2532, 12
      %v2551 = vpop.permute.xlu0 %2550
      %2552 = vrot.lane.b32.xlu0 %v2533, 12
      %v2553 = vpop.permute.xlu0 %2552
      %2554 = vrot.lane.b32.xlu0 %v2534, 12
      %v2555 = vpop.permute.xlu0 %2554
      %2556 = vrot.lane.b32.xlu0 %v2535, 12
      %v2557 = vpop.permute.xlu0 %2556
      %2558 = vrot.lane.b32.xlu0 %v2536, 12
      %v2559 = vpop.permute.xlu0 %2558
      %2560 = vrot.lane.b32.xlu0 %v2537, 12
      %v2561 = vpop.permute.xlu0 %2560
      %2562 = vrot.lane.b32.xlu0 %v2538, 12
      %v2563 = vpop.permute.xlu0 %2562
      %2564 = vrot.lane.b32.xlu0 %v2539, 12
      %v2565 = vpop.permute.xlu0 %2564
      %2566 = vrot.lane.b32.xlu0 %v2540, 12
      %v2567 = vpop.permute.xlu0 %2566
      %2568 = vrot.lane.b32.xlu0 %v2541, 12
      %v2569 = vpop.permute.xlu0 %2568
      %2570 = vrot.lane.b32.xlu0 %v2542, 12
      %v2571 = vpop.permute.xlu0 %2570
      %2572 = vrot.lane.b32.xlu0 %v2543, 12
      %v2573 = vpop.permute.xlu0 %2572
      %2574 = vrot.lane.b32.xlu0 %v2544, 12
      %v2575 = vpop.permute.xlu0 %2574
      %2576 = vrot.lane.b32.xlu0 %v2545, 12
      %v2577 = vpop.permute.xlu0 %2576
      %v2578 = vunpack.c.l.b16 %v1102
      %v2579 = vunpack.c.l.b16 %v1112
      %v2580 = vunpack.c.l.b16 %v1126
      %v2581 = vunpack.c.l.b16 %v1136
      %v2582 = vunpack.c.l.b16 %v1150
      %v2583 = vunpack.c.l.b16 %v1160
      %v2584 = vunpack.c.l.b16 %v1174
      %v2585 = vunpack.c.l.b16 %v1184
      %v2586 = vunpack.c.l.b16 %v1198
      %v2587 = vunpack.c.l.b16 %v1208
      %v2588 = vunpack.c.l.b16 %v1222
      %v2589 = vunpack.c.l.b16 %v1232
      %v2590 = vunpack.c.l.b16 %v1246
      %v2591 = vunpack.c.l.b16 %v1256
      %v2592 = vunpack.c.l.b16 %v1270
      %v2593 = vunpack.c.l.b16 %v1280
      %v2594 = vunpack.c.l.b16 %v1294
      %v2595 = vunpack.c.l.b16 %v1304
      %v2596 = vunpack.c.l.b16 %v1318
      %v2597 = vunpack.c.l.b16 %v1328
      %v2598 = vunpack.c.l.b16 %v1342
      %v2599 = vunpack.c.l.b16 %v1352
      %v2600 = vunpack.c.l.b16 %v1366
      %v2601 = vunpack.c.l.b16 %v1376
      %v2602 = vunpack.c.l.b16 %v1390
      %v2603 = vunpack.c.l.b16 %v1400
      %v2604 = vunpack.c.l.b16 %v1414
      %v2605 = vunpack.c.l.b16 %v1424
      %v2606 = vunpack.c.l.b16 %v1438
      %v2607 = vunpack.c.l.b16 %v1448
      %v2608 = vunpack.c.l.b16 %v1462
      %v2609 = vunpack.c.l.b16 %v1472
      %v2610 = vpack.c.b16 %v2579, %v2578
      %v2611 = vpack.c.b16 %v2581, %v2580
      %v2612 = vpack.c.b16 %v2583, %v2582
      %v2613 = vpack.c.b16 %v2585, %v2584
      %v2614 = vpack.c.b16 %v2587, %v2586
      %v2615 = vpack.c.b16 %v2589, %v2588
      %v2616 = vpack.c.b16 %v2591, %v2590
      %v2617 = vpack.c.b16 %v2593, %v2592
      %v2618 = vpack.c.b16 %v2595, %v2594
      %v2619 = vpack.c.b16 %v2597, %v2596
      %v2620 = vpack.c.b16 %v2599, %v2598
      %v2621 = vpack.c.b16 %v2601, %v2600
      %v2622 = vpack.c.b16 %v2603, %v2602
      %v2623 = vpack.c.b16 %v2605, %v2604
      %v2624 = vpack.c.b16 %v2607, %v2606
      %v2625 = vpack.c.b16 %v2609, %v2608
      %2626 = vrot.lane.b32.xlu0 %v2610, 16
      %v2627 = vpop.permute.xlu0 %2626
      %2628 = vrot.lane.b32.xlu0 %v2611, 16
      %v2629 = vpop.permute.xlu0 %2628
      %2630 = vrot.lane.b32.xlu0 %v2612, 16
      %v2631 = vpop.permute.xlu0 %2630
      %2632 = vrot.lane.b32.xlu0 %v2613, 16
      %v2633 = vpop.permute.xlu0 %2632
      %2634 = vrot.lane.b32.xlu0 %v2614, 16
      %v2635 = vpop.permute.xlu0 %2634
      %2636 = vrot.lane.b32.xlu0 %v2615, 16
      %v2637 = vpop.permute.xlu0 %2636
      %2638 = vrot.lane.b32.xlu0 %v2616, 16
      %v2639 = vpop.permute.xlu0 %2638
      %2640 = vrot.lane.b32.xlu0 %v2617, 16
      %v2641 = vpop.permute.xlu0 %2640
      %2642 = vrot.lane.b32.xlu0 %v2618, 16
      %v2643 = vpop.permute.xlu0 %2642
      %2644 = vrot.lane.b32.xlu0 %v2619, 16
      %v2645 = vpop.permute.xlu0 %2644
      %2646 = vrot.lane.b32.xlu0 %v2620, 16
      %v2647 = vpop.permute.xlu0 %2646
      %2648 = vrot.lane.b32.xlu0 %v2621, 16
      %v2649 = vpop.permute.xlu0 %2648
      %2650 = vrot.lane.b32.xlu0 %v2622, 16
      %v2651 = vpop.permute.xlu0 %2650
      %2652 = vrot.lane.b32.xlu0 %v2623, 16
      %v2653 = vpop.permute.xlu0 %2652
      %2654 = vrot.lane.b32.xlu0 %v2624, 16
      %v2655 = vpop.permute.xlu0 %2654
      %2656 = vrot.lane.b32.xlu0 %v2625, 16
      %v2657 = vpop.permute.xlu0 %2656
      %v2658 = vunpack.c.l.b16 %v1540
      %v2659 = vunpack.c.l.b16 %v1543
      %v2660 = vunpack.c.l.b16 %v1547
      %v2661 = vunpack.c.l.b16 %v1550
      %v2662 = vunpack.c.l.b16 %v1554
      %v2663 = vunpack.c.l.b16 %v1557
      %v2664 = vunpack.c.l.b16 %v1561
      %v2665 = vunpack.c.l.b16 %v1564
      %v2666 = vunpack.c.l.b16 %v1568
      %v2667 = vunpack.c.l.b16 %v1571
      %v2668 = vunpack.c.l.b16 %v1575
      %v2669 = vunpack.c.l.b16 %v1578
      %v2670 = vunpack.c.l.b16 %v1582
      %v2671 = vunpack.c.l.b16 %v1585
      %v2672 = vunpack.c.l.b16 %v1589
      %v2673 = vunpack.c.l.b16 %v1592
      %v2674 = vunpack.c.l.b16 %v1596
      %v2675 = vunpack.c.l.b16 %v1599
      %v2676 = vunpack.c.l.b16 %v1603
      %v2677 = vunpack.c.l.b16 %v1606
      %v2678 = vunpack.c.l.b16 %v1610
      %v2679 = vunpack.c.l.b16 %v1613
      %v2680 = vunpack.c.l.b16 %v1617
      %v2681 = vunpack.c.l.b16 %v1620
      %v2682 = vunpack.c.l.b16 %v1624
      %v2683 = vunpack.c.l.b16 %v1627
      %v2684 = vunpack.c.l.b16 %v1631
      %v2685 = vunpack.c.l.b16 %v1634
      %v2686 = vunpack.c.l.b16 %v1638
      %v2687 = vunpack.c.l.b16 %v1641
      %v2688 = vunpack.c.l.b16 %v1645
      %v2689 = vunpack.c.l.b16 %v1648
      %v2690 = vpack.c.b16 %v2659, %v2658
      %v2691 = vpack.c.b16 %v2661, %v2660
      %v2692 = vpack.c.b16 %v2663, %v2662
      %v2693 = vpack.c.b16 %v2665, %v2664
      %v2694 = vpack.c.b16 %v2667, %v2666
      %v2695 = vpack.c.b16 %v2669, %v2668
      %v2696 = vpack.c.b16 %v2671, %v2670
      %v2697 = vpack.c.b16 %v2673, %v2672
      %v2698 = vpack.c.b16 %v2675, %v2674
      %v2699 = vpack.c.b16 %v2677, %v2676
      %v2700 = vpack.c.b16 %v2679, %v2678
      %v2701 = vpack.c.b16 %v2681, %v2680
      %v2702 = vpack.c.b16 %v2683, %v2682
      %v2703 = vpack.c.b16 %v2685, %v2684
      %v2704 = vpack.c.b16 %v2687, %v2686
      %v2705 = vpack.c.b16 %v2689, %v2688
      %2706 = vrot.lane.b32.xlu0 %v2690, 20
      %v2707 = vpop.permute.xlu0 %2706
      %2708 = vrot.lane.b32.xlu0 %v2691, 20
      %v2709 = vpop.permute.xlu0 %2708
      %2710 = vrot.lane.b32.xlu0 %v2692, 20
      %v2711 = vpop.permute.xlu0 %2710
      %2712 = vrot.lane.b32.xlu0 %v2693, 20
      %v2713 = vpop.permute.xlu0 %2712
      %2714 = vrot.lane.b32.xlu0 %v2694, 20
      %v2715 = vpop.permute.xlu0 %2714
      %2716 = vrot.lane.b32.xlu0 %v2695, 20
      %v2717 = vpop.permute.xlu0 %2716
      %2718 = vrot.lane.b32.xlu0 %v2696, 20
      %v2719 = vpop.permute.xlu0 %2718
      %2720 = vrot.lane.b32.xlu0 %v2697, 20
      %v2721 = vpop.permute.xlu0 %2720
      %2722 = vrot.lane.b32.xlu0 %v2698, 20
      %v2723 = vpop.permute.xlu0 %2722
      %2724 = vrot.lane.b32.xlu0 %v2699, 20
      %v2725 = vpop.permute.xlu0 %2724
      %2726 = vrot.lane.b32.xlu0 %v2700, 20
      %v2727 = vpop.permute.xlu0 %2726
      %2728 = vrot.lane.b32.xlu0 %v2701, 20
      %v2729 = vpop.permute.xlu0 %2728
      %2730 = vrot.lane.b32.xlu0 %v2702, 20
      %v2731 = vpop.permute.xlu0 %2730
      %2732 = vrot.lane.b32.xlu0 %v2703, 20
      %v2733 = vpop.permute.xlu0 %2732
      %2734 = vrot.lane.b32.xlu0 %v2704, 20
      %v2735 = vpop.permute.xlu0 %2734
      %2736 = vrot.lane.b32.xlu0 %v2705, 20
      %v2737 = vpop.permute.xlu0 %2736
      %v2754 = vunpack.c.l.b16 %v1650
      %v2755 = vunpack.c.l.b16 %v1651
      %v2756 = vunpack.c.l.b16 %v1652
      %v2757 = vunpack.c.l.b16 %v1653
      %v2758 = vunpack.c.l.b16 %v1654
      %v2759 = vunpack.c.l.b16 %v1655
      %v2760 = vunpack.c.l.b16 %v1656
      %v2761 = vunpack.c.l.b16 %v1657
      %v2762 = vunpack.c.l.b16 %v1658
      %v2763 = vunpack.c.l.b16 %v1659
      %v2764 = vunpack.c.l.b16 %v1660
      %v2765 = vunpack.c.l.b16 %v1661
      %v2766 = vunpack.c.l.b16 %v1662
      %v2767 = vunpack.c.l.b16 %v1663
      %v2768 = vunpack.c.l.b16 %v1664
      %v2769 = vunpack.c.l.b16 %v1665
      %v2770 = vunpack.c.l.b16 %v1666
      %v2771 = vunpack.c.l.b16 %v1667
      %v2772 = vunpack.c.l.b16 %v1668
      %v2773 = vunpack.c.l.b16 %v1669
      %v2774 = vunpack.c.l.b16 %v1670
      %v2775 = vunpack.c.l.b16 %v1671
      %v2776 = vunpack.c.l.b16 %v1672
      %v2777 = vunpack.c.l.b16 %v1673
      %v2778 = vunpack.c.l.b16 %v1674
      %v2779 = vunpack.c.l.b16 %v1675
      %v2780 = vunpack.c.l.b16 %v1676
      %v2781 = vunpack.c.l.b16 %v1677
      %v2782 = vunpack.c.l.b16 %v1678
      %v2783 = vunpack.c.l.b16 %v1679
      %v2784 = vunpack.c.l.b16 %v1680
      %v2785 = vunpack.c.l.b16 %v1681
      %v2786 = vpack.c.b16 %v2755, %v2754
      %v2787 = vpack.c.b16 %v2757, %v2756
      %v2788 = vpack.c.b16 %v2759, %v2758
      %v2789 = vpack.c.b16 %v2761, %v2760
      %v2790 = vpack.c.b16 %v2763, %v2762
      %v2791 = vpack.c.b16 %v2765, %v2764
      %v2792 = vpack.c.b16 %v2767, %v2766
      %v2793 = vpack.c.b16 %v2769, %v2768
      %v2794 = vpack.c.b16 %v2771, %v2770
      %v2795 = vpack.c.b16 %v2773, %v2772
      %v2796 = vpack.c.b16 %v2775, %v2774
      %v2797 = vpack.c.b16 %v2777, %v2776
      %v2798 = vpack.c.b16 %v2779, %v2778
      %v2799 = vpack.c.b16 %v2781, %v2780
      %v2800 = vpack.c.b16 %v2783, %v2782
      %v2801 = vpack.c.b16 %v2785, %v2784
      %2802 = vrot.lane.b32.xlu0 %v2786, 24
      %v2803 = vpop.permute.xlu0 %2802
      %2804 = vrot.lane.b32.xlu0 %v2787, 24
      %v2805 = vpop.permute.xlu0 %2804
      %2806 = vrot.lane.b32.xlu0 %v2788, 24
      %v2807 = vpop.permute.xlu0 %2806
      %2808 = vrot.lane.b32.xlu0 %v2789, 24
      %v2809 = vpop.permute.xlu0 %2808
      %2810 = vrot.lane.b32.xlu0 %v2790, 24
      %v2811 = vpop.permute.xlu0 %2810
      %2812 = vrot.lane.b32.xlu0 %v2791, 24
      %v2813 = vpop.permute.xlu0 %2812
      %2814 = vrot.lane.b32.xlu0 %v2792, 24
      %v2815 = vpop.permute.xlu0 %2814
      %2816 = vrot.lane.b32.xlu0 %v2793, 24
      %v2817 = vpop.permute.xlu0 %2816
      %2818 = vrot.lane.b32.xlu0 %v2794, 24
      %v2819 = vpop.permute.xlu0 %2818
      %2820 = vrot.lane.b32.xlu0 %v2795, 24
      %v2821 = vpop.permute.xlu0 %2820
      %2822 = vrot.lane.b32.xlu0 %v2796, 24
      %v2823 = vpop.permute.xlu0 %2822
      %2824 = vrot.lane.b32.xlu0 %v2797, 24
      %v2825 = vpop.permute.xlu0 %2824
      %2826 = vrot.lane.b32.xlu0 %v2798, 24
      %v2827 = vpop.permute.xlu0 %2826
      %2828 = vrot.lane.b32.xlu0 %v2799, 24
      %v2829 = vpop.permute.xlu0 %2828
      %2830 = vrot.lane.b32.xlu0 %v2800, 24
      %v2831 = vpop.permute.xlu0 %2830
      %2832 = vrot.lane.b32.xlu0 %v2801, 24
      %v2833 = vpop.permute.xlu0 %2832
      %v2834 = vunpack.c.l.b16 %v1711
      %v2835 = vunpack.c.l.b16 %v1721
      %v2836 = vunpack.c.l.b16 %v1735
      %v2837 = vunpack.c.l.b16 %v1745
      %v2838 = vunpack.c.l.b16 %v1759
      %v2839 = vunpack.c.l.b16 %v1769
      %v2840 = vunpack.c.l.b16 %v1783
      %v2841 = vunpack.c.l.b16 %v1793
      %v2842 = vunpack.c.l.b16 %v1807
      %v2843 = vunpack.c.l.b16 %v1817
      %v2844 = vunpack.c.l.b16 %v1831
      %v2845 = vunpack.c.l.b16 %v1841
      %v2846 = vunpack.c.l.b16 %v1855
      %v2847 = vunpack.c.l.b16 %v1865
      %v2848 = vunpack.c.l.b16 %v1879
      %v2849 = vunpack.c.l.b16 %v1889
      %v2850 = vunpack.c.l.b16 %v1903
      %v2851 = vunpack.c.l.b16 %v1913
      %v2852 = vunpack.c.l.b16 %v1927
      %v2853 = vunpack.c.l.b16 %v1937
      %v2854 = vunpack.c.l.b16 %v1951
      %v2855 = vunpack.c.l.b16 %v1961
      %v2856 = vunpack.c.l.b16 %v1975
      %v2857 = vunpack.c.l.b16 %v1985
      %v2858 = vunpack.c.l.b16 %v1999
      %v2859 = vunpack.c.l.b16 %v2009
      %v2860 = vunpack.c.l.b16 %v2023
      %v2861 = vunpack.c.l.b16 %v2033
      %v2862 = vunpack.c.l.b16 %v2047
      %v2863 = vunpack.c.l.b16 %v2057
      %v2864 = vunpack.c.l.b16 %v2071
      %v2865 = vunpack.c.l.b16 %v2081
      %v2866 = vpack.c.b16 %v2835, %v2834
      %v2867 = vpack.c.b16 %v2837, %v2836
      %v2868 = vpack.c.b16 %v2839, %v2838
      %v2869 = vpack.c.b16 %v2841, %v2840
      %v2870 = vpack.c.b16 %v2843, %v2842
      %v2871 = vpack.c.b16 %v2845, %v2844
      %v2872 = vpack.c.b16 %v2847, %v2846
      %v2873 = vpack.c.b16 %v2849, %v2848
      %v2874 = vpack.c.b16 %v2851, %v2850
      %v2875 = vpack.c.b16 %v2853, %v2852
      %v2876 = vpack.c.b16 %v2855, %v2854
      %v2877 = vpack.c.b16 %v2857, %v2856
      %v2878 = vpack.c.b16 %v2859, %v2858
      %v2879 = vpack.c.b16 %v2861, %v2860
      %v2880 = vpack.c.b16 %v2863, %v2862
      %v2881 = vpack.c.b16 %v2865, %v2864
      %2882 = vrot.lane.b32.xlu0 %v2866, 28
      %v2883 = vpop.permute.xlu0 %2882
      %2884 = vrot.lane.b32.xlu0 %v2867, 28
      %v2885 = vpop.permute.xlu0 %2884
      %2886 = vrot.lane.b32.xlu0 %v2868, 28
      %v2887 = vpop.permute.xlu0 %2886
      %2888 = vrot.lane.b32.xlu0 %v2869, 28
      %v2889 = vpop.permute.xlu0 %2888
      %2890 = vrot.lane.b32.xlu0 %v2870, 28
      %v2891 = vpop.permute.xlu0 %2890
      %2892 = vrot.lane.b32.xlu0 %v2871, 28
      %v2893 = vpop.permute.xlu0 %2892
      %2894 = vrot.lane.b32.xlu0 %v2872, 28
      %v2895 = vpop.permute.xlu0 %2894
      %2896 = vrot.lane.b32.xlu0 %v2873, 28
      %v2897 = vpop.permute.xlu0 %2896
      %2898 = vrot.lane.b32.xlu0 %v2874, 28
      %v2899 = vpop.permute.xlu0 %2898
      %2900 = vrot.lane.b32.xlu0 %v2875, 28
      %v2901 = vpop.permute.xlu0 %2900
      %2902 = vrot.lane.b32.xlu0 %v2876, 28
      %v2903 = vpop.permute.xlu0 %2902
      %2904 = vrot.lane.b32.xlu0 %v2877, 28
      %v2905 = vpop.permute.xlu0 %2904
      %2906 = vrot.lane.b32.xlu0 %v2878, 28
      %v2907 = vpop.permute.xlu0 %2906
      %2908 = vrot.lane.b32.xlu0 %v2879, 28
      %v2909 = vpop.permute.xlu0 %2908
      %2910 = vrot.lane.b32.xlu0 %v2880, 28
      %v2911 = vpop.permute.xlu0 %2910
      %2912 = vrot.lane.b32.xlu0 %v2881, 28
      %v2913 = vpop.permute.xlu0 %2912
      %v2914 = vunpack.c.l.b16 %v2149
      %v2915 = vunpack.c.l.b16 %v2152
      %v2916 = vunpack.c.l.b16 %v2156
      %v2917 = vunpack.c.l.b16 %v2159
      %v2918 = vunpack.c.l.b16 %v2163
      %v2919 = vunpack.c.l.b16 %v2166
      %v2920 = vunpack.c.l.b16 %v2170
      %v2921 = vunpack.c.l.b16 %v2173
      %v2922 = vunpack.c.l.b16 %v2177
      %v2923 = vunpack.c.l.b16 %v2180
      %v2924 = vunpack.c.l.b16 %v2184
      %v2925 = vunpack.c.l.b16 %v2187
      %v2926 = vunpack.c.l.b16 %v2191
      %v2927 = vunpack.c.l.b16 %v2194
      %v2928 = vunpack.c.l.b16 %v2198
      %v2929 = vunpack.c.l.b16 %v2201
      %v2930 = vunpack.c.l.b16 %v2205
      %v2931 = vunpack.c.l.b16 %v2208
      %v2932 = vunpack.c.l.b16 %v2212
      %v2933 = vunpack.c.l.b16 %v2215
      %v2934 = vunpack.c.l.b16 %v2219
      %v2935 = vunpack.c.l.b16 %v2222
      %v2936 = vunpack.c.l.b16 %v2226
      %v2937 = vunpack.c.l.b16 %v2229
      %v2938 = vunpack.c.l.b16 %v2233
      %v2939 = vunpack.c.l.b16 %v2236
      %v2940 = vunpack.c.l.b16 %v2240
      %v2941 = vunpack.c.l.b16 %v2243
      %v2942 = vunpack.c.l.b16 %v2247
      %v2943 = vunpack.c.l.b16 %v2250
      %v2944 = vunpack.c.l.b16 %v2254
      %v2945 = vunpack.c.l.b16 %v2257
      %v2946 = vpack.c.b16 %v2915, %v2914
      %v2947 = vpack.c.b16 %v2917, %v2916
      %v2948 = vpack.c.b16 %v2919, %v2918
      %v2949 = vpack.c.b16 %v2921, %v2920
      %v2950 = vpack.c.b16 %v2923, %v2922
      %v2951 = vpack.c.b16 %v2925, %v2924
      %v2952 = vpack.c.b16 %v2927, %v2926
      %v2953 = vpack.c.b16 %v2929, %v2928
      %v2954 = vpack.c.b16 %v2931, %v2930
      %v2955 = vpack.c.b16 %v2933, %v2932
      %v2956 = vpack.c.b16 %v2935, %v2934
      %v2957 = vpack.c.b16 %v2937, %v2936
      %v2958 = vpack.c.b16 %v2939, %v2938
      %v2959 = vpack.c.b16 %v2941, %v2940
      %v2960 = vpack.c.b16 %v2943, %v2942
      %v2961 = vpack.c.b16 %v2945, %v2944
      %2962 = vrot.lane.b32.xlu0 %v2946, 32
      %v2963 = vpop.permute.xlu0 %2962
      %2964 = vrot.lane.b32.xlu0 %v2947, 32
      %v2965 = vpop.permute.xlu0 %2964
      %2966 = vrot.lane.b32.xlu0 %v2948, 32
      %v2967 = vpop.permute.xlu0 %2966
      %2968 = vrot.lane.b32.xlu0 %v2949, 32
      %v2969 = vpop.permute.xlu0 %2968
      %2970 = vrot.lane.b32.xlu0 %v2950, 32
      %v2971 = vpop.permute.xlu0 %2970
      %2972 = vrot.lane.b32.xlu0 %v2951, 32
      %v2973 = vpop.permute.xlu0 %2972
      %2974 = vrot.lane.b32.xlu0 %v2952, 32
      %v2975 = vpop.permute.xlu0 %2974
      %2976 = vrot.lane.b32.xlu0 %v2953, 32
      %v2977 = vpop.permute.xlu0 %2976
      %2978 = vrot.lane.b32.xlu0 %v2954, 32
      %v2979 = vpop.permute.xlu0 %2978
      %2980 = vrot.lane.b32.xlu0 %v2955, 32
      %v2981 = vpop.permute.xlu0 %2980
      %2982 = vrot.lane.b32.xlu0 %v2956, 32
      %v2983 = vpop.permute.xlu0 %2982
      %2984 = vrot.lane.b32.xlu0 %v2957, 32
      %v2985 = vpop.permute.xlu0 %2984
      %2986 = vrot.lane.b32.xlu0 %v2958, 32
      %v2987 = vpop.permute.xlu0 %2986
      %2988 = vrot.lane.b32.xlu0 %v2959, 32
      %v2989 = vpop.permute.xlu0 %2988
      %2990 = vrot.lane.b32.xlu0 %v2960, 32
      %v2991 = vpop.permute.xlu0 %2990
      %2992 = vrot.lane.b32.xlu0 %v2961, 32
      %v2993 = vpop.permute.xlu0 %2992
      %vm2994 = vcmask 31744
      %v2997 = vsel %vm2994, %v2306, %v2371
      %v3000 = vsel %vm2994, %v2307, %v2373
      %v3003 = vsel %vm2994, %v2308, %v2375
      %v3006 = vsel %vm2994, %v2309, %v2377
      %v3009 = vsel %vm2994, %v2310, %v2379
      %v3012 = vsel %vm2994, %v2311, %v2381
      %v3015 = vsel %vm2994, %v2312, %v2383
      %v3018 = vsel %vm2994, %v2313, %v2385
      %v3021 = vsel %vm2994, %v2314, %v2387
      %v3024 = vsel %vm2994, %v2315, %v2389
      %v3027 = vsel %vm2994, %v2316, %v2391
      %v3030 = vsel %vm2994, %v2317, %v2393
      %v3033 = vsel %vm2994, %v2318, %v2395
      %v3036 = vsel %vm2994, %v2319, %v2397
      %v3039 = vsel %vm2994, %v2320, %v2399
      %v3042 = vsel %vm2994, %v2321, %v2401
      %vm3043 = vcmask 64512
      %v3045 = vsel %vm3043, %v2997, %v2451
      %v3047 = vsel %vm3043, %v3000, %v2453
      %v3049 = vsel %vm3043, %v3003, %v2455
      %v3051 = vsel %vm3043, %v3006, %v2457
      %v3053 = vsel %vm3043, %v3009, %v2459
      %v3055 = vsel %vm3043, %v3012, %v2461
      %v3057 = vsel %vm3043, %v3015, %v2463
      %v3059 = vsel %vm3043, %v3018, %v2465
      %v3061 = vsel %vm3043, %v3021, %v2467
      %v3063 = vsel %vm3043, %v3024, %v2469
      %v3065 = vsel %vm3043, %v3027, %v2471
      %v3067 = vsel %vm3043, %v3030, %v2473
      %v3069 = vsel %vm3043, %v3033, %v2475
      %v3071 = vsel %vm3043, %v3036, %v2477
      %v3073 = vsel %vm3043, %v3039, %v2479
      %v3075 = vsel %vm3043, %v3042, %v2481
      %vm3076 = vcmask 97280
      %v3078 = vsel %vm3076, %v3045, %v2547
      %v3080 = vsel %vm3076, %v3047, %v2549
      %v3082 = vsel %vm3076, %v3049, %v2551
      %v3084 = vsel %vm3076, %v3051, %v2553
      %v3086 = vsel %vm3076, %v3053, %v2555
      %v3088 = vsel %vm3076, %v3055, %v2557
      %v3090 = vsel %vm3076, %v3057, %v2559
      %v3092 = vsel %vm3076, %v3059, %v2561
      %v3094 = vsel %vm3076, %v3061, %v2563
      %v3096 = vsel %vm3076, %v3063, %v2565
      %v3098 = vsel %vm3076, %v3065, %v2567
      %v3100 = vsel %vm3076, %v3067, %v2569
      %v3102 = vsel %vm3076, %v3069, %v2571
      %v3104 = vsel %vm3076, %v3071, %v2573
      %v3106 = vsel %vm3076, %v3073, %v2575
      %v3108 = vsel %vm3076, %v3075, %v2577
      %vm3109 = vcmask 130048
      %v3111 = vsel %vm3109, %v3078, %v2627
      %v3113 = vsel %vm3109, %v3080, %v2629
      %v3115 = vsel %vm3109, %v3082, %v2631
      %v3117 = vsel %vm3109, %v3084, %v2633
      %v3119 = vsel %vm3109, %v3086, %v2635
      %v3121 = vsel %vm3109, %v3088, %v2637
      %v3123 = vsel %vm3109, %v3090, %v2639
      %v3125 = vsel %vm3109, %v3092, %v2641
      %v3127 = vsel %vm3109, %v3094, %v2643
      %v3129 = vsel %vm3109, %v3096, %v2645
      %v3131 = vsel %vm3109, %v3098, %v2647
      %v3133 = vsel %vm3109, %v3100, %v2649
      %v3135 = vsel %vm3109, %v3102, %v2651
      %v3137 = vsel %vm3109, %v3104, %v2653
      %v3139 = vsel %vm3109, %v3106, %v2655
      %v3141 = vsel %vm3109, %v3108, %v2657
      %vm3142 = vcmask 162816
      %v3144 = vsel %vm3142, %v3111, %v2707
      %v3146 = vsel %vm3142, %v3113, %v2709
      %v3148 = vsel %vm3142, %v3115, %v2711
      %v3150 = vsel %vm3142, %v3117, %v2713
      %v3152 = vsel %vm3142, %v3119, %v2715
      %v3154 = vsel %vm3142, %v3121, %v2717
      %v3156 = vsel %vm3142, %v3123, %v2719
      %v3158 = vsel %vm3142, %v3125, %v2721
      %v3160 = vsel %vm3142, %v3127, %v2723
      %v3162 = vsel %vm3142, %v3129, %v2725
      %v3164 = vsel %vm3142, %v3131, %v2727
      %v3166 = vsel %vm3142, %v3133, %v2729
      %v3168 = vsel %vm3142, %v3135, %v2731
      %v3170 = vsel %vm3142, %v3137, %v2733
      %v3172 = vsel %vm3142, %v3139, %v2735
      %v3174 = vsel %vm3142, %v3141, %v2737
      %vm3175 = vcmask 195584
      %v3177 = vsel %vm3175, %v3144, %v2803
      %v3179 = vsel %vm3175, %v3146, %v2805
      %v3181 = vsel %vm3175, %v3148, %v2807
      %v3183 = vsel %vm3175, %v3150, %v2809
      %v3185 = vsel %vm3175, %v3152, %v2811
      %v3187 = vsel %vm3175, %v3154, %v2813
      %v3189 = vsel %vm3175, %v3156, %v2815
      %v3191 = vsel %vm3175, %v3158, %v2817
      %v3193 = vsel %vm3175, %v3160, %v2819
      %v3195 = vsel %vm3175, %v3162, %v2821
      %v3197 = vsel %vm3175, %v3164, %v2823
      %v3199 = vsel %vm3175, %v3166, %v2825
      %v3201 = vsel %vm3175, %v3168, %v2827
      %v3203 = vsel %vm3175, %v3170, %v2829
      %v3205 = vsel %vm3175, %v3172, %v2831
      %v3207 = vsel %vm3175, %v3174, %v2833
      %vm3208 = vcmask 228352
      %v3210 = vsel %vm3208, %v3177, %v2883
      %v3212 = vsel %vm3208, %v3179, %v2885
      %v3214 = vsel %vm3208, %v3181, %v2887
      %v3216 = vsel %vm3208, %v3183, %v2889
      %v3218 = vsel %vm3208, %v3185, %v2891
      %v3220 = vsel %vm3208, %v3187, %v2893
      %v3222 = vsel %vm3208, %v3189, %v2895
      %v3224 = vsel %vm3208, %v3191, %v2897
      %v3226 = vsel %vm3208, %v3193, %v2899
      %v3228 = vsel %vm3208, %v3195, %v2901
      %v3230 = vsel %vm3208, %v3197, %v2903
      %v3232 = vsel %vm3208, %v3199, %v2905
      %v3234 = vsel %vm3208, %v3201, %v2907
      %v3236 = vsel %vm3208, %v3203, %v2909
      %v3238 = vsel %vm3208, %v3205, %v2911
      %v3240 = vsel %vm3208, %v3207, %v2913
      %vm3241 = vcmask 261120
      %v3243 = vsel %vm3241, %v3210, %v2963
      %v3245 = vsel %vm3241, %v3212, %v2965
      %v3247 = vsel %vm3241, %v3214, %v2967
      %v3249 = vsel %vm3241, %v3216, %v2969
      %v3251 = vsel %vm3241, %v3218, %v2971
      %v3253 = vsel %vm3241, %v3220, %v2973
      %v3255 = vsel %vm3241, %v3222, %v2975
      %v3257 = vsel %vm3241, %v3224, %v2977
      %v3259 = vsel %vm3241, %v3226, %v2979
      %v3261 = vsel %vm3241, %v3228, %v2981
      %v3263 = vsel %vm3241, %v3230, %v2983
      %v3265 = vsel %vm3241, %v3232, %v2985
      %v3267 = vsel %vm3241, %v3234, %v2987
      %v3269 = vsel %vm3241, %v3236, %v2989
      %v3271 = vsel %vm3241, %v3238, %v2991
      %v3273 = vsel %vm3241, %v3240, %v2993
      %v3274 = vld [vmem:[%s392] sm:$0xf]
      %v3275 = vld [vmem:[%s392 + $0x4] sm:$0xf]
      %v3276 = vld [vmem:[%s392 + $0x8] sm:$0xf]
      %v3277 = vld [vmem:[%s392 + $0xc] sm:$0xf]
      %v3278 = vld [vmem:[%s392 + $0x10] sm:$0x3]
      %v3279 = vld [vmem:[%s395] sm:$0x1]
      %v3281 = vlaneseq
      %v3282 = vshrl.u32 %v3281, 7
      %v3283 = vsub.s32 0, %v3282
      %v3284 = vrot.slane %v3279, %v3283
      %v3291 = vunpack.c.l.b16 %v3274
      %v3292 = vunpack.c.l.b16 %v3275
      %v3293 = vunpack.c.l.b16 %v3276
      %v3294 = vunpack.c.l.b16 %v3277
      %v3295 = vunpack.c.l.b16 %v3278
      %v3296 = vpack.c.b16 %v3292, %v3291
      %v3297 = vpack.c.b16 %v3294, %v3293
      %v3298 = vpack.c.b16 %v3295, %v3295
      %vm3301 = vcmask 293888
      %v3302 = vsel %vm3301, %v3243, 0
      %v3304 = vsel %vm3301, %v3245, 0
      %v3306 = vsel %vm3301, %v3247, 0
      %v3308 = vsel %vm3301, %v3249, 0
      %v3310 = vsel %vm3301, %v3251, 0
      %v3312 = vsel %vm3301, %v3253, 0
      %v3314 = vsel %vm3301, %v3255, 0
      %v3316 = vsel %vm3301, %v3257, 0
      %v3318 = vsel %vm3301, %v3259, 0
      %v3320 = vsel %vm3301, %v3261, 0
      %v3322 = vsel %vm3301, %v3263, 0
      %v3324 = vsel %vm3301, %v3265, 0
      %v3326 = vsel %vm3301, %v3267, 0
      %v3328 = vsel %vm3301, %v3269, 0
      %v3330 = vsel %vm3301, %v3271, 0
      %v3332 = vsel %vm3301, %v3273, 0
      %vm3334 = vcmask 1041408
      %v3336 = vsel %vm3334, %v3298, 0
      %3338 = vmatprep.subr.bf16.mxu0 0
      %3339 = vmatpush1.bf16.msra.mxu0 %v3296
      %3340 = vmatprep.subr.bf16.mxu0 0
      %3341 = vmatpush1.bf16.msra.mxu0 %v3297
      %3342 = vmatprep.subr.bf16.mxu0 0
      %3343 = vmatpush1.bf16.msra.mxu0 %v3336
      %3344 = vmatprep.subr.bf16.mxu0 0
      %3345 = vmatpush1.bf16.msra.mxu0 0
      %3346 = vmatprep.subr.bf16.mxu0 0
      %3347 = vmatpush1.bf16.msra.mxu0 0
      %3348 = vmatprep.subr.bf16.mxu0 0
      %3349 = vmatpush1.bf16.msra.mxu0 0
      %3350 = vmatprep.subr.bf16.mxu0 0
      %3351 = vmatpush1.bf16.msra.mxu0 0
      %3352 = vmatprep.subr.bf16.mxu0 0
      %3353 = vmatpush1.bf16.msra.mxu0 0
      %3354 = vmatprep.subr.bf16.mxu0 0
      %3355 = vmatpush1.bf16.msra.mxu0 0
      %3356 = vmatprep.subr.bf16.mxu0 0
      %3357 = vmatpush1.bf16.msra.mxu0 0
      %3358 = vmatprep.subr.bf16.mxu0 0
      %3359 = vmatpush1.bf16.msra.mxu0 0
      %3360 = vmatprep.subr.bf16.mxu0 0
      %3361 = vmatpush1.bf16.msra.mxu0 0
      %3362 = vmatprep.subr.bf16.mxu0 0
      %3363 = vmatpush1.bf16.msra.mxu0 0
      %3364 = vmatprep.subr.bf16.mxu0 0
      %3365 = vmatpush1.bf16.msra.mxu0 0
      %3366 = vmatprep.subr.bf16.mxu0 0
      %3367 = vmatpush1.bf16.msra.mxu0 0
      %3368 = vmatprep.subr.bf16.mxu0 0
      %3369 = vmatpush1.bf16.msra.mxu0 0
      %3370 = vmatprep.mubr.bf16.mxu0 0
      %3371 = vmatmul.mubr.bf16.gmra.mrb[0].mxu0 %v3302
      %v3372 = vpop.f32.mrb[0].mxu0
      %v3373 = vadd.f32 %v3284, %v3372
      %v3374 = vpop.f32.mrb[0].mxu0
      %v3375 = vpop.f32.mrb[0].mxu0
      %v3376 = vadd.f32 %v3284, %v3375
      %v3377 = vpop.f32.mrb[0].mxu0
      %3378 = vmatprep.mubr.bf16.mxu0 0
      %3379 = vmatmul.mubr.bf16.gmra.mrb[0].mxu0 %v3304
      %v3380 = vpop.f32.mrb[0].mxu0
      %v3381 = vadd.f32 %v3284, %v3380
      %v3382 = vpop.f32.mrb[0].mxu0
      %v3383 = vpop.f32.mrb[0].mxu0
      %v3384 = vadd.f32 %v3284, %v3383
      %v3385 = vpop.f32.mrb[0].mxu0
      %3386 = vmatprep.mubr.bf16.mxu0 0
      %3387 = vmatmul.mubr.bf16.gmra.mrb[0].mxu0 %v3306
      %v3388 = vpop.f32.mrb[0].mxu0
      %v3389 = vadd.f32 %v3284, %v3388
      %v3390 = vpop.f32.mrb[0].mxu0
      %v3391 = vpop.f32.mrb[0].mxu0
      %v3392 = vadd.f32 %v3284, %v3391
      %v3393 = vpop.f32.mrb[0].mxu0
      %3394 = vmatprep.mubr.bf16.mxu0 0
      %3395 = vmatmul.mubr.bf16.gmra.mrb[0].mxu0 %v3308
      %v3396 = vpop.f32.mrb[0].mxu0
      %v3397 = vadd.f32 %v3284, %v3396
      %v3398 = vpop.f32.mrb[0].mxu0
      %v3399 = vpop.f32.mrb[0].mxu0
      %v3400 = vadd.f32 %v3284, %v3399
      %v3401 = vpop.f32.mrb[0].mxu0
      %3402 = vmatprep.mubr.bf16.mxu0 0
      %3403 = vmatmul.mubr.bf16.gmra.mrb[0].mxu0 %v3310
      %v3404 = vpop.f32.mrb[0].mxu0
      %v3405 = vadd.f32 %v3284, %v3404
      %v3406 = vpop.f32.mrb[0].mxu0
      %v3407 = vpop.f32.mrb[0].mxu0
      %v3408 = vadd.f32 %v3284, %v3407
      %v3409 = vpop.f32.mrb[0].mxu0
      %3410 = vmatprep.mubr.bf16.mxu0 0
      %3411 = vmatmul.mubr.bf16.gmra.mrb[0].mxu0 %v3312
      %v3412 = vpop.f32.mrb[0].mxu0
      %v3413 = vadd.f32 %v3284, %v3412
      %v3414 = vpop.f32.mrb[0].mxu0
      %v3415 = vpop.f32.mrb[0].mxu0
      %v3416 = vadd.f32 %v3284, %v3415
      %v3417 = vpop.f32.mrb[0].mxu0
      %3418 = vmatprep.mubr.bf16.mxu0 0
      %3419 = vmatmul.mubr.bf16.gmra.mrb[0].mxu0 %v3314
      %v3420 = vpop.f32.mrb[0].mxu0
      %v3421 = vadd.f32 %v3284, %v3420
      %v3422 = vpop.f32.mrb[0].mxu0
      %v3423 = vpop.f32.mrb[0].mxu0
      %v3424 = vadd.f32 %v3284, %v3423
      %v3425 = vpop.f32.mrb[0].mxu0
      %3426 = vmatprep.mubr.bf16.mxu0 0
      %3427 = vmatmul.mubr.bf16.gmra.mrb[0].mxu0 %v3316
      %v3428 = vpop.f32.mrb[0].mxu0
      %v3429 = vadd.f32 %v3284, %v3428
      %v3430 = vpop.f32.mrb[0].mxu0
      %v3431 = vpop.f32.mrb[0].mxu0
      %v3432 = vadd.f32 %v3284, %v3431
      %v3433 = vpop.f32.mrb[0].mxu0
      %3434 = vmatprep.mubr.bf16.mxu0 0
      %3435 = vmatmul.mubr.bf16.gmra.mrb[0].mxu0 %v3318
      %v3436 = vpop.f32.mrb[0].mxu0
      %v3437 = vadd.f32 %v3284, %v3436
      %v3438 = vpop.f32.mrb[0].mxu0
      %v3439 = vpop.f32.mrb[0].mxu0
      %v3440 = vadd.f32 %v3284, %v3439
      %v3441 = vpop.f32.mrb[0].mxu0
      %3442 = vmatprep.mubr.bf16.mxu0 0
      %3443 = vmatmul.mubr.bf16.gmra.mrb[0].mxu0 %v3320
      %v3444 = vpop.f32.mrb[0].mxu0
      %v3445 = vadd.f32 %v3284, %v3444
      %v3446 = vpop.f32.mrb[0].mxu0
      %v3447 = vpop.f32.mrb[0].mxu0
      %v3448 = vadd.f32 %v3284, %v3447
      %v3449 = vpop.f32.mrb[0].mxu0
      %3450 = vmatprep.mubr.bf16.mxu0 0
      %3451 = vmatmul.mubr.bf16.gmra.mrb[0].mxu0 %v3322
      %v3452 = vpop.f32.mrb[0].mxu0
      %v3453 = vadd.f32 %v3284, %v3452
      %v3454 = vpop.f32.mrb[0].mxu0
      %v3455 = vpop.f32.mrb[0].mxu0
      %v3456 = vadd.f32 %v3284, %v3455
      %v3457 = vpop.f32.mrb[0].mxu0
      %3458 = vmatprep.mubr.bf16.mxu0 0
      %3459 = vmatmul.mubr.bf16.gmra.mrb[0].mxu0 %v3324
      %v3460 = vpop.f32.mrb[0].mxu0
      %v3461 = vadd.f32 %v3284, %v3460
      %v3462 = vpop.f32.mrb[0].mxu0
      %v3463 = vpop.f32.mrb[0].mxu0
      %v3464 = vadd.f32 %v3284, %v3463
      %v3465 = vpop.f32.mrb[0].mxu0
      %3466 = vmatprep.mubr.bf16.mxu0 0
      %3467 = vmatmul.mubr.bf16.gmra.mrb[0].mxu0 %v3326
      %v3468 = vpop.f32.mrb[0].mxu0
      %v3469 = vadd.f32 %v3284, %v3468
      %v3470 = vpop.f32.mrb[0].mxu0
      %v3471 = vpop.f32.mrb[0].mxu0
      %v3472 = vadd.f32 %v3284, %v3471
      %v3473 = vpop.f32.mrb[0].mxu0
      %3474 = vmatprep.mubr.bf16.mxu0 0
      %3475 = vmatmul.mubr.bf16.gmra.mrb[0].mxu0 %v3328
      %v3476 = vpop.f32.mrb[0].mxu0
      %v3477 = vadd.f32 %v3284, %v3476
      %v3478 = vpop.f32.mrb[0].mxu0
      %v3479 = vpop.f32.mrb[0].mxu0
      %v3480 = vadd.f32 %v3284, %v3479
      %v3481 = vpop.f32.mrb[0].mxu0
      %3482 = vmatprep.mubr.bf16.mxu0 0
      %3483 = vmatmul.mubr.bf16.gmra.mrb[0].mxu0 %v3330
      %v3484 = vpop.f32.mrb[0].mxu0
      %v3485 = vadd.f32 %v3284, %v3484
      %v3486 = vpop.f32.mrb[0].mxu0
      %v3487 = vpop.f32.mrb[0].mxu0
      %v3488 = vadd.f32 %v3284, %v3487
      %v3489 = vpop.f32.mrb[0].mxu0
      %3490 = vmatprep.mubr.bf16.mxu0 0
      %3491 = vmatmul.mubr.bf16.gmra.mrb[0].mxu0 %v3332
      %v3492 = vpop.f32.mrb[0].mxu0
      %v3493 = vadd.f32 %v3284, %v3492
      %v3494 = vpop.f32.mrb[0].mxu0
      %v3495 = vpop.f32.mrb[0].mxu0
      %v3496 = vadd.f32 %v3284, %v3495
      %v3497 = vpop.f32.mrb[0].mxu0
      %3498 = vdwg.mxu0
      %v3499 = vpack.c.bf16 %v3376, %v3373
      %v3500 = vpack.c.bf16 %v3384, %v3381
      %v3501 = vpack.c.bf16 %v3392, %v3389
      %v3502 = vpack.c.bf16 %v3400, %v3397
      %v3503 = vpack.c.bf16 %v3408, %v3405
      %v3504 = vpack.c.bf16 %v3416, %v3413
      %v3505 = vpack.c.bf16 %v3424, %v3421
      %v3506 = vpack.c.bf16 %v3432, %v3429
      %v3507 = vpack.c.bf16 %v3440, %v3437
      %v3508 = vpack.c.bf16 %v3448, %v3445
      %v3509 = vpack.c.bf16 %v3456, %v3453
      %v3510 = vpack.c.bf16 %v3464, %v3461
      %v3511 = vpack.c.bf16 %v3472, %v3469
      %v3512 = vpack.c.bf16 %v3480, %v3477
      %v3513 = vpack.c.bf16 %v3488, %v3485
      %v3514 = vpack.c.bf16 %v3496, %v3493
      %v3531 = vunpack.c.l.b16 %v3499
      %v3532 = vunpack.c.h.b16 %v3499
      %v3533 = vunpack.c.l.b16 %v3500
      %v3534 = vunpack.c.h.b16 %v3500
      %v3535 = vunpack.c.l.b16 %v3501
      %v3536 = vunpack.c.h.b16 %v3501
      %v3537 = vunpack.c.l.b16 %v3502
      %v3538 = vunpack.c.h.b16 %v3502
      %v3539 = vunpack.c.l.b16 %v3503
      %v3540 = vunpack.c.h.b16 %v3503
      %v3541 = vunpack.c.l.b16 %v3504
      %v3542 = vunpack.c.h.b16 %v3504
      %v3543 = vunpack.c.l.b16 %v3505
      %v3544 = vunpack.c.h.b16 %v3505
      %v3545 = vunpack.c.l.b16 %v3506
      %v3546 = vunpack.c.h.b16 %v3506
      %v3547 = vunpack.c.l.b16 %v3507
      %v3548 = vunpack.c.h.b16 %v3507
      %v3549 = vunpack.c.l.b16 %v3508
      %v3550 = vunpack.c.h.b16 %v3508
      %v3551 = vunpack.c.l.b16 %v3509
      %v3552 = vunpack.c.h.b16 %v3509
      %v3553 = vunpack.c.l.b16 %v3510
      %v3554 = vunpack.c.h.b16 %v3510
      %v3555 = vunpack.c.l.b16 %v3511
      %v3556 = vunpack.c.h.b16 %v3511
      %v3557 = vunpack.c.l.b16 %v3512
      %v3558 = vunpack.c.h.b16 %v3512
      %v3559 = vunpack.c.l.b16 %v3513
      %v3560 = vunpack.c.h.b16 %v3513
      %v3561 = vunpack.c.l.b16 %v3514
      %v3562 = vunpack.c.h.b16 %v3514
      %v3563 = vpack.c.b16 %v3531, %v3531
      %v3564 = vpack.c.b16 %v3532, %v3532
      %v3565 = vpack.c.b16 %v3533, %v3533
      %v3566 = vpack.c.b16 %v3534, %v3534
      %v3567 = vpack.c.b16 %v3535, %v3535
      %v3568 = vpack.c.b16 %v3536, %v3536
      %v3569 = vpack.c.b16 %v3537, %v3537
      %v3570 = vpack.c.b16 %v3538, %v3538
      %v3571 = vpack.c.b16 %v3539, %v3539
      %v3572 = vpack.c.b16 %v3540, %v3540
      %v3573 = vpack.c.b16 %v3541, %v3541
      %v3574 = vpack.c.b16 %v3542, %v3542
      %v3575 = vpack.c.b16 %v3543, %v3543
      %v3576 = vpack.c.b16 %v3544, %v3544
      %v3577 = vpack.c.b16 %v3545, %v3545
      %v3578 = vpack.c.b16 %v3546, %v3546
      %v3579 = vpack.c.b16 %v3547, %v3547
      %v3580 = vpack.c.b16 %v3548, %v3548
      %v3581 = vpack.c.b16 %v3549, %v3549
      %v3582 = vpack.c.b16 %v3550, %v3550
      %v3583 = vpack.c.b16 %v3551, %v3551
      %v3584 = vpack.c.b16 %v3552, %v3552
      %v3585 = vpack.c.b16 %v3553, %v3553
      %v3586 = vpack.c.b16 %v3554, %v3554
      %v3587 = vpack.c.b16 %v3555, %v3555
      %v3588 = vpack.c.b16 %v3556, %v3556
      %v3589 = vpack.c.b16 %v3557, %v3557
      %v3590 = vpack.c.b16 %v3558, %v3558
      %v3591 = vpack.c.b16 %v3559, %v3559
      %v3592 = vpack.c.b16 %v3560, %v3560
      %v3593 = vpack.c.b16 %v3561, %v3561
      %v3594 = vpack.c.b16 %v3562, %v3562
      %vm3627 = vcmask 60416
      %3628 = vst.msk [vmem:[%s410] sm:$0xf] %vm3627, %v3563
      %3629 = vst.msk [vmem:[%s410 + $0x4] sm:$0xf] %vm3627, %v3564
      %3630 = vst.msk [vmem:[%s410 + $0x8] sm:$0xf] %vm3627, %v3565
      %3631 = vst.msk [vmem:[%s410 + $0xc] sm:$0xf] %vm3627, %v3566
      %3632 = vst.msk [vmem:[%s410 + $0x10] sm:$0xf] %vm3627, %v3567
      %3633 = vst.msk [vmem:[%s410 + $0x14] sm:$0xf] %vm3627, %v3568
      %3634 = vst.msk [vmem:[%s410 + $0x18] sm:$0xf] %vm3627, %v3569
      %3635 = vst.msk [vmem:[%s410 + $0x1c] sm:$0xf] %vm3627, %v3570
      %3636 = vst.msk [vmem:[%s410 + $0x20] sm:$0xf] %vm3627, %v3571
      %3637 = vst.msk [vmem:[%s410 + $0x24] sm:$0xf] %vm3627, %v3572
      %3638 = vst.msk [vmem:[%s410 + $0x28] sm:$0xf] %vm3627, %v3573
      %3639 = vst.msk [vmem:[%s410 + $0x2c] sm:$0xf] %vm3627, %v3574
      %3640 = vst.msk [vmem:[%s410 + $0x30] sm:$0xf] %vm3627, %v3575
      %3641 = vst.msk [vmem:[%s410 + $0x34] sm:$0xf] %vm3627, %v3576
      %3642 = vst.msk [vmem:[%s410 + $0x38] sm:$0xf] %vm3627, %v3577
      %3643 = vst.msk [vmem:[%s410 + $0x3c] sm:$0xf] %vm3627, %v3578
      %3644 = vst.msk [vmem:[%s410 + $0x40] sm:$0xf] %vm3627, %v3579
      %3645 = vst.msk [vmem:[%s410 + $0x44] sm:$0xf] %vm3627, %v3580
      %3646 = vst.msk [vmem:[%s410 + $0x48] sm:$0xf] %vm3627, %v3581
      %3647 = vst.msk [vmem:[%s410 + $0x4c] sm:$0xf] %vm3627, %v3582
      %3648 = vst.msk [vmem:[%s410 + $0x50] sm:$0xf] %vm3627, %v3583
      %3649 = vst.msk [vmem:[%s410 + $0x54] sm:$0xf] %vm3627, %v3584
      %3650 = vst.msk [vmem:[%s410 + $0x58] sm:$0xf] %vm3627, %v3585
      %3651 = vst.msk [vmem:[%s410 + $0x5c] sm:$0xf] %vm3627, %v3586
      %3652 = vst.msk [vmem:[%s410 + $0x60] sm:$0xf] %vm3627, %v3587
      %3653 = vst.msk [vmem:[%s410 + $0x64] sm:$0xf] %vm3627, %v3588
      %3654 = vst.msk [vmem:[%s410 + $0x68] sm:$0xf] %vm3627, %v3589
      %3655 = vst.msk [vmem:[%s410 + $0x6c] sm:$0xf] %vm3627, %v3590
      %3656 = vst.msk [vmem:[%s410 + $0x70] sm:$0xf] %vm3627, %v3591
      %3657 = vst.msk [vmem:[%s410 + $0x74] sm:$0xf] %vm3627, %v3592
      %3658 = vst.msk [vmem:[%s410 + $0x78] sm:$0xf] %vm3627, %v3593
      %3659 = vst.msk [vmem:[%s410 + $0x7c] sm:$0xf] %vm3627, %v3594
      %p3660 = scmp.eq.s32.totalorder %s25, 0
      // Predicated region
      $region41: #{residual_block_forward.4} parent=39 // pred_check
        %p3661 = pneg %p3660
      $region42: #{residual_block_forward.4} parent=39 // pred_check_branch
        %3663 = sbr.rel (%p3661) target = $region44
      $region43: #{residual_block_forward.4} parent=39 // pred_region
        %vm3664 = vcmask 57344
        %3665 = vst.msk [vmem:[%s421] sm:$0x1] %vm3664, 0.0
        %3666 = vst.msk [vmem:[%s424] sm:$0x1] %vm3664, 0.0
      $region44: #{residual_block_forward.4} parent=39 // pred_fallthru
        _
      %v3667 = vld [vmem:[%s421] sm:$0x1]
      %v3668 = vsel %vm3043, %v3373, 0.0
      %v3669 = vsel %vm3043, %v3376, 0.0
      %v3670 = vadd.f32 %v3668, %v3669
      %v3671 = vsel %vm3043, %v3381, 0.0
      %v3672 = vadd.f32 %v3670, %v3671
      %v3673 = vsel %vm3043, %v3384, 0.0
      %v3674 = vadd.f32 %v3672, %v3673
      %v3675 = vsel %vm3043, %v3389, 0.0
      %v3676 = vadd.f32 %v3674, %v3675
      %v3677 = vsel %vm3043, %v3392, 0.0
      %v3678 = vadd.f32 %v3676, %v3677
      %v3679 = vsel %vm3043, %v3397, 0.0
      %v3680 = vadd.f32 %v3678, %v3679
      %v3681 = vsel %vm3043, %v3400, 0.0
      %v3682 = vadd.f32 %v3680, %v3681
      %v3683 = vsel %vm3043, %v3405, 0.0
      %v3684 = vadd.f32 %v3682, %v3683
      %v3685 = vsel %vm3043, %v3408, 0.0
      %v3686 = vadd.f32 %v3684, %v3685
      %v3687 = vsel %vm3043, %v3413, 0.0
      %v3688 = vadd.f32 %v3686, %v3687
      %v3689 = vsel %vm3043, %v3416, 0.0
      %v3690 = vadd.f32 %v3688, %v3689
      %v3691 = vsel %vm3043, %v3421, 0.0
      %v3692 = vadd.f32 %v3690, %v3691
      %v3693 = vsel %vm3043, %v3424, 0.0
      %v3694 = vadd.f32 %v3692, %v3693
      %v3695 = vsel %vm3043, %v3429, 0.0
      %v3696 = vadd.f32 %v3694, %v3695
      %v3697 = vsel %vm3043, %v3432, 0.0
      %v3698 = vadd.f32 %v3696, %v3697
      %v3699 = vsel %vm3043, %v3437, 0.0
      %v3700 = vadd.f32 %v3698, %v3699
      %v3701 = vsel %vm3043, %v3440, 0.0
      %v3702 = vadd.f32 %v3700, %v3701
      %v3703 = vsel %vm3043, %v3445, 0.0
      %v3704 = vadd.f32 %v3702, %v3703
      %v3705 = vsel %vm3043, %v3448, 0.0
      %v3706 = vadd.f32 %v3704, %v3705
      %v3707 = vsel %vm3043, %v3453, 0.0
      %v3708 = vadd.f32 %v3706, %v3707
      %v3709 = vsel %vm3043, %v3456, 0.0
      %v3710 = vadd.f32 %v3708, %v3709
      %v3711 = vsel %vm3043, %v3461, 0.0
      %v3712 = vadd.f32 %v3710, %v3711
      %v3713 = vsel %vm3043, %v3464, 0.0
      %v3714 = vadd.f32 %v3712, %v3713
      %v3715 = vsel %vm3043, %v3469, 0.0
      %v3716 = vadd.f32 %v3714, %v3715
      %v3717 = vsel %vm3043, %v3472, 0.0
      %v3718 = vadd.f32 %v3716, %v3717
      %v3719 = vsel %vm3043, %v3477, 0.0
      %v3720 = vadd.f32 %v3718, %v3719
      %v3721 = vsel %vm3043, %v3480, 0.0
      %v3722 = vadd.f32 %v3720, %v3721
      %v3723 = vsel %vm3043, %v3485, 0.0
      %v3724 = vadd.f32 %v3722, %v3723
      %v3725 = vsel %vm3043, %v3488, 0.0
      %v3726 = vadd.f32 %v3724, %v3725
      %v3727 = vsel %vm3043, %v3493, 0.0
      %v3728 = vadd.f32 %v3726, %v3727
      %v3729 = vsel %vm3043, %v3496, 0.0
      %v3730 = vadd.f32 %v3728, %v3729
      %v3731 = vrot.slane %v3730, 4
      %v3732 = vadd.f32 %v3730, %v3731
      %v3733 = vrot.slane %v3732, 2
      %v3734 = vadd.f32 %v3732, %v3733
      %v3735 = vrot.slane %v3734, 1
      %v3736 = vadd.f32 %v3734, %v3735
      %v3737 = vadd.f32 %v3667, %v3736
      %vm3738 = vcmask 57344
      %3739 = vst.msk [vmem:[%s421] sm:$0x1] %vm3738, %v3737
      %v3740 = vld [vmem:[%s424] sm:$0x1]
      %v3741 = vmul.f32 %v3373, %v3373
      %v3742 = vmul.f32 %v3376, %v3376
      %v3743 = vmul.f32 %v3381, %v3381
      %v3744 = vmul.f32 %v3384, %v3384
      %v3745 = vmul.f32 %v3389, %v3389
      %v3746 = vmul.f32 %v3392, %v3392
      %v3747 = vmul.f32 %v3397, %v3397
      %v3748 = vmul.f32 %v3400, %v3400
      %v3749 = vmul.f32 %v3405, %v3405
      %v3750 = vmul.f32 %v3408, %v3408
      %v3751 = vmul.f32 %v3413, %v3413
      %v3752 = vmul.f32 %v3416, %v3416
      %v3753 = vmul.f32 %v3421, %v3421
      %v3754 = vmul.f32 %v3424, %v3424
      %v3755 = vmul.f32 %v3429, %v3429
      %v3756 = vmul.f32 %v3432, %v3432
      %v3757 = vmul.f32 %v3437, %v3437
      %v3758 = vmul.f32 %v3440, %v3440
      %v3759 = vmul.f32 %v3445, %v3445
      %v3760 = vmul.f32 %v3448, %v3448
      %v3761 = vmul.f32 %v3453, %v3453
      %v3762 = vmul.f32 %v3456, %v3456
      %v3763 = vmul.f32 %v3461, %v3461
      %v3764 = vmul.f32 %v3464, %v3464
      %v3765 = vmul.f32 %v3469, %v3469
      %v3766 = vmul.f32 %v3472, %v3472
      %v3767 = vmul.f32 %v3477, %v3477
      %v3768 = vmul.f32 %v3480, %v3480
      %v3769 = vmul.f32 %v3485, %v3485
      %v3770 = vmul.f32 %v3488, %v3488
      %v3771 = vmul.f32 %v3493, %v3493
      %v3772 = vmul.f32 %v3496, %v3496
      %v3773 = vsel %vm3043, %v3741, 0.0
      %v3774 = vsel %vm3043, %v3742, 0.0
      %v3775 = vadd.f32 %v3773, %v3774
      %v3776 = vsel %vm3043, %v3743, 0.0
      %v3777 = vadd.f32 %v3775, %v3776
      %v3778 = vsel %vm3043, %v3744, 0.0
      %v3779 = vadd.f32 %v3777, %v3778
      %v3780 = vsel %vm3043, %v3745, 0.0
      %v3781 = vadd.f32 %v3779, %v3780
      %v3782 = vsel %vm3043, %v3746, 0.0
      %v3783 = vadd.f32 %v3781, %v3782
      %v3784 = vsel %vm3043, %v3747, 0.0
      %v3785 = vadd.f32 %v3783, %v3784
      %v3786 = vsel %vm3043, %v3748, 0.0
      %v3787 = vadd.f32 %v3785, %v3786
      %v3788 = vsel %vm3043, %v3749, 0.0
      %v3789 = vadd.f32 %v3787, %v3788
      %v3790 = vsel %vm3043, %v3750, 0.0
      %v3791 = vadd.f32 %v3789, %v3790
      %v3792 = vsel %vm3043, %v3751, 0.0
      %v3793 = vadd.f32 %v3791, %v3792
      %v3794 = vsel %vm3043, %v3752, 0.0
      %v3795 = vadd.f32 %v3793, %v3794
      %v3796 = vsel %vm3043, %v3753, 0.0
      %v3797 = vadd.f32 %v3795, %v3796
      %v3798 = vsel %vm3043, %v3754, 0.0
      %v3799 = vadd.f32 %v3797, %v3798
      %v3800 = vsel %vm3043, %v3755, 0.0
      %v3801 = vadd.f32 %v3799, %v3800
      %v3802 = vsel %vm3043, %v3756, 0.0
      %v3803 = vadd.f32 %v3801, %v3802
      %v3804 = vsel %vm3043, %v3757, 0.0
      %v3805 = vadd.f32 %v3803, %v3804
      %v3806 = vsel %vm3043, %v3758, 0.0
      %v3807 = vadd.f32 %v3805, %v3806
      %v3808 = vsel %vm3043, %v3759, 0.0
      %v3809 = vadd.f32 %v3807, %v3808
      %v3810 = vsel %vm3043, %v3760, 0.0
      %v3811 = vadd.f32 %v3809, %v3810
      %v3812 = vsel %vm3043, %v3761, 0.0
      %v3813 = vadd.f32 %v3811, %v3812
      %v3814 = vsel %vm3043, %v3762, 0.0
      %v3815 = vadd.f32 %v3813, %v3814
      %v3816 = vsel %vm3043, %v3763, 0.0
      %v3817 = vadd.f32 %v3815, %v3816
      %v3818 = vsel %vm3043, %v3764, 0.0
      %v3819 = vadd.f32 %v3817, %v3818
      %v3820 = vsel %vm3043, %v3765, 0.0
      %v3821 = vadd.f32 %v3819, %v3820
      %v3822 = vsel %vm3043, %v3766, 0.0
      %v3823 = vadd.f32 %v3821, %v3822
      %v3824 = vsel %vm3043, %v3767, 0.0
      %v3825 = vadd.f32 %v3823, %v3824
      %v3826 = vsel %vm3043, %v3768, 0.0
      %v3827 = vadd.f32 %v3825, %v3826
      %v3828 = vsel %vm3043, %v3769, 0.0
      %v3829 = vadd.f32 %v3827, %v3828
      %v3830 = vsel %vm3043, %v3770, 0.0
      %v3831 = vadd.f32 %v3829, %v3830
      %v3832 = vsel %vm3043, %v3771, 0.0
      %v3833 = vadd.f32 %v3831, %v3832
      %v3834 = vsel %vm3043, %v3772, 0.0
      %v3835 = vadd.f32 %v3833, %v3834
      %v3836 = vrot.slane %v3835, 4
      %v3837 = vadd.f32 %v3835, %v3836
      %v3838 = vrot.slane %v3837, 2
      %v3839 = vadd.f32 %v3837, %v3838
      %v3840 = vrot.slane %v3839, 1
      %v3841 = vadd.f32 %v3839, %v3840
      %v3842 = vadd.f32 %v3740, %v3841
      %3843 = vst.msk [vmem:[%s424] sm:$0x1] %vm3738, %v3842
      %v3844 = vld [vmem:[%s399] sm:$0x3]
      %v3845 = vld [vmem:[%s402] sm:$0x1]
      %v3847 = vlaneseq
      %v3848 = vshrl.u32 %v3847, 7
      %v3849 = vsub.s32 0, %v3848
      %v3850 = vrot.slane %v3845, %v3849
      %v3853 = vsel %vm2994, %v2610, 0
      %v3856 = vsel %vm2994, %v2611, 0
      %v3859 = vsel %vm2994, %v2612, 0
      %v3862 = vsel %vm2994, %v2613, 0
      %v3865 = vsel %vm2994, %v2614, 0
      %v3868 = vsel %vm2994, %v2615, 0
      %v3871 = vsel %vm2994, %v2616, 0
      %v3874 = vsel %vm2994, %v2617, 0
      %v3877 = vsel %vm2994, %v2618, 0
      %v3880 = vsel %vm2994, %v2619, 0
      %v3883 = vsel %vm2994, %v2620, 0
      %v3886 = vsel %vm2994, %v2621, 0
      %v3889 = vsel %vm2994, %v2622, 0
      %v3892 = vsel %vm2994, %v2623, 0
      %v3895 = vsel %vm2994, %v2624, 0
      %v3898 = vsel %vm2994, %v2625, 0
      %v3901 = vsel %vm3334, %v3844, 0
      %3903 = vmatprep.subr.bf16.mxu0 0
      %3904 = vmatpush1.bf16.msra.mxu0 %v3901
      %3905 = vmatprep.subr.bf16.mxu0 0
      %3906 = vmatpush1.bf16.msra.mxu0 0
      %3907 = vmatprep.subr.bf16.mxu0 0
      %3908 = vmatpush1.bf16.msra.mxu0 0
      %3909 = vmatprep.subr.bf16.mxu0 0
      %3910 = vmatpush1.bf16.msra.mxu0 0
      %3911 = vmatprep.subr.bf16.mxu0 0
      %3912 = vmatpush1.bf16.msra.mxu0 0
      %3913 = vmatprep.subr.bf16.mxu0 0
      %3914 = vmatpush1.bf16.msra.mxu0 0
      %3915 = vmatprep.subr.bf16.mxu0 0
      %3916 = vmatpush1.bf16.msra.mxu0 0
      %3917 = vmatprep.subr.bf16.mxu0 0
      %3918 = vmatpush1.bf16.msra.mxu0 0
      %3919 = vmatprep.subr.bf16.mxu0 0
      %3920 = vmatpush1.bf16.msra.mxu0 0
      %3921 = vmatprep.subr.bf16.mxu0 0
      %3922 = vmatpush1.bf16.msra.mxu0 0
      %3923 = vmatprep.subr.bf16.mxu0 0
      %3924 = vmatpush1.bf16.msra.mxu0 0
      %3925 = vmatprep.subr.bf16.mxu0 0
      %3926 = vmatpush1.bf16.msra.mxu0 0
      %3927 = vmatprep.subr.bf16.mxu0 0
      %3928 = vmatpush1.bf16.msra.mxu0 0
      %3929 = vmatprep.subr.bf16.mxu0 0
      %3930 = vmatpush1.bf16.msra.mxu0 0
      %3931 = vmatprep.subr.bf16.mxu0 0
      %3932 = vmatpush1.bf16.msra.mxu0 0
      %3933 = vmatprep.subr.bf16.mxu0 0
      %3934 = vmatpush1.bf16.msra.mxu0 0
      %3935 = vmatprep.mubr.bf16.mxu0 0
      %3936 = vmatmul.mubr.bf16.gmra.mrb[0].mxu0 %v3853
      %v3937 = vpop.f32.mrb[0].mxu0
      %v3938 = vadd.f32 %v3850, %v3937
      %v3939 = vpop.f32.mrb[0].mxu0
      %v3940 = vpop.f32.mrb[0].mxu0
      %v3941 = vadd.f32 %v3850, %v3940
      %v3942 = vpop.f32.mrb[0].mxu0
      %3943 = vmatprep.mubr.bf16.mxu0 0
      %3944 = vmatmul.mubr.bf16.gmra.mrb[0].mxu0 %v3856
      %v3945 = vpop.f32.mrb[0].mxu0
      %v3946 = vadd.f32 %v3850, %v3945
      %v3947 = vpop.f32.mrb[0].mxu0
      %v3948 = vpop.f32.mrb[0].mxu0
      %v3949 = vadd.f32 %v3850, %v3948
      %v3950 = vpop.f32.mrb[0].mxu0
      %3951 = vmatprep.mubr.bf16.mxu0 0
      %3952 = vmatmul.mubr.bf16.gmra.mrb[0].mxu0 %v3859
      %v3953 = vpop.f32.mrb[0].mxu0
      %v3954 = vadd.f32 %v3850, %v3953
      %v3955 = vpop.f32.mrb[0].mxu0
      %v3956 = vpop.f32.mrb[0].mxu0
      %v3957 = vadd.f32 %v3850, %v3956
      %v3958 = vpop.f32.mrb[0].mxu0
      %3959 = vmatprep.mubr.bf16.mxu0 0
      %3960 = vmatmul.mubr.bf16.gmra.mrb[0].mxu0 %v3862
      %v3961 = vpop.f32.mrb[0].mxu0
      %v3962 = vadd.f32 %v3850, %v3961
      %v3963 = vpop.f32.mrb[0].mxu0
      %v3964 = vpop.f32.mrb[0].mxu0
      %v3965 = vadd.f32 %v3850, %v3964
      %v3966 = vpop.f32.mrb[0].mxu0
      %3967 = vmatprep.mubr.bf16.mxu0 0
      %3968 = vmatmul.mubr.bf16.gmra.mrb[0].mxu0 %v3865
      %v3969 = vpop.f32.mrb[0].mxu0
      %v3970 = vadd.f32 %v3850, %v3969
      %v3971 = vpop.f32.mrb[0].mxu0
      %v3972 = vpop.f32.mrb[0].mxu0
      %v3973 = vadd.f32 %v3850, %v3972
      %v3974 = vpop.f32.mrb[0].mxu0
      %3975 = vmatprep.mubr.bf16.mxu0 0
      %3976 = vmatmul.mubr.bf16.gmra.mrb[0].mxu0 %v3868
      %v3977 = vpop.f32.mrb[0].mxu0
      %v3978 = vadd.f32 %v3850, %v3977
      %v3979 = vpop.f32.mrb[0].mxu0
      %v3980 = vpop.f32.mrb[0].mxu0
      %v3981 = vadd.f32 %v3850, %v3980
      %v3982 = vpop.f32.mrb[0].mxu0
      %3983 = vmatprep.mubr.bf16.mxu0 0
      %3984 = vmatmul.mubr.bf16.gmra.mrb[0].mxu0 %v3871
      %v3985 = vpop.f32.mrb[0].mxu0
      %v3986 = vadd.f32 %v3850, %v3985
      %v3987 = vpop.f32.mrb[0].mxu0
      %v3988 = vpop.f32.mrb[0].mxu0
      %v3989 = vadd.f32 %v3850, %v3988
      %v3990 = vpop.f32.mrb[0].mxu0
      %3991 = vmatprep.mubr.bf16.mxu0 0
      %3992 = vmatmul.mubr.bf16.gmra.mrb[0].mxu0 %v3874
      %v3993 = vpop.f32.mrb[0].mxu0
      %v3994 = vadd.f32 %v3850, %v3993
      %v3995 = vpop.f32.mrb[0].mxu0
      %v3996 = vpop.f32.mrb[0].mxu0
      %v3997 = vadd.f32 %v3850, %v3996
      %v3998 = vpop.f32.mrb[0].mxu0
      %3999 = vmatprep.mubr.bf16.mxu0 0
      %4000 = vmatmul.mubr.bf16.gmra.mrb[0].mxu0 %v3877
      %v4001 = vpop.f32.mrb[0].mxu0
      %v4002 = vadd.f32 %v3850, %v4001
      %v4003 = vpop.f32.mrb[0].mxu0
      %v4004 = vpop.f32.mrb[0].mxu0
      %v4005 = vadd.f32 %v3850, %v4004
      %v4006 = vpop.f32.mrb[0].mxu0
      %4007 = vmatprep.mubr.bf16.mxu0 0
      %4008 = vmatmul.mubr.bf16.gmra.mrb[0].mxu0 %v3880
      %v4009 = vpop.f32.mrb[0].mxu0
      %v4010 = vadd.f32 %v3850, %v4009
      %v4011 = vpop.f32.mrb[0].mxu0
      %v4012 = vpop.f32.mrb[0].mxu0
      %v4013 = vadd.f32 %v3850, %v4012
      %v4014 = vpop.f32.mrb[0].mxu0
      %4015 = vmatprep.mubr.bf16.mxu0 0
      %4016 = vmatmul.mubr.bf16.gmra.mrb[0].mxu0 %v3883
      %v4017 = vpop.f32.mrb[0].mxu0
      %v4018 = vadd.f32 %v3850, %v4017
      %v4019 = vpop.f32.mrb[0].mxu0
      %v4020 = vpop.f32.mrb[0].mxu0
      %v4021 = vadd.f32 %v3850, %v4020
      %v4022 = vpop.f32.mrb[0].mxu0
      %4023 = vmatprep.mubr.bf16.mxu0 0
      %4024 = vmatmul.mubr.bf16.gmra.mrb[0].mxu0 %v3886
      %v4025 = vpop.f32.mrb[0].mxu0
      %v4026 = vadd.f32 %v3850, %v4025
      %v4027 = vpop.f32.mrb[0].mxu0
      %v4028 = vpop.f32.mrb[0].mxu0
      %v4029 = vadd.f32 %v3850, %v4028
      %v4030 = vpop.f32.mrb[0].mxu0
      %4031 = vmatprep.mubr.bf16.mxu0 0
      %4032 = vmatmul.mubr.bf16.gmra.mrb[0].mxu0 %v3889
      %v4033 = vpop.f32.mrb[0].mxu0
      %v4034 = vadd.f32 %v3850, %v4033
      %v4035 = vpop.f32.mrb[0].mxu0
      %v4036 = vpop.f32.mrb[0].mxu0
      %v4037 = vadd.f32 %v3850, %v4036
      %v4038 = vpop.f32.mrb[0].mxu0
      %4039 = vmatprep.mubr.bf16.mxu0 0
      %4040 = vmatmul.mubr.bf16.gmra.mrb[0].mxu0 %v3892
      %v4041 = vpop.f32.mrb[0].mxu0
      %v4042 = vadd.f32 %v3850, %v4041
      %v4043 = vpop.f32.mrb[0].mxu0
      %v4044 = vpop.f32.mrb[0].mxu0
      %v4045 = vadd.f32 %v3850, %v4044
      %v4046 = vpop.f32.mrb[0].mxu0
      %4047 = vmatprep.mubr.bf16.mxu0 0
      %4048 = vmatmul.mubr.bf16.gmra.mrb[0].mxu0 %v3895
      %v4049 = vpop.f32.mrb[0].mxu0
      %v4050 = vadd.f32 %v3850, %v4049
      %v4051 = vpop.f32.mrb[0].mxu0
      %v4052 = vpop.f32.mrb[0].mxu0
      %v4053 = vadd.f32 %v3850, %v4052
      %v4054 = vpop.f32.mrb[0].mxu0
      %4055 = vmatprep.mubr.bf16.mxu0 0
      %4056 = vmatmul.mubr.bf16.gmra.mrb[0].mxu0 %v3898
      %v4057 = vpop.f32.mrb[0].mxu0
      %v4058 = vadd.f32 %v3850, %v4057
      %v4059 = vpop.f32.mrb[0].mxu0
      %v4060 = vpop.f32.mrb[0].mxu0
      %v4061 = vadd.f32 %v3850, %v4060
      %v4062 = vpop.f32.mrb[0].mxu0
      %4063 = vdwg.mxu0
      %v4064 = vpack.c.bf16 %v3941, %v3938
      %v4065 = vpack.c.bf16 %v3949, %v3946
      %v4066 = vpack.c.bf16 %v3957, %v3954
      %v4067 = vpack.c.bf16 %v3965, %v3962
      %v4068 = vpack.c.bf16 %v3973, %v3970
      %v4069 = vpack.c.bf16 %v3981, %v3978
      %v4070 = vpack.c.bf16 %v3989, %v3986
      %v4071 = vpack.c.bf16 %v3997, %v3994
      %v4072 = vpack.c.bf16 %v4005, %v4002
      %v4073 = vpack.c.bf16 %v4013, %v4010
      %v4074 = vpack.c.bf16 %v4021, %v4018
      %v4075 = vpack.c.bf16 %v4029, %v4026
      %v4076 = vpack.c.bf16 %v4037, %v4034
      %v4077 = vpack.c.bf16 %v4045, %v4042
      %v4078 = vpack.c.bf16 %v4053, %v4050
      %v4079 = vpack.c.bf16 %v4061, %v4058
      %v4096 = vunpack.c.l.b16 %v4064
      %v4097 = vunpack.c.h.b16 %v4064
      %v4098 = vunpack.c.l.b16 %v4065
      %v4099 = vunpack.c.h.b16 %v4065
      %v4100 = vunpack.c.l.b16 %v4066
      %v4101 = vunpack.c.h.b16 %v4066
      %v4102 = vunpack.c.l.b16 %v4067
      %v4103 = vunpack.c.h.b16 %v4067
      %v4104 = vunpack.c.l.b16 %v4068
      %v4105 = vunpack.c.h.b16 %v4068
      %v4106 = vunpack.c.l.b16 %v4069
      %v4107 = vunpack.c.h.b16 %v4069
      %v4108 = vunpack.c.l.b16 %v4070
      %v4109 = vunpack.c.h.b16 %v4070
      %v4110 = vunpack.c.l.b16 %v4071
      %v4111 = vunpack.c.h.b16 %v4071
      %v4112 = vunpack.c.l.b16 %v4072
      %v4113 = vunpack.c.h.b16 %v4072
      %v4114 = vunpack.c.l.b16 %v4073
      %v4115 = vunpack.c.h.b16 %v4073
      %v4116 = vunpack.c.l.b16 %v4074
      %v4117 = vunpack.c.h.b16 %v4074
      %v4118 = vunpack.c.l.b16 %v4075
      %v4119 = vunpack.c.h.b16 %v4075
      %v4120 = vunpack.c.l.b16 %v4076
      %v4121 = vunpack.c.h.b16 %v4076
      %v4122 = vunpack.c.l.b16 %v4077
      %v4123 = vunpack.c.h.b16 %v4077
      %v4124 = vunpack.c.l.b16 %v4078
      %v4125 = vunpack.c.h.b16 %v4078
      %v4126 = vunpack.c.l.b16 %v4079
      %v4127 = vunpack.c.h.b16 %v4079
      %v4128 = vpack.c.b16 %v4096, %v4096
      %v4129 = vpack.c.b16 %v4097, %v4097
      %v4130 = vpack.c.b16 %v4098, %v4098
      %v4131 = vpack.c.b16 %v4099, %v4099
      %v4132 = vpack.c.b16 %v4100, %v4100
      %v4133 = vpack.c.b16 %v4101, %v4101
      %v4134 = vpack.c.b16 %v4102, %v4102
      %v4135 = vpack.c.b16 %v4103, %v4103
      %v4136 = vpack.c.b16 %v4104, %v4104
      %v4137 = vpack.c.b16 %v4105, %v4105
      %v4138 = vpack.c.b16 %v4106, %v4106
      %v4139 = vpack.c.b16 %v4107, %v4107
      %v4140 = vpack.c.b16 %v4108, %v4108
      %v4141 = vpack.c.b16 %v4109, %v4109
      %v4142 = vpack.c.b16 %v4110, %v4110
      %v4143 = vpack.c.b16 %v4111, %v4111
      %v4144 = vpack.c.b16 %v4112, %v4112
      %v4145 = vpack.c.b16 %v4113, %v4113
      %v4146 = vpack.c.b16 %v4114, %v4114
      %v4147 = vpack.c.b16 %v4115, %v4115
      %v4148 = vpack.c.b16 %v4116, %v4116
      %v4149 = vpack.c.b16 %v4117, %v4117
      %v4150 = vpack.c.b16 %v4118, %v4118
      %v4151 = vpack.c.b16 %v4119, %v4119
      %v4152 = vpack.c.b16 %v4120, %v4120
      %v4153 = vpack.c.b16 %v4121, %v4121
      %v4154 = vpack.c.b16 %v4122, %v4122
      %v4155 = vpack.c.b16 %v4123, %v4123
      %v4156 = vpack.c.b16 %v4124, %v4124
      %v4157 = vpack.c.b16 %v4125, %v4125
      %v4158 = vpack.c.b16 %v4126, %v4126
      %v4159 = vpack.c.b16 %v4127, %v4127
      %4192 = vst.msk [vmem:[%s418] sm:$0xf] %vm3627, %v4128
      %4193 = vst.msk [vmem:[%s418 + $0x4] sm:$0xf] %vm3627, %v4129
      %4194 = vst.msk [vmem:[%s418 + $0x8] sm:$0xf] %vm3627, %v4130
      %4195 = vst.msk [vmem:[%s418 + $0xc] sm:$0xf] %vm3627, %v4131
      %4196 = vst.msk [vmem:[%s418 + $0x10] sm:$0xf] %vm3627, %v4132
      %4197 = vst.msk [vmem:[%s418 + $0x14] sm:$0xf] %vm3627, %v4133
      %4198 = vst.msk [vmem:[%s418 + $0x18] sm:$0xf] %vm3627, %v4134
      %4199 = vst.msk [vmem:[%s418 + $0x1c] sm:$0xf] %vm3627, %v4135
      %4200 = vst.msk [vmem:[%s418 + $0x20] sm:$0xf] %vm3627, %v4136
      %4201 = vst.msk [vmem:[%s418 + $0x24] sm:$0xf] %vm3627, %v4137
      %4202 = vst.msk [vmem:[%s418 + $0x28] sm:$0xf] %vm3627, %v4138
      %4203 = vst.msk [vmem:[%s418 + $0x2c] sm:$0xf] %vm3627, %v4139
      %4204 = vst.msk [vmem:[%s418 + $0x30] sm:$0xf] %vm3627, %v4140
      %4205 = vst.msk [vmem:[%s418 + $0x34] sm:$0xf] %vm3627, %v4141
      %4206 = vst.msk [vmem:[%s418 + $0x38] sm:$0xf] %vm3627, %v4142
      %4207 = vst.msk [vmem:[%s418 + $0x3c] sm:$0xf] %vm3627, %v4143
      %4208 = vst.msk [vmem:[%s418 + $0x40] sm:$0xf] %vm3627, %v4144
      %4209 = vst.msk [vmem:[%s418 + $0x44] sm:$0xf] %vm3627, %v4145
      %4210 = vst.msk [vmem:[%s418 + $0x48] sm:$0xf] %vm3627, %v4146
      %4211 = vst.msk [vmem:[%s418 + $0x4c] sm:$0xf] %vm3627, %v4147
      %4212 = vst.msk [vmem:[%s418 + $0x50] sm:$0xf] %vm3627, %v4148
      %4213 = vst.msk [vmem:[%s418 + $0x54] sm:$0xf] %vm3627, %v4149
      %4214 = vst.msk [vmem:[%s418 + $0x58] sm:$0xf] %vm3627, %v4150
      %4215 = vst.msk [vmem:[%s418 + $0x5c] sm:$0xf] %vm3627, %v4151
      %4216 = vst.msk [vmem:[%s418 + $0x60] sm:$0xf] %vm3627, %v4152
      %4217 = vst.msk [vmem:[%s418 + $0x64] sm:$0xf] %vm3627, %v4153
      %4218 = vst.msk [vmem:[%s418 + $0x68] sm:$0xf] %vm3627, %v4154
      %4219 = vst.msk [vmem:[%s418 + $0x6c] sm:$0xf] %vm3627, %v4155
      %4220 = vst.msk [vmem:[%s418 + $0x70] sm:$0xf] %vm3627, %v4156
      %4221 = vst.msk [vmem:[%s418 + $0x74] sm:$0xf] %vm3627, %v4157
      %4222 = vst.msk [vmem:[%s418 + $0x78] sm:$0xf] %vm3627, %v4158
      %4223 = vst.msk [vmem:[%s418 + $0x7c] sm:$0xf] %vm3627, %v4159
      %p4224 = scmp.lt.s32.totalorder %s25, 1
      %s4225 = scalar_select %p4224, %s25, 1
      %p4226 = scmp.lt.s32.totalorder %s24, 0
      %s4227 = scalar_select %p4226, %s24, 0
      %s4228 = smul.addr %s4225, 32
      %s4229 = sadd.s32 %s4227, %s4228
      %s4230 = smul.addr %s4229, 4
      %s4231 = scalar_lea.vmem %s5, %s4230
      %p4232 = scmp.lt.s32.totalorder %s25, 1
      %s4233 = scalar_select %p4232, %s25, 1
      %p4234 = scmp.lt.s32.totalorder %s24, 0
      %s4235 = scalar_select %p4234, %s24, 0
      %s4236 = smul.addr %s4233, 32
      %s4237 = sadd.s32 %s4235, %s4236
      %s4238 = smul.addr %s4237, 4
      %s4239 = scalar_lea.vmem %s6, %s4238
      %p4240 = scmp.lt.s32.totalorder %s24, 0
      %s4241 = scalar_select %p4240, %s24, 0
      %s4242 = scalar_lea.vmem %s7, %s4241
      %p4243 = scmp.lt.s32.totalorder %s24, 0
      %s4244 = scalar_select %p4243, %s24, 0
      %s4245 = scalar_lea.vmem %s8, %s4244
      // Predicated region
      $region45: #{residual_block_forward.4} parent=39 // pred_check
        %p4246 = pneg %p182
      $region46: #{residual_block_forward.4} parent=39 // pred_check_branch
        %4248 = sbr.rel (%p4246) target = $region48
      $region47: #{residual_block_forward.4} parent=39 // pred_region
        _
      $region48: #{residual_block_forward.4} parent=39 // pred_fallthru
        _
      // Predicated region
      $region49: #{residual_block_forward.4} parent=39 // pred_check
        %p4249 = pneg %p210
      $region50: #{residual_block_forward.4} parent=39 // pred_check_branch
        %4251 = sbr.rel (%p4249) target = $region52
      $region51: #{residual_block_forward.4} parent=39 // pred_region
        _
      $region52: #{residual_block_forward.4} parent=39 // pred_fallthru
        _
      // Predicated region
      $region53: #{residual_block_forward.4} parent=39 // pred_check
        %p4252 = pneg %p236
      $region54: #{residual_block_forward.4} parent=39 // pred_check_branch
        %4254 = sbr.rel (%p4252) target = $region56
      $region55: #{residual_block_forward.4} parent=39 // pred_region
        _
      $region56: #{residual_block_forward.4} parent=39 // pred_fallthru
        _
      // Predicated region
      $region57: #{residual_block_forward.4} parent=39 // pred_check
        %p4255 = pneg %p262
      $region58: #{residual_block_forward.4} parent=39 // pred_check_branch
        %4257 = sbr.rel (%p4255) target = $region60
      $region59: #{residual_block_forward.4} parent=39 // pred_region
        _
      $region60: #{residual_block_forward.4} parent=39 // pred_fallthru
        _
      // Predicated region
      $region61: #{residual_block_forward.4} parent=39 // pred_check
        %p4258 = pneg %p236
      $region62: #{residual_block_forward.4} parent=39 // pred_check_branch
        %4260 = sbr.rel (%p4258) target = $region64
      $region63: #{residual_block_forward.4} parent=39 // pred_region
        %p4261 = scmp.lt.s32.totalorder %s24, 0
        %s4262 = scalar_select %p4261, %s24, 0
        %s4263 = scalar_lea.vmem %s7, %s4262
      $region64: #{residual_block_forward.4} parent=39 // pred_fallthru
        _
      // Predicated region
      $region65: #{residual_block_forward.4} parent=39 // pred_check
        %p4264 = pneg %p262
      $region66: #{residual_block_forward.4} parent=39 // pred_check_branch
        %4266 = sbr.rel (%p4264) target = $region68
      $region67: #{residual_block_forward.4} parent=39 // pred_region
        %p4267 = scmp.lt.s32.totalorder %s24, 0
        %s4268 = scalar_select %p4267, %s24, 0
        %s4269 = scalar_lea.vmem %s8, %s4268
      $region68: #{residual_block_forward.4} parent=39 // pred_fallthru
        _
    $region40: #{residual_block_forward.4} parent=5 // pred_fallthru
      _
    %p4270 = scmp.le.s32.totalorder 2, %s15
    // Predicated region
    $region69: #{residual_block_forward.4} parent=5 // pred_check
      %p4271 = pneg %p4270
    $region70: #{residual_block_forward.4} parent=5 // pred_check_branch
      %4273 = sbr.rel (%p4271) target = $region72
    $region71: #{residual_block_forward.4} parent=5 // pred_region
      %s4274 = ssub.s32 %s15, 2
      // Predicated region
      $region73: #{residual_block_forward.4} parent=71 // pred_check
        %p4275 = pneg %p188
      $region74: #{residual_block_forward.4} parent=71 // pred_check_branch
        %4277 = sbr.rel (%p4275) target = $region76
      $region75: #{residual_block_forward.4} parent=71 // pred_region
        %p4278 = scmp.lt.s32.totalorder %s27, 1
        %s4279 = scalar_select %p4278, %s27, 1
        %p4280 = scmp.lt.s32.totalorder %s26, 0
        %s4281 = scalar_select %p4280, %s26, 0
        %s4282 = smul.addr %s4279, 32
        %s4283 = sadd.s32 %s4281, %s4282
        %s4284 = smul.addr %s4283, 4
        %s4285 = scalar_lea.vmem %s5, %s4284
      $region76: #{residual_block_forward.4} parent=71 // pred_fallthru
        _
      // Predicated region
      $region77: #{residual_block_forward.4} parent=71 // pred_check
        %p4286 = pneg %p216
      $region78: #{residual_block_forward.4} parent=71 // pred_check_branch
        %4288 = sbr.rel (%p4286) target = $region80
      $region79: #{residual_block_forward.4} parent=71 // pred_region
        %p4289 = scmp.lt.s32.totalorder %s27, 1
        %s4290 = scalar_select %p4289, %s27, 1
        %p4291 = scmp.lt.s32.totalorder %s26, 0
        %s4292 = scalar_select %p4291, %s26, 0
        %s4293 = smul.addr %s4290, 32
        %s4294 = sadd.s32 %s4292, %s4293
        %s4295 = smul.addr %s4294, 4
        %s4296 = scalar_lea.vmem %s6, %s4295
      $region80: #{residual_block_forward.4} parent=71 // pred_fallthru
        _
    $region72: #{residual_block_forward.4} parent=5 // pred_fallthru
      _
  $region6: #{residual_block_forward.4} parent=0 // loop_footer
    %s19 = sadd.s32 1, %s15
  $region7: #{residual_block_forward.4} parent=0 // loop_footer_branch
    %14 = sbr.rel target = $region3
  $region8: #{residual_block_forward.4} parent=0 // loop_exit
    _

// kernel: residual_block_forward.6
$region0: #{residual_block_forward.6}
  #allocation0 [shape = 'u32[]', space=smem, size = 0x4, offset = 0x4, fixed_abs, tag = 'smem constant byte address 0x4 - core index']
  #allocation1 [shape = 'u32[144,128]{1,0:T(1,128)}', space=vmem, size = 0x12000, scoped, tag = 'internal scratch']
  %s0 = inlined_call_operand.vmem [shape: bf16[2,18,18,8], index: 0, kind: input, shape index: {}]
  %s1 = inlined_call_operand.vmem [shape: bf16[72,8], index: 1, kind: input, shape index: {}]
  %s2 = inlined_call_operand.vmem [shape: f32[1,8], index: 2, kind: input, shape index: {}]
  %s3 = inlined_call_operand.vmem [shape: bf16[2,256,8], index: 3, kind: output, shape index: {0}]
  %s4 = inlined_call_operand.vmem [shape: f32[1,8], index: 4, kind: output, shape index: {1}]
  %s5 = inlined_call_operand.vmem [shape: f32[1,8], index: 5, kind: output, shape index: {2}]
  %6 = xla_tuple %s3, %s4, %s5
  %s7 = sld [smem:[#allocation0]]
  $region65: #{residual_block_forward.6} parent=0
    _
  %s9 = ssub.s32 1, %s7
  %s10 = scalar_select 0, %s9, %s7
  loop: start=0, step=1, limit=4
  $region2: #{residual_block_forward.6} parent=0 // loop_pre_header
    _
  $region3: #{residual_block_forward.6} parent=0 // loop_header
    %s12 = sphi 0, %s16
    %p13 = scmp.ge.s32.totalorder %s12, 4
    %s19 = sphi 0, %s31
    %s20 = sphi 0, %s27
    %s21 = sphi 0, %s19
    %s22 = sphi 0, %s20
    %s23 = sphi 0, %s21
    %s24 = sphi 0, %s22
    %s34 = sphi 0, %s36
    %s37 = sphi 0, %s34
    %s38 = sphi 0, %s37
    %s54 = sphi 0, %s38
    %s60 = sphi 0, %s62
    %s63 = sphi 0, %s60
    %s64 = sphi 0, %s63
    %s80 = sphi 0, %s64
    %s86 = sphi 0, %s88
    %s89 = sphi 0, %s86
    %s90 = sphi 0, %s89
    %s106 = sphi 0, %s90
    %s114 = sphi 0, %s116
    %s117 = sphi 0, %s114
    %s118 = sphi 0, %s117
    %s134 = sphi 0, %s118
    %s140 = sphi 0, %s142
    %s143 = sphi 0, %s140
    %s144 = sphi 0, %s143
    %s160 = sphi 0, %s144
    %s166 = sphi 0, %s168
    %s169 = sphi 0, %s166
    %s170 = sphi 0, %s169
    %s186 = sphi 0, %s170
  $region4: #{residual_block_forward.6} parent=0 // loop_header_branch
    %15 = sbr.rel (%p13) target = $region8
  $region5: #{residual_block_forward.6} parent=0 // loop_body
    %s17 = ssub.s32 %s12, 1
    %s18 = ssub.s32 %s12, 2
    %s25 = sadd.s32 1, %s20
    %p26 = scmp.ge.s32.totalorder %s25, 2
    %s27 = scalar_select %p26, 0, %s25
    %s28 = sadd.s32 1, %s19
    %s29 = scalar_select %p26, %s28, %s19
    %p30 = scmp.ge.s32.totalorder %s29, 1
    %s31 = scalar_select %p30, 0, %s29
    %s32 = ssub.s32 %s20, %s27
    %p33 = scmp.eq.s32.totalorder %s32, 0
    %s35 = sadd.s32 %s34, 1
    %s36 = scalar_select %p33, %s34, %s35
    %p39 = pneg %p33
    %p40 = scmp.eq.s32.totalorder %s12, 1
    %p41 = por %p39, %p40
    %p42 = scmp.ne.s32.totalorder %s34, %s37
    %p43 = scmp.eq.s32.totalorder %s12, 0
    %p44 = por %p42, %p43
    %p45 = scmp.ne.s32.totalorder %s34, %s37
    %p46 = scmp.eq.s32.totalorder %s17, 1
    %p47 = por %p45, %p46
    %p48 = scmp.ne.s32.totalorder %s37, %s38
    %p49 = scmp.eq.s32.totalorder %s17, 0
    %p50 = por %p48, %p49
    %p51 = scmp.ne.s32.totalorder %s37, %s38
    %p52 = scmp.eq.s32.totalorder %s18, 1
    %p53 = por %p51, %p52
    %p55 = scmp.ne.s32.totalorder %s38, %s54
    %p56 = scmp.eq.s32.totalorder %s18, 0
    %p57 = por %p55, %p56
    %s58 = ssub.s32 %s19, %s31
    %p59 = scmp.eq.s32.totalorder %s58, 0
    %s61 = sadd.s32 %s60, 1
    %s62 = scalar_select %p59, %s60, %s61
    %p65 = pneg %p59
    %p66 = scmp.eq.s32.totalorder %s12, 1
    %p67 = por %p65, %p66
    %p68 = scmp.ne.s32.totalorder %s60, %s63
    %p69 = scmp.eq.s32.totalorder %s12, 0
    %p70 = por %p68, %p69
    %p71 = scmp.ne.s32.totalorder %s60, %s63
    %p72 = scmp.eq.s32.totalorder %s17, 1
    %p73 = por %p71, %p72
    %p74 = scmp.ne.s32.totalorder %s63, %s64
    %p75 = scmp.eq.s32.totalorder %s17, 0
    %p76 = por %p74, %p75
    %p77 = scmp.ne.s32.totalorder %s63, %s64
    %p78 = scmp.eq.s32.totalorder %s18, 1
    %p79 = por %p77, %p78
    %p81 = scmp.ne.s32.totalorder %s64, %s80
    %p82 = scmp.eq.s32.totalorder %s18, 0
    %p83 = por %p81, %p82
    %s84 = ssub.s32 %s19, %s31
    %p85 = scmp.eq.s32.totalorder %s84, 0
    %s87 = sadd.s32 %s86, 1
    %s88 = scalar_select %p85, %s86, %s87
    %p91 = pneg %p85
    %p92 = scmp.eq.s32.totalorder %s12, 1
    %p93 = por %p91, %p92
    %p94 = scmp.ne.s32.totalorder %s86, %s89
    %p95 = scmp.eq.s32.totalorder %s12, 0
    %p96 = por %p94, %p95
    %p97 = scmp.ne.s32.totalorder %s86, %s89
    %p98 = scmp.eq.s32.totalorder %s17, 1
    %p99 = por %p97, %p98
    %p100 = scmp.ne.s32.totalorder %s89, %s90
    %p101 = scmp.eq.s32.totalorder %s17, 0
    %p102 = por %p100, %p101
    %p103 = scmp.ne.s32.totalorder %s89, %s90
    %p104 = scmp.eq.s32.totalorder %s18, 1
    %p105 = por %p103, %p104
    %p107 = scmp.ne.s32.totalorder %s90, %s106
    %p108 = scmp.eq.s32.totalorder %s18, 0
    %p109 = por %p107, %p108
    %s110 = ssub.s32 %s20, %s27
    %s111 = ssub.s32 %s19, %s31
    %s112 = sor.u32 %s110, %s111
    %p113 = scmp.eq.s32.totalorder %s112, 0
    %s115 = sadd.s32 %s114, 1
    %s116 = scalar_select %p113, %s114, %s115
    %p119 = pneg %p113
    %p120 = scmp.eq.s32.totalorder %s12, 1
    %p121 = por %p119, %p120
    %p122 = scmp.ne.s32.totalorder %s114, %s117
    %p123 = scmp.eq.s32.totalorder %s12, 0
    %p124 = por %p122, %p123
    %p125 = scmp.ne.s32.totalorder %s114, %s117
    %p126 = scmp.eq.s32.totalorder %s17, 1
    %p127 = por %p125, %p126
    %p128 = scmp.ne.s32.totalorder %s117, %s118
    %p129 = scmp.eq.s32.totalorder %s17, 0
    %p130 = por %p128, %p129
    %p131 = scmp.ne.s32.totalorder %s117, %s118
    %p132 = scmp.eq.s32.totalorder %s18, 1
    %p133 = por %p131, %p132
    %p135 = scmp.ne.s32.totalorder %s118, %s134
    %p136 = scmp.eq.s32.totalorder %s18, 0
    %p137 = por %p135, %p136
    %s138 = ssub.s32 %s19, %s31
    %p139 = scmp.eq.s32.totalorder %s138, 0
    %s141 = sadd.s32 %s140, 1
    %s142 = scalar_select %p139, %s140, %s141
    %p145 = pneg %p139
    %p146 = scmp.eq.s32.totalorder %s12, 1
    %p147 = por %p145, %p146
    %p148 = scmp.ne.s32.totalorder %s140, %s143
    %p149 = scmp.eq.s32.totalorder %s12, 0
    %p150 = por %p148, %p149
    %p151 = scmp.ne.s32.totalorder %s140, %s143
    %p152 = scmp.eq.s32.totalorder %s17, 1
    %p153 = por %p151, %p152
    %p154 = scmp.ne.s32.totalorder %s143, %s144
    %p155 = scmp.eq.s32.totalorder %s17, 0
    %p156 = por %p154, %p155
    %p157 = scmp.ne.s32.totalorder %s143, %s144
    %p158 = scmp.eq.s32.totalorder %s18, 1
    %p159 = por %p157, %p158
    %p161 = scmp.ne.s32.totalorder %s144, %s160
    %p162 = scmp.eq.s32.totalorder %s18, 0
    %p163 = por %p161, %p162
    %s164 = ssub.s32 %s19, %s31
    %p165 = scmp.eq.s32.totalorder %s164, 0
    %s167 = sadd.s32 %s166, 1
    %s168 = scalar_select %p165, %s166, %s167
    %p171 = pneg %p165
    %p172 = scmp.eq.s32.totalorder %s12, 1
    %p173 = por %p171, %p172
    %p174 = scmp.ne.s32.totalorder %s166, %s169
    %p175 = scmp.eq.s32.totalorder %s12, 0
    %p176 = por %p174, %p175
    %p177 = scmp.ne.s32.totalorder %s166, %s169
    %p178 = scmp.eq.s32.totalorder %s17, 1
    %p179 = por %p177, %p178
    %p180 = scmp.ne.s32.totalorder %s169, %s170
    %p181 = scmp.eq.s32.totalorder %s17, 0
    %p182 = por %p180, %p181
    %p183 = scmp.ne.s32.totalorder %s169, %s170
    %p184 = scmp.eq.s32.totalorder %s18, 1
    %p185 = por %p183, %p184
    %p187 = scmp.ne.s32.totalorder %s170, %s186
    %p188 = scmp.eq.s32.totalorder %s18, 0
    %p189 = por %p187, %p188
    %p190 = scmp.le.s32.totalorder 1, %s12
    %p191 = scmp.lt.s32.totalorder %s12, 3
    %p192 = pnand %p190, %p191
    %p193 = pneg %p192
    // Predicated region
    $region9: #{residual_block_forward.6} parent=5 // pred_check
      _
    $region10: #{residual_block_forward.6} parent=5 // pred_check_branch
      %195 = sbr.rel (%p192) target = $region12
    $region11: #{residual_block_forward.6} parent=5 // pred_region
      %s196 = ssub.s32 %s12, 1
      // Predicated region
      $region13: #{residual_block_forward.6} parent=11 // pred_check
        %p197 = pneg %p76
      $region14: #{residual_block_forward.6} parent=11 // pred_check_branch
        %199 = sbr.rel (%p197) target = $region16
      $region15: #{residual_block_forward.6} parent=11 // pred_region
        %p200 = scmp.lt.s32.totalorder %s21, 0
        %s201 = scalar_select %p200, %s21, 0
        %s202 = smul.addr %s201, 4
        %s203 = scalar_lea.vmem %s1, %s202
      $region16: #{residual_block_forward.6} parent=11 // pred_fallthru
        _
      // Predicated region
      $region17: #{residual_block_forward.6} parent=11 // pred_check
        %p204 = pneg %p102
      $region18: #{residual_block_forward.6} parent=11 // pred_check_branch
        %206 = sbr.rel (%p204) target = $region20
      $region19: #{residual_block_forward.6} parent=11 // pred_region
        %p207 = scmp.lt.s32.totalorder %s21, 0
        %s208 = scalar_select %p207, %s21, 0
        %s209 = scalar_lea.vmem %s2, %s208
      $region20: #{residual_block_forward.6} parent=11 // pred_fallthru
        _
    $region12: #{residual_block_forward.6} parent=5 // pred_fallthru
      _
    %p210 = scmp.lt.s32.totalorder %s12, 2
    // Predicated region
    $region21: #{residual_block_forward.6} parent=5 // pred_check
      %p211 = pneg %p210
    $region22: #{residual_block_forward.6} parent=5 // pred_check_branch
      %213 = sbr.rel (%p211) target = $region24
    $region23: #{residual_block_forward.6} parent=5 // pred_region
      // Predicated region
      $region25: #{residual_block_forward.6} parent=23 // pred_check
        %p214 = pneg %p44
      $region26: #{residual_block_forward.6} parent=23 // pred_check_branch
        %216 = sbr.rel (%p214) target = $region28
      $region27: #{residual_block_forward.6} parent=23 // pred_region
        %p217 = scmp.lt.s32.totalorder %s20, 1
        %s218 = scalar_select %p217, %s20, 1
        %s219 = smul.addr %s218, 54
        %s220 = smul.addr %s219, 4
        %s221 = scalar_lea.vmem %s0, %s220
      $region28: #{residual_block_forward.6} parent=23 // pred_fallthru
        _
    $region24: #{residual_block_forward.6} parent=5 // pred_fallthru
      _
    %p222 = scmp.le.s32.totalorder 1, %s12
    %p223 = scmp.lt.s32.totalorder %s12, 3
    %p224 = pnand %p222, %p223
    %p225 = pneg %p224
    // Predicated region
    $region29: #{residual_block_forward.6} parent=5 // pred_check
      _
    $region30: #{residual_block_forward.6} parent=5 // pred_check_branch
      %227 = sbr.rel (%p224) target = $region32
    $region31: #{residual_block_forward.6} parent=5 // pred_region
      %s228 = ssub.s32 %s12, 1
      %p229 = scmp.lt.s32.totalorder %s22, 1
      %s230 = scalar_select %p229, %s22, 1
      %s231 = smul.addr %s230, 54
      %s232 = smul.addr %s231, 4
      %s233 = scalar_lea.vmem %s0, %s232
      %p234 = pneg %p50
      %p235 = pneg %p47
      %p236 = scmp.lt.s32.totalorder %s21, 0
      %s237 = scalar_select %p236, %s21, 0
      %s238 = smul.addr %s237, 4
      %s239 = scalar_lea.vmem %s1, %s238
      %p240 = pneg %p76
      %p241 = pneg %p73
      %p242 = scmp.lt.s32.totalorder %s21, 0
      %s243 = scalar_select %p242, %s21, 0
      %s244 = scalar_lea.vmem %s2, %s243
      %p245 = pneg %p102
      %p246 = pneg %p99
      %p247 = pneg %p130
      %p248 = pneg %p127
      %p249 = scmp.lt.s32.totalorder %s22, 1
      %s250 = scalar_select %p249, %s22, 1
      %p251 = scmp.lt.s32.totalorder %s21, 0
      %s252 = scalar_select %p251, %s21, 0
      %s253 = smul.addr %s250, 32
      %s254 = sadd.s32 %s252, %s253
      %s255 = smul.addr %s254, 4
      %s256 = scalar_lea.vmem %s3, %s255
      %p257 = pneg %p156
      %p258 = pneg %p153
      %p259 = scmp.lt.s32.totalorder %s21, 0
      %s260 = scalar_select %p259, %s21, 0
      %s261 = scalar_lea.vmem %s4, %s260
      %p262 = pneg %p182
      %p263 = pneg %p179
      %p264 = scmp.lt.s32.totalorder %s21, 0
      %s265 = scalar_select %p264, %s21, 0
      %s266 = scalar_lea.vmem %s5, %s265
      %p267 = scmp.lt.s32.totalorder %s22, 1
      %s268 = scalar_select %p267, %s22, 1
      %s269 = smul.addr %s268, 54
      %s270 = smul.addr %s269, 4
      %s271 = scalar_lea.vmem %s0, %s270
      %p272 = scmp.lt.s32.totalorder %s21, 0
      %s273 = scalar_select %p272, %s21, 0
      %s274 = smul.addr %s273, 4
      %s275 = scalar_lea.vmem %s1, %s274
      %p276 = scmp.lt.s32.totalorder %s21, 0
      %s277 = scalar_select %p276, %s21, 0
      %s278 = scalar_lea.vmem %s2, %s277
      %p279 = scmp.lt.s32.totalorder %s22, 1
      %s280 = scalar_select %p279, %s22, 1
      %p281 = scmp.lt.s32.totalorder %s21, 0
      %s282 = scalar_select %p281, %s21, 0
      %s283 = smul.addr %s280, 32
      %s284 = sadd.s32 %s282, %s283
      %s285 = smul.addr %s284, 4
      %s286 = scalar_lea.vmem %s3, %s285
      %p287 = scmp.lt.s32.totalorder %s21, 0
      %s288 = scalar_select %p287, %s21, 0
      %s289 = scalar_lea.vmem %s4, %s288
      %p290 = scmp.lt.s32.totalorder %s21, 0
      %s291 = scalar_select %p290, %s21, 0
      %s292 = scalar_lea.vmem %s5, %s291
      %v294 = vld [vmem:[%s271] sm:$0xf]
      %v295 = vld [vmem:[%s271 + $0x4] sm:$0xf]
      %v296 = vld [vmem:[%s271 + $0xc] sm:$0xf]
      %v297 = vld [vmem:[%s271 + $0x10] sm:$0xf]
      %v298 = vld [vmem:[%s271 + $0x18] sm:$0xf]
      %v299 = vld [vmem:[%s271 + $0x1c] sm:$0xf]
      %v300 = vld [vmem:[%s271 + $0x24] sm:$0xf]
      %v301 = vld [vmem:[%s271 + $0x28] sm:$0xf]
      %v302 = vld [vmem:[%s271 + $0x30] sm:$0xf]
      %v303 = vld [vmem:[%s271 + $0x34] sm:$0xf]
      %v304 = vld [vmem:[%s271 + $0x3c] sm:$0xf]
      %v305 = vld [vmem:[%s271 + $0x40] sm:$0xf]
      %v306 = vld [vmem:[%s271 + $0x48] sm:$0xf]
      %v307 = vld [vmem:[%s271 + $0x4c] sm:$0xf]
      %v308 = vld [vmem:[%s271 + $0x54] sm:$0xf]
      %v309 = vld [vmem:[%s271 + $0x58] sm:$0xf]
      %v310 = vld [vmem:[%s271 + $0x60] sm:$0xf]
      %v311 = vld [vmem:[%s271 + $0x64] sm:$0xf]
      %v312 = vld [vmem:[%s271 + $0x6c] sm:$0xf]
      %v313 = vld [vmem:[%s271 + $0x70] sm:$0xf]
      %v314 = vld [vmem:[%s271 + $0x78] sm:$0xf]
      %v315 = vld [vmem:[%s271 + $0x7c] sm:$0xf]
      %v316 = vld [vmem:[%s271 + $0x84] sm:$0xf]
      %v317 = vld [vmem:[%s271 + $0x88] sm:$0xf]
      %v318 = vld [vmem:[%s271 + $0x90] sm:$0xf]
      %v319 = vld [vmem:[%s271 + $0x94] sm:$0xf]
      %v320 = vld [vmem:[%s271 + $0x9c] sm:$0xf]
      %v321 = vld [vmem:[%s271 + $0xa0] sm:$0xf]
      %v322 = vld [vmem:[%s271 + $0xa8] sm:$0xf]
      %v323 = vld [vmem:[%s271 + $0xac] sm:$0xf]
      %v324 = vld [vmem:[%s271 + $0xb4] sm:$0xf]
      %v325 = vld [vmem:[%s271 + $0xb8] sm:$0xf]
      %v326 = vld [vmem:[%s271 + $0x8] sm:$0x1]
      %v327 = vld [vmem:[%s271 + $0x14] sm:$0x1]
      %v328 = vld [vmem:[%s271 + $0x20] sm:$0x1]
      %v329 = vld [vmem:[%s271 + $0x2c] sm:$0x1]
      %v330 = vld [vmem:[%s271 + $0x38] sm:$0x1]
      %v331 = vld [vmem:[%s271 + $0x44] sm:$0x1]
      %v332 = vld [vmem:[%s271 + $0x50] sm:$0x1]
      %v333 = vld [vmem:[%s271 + $0x5c] sm:$0x1]
      %v334 = vld [vmem:[%s271 + $0x68] sm:$0x1]
      %v335 = vld [vmem:[%s271 + $0x74] sm:$0x1]
      %v336 = vld [vmem:[%s271 + $0x80] sm:$0x1]
      %v337 = vld [vmem:[%s271 + $0x8c] sm:$0x1]
      %v338 = vld [vmem:[%s271 + $0x98] sm:$0x1]
      %v339 = vld [vmem:[%s271 + $0xa4] sm:$0x1]
      %v340 = vld [vmem:[%s271 + $0xb0] sm:$0x1]
      %v341 = vld [vmem:[%s271 + $0xbc] sm:$0x1]
      %vm342 = vsmask.f32 3328
      %vm343 = vsmask.f32 7440
      %vm344 = vmor %vm342, %vm343
      %v346 = vshrl.u32 %v294, 16
      %v348 = vrot.slane %v346, 4
      %v349 = vshll.u32 %v294, 16
      %v351 = vrot.slane %v349, 5
      %v352 = vor.u32 %v348, %v351
      %v353 = vrot.slane %v352, 4
      %v355 = vshll.u32 %v295, 16
      %v357 = vrot.slane %v355, 5
      %v358 = vsel %vm344, %v353, %v357
      %v359 = vshrl.u32 %v295, 16
      %v361 = vrot.slane %v359, 4
      %v362 = vor.u32 %v361, %v357
      %v363 = vrot.slane %v362, 4
      %v365 = vshll.u32 %v326, 16
      %v367 = vrot.slane %v365, 5
      %v368 = vsel %vm344, %v363, %v367
      %v370 = vshrl.u32 %v296, 16
      %v372 = vrot.slane %v370, 4
      %v373 = vshll.u32 %v296, 16
      %v375 = vrot.slane %v373, 5
      %v376 = vor.u32 %v372, %v375
      %v377 = vrot.slane %v376, 4
      %v379 = vshll.u32 %v297, 16
      %v381 = vrot.slane %v379, 5
      %v382 = vsel %vm344, %v377, %v381
      %v383 = vshrl.u32 %v297, 16
      %v385 = vrot.slane %v383, 4
      %v386 = vor.u32 %v385, %v381
      %v387 = vrot.slane %v386, 4
      %v389 = vshll.u32 %v327, 16
      %v391 = vrot.slane %v389, 5
      %v392 = vsel %vm344, %v387, %v391
      %v394 = vshrl.u32 %v298, 16
      %v396 = vrot.slane %v394, 4
      %v397 = vshll.u32 %v298, 16
      %v399 = vrot.slane %v397, 5
      %v400 = vor.u32 %v396, %v399
      %v401 = vrot.slane %v400, 4
      %v403 = vshll.u32 %v299, 16
      %v405 = vrot.slane %v403, 5
      %v406 = vsel %vm344, %v401, %v405
      %v407 = vshrl.u32 %v299, 16
      %v409 = vrot.slane %v407, 4
      %v410 = vor.u32 %v409, %v405
      %v411 = vrot.slane %v410, 4
      %v413 = vshll.u32 %v328, 16
      %v415 = vrot.slane %v413, 5
      %v416 = vsel %vm344, %v411, %v415
      %v418 = vshrl.u32 %v300, 16
      %v420 = vrot.slane %v418, 4
      %v421 = vshll.u32 %v300, 16
      %v423 = vrot.slane %v421, 5
      %v424 = vor.u32 %v420, %v423
      %v425 = vrot.slane %v424, 4
      %v427 = vshll.u32 %v301, 16
      %v429 = vrot.slane %v427, 5
      %v430 = vsel %vm344, %v425, %v429
      %v431 = vshrl.u32 %v301, 16
      %v433 = vrot.slane %v431, 4
      %v434 = vor.u32 %v433, %v429
      %v435 = vrot.slane %v434, 4
      %v437 = vshll.u32 %v329, 16
      %v439 = vrot.slane %v437, 5
      %v440 = vsel %vm344, %v435, %v439
      %v442 = vshrl.u32 %v302, 16
      %v444 = vrot.slane %v442, 4
      %v445 = vshll.u32 %v302, 16
      %v447 = vrot.slane %v445, 5
      %v448 = vor.u32 %v444, %v447
      %v449 = vrot.slane %v448, 4
      %v451 = vshll.u32 %v303, 16
      %v453 = vrot.slane %v451, 5
      %v454 = vsel %vm344, %v449, %v453
      %v455 = vshrl.u32 %v303, 16
      %v457 = vrot.slane %v455, 4
      %v458 = vor.u32 %v457, %v453
      %v459 = vrot.slane %v458, 4
      %v461 = vshll.u32 %v330, 16
      %v463 = vrot.slane %v461, 5
      %v464 = vsel %vm344, %v459, %v463
      %v466 = vshrl.u32 %v304, 16
      %v468 = vrot.slane %v466, 4
      %v469 = vshll.u32 %v304, 16
      %v471 = vrot.slane %v469, 5
      %v472 = vor.u32 %v468, %v471
      %v473 = vrot.slane %v472, 4
      %v475 = vshll.u32 %v305, 16
      %v477 = vrot.slane %v475, 5
      %v478 = vsel %vm344, %v473, %v477
      %v479 = vshrl.u32 %v305, 16
      %v481 = vrot.slane %v479, 4
      %v482 = vor.u32 %v481, %v477
      %v483 = vrot.slane %v482, 4
      %v485 = vshll.u32 %v331, 16
      %v487 = vrot.slane %v485, 5
      %v488 = vsel %vm344, %v483, %v487
      %v490 = vshrl.u32 %v306, 16
      %v492 = vrot.slane %v490, 4
      %v493 = vshll.u32 %v306, 16
      %v495 = vrot.slane %v493, 5
      %v496 = vor.u32 %v492, %v495
      %v497 = vrot.slane %v496, 4
      %v499 = vshll.u32 %v307, 16
      %v501 = vrot.slane %v499, 5
      %v502 = vsel %vm344, %v497, %v501
      %v503 = vshrl.u32 %v307, 16
      %v505 = vrot.slane %v503, 4
      %v506 = vor.u32 %v505, %v501
      %v507 = vrot.slane %v506, 4
      %v509 = vshll.u32 %v332, 16
      %v511 = vrot.slane %v509, 5
      %v512 = vsel %vm344, %v507, %v511
      %v514 = vshrl.u32 %v308, 16
      %v516 = vrot.slane %v514, 4
      %v517 = vshll.u32 %v308, 16
      %v519 = vrot.slane %v517, 5
      %v520 = vor.u32 %v516, %v519
      %v521 = vrot.slane %v520, 4
      %v523 = vshll.u32 %v309, 16
      %v525 = vrot.slane %v523, 5
      %v526 = vsel %vm344, %v521, %v525
      %v527 = vshrl.u32 %v309, 16
      %v529 = vrot.slane %v527, 4
      %v530 = vor.u32 %v529, %v525
      %v531 = vrot.slane %v530, 4
      %v533 = vshll.u32 %v333, 16
      %v535 = vrot.slane %v533, 5
      %v536 = vsel %vm344, %v531, %v535
      %v538 = vshrl.u32 %v310, 16
      %v540 = vrot.slane %v538, 4
      %v541 = vshll.u32 %v310, 16
      %v543 = vrot.slane %v541, 5
      %v544 = vor.u32 %v540, %v543
      %v545 = vrot.slane %v544, 4
      %v547 = vshll.u32 %v311, 16
      %v549 = vrot.slane %v547, 5
      %v550 = vsel %vm344, %v545, %v549
      %v551 = vshrl.u32 %v311, 16
      %v553 = vrot.slane %v551, 4
      %v554 = vor.u32 %v553, %v549
      %v555 = vrot.slane %v554, 4
      %v557 = vshll.u32 %v334, 16
      %v559 = vrot.slane %v557, 5
      %v560 = vsel %vm344, %v555, %v559
      %v562 = vshrl.u32 %v312, 16
      %v564 = vrot.slane %v562, 4
      %v565 = vshll.u32 %v312, 16
      %v567 = vrot.slane %v565, 5
      %v568 = vor.u32 %v564, %v567
      %v569 = vrot.slane %v568, 4
      %v571 = vshll.u32 %v313, 16
      %v573 = vrot.slane %v571, 5
      %v574 = vsel %vm344, %v569, %v573
      %v575 = vshrl.u32 %v313, 16
      %v577 = vrot.slane %v575, 4
      %v578 = vor.u32 %v577, %v573
      %v579 = vrot.slane %v578, 4
      %v581 = vshll.u32 %v335, 16
      %v583 = vrot.slane %v581, 5
      %v584 = vsel %vm344, %v579, %v583
      %v586 = vshrl.u32 %v314, 16
      %v588 = vrot.slane %v586, 4
      %v589 = vshll.u32 %v314, 16
      %v591 = vrot.slane %v589, 5
      %v592 = vor.u32 %v588, %v591
      %v593 = vrot.slane %v592, 4
      %v595 = vshll.u32 %v315, 16
      %v597 = vrot.slane %v595, 5
      %v598 = vsel %vm344, %v593, %v597
      %v599 = vshrl.u32 %v315, 16
      %v601 = vrot.slane %v599, 4
      %v602 = vor.u32 %v601, %v597
      %v603 = vrot.slane %v602, 4
      %v605 = vshll.u32 %v336, 16
      %v607 = vrot.slane %v605, 5
      %v608 = vsel %vm344, %v603, %v607
      %v610 = vshrl.u32 %v316, 16
      %v612 = vrot.slane %v610, 4
      %v613 = vshll.u32 %v316, 16
      %v615 = vrot.slane %v613, 5
      %v616 = vor.u32 %v612, %v615
      %v617 = vrot.slane %v616, 4
      %v619 = vshll.u32 %v317, 16
      %v621 = vrot.slane %v619, 5
      %v622 = vsel %vm344, %v617, %v621
      %v623 = vshrl.u32 %v317, 16
      %v625 = vrot.slane %v623, 4
      %v626 = vor.u32 %v625, %v621
      %v627 = vrot.slane %v626, 4
      %v629 = vshll.u32 %v337, 16
      %v631 = vrot.slane %v629, 5
      %v632 = vsel %vm344, %v627, %v631
      %v634 = vshrl.u32 %v318, 16
      %v636 = vrot.slane %v634, 4
      %v637 = vshll.u32 %v318, 16
      %v639 = vrot.slane %v637, 5
      %v640 = vor.u32 %v636, %v639
      %v641 = vrot.slane %v640, 4
      %v643 = vshll.u32 %v319, 16
      %v645 = vrot.slane %v643, 5
      %v646 = vsel %vm344, %v641, %v645
      %v647 = vshrl.u32 %v319, 16
      %v649 = vrot.slane %v647, 4
      %v650 = vor.u32 %v649, %v645
      %v651 = vrot.slane %v650, 4
      %v653 = vshll.u32 %v338, 16
      %v655 = vrot.slane %v653, 5
      %v656 = vsel %vm344, %v651, %v655
      %v658 = vshrl.u32 %v320, 16
      %v660 = vrot.slane %v658, 4
      %v661 = vshll.u32 %v320, 16
      %v663 = vrot.slane %v661, 5
      %v664 = vor.u32 %v660, %v663
      %v665 = vrot.slane %v664, 4
      %v667 = vshll.u32 %v321, 16
      %v669 = vrot.slane %v667, 5
      %v670 = vsel %vm344, %v665, %v669
      %v671 = vshrl.u32 %v321, 16
      %v673 = vrot.slane %v671, 4
      %v674 = vor.u32 %v673, %v669
      %v675 = vrot.slane %v674, 4
      %v677 = vshll.u32 %v339, 16
      %v679 = vrot.slane %v677, 5
      %v680 = vsel %vm344, %v675, %v679
      %v682 = vshrl.u32 %v322, 16
      %v684 = vrot.slane %v682, 4
      %v685 = vshll.u32 %v322, 16
      %v687 = vrot.slane %v685, 5
      %v688 = vor.u32 %v684, %v687
      %v689 = vrot.slane %v688, 4
      %v691 = vshll.u32 %v323, 16
      %v693 = vrot.slane %v691, 5
      %v694 = vsel %vm344, %v689, %v693
      %v695 = vshrl.u32 %v323, 16
      %v697 = vrot.slane %v695, 4
      %v698 = vor.u32 %v697, %v693
      %v699 = vrot.slane %v698, 4
      %v701 = vshll.u32 %v340, 16
      %v703 = vrot.slane %v701, 5
      %v704 = vsel %vm344, %v699, %v703
      %v706 = vshrl.u32 %v324, 16
      %v708 = vrot.slane %v706, 4
      %v709 = vshll.u32 %v324, 16
      %v711 = vrot.slane %v709, 5
      %v712 = vor.u32 %v708, %v711
      %v713 = vrot.slane %v712, 4
      %v715 = vshll.u32 %v325, 16
      %v717 = vrot.slane %v715, 5
      %v718 = vsel %vm344, %v713, %v717
      %v719 = vshrl.u32 %v325, 16
      %v721 = vrot.slane %v719, 4
      %v722 = vor.u32 %v721, %v717
      %v723 = vrot.slane %v722, 4
      %v725 = vshll.u32 %v341, 16
      %v727 = vrot.slane %v725, 5
      %v728 = vsel %vm344, %v723, %v727
      %v729 = vld [vmem:[%s271] sm:$0xe]
      %v730 = vld [vmem:[%s271 + $0xc] sm:$0xe]
      %v731 = vld [vmem:[%s271 + $0x18] sm:$0xe]
      %v732 = vld [vmem:[%s271 + $0x24] sm:$0xe]
      %v733 = vld [vmem:[%s271 + $0x30] sm:$0xe]
      %v734 = vld [vmem:[%s271 + $0x3c] sm:$0xe]
      %v735 = vld [vmem:[%s271 + $0x48] sm:$0xe]
      %v736 = vld [vmem:[%s271 + $0x54] sm:$0xe]
      %v737 = vld [vmem:[%s271 + $0x60] sm:$0xe]
      %v738 = vld [vmem:[%s271 + $0x6c] sm:$0xe]
      %v739 = vld [vmem:[%s271 + $0x78] sm:$0xe]
      %v740 = vld [vmem:[%s271 + $0x84] sm:$0xe]
      %v741 = vld [vmem:[%s271 + $0x90] sm:$0xe]
      %v742 = vld [vmem:[%s271 + $0x9c] sm:$0xe]
      %v743 = vld [vmem:[%s271 + $0xa8] sm:$0xe]
      %v744 = vld [vmem:[%s271 + $0xb4] sm:$0xe]
      %vm793 = vcmask 1042432
      %vm794 = vcmask 1046532
      %vm795 = vmor %vm793, %vm794
      %v796 = vrot.slane %v729, 5
      %v797 = vrot.slane %v796, 4
      %v798 = vrot.slane %v295, 5
      %v799 = vsel %vm795, %v797, %v798
      %v800 = vrot.slane %v798, 4
      %v801 = vrot.slane %v326, 5
      %v802 = vsel %vm795, %v800, %v801
      %v803 = vrot.slane %v730, 5
      %v804 = vrot.slane %v803, 4
      %v805 = vrot.slane %v297, 5
      %v806 = vsel %vm795, %v804, %v805
      %v807 = vrot.slane %v805, 4
      %v808 = vrot.slane %v327, 5
      %v809 = vsel %vm795, %v807, %v808
      %v810 = vrot.slane %v731, 5
      %v811 = vrot.slane %v810, 4
      %v812 = vrot.slane %v299, 5
      %v813 = vsel %vm795, %v811, %v812
      %v814 = vrot.slane %v812, 4
      %v815 = vrot.slane %v328, 5
      %v816 = vsel %vm795, %v814, %v815
      %v817 = vrot.slane %v732, 5
      %v818 = vrot.slane %v817, 4
      %v819 = vrot.slane %v301, 5
      %v820 = vsel %vm795, %v818, %v819
      %v821 = vrot.slane %v819, 4
      %v822 = vrot.slane %v329, 5
      %v823 = vsel %vm795, %v821, %v822
      %v824 = vrot.slane %v733, 5
      %v825 = vrot.slane %v824, 4
      %v826 = vrot.slane %v303, 5
      %v827 = vsel %vm795, %v825, %v826
      %v828 = vrot.slane %v826, 4
      %v829 = vrot.slane %v330, 5
      %v830 = vsel %vm795, %v828, %v829
      %v831 = vrot.slane %v734, 5
      %v832 = vrot.slane %v831, 4
      %v833 = vrot.slane %v305, 5
      %v834 = vsel %vm795, %v832, %v833
      %v835 = vrot.slane %v833, 4
      %v836 = vrot.slane %v331, 5
      %v837 = vsel %vm795, %v835, %v836
      %v838 = vrot.slane %v735, 5
      %v839 = vrot.slane %v838, 4
      %v840 = vrot.slane %v307, 5
      %v841 = vsel %vm795, %v839, %v840
      %v842 = vrot.slane %v840, 4
      %v843 = vrot.slane %v332, 5
      %v844 = vsel %vm795, %v842, %v843
      %v845 = vrot.slane %v736, 5
      %v846 = vrot.slane %v845, 4
      %v847 = vrot.slane %v309, 5
      %v848 = vsel %vm795, %v846, %v847
      %v849 = vrot.slane %v847, 4
      %v850 = vrot.slane %v333, 5
      %v851 = vsel %vm795, %v849, %v850
      %v852 = vrot.slane %v737, 5
      %v853 = vrot.slane %v852, 4
      %v854 = vrot.slane %v311, 5
      %v855 = vsel %vm795, %v853, %v854
      %v856 = vrot.slane %v854, 4
      %v857 = vrot.slane %v334, 5
      %v858 = vsel %vm795, %v856, %v857
      %v859 = vrot.slane %v738, 5
      %v860 = vrot.slane %v859, 4
      %v861 = vrot.slane %v313, 5
      %v862 = vsel %vm795, %v860, %v861
      %v863 = vrot.slane %v861, 4
      %v864 = vrot.slane %v335, 5
      %v865 = vsel %vm795, %v863, %v864
      %v866 = vrot.slane %v739, 5
      %v867 = vrot.slane %v866, 4
      %v868 = vrot.slane %v315, 5
      %v869 = vsel %vm795, %v867, %v868
      %v870 = vrot.slane %v868, 4
      %v871 = vrot.slane %v336, 5
      %v872 = vsel %vm795, %v870, %v871
      %v873 = vrot.slane %v740, 5
      %v874 = vrot.slane %v873, 4
      %v875 = vrot.slane %v317, 5
      %v876 = vsel %vm795, %v874, %v875
      %v877 = vrot.slane %v875, 4
      %v878 = vrot.slane %v337, 5
      %v879 = vsel %vm795, %v877, %v878
      %v880 = vrot.slane %v741, 5
      %v881 = vrot.slane %v880, 4
      %v882 = vrot.slane %v319, 5
      %v883 = vsel %vm795, %v881, %v882
      %v884 = vrot.slane %v882, 4
      %v885 = vrot.slane %v338, 5
      %v886 = vsel %vm795, %v884, %v885
      %v887 = vrot.slane %v742, 5
      %v888 = vrot.slane %v887, 4
      %v889 = vrot.slane %v321, 5
      %v890 = vsel %vm795, %v888, %v889
      %v891 = vrot.slane %v889, 4
      %v892 = vrot.slane %v339, 5
      %v893 = vsel %vm795, %v891, %v892
      %v894 = vrot.slane %v743, 5
      %v895 = vrot.slane %v894, 4
      %v896 = vrot.slane %v323, 5
      %v897 = vsel %vm795, %v895, %v896
      %v898 = vrot.slane %v896, 4
      %v899 = vrot.slane %v340, 5
      %v900 = vsel %vm795, %v898, %v899
      %v901 = vrot.slane %v744, 5
      %v902 = vrot.slane %v901, 4
      %v903 = vrot.slane %v325, 5
      %v904 = vsel %vm795, %v902, %v903
      %v905 = vrot.slane %v903, 4
      %v906 = vrot.slane %v341, 5
      %v907 = vsel %vm795, %v905, %v906
      %s908 = scalar_lea.vmem %s271, 12
      %v909 = vld [vmem:[%s908] sm:$0xf]
      %v910 = vld [vmem:[%s908 + $0x4] sm:$0xf]
      %v911 = vld [vmem:[%s908 + $0xc] sm:$0xf]
      %v912 = vld [vmem:[%s908 + $0x10] sm:$0xf]
      %v913 = vld [vmem:[%s908 + $0x18] sm:$0xf]
      %v914 = vld [vmem:[%s908 + $0x1c] sm:$0xf]
      %v915 = vld [vmem:[%s908 + $0x24] sm:$0xf]
      %v916 = vld [vmem:[%s908 + $0x28] sm:$0xf]
      %v917 = vld [vmem:[%s908 + $0x30] sm:$0xf]
      %v918 = vld [vmem:[%s908 + $0x34] sm:$0xf]
      %v919 = vld [vmem:[%s908 + $0x3c] sm:$0xf]
      %v920 = vld [vmem:[%s908 + $0x40] sm:$0xf]
      %v921 = vld [vmem:[%s908 + $0x48] sm:$0xf]
      %v922 = vld [vmem:[%s908 + $0x4c] sm:$0xf]
      %v923 = vld [vmem:[%s908 + $0x54] sm:$0xf]
      %v924 = vld [vmem:[%s908 + $0x58] sm:$0xf]
      %v925 = vld [vmem:[%s908 + $0x60] sm:$0xf]
      %v926 = vld [vmem:[%s908 + $0x64] sm:$0xf]
      %v927 = vld [vmem:[%s908 + $0x6c] sm:$0xf]
      %v928 = vld [vmem:[%s908 + $0x70] sm:$0xf]
      %v929 = vld [vmem:[%s908 + $0x78] sm:$0xf]
      %v930 = vld [vmem:[%s908 + $0x7c] sm:$0xf]
      %v931 = vld [vmem:[%s908 + $0x84] sm:$0xf]
      %v932 = vld [vmem:[%s908 + $0x88] sm:$0xf]
      %v933 = vld [vmem:[%s908 + $0x90] sm:$0xf]
      %v934 = vld [vmem:[%s908 + $0x94] sm:$0xf]
      %v935 = vld [vmem:[%s908 + $0x9c] sm:$0xf]
      %v936 = vld [vmem:[%s908 + $0xa0] sm:$0xf]
      %v937 = vld [vmem:[%s908 + $0xa8] sm:$0xf]
      %v938 = vld [vmem:[%s908 + $0xac] sm:$0xf]
      %v939 = vld [vmem:[%s908 + $0xb4] sm:$0xf]
      %v940 = vld [vmem:[%s908 + $0xb8] sm:$0xf]
      %v941 = vld [vmem:[%s908 + $0x8] sm:$0x1]
      %v942 = vld [vmem:[%s908 + $0x14] sm:$0x1]
      %v943 = vld [vmem:[%s908 + $0x20] sm:$0x1]
      %v944 = vld [vmem:[%s908 + $0x2c] sm:$0x1]
      %v945 = vld [vmem:[%s908 + $0x38] sm:$0x1]
      %v946 = vld [vmem:[%s908 + $0x44] sm:$0x1]
      %v947 = vld [vmem:[%s908 + $0x50] sm:$0x1]
      %v948 = vld [vmem:[%s908 + $0x5c] sm:$0x1]
      %v949 = vld [vmem:[%s908 + $0x68] sm:$0x1]
      %v950 = vld [vmem:[%s908 + $0x74] sm:$0x1]
      %v951 = vld [vmem:[%s908 + $0x80] sm:$0x1]
      %v952 = vld [vmem:[%s908 + $0x8c] sm:$0x1]
      %v953 = vld [vmem:[%s908 + $0x98] sm:$0x1]
      %v954 = vld [vmem:[%s908 + $0xa4] sm:$0x1]
      %v955 = vld [vmem:[%s908 + $0xb0] sm:$0x1]
      %v956 = vld [vmem:[%s908 + $0xbc] sm:$0x1]
      %v958 = vshrl.u32 %v909, 16
      %v960 = vrot.slane %v958, 4
      %v961 = vshll.u32 %v909, 16
      %v963 = vrot.slane %v961, 5
      %v964 = vor.u32 %v960, %v963
      %v965 = vrot.slane %v964, 4
      %v967 = vshll.u32 %v910, 16
      %v969 = vrot.slane %v967, 5
      %v970 = vsel %vm344, %v965, %v969
      %v971 = vshrl.u32 %v910, 16
      %v973 = vrot.slane %v971, 4
      %v974 = vor.u32 %v973, %v969
      %v975 = vrot.slane %v974, 4
      %v977 = vshll.u32 %v941, 16
      %v979 = vrot.slane %v977, 5
      %v980 = vsel %vm344, %v975, %v979
      %v982 = vshrl.u32 %v911, 16
      %v984 = vrot.slane %v982, 4
      %v985 = vshll.u32 %v911, 16
      %v987 = vrot.slane %v985, 5
      %v988 = vor.u32 %v984, %v987
      %v989 = vrot.slane %v988, 4
      %v991 = vshll.u32 %v912, 16
      %v993 = vrot.slane %v991, 5
      %v994 = vsel %vm344, %v989, %v993
      %v995 = vshrl.u32 %v912, 16
      %v997 = vrot.slane %v995, 4
      %v998 = vor.u32 %v997, %v993
      %v999 = vrot.slane %v998, 4
      %v1001 = vshll.u32 %v942, 16
      %v1003 = vrot.slane %v1001, 5
      %v1004 = vsel %vm344, %v999, %v1003
      %v1006 = vshrl.u32 %v913, 16
      %v1008 = vrot.slane %v1006, 4
      %v1009 = vshll.u32 %v913, 16
      %v1011 = vrot.slane %v1009, 5
      %v1012 = vor.u32 %v1008, %v1011
      %v1013 = vrot.slane %v1012, 4
      %v1015 = vshll.u32 %v914, 16
      %v1017 = vrot.slane %v1015, 5
      %v1018 = vsel %vm344, %v1013, %v1017
      %v1019 = vshrl.u32 %v914, 16
      %v1021 = vrot.slane %v1019, 4
      %v1022 = vor.u32 %v1021, %v1017
      %v1023 = vrot.slane %v1022, 4
      %v1025 = vshll.u32 %v943, 16
      %v1027 = vrot.slane %v1025, 5
      %v1028 = vsel %vm344, %v1023, %v1027
      %v1030 = vshrl.u32 %v915, 16
      %v1032 = vrot.slane %v1030, 4
      %v1033 = vshll.u32 %v915, 16
      %v1035 = vrot.slane %v1033, 5
      %v1036 = vor.u32 %v1032, %v1035
      %v1037 = vrot.slane %v1036, 4
      %v1039 = vshll.u32 %v916, 16
      %v1041 = vrot.slane %v1039, 5
      %v1042 = vsel %vm344, %v1037, %v1041
      %v1043 = vshrl.u32 %v916, 16
      %v1045 = vrot.slane %v1043, 4
      %v1046 = vor.u32 %v1045, %v1041
      %v1047 = vrot.slane %v1046, 4
      %v1049 = vshll.u32 %v944, 16
      %v1051 = vrot.slane %v1049, 5
      %v1052 = vsel %vm344, %v1047, %v1051
      %v1054 = vshrl.u32 %v917, 16
      %v1056 = vrot.slane %v1054, 4
      %v1057 = vshll.u32 %v917, 16
      %v1059 = vrot.slane %v1057, 5
      %v1060 = vor.u32 %v1056, %v1059
      %v1061 = vrot.slane %v1060, 4
      %v1063 = vshll.u32 %v918, 16
      %v1065 = vrot.slane %v1063, 5
      %v1066 = vsel %vm344, %v1061, %v1065
      %v1067 = vshrl.u32 %v918, 16
      %v1069 = vrot.slane %v1067, 4
      %v1070 = vor.u32 %v1069, %v1065
      %v1071 = vrot.slane %v1070, 4
      %v1073 = vshll.u32 %v945, 16
      %v1075 = vrot.slane %v1073, 5
      %v1076 = vsel %vm344, %v1071, %v1075
      %v1078 = vshrl.u32 %v919, 16
      %v1080 = vrot.slane %v1078, 4
      %v1081 = vshll.u32 %v919, 16
      %v1083 = vrot.slane %v1081, 5
      %v1084 = vor.u32 %v1080, %v1083
      %v1085 = vrot.slane %v1084, 4
      %v1087 = vshll.u32 %v920, 16
      %v1089 = vrot.slane %v1087, 5
      %v1090 = vsel %vm344, %v1085, %v1089
      %v1091 = vshrl.u32 %v920, 16
      %v1093 = vrot.slane %v1091, 4
      %v1094 = vor.u32 %v1093, %v1089
      %v1095 = vrot.slane %v1094, 4
      %v1097 = vshll.u32 %v946, 16
      %v1099 = vrot.slane %v1097, 5
      %v1100 = vsel %vm344, %v1095, %v1099
      %v1102 = vshrl.u32 %v921, 16
      %v1104 = vrot.slane %v1102, 4
      %v1105 = vshll.u32 %v921, 16
      %v1107 = vrot.slane %v1105, 5
      %v1108 = vor.u32 %v1104, %v1107
      %v1109 = vrot.slane %v1108, 4
      %v1111 = vshll.u32 %v922, 16
      %v1113 = vrot.slane %v1111, 5
      %v1114 = vsel %vm344, %v1109, %v1113
      %v1115 = vshrl.u32 %v922, 16
      %v1117 = vrot.slane %v1115, 4
      %v1118 = vor.u32 %v1117, %v1113
      %v1119 = vrot.slane %v1118, 4
      %v1121 = vshll.u32 %v947, 16
      %v1123 = vrot.slane %v1121, 5
      %v1124 = vsel %vm344, %v1119, %v1123
      %v1126 = vshrl.u32 %v923, 16
      %v1128 = vrot.slane %v1126, 4
      %v1129 = vshll.u32 %v923, 16
      %v1131 = vrot.slane %v1129, 5
      %v1132 = vor.u32 %v1128, %v1131
      %v1133 = vrot.slane %v1132, 4
      %v1135 = vshll.u32 %v924, 16
      %v1137 = vrot.slane %v1135, 5
      %v1138 = vsel %vm344, %v1133, %v1137
      %v1139 = vshrl.u32 %v924, 16
      %v1141 = vrot.slane %v1139, 4
      %v1142 = vor.u32 %v1141, %v1137
      %v1143 = vrot.slane %v1142, 4
      %v1145 = vshll.u32 %v948, 16
      %v1147 = vrot.slane %v1145, 5
      %v1148 = vsel %vm344, %v1143, %v1147
      %v1150 = vshrl.u32 %v925, 16
      %v1152 = vrot.slane %v1150, 4
      %v1153 = vshll.u32 %v925, 16
      %v1155 = vrot.slane %v1153, 5
      %v1156 = vor.u32 %v1152, %v1155
      %v1157 = vrot.slane %v1156, 4
      %v1159 = vshll.u32 %v926, 16
      %v1161 = vrot.slane %v1159, 5
      %v1162 = vsel %vm344, %v1157, %v1161
      %v1163 = vshrl.u32 %v926, 16
      %v1165 = vrot.slane %v1163, 4
      %v1166 = vor.u32 %v1165, %v1161
      %v1167 = vrot.slane %v1166, 4
      %v1169 = vshll.u32 %v949, 16
      %v1171 = vrot.slane %v1169, 5
      %v1172 = vsel %vm344, %v1167, %v1171
      %v1174 = vshrl.u32 %v927, 16
      %v1176 = vrot.slane %v1174, 4
      %v1177 = vshll.u32 %v927, 16
      %v1179 = vrot.slane %v1177, 5
      %v1180 = vor.u32 %v1176, %v1179
      %v1181 = vrot.slane %v1180, 4
      %v1183 = vshll.u32 %v928, 16
      %v1185 = vrot.slane %v1183, 5
      %v1186 = vsel %vm344, %v1181, %v1185
      %v1187 = vshrl.u32 %v928, 16
      %v1189 = vrot.slane %v1187, 4
      %v1190 = vor.u32 %v1189, %v1185
      %v1191 = vrot.slane %v1190, 4
      %v1193 = vshll.u32 %v950, 16
      %v1195 = vrot.slane %v1193, 5
      %v1196 = vsel %vm344, %v1191, %v1195
      %v1198 = vshrl.u32 %v929, 16
      %v1200 = vrot.slane %v1198, 4
      %v1201 = vshll.u32 %v929, 16
      %v1203 = vrot.slane %v1201, 5
      %v1204 = vor.u32 %v1200, %v1203
      %v1205 = vrot.slane %v1204, 4
      %v1207 = vshll.u32 %v930, 16
      %v1209 = vrot.slane %v1207, 5
      %v1210 = vsel %vm344, %v1205, %v1209
      %v1211 = vshrl.u32 %v930, 16
      %v1213 = vrot.slane %v1211, 4
      %v1214 = vor.u32 %v1213, %v1209
      %v1215 = vrot.slane %v1214, 4
      %v1217 = vshll.u32 %v951, 16
      %v1219 = vrot.slane %v1217, 5
      %v1220 = vsel %vm344, %v1215, %v1219
      %v1222 = vshrl.u32 %v931, 16
      %v1224 = vrot.slane %v1222, 4
      %v1225 = vshll.u32 %v931, 16
      %v1227 = vrot.slane %v1225, 5
      %v1228 = vor.u32 %v1224, %v1227
      %v1229 = vrot.slane %v1228, 4
      %v1231 = vshll.u32 %v932, 16
      %v1233 = vrot.slane %v1231, 5
      %v1234 = vsel %vm344, %v1229, %v1233
      %v1235 = vshrl.u32 %v932, 16
      %v1237 = vrot.slane %v1235, 4
      %v1238 = vor.u32 %v1237, %v1233
      %v1239 = vrot.slane %v1238, 4
      %v1241 = vshll.u32 %v952, 16
      %v1243 = vrot.slane %v1241, 5
      %v1244 = vsel %vm344, %v1239, %v1243
      %v1246 = vshrl.u32 %v933, 16
      %v1248 = vrot.slane %v1246, 4
      %v1249 = vshll.u32 %v933, 16
      %v1251 = vrot.slane %v1249, 5
      %v1252 = vor.u32 %v1248, %v1251
      %v1253 = vrot.slane %v1252, 4
      %v1255 = vshll.u32 %v934, 16
      %v1257 = vrot.slane %v1255, 5
      %v1258 = vsel %vm344, %v1253, %v1257
      %v1259 = vshrl.u32 %v934, 16
      %v1261 = vrot.slane %v1259, 4
      %v1262 = vor.u32 %v1261, %v1257
      %v1263 = vrot.slane %v1262, 4
      %v1265 = vshll.u32 %v953, 16
      %v1267 = vrot.slane %v1265, 5
      %v1268 = vsel %vm344, %v1263, %v1267
      %v1270 = vshrl.u32 %v935, 16
      %v1272 = vrot.slane %v1270, 4
      %v1273 = vshll.u32 %v935, 16
      %v1275 = vrot.slane %v1273, 5
      %v1276 = vor.u32 %v1272, %v1275
      %v1277 = vrot.slane %v1276, 4
      %v1279 = vshll.u32 %v936, 16
      %v1281 = vrot.slane %v1279, 5
      %v1282 = vsel %vm344, %v1277, %v1281
      %v1283 = vshrl.u32 %v936, 16
      %v1285 = vrot.slane %v1283, 4
      %v1286 = vor.u32 %v1285, %v1281
      %v1287 = vrot.slane %v1286, 4
      %v1289 = vshll.u32 %v954, 16
      %v1291 = vrot.slane %v1289, 5
      %v1292 = vsel %vm344, %v1287, %v1291
      %v1294 = vshrl.u32 %v937, 16
      %v1296 = vrot.slane %v1294, 4
      %v1297 = vshll.u32 %v937, 16
      %v1299 = vrot.slane %v1297, 5
      %v1300 = vor.u32 %v1296, %v1299
      %v1301 = vrot.slane %v1300, 4
      %v1303 = vshll.u32 %v938, 16
      %v1305 = vrot.slane %v1303, 5
      %v1306 = vsel %vm344, %v1301, %v1305
      %v1307 = vshrl.u32 %v938, 16
      %v1309 = vrot.slane %v1307, 4
      %v1310 = vor.u32 %v1309, %v1305
      %v1311 = vrot.slane %v1310, 4
      %v1313 = vshll.u32 %v955, 16
      %v1315 = vrot.slane %v1313, 5
      %v1316 = vsel %vm344, %v1311, %v1315
      %v1318 = vshrl.u32 %v939, 16
      %v1320 = vrot.slane %v1318, 4
      %v1321 = vshll.u32 %v939, 16
      %v1323 = vrot.slane %v1321, 5
      %v1324 = vor.u32 %v1320, %v1323
      %v1325 = vrot.slane %v1324, 4
      %v1327 = vshll.u32 %v940, 16
      %v1329 = vrot.slane %v1327, 5
      %v1330 = vsel %vm344, %v1325, %v1329
      %v1331 = vshrl.u32 %v940, 16
      %v1333 = vrot.slane %v1331, 4
      %v1334 = vor.u32 %v1333, %v1329
      %v1335 = vrot.slane %v1334, 4
      %v1337 = vshll.u32 %v956, 16
      %v1339 = vrot.slane %v1337, 5
      %v1340 = vsel %vm344, %v1335, %v1339
      %v1341 = vld [vmem:[%s908] sm:$0xe]
      %v1342 = vld [vmem:[%s908 + $0xc] sm:$0xe]
      %v1343 = vld [vmem:[%s908 + $0x18] sm:$0xe]
      %v1344 = vld [vmem:[%s908 + $0x24] sm:$0xe]
      %v1345 = vld [vmem:[%s908 + $0x30] sm:$0xe]
      %v1346 = vld [vmem:[%s908 + $0x3c] sm:$0xe]
      %v1347 = vld [vmem:[%s908 + $0x48] sm:$0xe]
      %v1348 = vld [vmem:[%s908 + $0x54] sm:$0xe]
      %v1349 = vld [vmem:[%s908 + $0x60] sm:$0xe]
      %v1350 = vld [vmem:[%s908 + $0x6c] sm:$0xe]
      %v1351 = vld [vmem:[%s908 + $0x78] sm:$0xe]
      %v1352 = vld [vmem:[%s908 + $0x84] sm:$0xe]
      %v1353 = vld [vmem:[%s908 + $0x90] sm:$0xe]
      %v1354 = vld [vmem:[%s908 + $0x9c] sm:$0xe]
      %v1355 = vld [vmem:[%s908 + $0xa8] sm:$0xe]
      %v1356 = vld [vmem:[%s908 + $0xb4] sm:$0xe]
      %v1405 = vrot.slane %v1341, 5
      %v1406 = vrot.slane %v1405, 4
      %v1407 = vrot.slane %v910, 5
      %v1408 = vsel %vm795, %v1406, %v1407
      %v1409 = vrot.slane %v1407, 4
      %v1410 = vrot.slane %v941, 5
      %v1411 = vsel %vm795, %v1409, %v1410
      %v1412 = vrot.slane %v1342, 5
      %v1413 = vrot.slane %v1412, 4
      %v1414 = vrot.slane %v912, 5
      %v1415 = vsel %vm795, %v1413, %v1414
      %v1416 = vrot.slane %v1414, 4
      %v1417 = vrot.slane %v942, 5
      %v1418 = vsel %vm795, %v1416, %v1417
      %v1419 = vrot.slane %v1343, 5
      %v1420 = vrot.slane %v1419, 4
      %v1421 = vrot.slane %v914, 5
      %v1422 = vsel %vm795, %v1420, %v1421
      %v1423 = vrot.slane %v1421, 4
      %v1424 = vrot.slane %v943, 5
      %v1425 = vsel %vm795, %v1423, %v1424
      %v1426 = vrot.slane %v1344, 5
      %v1427 = vrot.slane %v1426, 4
      %v1428 = vrot.slane %v916, 5
      %v1429 = vsel %vm795, %v1427, %v1428
      %v1430 = vrot.slane %v1428, 4
      %v1431 = vrot.slane %v944, 5
      %v1432 = vsel %vm795, %v1430, %v1431
      %v1433 = vrot.slane %v1345, 5
      %v1434 = vrot.slane %v1433, 4
      %v1435 = vrot.slane %v918, 5
      %v1436 = vsel %vm795, %v1434, %v1435
      %v1437 = vrot.slane %v1435, 4
      %v1438 = vrot.slane %v945, 5
      %v1439 = vsel %vm795, %v1437, %v1438
      %v1440 = vrot.slane %v1346, 5
      %v1441 = vrot.slane %v1440, 4
      %v1442 = vrot.slane %v920, 5
      %v1443 = vsel %vm795, %v1441, %v1442
      %v1444 = vrot.slane %v1442, 4
      %v1445 = vrot.slane %v946, 5
      %v1446 = vsel %vm795, %v1444, %v1445
      %v1447 = vrot.slane %v1347, 5
      %v1448 = vrot.slane %v1447, 4
      %v1449 = vrot.slane %v922, 5
      %v1450 = vsel %vm795, %v1448, %v1449
      %v1451 = vrot.slane %v1449, 4
      %v1452 = vrot.slane %v947, 5
      %v1453 = vsel %vm795, %v1451, %v1452
      %v1454 = vrot.slane %v1348, 5
      %v1455 = vrot.slane %v1454, 4
      %v1456 = vrot.slane %v924, 5
      %v1457 = vsel %vm795, %v1455, %v1456
      %v1458 = vrot.slane %v1456, 4
      %v1459 = vrot.slane %v948, 5
      %v1460 = vsel %vm795, %v1458, %v1459
      %v1461 = vrot.slane %v1349, 5
      %v1462 = vrot.slane %v1461, 4
      %v1463 = vrot.slane %v926, 5
      %v1464 = vsel %vm795, %v1462, %v1463
      %v1465 = vrot.slane %v1463, 4
      %v1466 = vrot.slane %v949, 5
      %v1467 = vsel %vm795, %v1465, %v1466
      %v1468 = vrot.slane %v1350, 5
      %v1469 = vrot.slane %v1468, 4
      %v1470 = vrot.slane %v928, 5
      %v1471 = vsel %vm795, %v1469, %v1470
      %v1472 = vrot.slane %v1470, 4
      %v1473 = vrot.slane %v950, 5
      %v1474 = vsel %vm795, %v1472, %v1473
      %v1475 = vrot.slane %v1351, 5
      %v1476 = vrot.slane %v1475, 4
      %v1477 = vrot.slane %v930, 5
      %v1478 = vsel %vm795, %v1476, %v1477
      %v1479 = vrot.slane %v1477, 4
      %v1480 = vrot.slane %v951, 5
      %v1481 = vsel %vm795, %v1479, %v1480
      %v1482 = vrot.slane %v1352, 5
      %v1483 = vrot.slane %v1482, 4
      %v1484 = vrot.slane %v932, 5
      %v1485 = vsel %vm795, %v1483, %v1484
      %v1486 = vrot.slane %v1484, 4
      %v1487 = vrot.slane %v952, 5
      %v1488 = vsel %vm795, %v1486, %v1487
      %v1489 = vrot.slane %v1353, 5
      %v1490 = vrot.slane %v1489, 4
      %v1491 = vrot.slane %v934, 5
      %v1492 = vsel %vm795, %v1490, %v1491
      %v1493 = vrot.slane %v1491, 4
      %v1494 = vrot.slane %v953, 5
      %v1495 = vsel %vm795, %v1493, %v1494
      %v1496 = vrot.slane %v1354, 5
      %v1497 = vrot.slane %v1496, 4
      %v1498 = vrot.slane %v936, 5
      %v1499 = vsel %vm795, %v1497, %v1498
      %v1500 = vrot.slane %v1498, 4
      %v1501 = vrot.slane %v954, 5
      %v1502 = vsel %vm795, %v1500, %v1501
      %v1503 = vrot.slane %v1355, 5
      %v1504 = vrot.slane %v1503, 4
      %v1505 = vrot.slane %v938, 5
      %v1506 = vsel %vm795, %v1504, %v1505
      %v1507 = vrot.slane %v1505, 4
      %v1508 = vrot.slane %v955, 5
      %v1509 = vsel %vm795, %v1507, %v1508
      %v1510 = vrot.slane %v1356, 5
      %v1511 = vrot.slane %v1510, 4
      %v1512 = vrot.slane %v940, 5
      %v1513 = vsel %vm795, %v1511, %v1512
      %v1514 = vrot.slane %v1512, 4
      %v1515 = vrot.slane %v956, 5
      %v1516 = vsel %vm795, %v1514, %v1515
      %s1517 = scalar_lea.vmem %s271, 24
      %v1518 = vld [vmem:[%s1517] sm:$0xf]
      %v1519 = vld [vmem:[%s1517 + $0x4] sm:$0xf]
      %v1520 = vld [vmem:[%s1517 + $0xc] sm:$0xf]
      %v1521 = vld [vmem:[%s1517 + $0x10] sm:$0xf]
      %v1522 = vld [vmem:[%s1517 + $0x18] sm:$0xf]
      %v1523 = vld [vmem:[%s1517 + $0x1c] sm:$0xf]
      %v1524 = vld [vmem:[%s1517 + $0x24] sm:$0xf]
      %v1525 = vld [vmem:[%s1517 + $0x28] sm:$0xf]
      %v1526 = vld [vmem:[%s1517 + $0x30] sm:$0xf]
      %v1527 = vld [vmem:[%s1517 + $0x34] sm:$0xf]
      %v1528 = vld [vmem:[%s1517 + $0x3c] sm:$0xf]
      %v1529 = vld [vmem:[%s1517 + $0x40] sm:$0xf]
      %v1530 = vld [vmem:[%s1517 + $0x48] sm:$0xf]
      %v1531 = vld [vmem:[%s1517 + $0x4c] sm:$0xf]
      %v1532 = vld [vmem:[%s1517 + $0x54] sm:$0xf]
      %v1533 = vld [vmem:[%s1517 + $0x58] sm:$0xf]
      %v1534 = vld [vmem:[%s1517 + $0x60] sm:$0xf]
      %v1535 = vld [vmem:[%s1517 + $0x64] sm:$0xf]
      %v1536 = vld [vmem:[%s1517 + $0x6c] sm:$0xf]
      %v1537 = vld [vmem:[%s1517 + $0x70] sm:$0xf]
      %v1538 = vld [vmem:[%s1517 + $0x78] sm:$0xf]
      %v1539 = vld [vmem:[%s1517 + $0x7c] sm:$0xf]
      %v1540 = vld [vmem:[%s1517 + $0x84] sm:$0xf]
      %v1541 = vld [vmem:[%s1517 + $0x88] sm:$0xf]
      %v1542 = vld [vmem:[%s1517 + $0x90] sm:$0xf]
      %v1543 = vld [vmem:[%s1517 + $0x94] sm:$0xf]
      %v1544 = vld [vmem:[%s1517 + $0x9c] sm:$0xf]
      %v1545 = vld [vmem:[%s1517 + $0xa0] sm:$0xf]
      %v1546 = vld [vmem:[%s1517 + $0xa8] sm:$0xf]
      %v1547 = vld [vmem:[%s1517 + $0xac] sm:$0xf]
      %v1548 = vld [vmem:[%s1517 + $0xb4] sm:$0xf]
      %v1549 = vld [vmem:[%s1517 + $0xb8] sm:$0xf]
      %v1550 = vld [vmem:[%s1517 + $0x8] sm:$0x1]
      %v1551 = vld [vmem:[%s1517 + $0x14] sm:$0x1]
      %v1552 = vld [vmem:[%s1517 + $0x20] sm:$0x1]
      %v1553 = vld [vmem:[%s1517 + $0x2c] sm:$0x1]
      %v1554 = vld [vmem:[%s1517 + $0x38] sm:$0x1]
      %v1555 = vld [vmem:[%s1517 + $0x44] sm:$0x1]
      %v1556 = vld [vmem:[%s1517 + $0x50] sm:$0x1]
      %v1557 = vld [vmem:[%s1517 + $0x5c] sm:$0x1]
      %v1558 = vld [vmem:[%s1517 + $0x68] sm:$0x1]
      %v1559 = vld [vmem:[%s1517 + $0x74] sm:$0x1]
      %v1560 = vld [vmem:[%s1517 + $0x80] sm:$0x1]
      %v1561 = vld [vmem:[%s1517 + $0x8c] sm:$0x1]
      %v1562 = vld [vmem:[%s1517 + $0x98] sm:$0x1]
      %v1563 = vld [vmem:[%s1517 + $0xa4] sm:$0x1]
      %v1564 = vld [vmem:[%s1517 + $0xb0] sm:$0x1]
      %v1565 = vld [vmem:[%s1517 + $0xbc] sm:$0x1]
      %v1567 = vshrl.u32 %v1518, 16
      %v1569 = vrot.slane %v1567, 4
      %v1570 = vshll.u32 %v1518, 16
      %v1572 = vrot.slane %v1570, 5
      %v1573 = vor.u32 %v1569, %v1572
      %v1574 = vrot.slane %v1573, 4
      %v1576 = vshll.u32 %v1519, 16
      %v1578 = vrot.slane %v1576, 5
      %v1579 = vsel %vm344, %v1574, %v1578
      %v1580 = vshrl.u32 %v1519, 16
      %v1582 = vrot.slane %v1580, 4
      %v1583 = vor.u32 %v1582, %v1578
      %v1584 = vrot.slane %v1583, 4
      %v1586 = vshll.u32 %v1550, 16
      %v1588 = vrot.slane %v1586, 5
      %v1589 = vsel %vm344, %v1584, %v1588
      %v1591 = vshrl.u32 %v1520, 16
      %v1593 = vrot.slane %v1591, 4
      %v1594 = vshll.u32 %v1520, 16
      %v1596 = vrot.slane %v1594, 5
      %v1597 = vor.u32 %v1593, %v1596
      %v1598 = vrot.slane %v1597, 4
      %v1600 = vshll.u32 %v1521, 16
      %v1602 = vrot.slane %v1600, 5
      %v1603 = vsel %vm344, %v1598, %v1602
      %v1604 = vshrl.u32 %v1521, 16
      %v1606 = vrot.slane %v1604, 4
      %v1607 = vor.u32 %v1606, %v1602
      %v1608 = vrot.slane %v1607, 4
      %v1610 = vshll.u32 %v1551, 16
      %v1612 = vrot.slane %v1610, 5
      %v1613 = vsel %vm344, %v1608, %v1612
      %v1615 = vshrl.u32 %v1522, 16
      %v1617 = vrot.slane %v1615, 4
      %v1618 = vshll.u32 %v1522, 16
      %v1620 = vrot.slane %v1618, 5
      %v1621 = vor.u32 %v1617, %v1620
      %v1622 = vrot.slane %v1621, 4
      %v1624 = vshll.u32 %v1523, 16
      %v1626 = vrot.slane %v1624, 5
      %v1627 = vsel %vm344, %v1622, %v1626
      %v1628 = vshrl.u32 %v1523, 16
      %v1630 = vrot.slane %v1628, 4
      %v1631 = vor.u32 %v1630, %v1626
      %v1632 = vrot.slane %v1631, 4
      %v1634 = vshll.u32 %v1552, 16
      %v1636 = vrot.slane %v1634, 5
      %v1637 = vsel %vm344, %v1632, %v1636
      %v1639 = vshrl.u32 %v1524, 16
      %v1641 = vrot.slane %v1639, 4
      %v1642 = vshll.u32 %v1524, 16
      %v1644 = vrot.slane %v1642, 5
      %v1645 = vor.u32 %v1641, %v1644
      %v1646 = vrot.slane %v1645, 4
      %v1648 = vshll.u32 %v1525, 16
      %v1650 = vrot.slane %v1648, 5
      %v1651 = vsel %vm344, %v1646, %v1650
      %v1652 = vshrl.u32 %v1525, 16
      %v1654 = vrot.slane %v1652, 4
      %v1655 = vor.u32 %v1654, %v1650
      %v1656 = vrot.slane %v1655, 4
      %v1658 = vshll.u32 %v1553, 16
      %v1660 = vrot.slane %v1658, 5
      %v1661 = vsel %vm344, %v1656, %v1660
      %v1663 = vshrl.u32 %v1526, 16
      %v1665 = vrot.slane %v1663, 4
      %v1666 = vshll.u32 %v1526, 16
      %v1668 = vrot.slane %v1666, 5
      %v1669 = vor.u32 %v1665, %v1668
      %v1670 = vrot.slane %v1669, 4
      %v1672 = vshll.u32 %v1527, 16
      %v1674 = vrot.slane %v1672, 5
      %v1675 = vsel %vm344, %v1670, %v1674
      %v1676 = vshrl.u32 %v1527, 16
      %v1678 = vrot.slane %v1676, 4
      %v1679 = vor.u32 %v1678, %v1674
      %v1680 = vrot.slane %v1679, 4
      %v1682 = vshll.u32 %v1554, 16
      %v1684 = vrot.slane %v1682, 5
      %v1685 = vsel %vm344, %v1680, %v1684
      %v1687 = vshrl.u32 %v1528, 16
      %v1689 = vrot.slane %v1687, 4
      %v1690 = vshll.u32 %v1528, 16
      %v1692 = vrot.slane %v1690, 5
      %v1693 = vor.u32 %v1689, %v1692
      %v1694 = vrot.slane %v1693, 4
      %v1696 = vshll.u32 %v1529, 16
      %v1698 = vrot.slane %v1696, 5
      %v1699 = vsel %vm344, %v1694, %v1698
      %v1700 = vshrl.u32 %v1529, 16
      %v1702 = vrot.slane %v1700, 4
      %v1703 = vor.u32 %v1702, %v1698
      %v1704 = vrot.slane %v1703, 4
      %v1706 = vshll.u32 %v1555, 16
      %v1708 = vrot.slane %v1706, 5
      %v1709 = vsel %vm344, %v1704, %v1708
      %v1711 = vshrl.u32 %v1530, 16
      %v1713 = vrot.slane %v1711, 4
      %v1714 = vshll.u32 %v1530, 16
      %v1716 = vrot.slane %v1714, 5
      %v1717 = vor.u32 %v1713, %v1716
      %v1718 = vrot.slane %v1717, 4
      %v1720 = vshll.u32 %v1531, 16
      %v1722 = vrot.slane %v1720, 5
      %v1723 = vsel %vm344, %v1718, %v1722
      %v1724 = vshrl.u32 %v1531, 16
      %v1726 = vrot.slane %v1724, 4
      %v1727 = vor.u32 %v1726, %v1722
      %v1728 = vrot.slane %v1727, 4
      %v1730 = vshll.u32 %v1556, 16
      %v1732 = vrot.slane %v1730, 5
      %v1733 = vsel %vm344, %v1728, %v1732
      %v1735 = vshrl.u32 %v1532, 16
      %v1737 = vrot.slane %v1735, 4
      %v1738 = vshll.u32 %v1532, 16
      %v1740 = vrot.slane %v1738, 5
      %v1741 = vor.u32 %v1737, %v1740
      %v1742 = vrot.slane %v1741, 4
      %v1744 = vshll.u32 %v1533, 16
      %v1746 = vrot.slane %v1744, 5
      %v1747 = vsel %vm344, %v1742, %v1746
      %v1748 = vshrl.u32 %v1533, 16
      %v1750 = vrot.slane %v1748, 4
      %v1751 = vor.u32 %v1750, %v1746
      %v1752 = vrot.slane %v1751, 4
      %v1754 = vshll.u32 %v1557, 16
      %v1756 = vrot.slane %v1754, 5
      %v1757 = vsel %vm344, %v1752, %v1756
      %v1759 = vshrl.u32 %v1534, 16
      %v1761 = vrot.slane %v1759, 4
      %v1762 = vshll.u32 %v1534, 16
      %v1764 = vrot.slane %v1762, 5
      %v1765 = vor.u32 %v1761, %v1764
      %v1766 = vrot.slane %v1765, 4
      %v1768 = vshll.u32 %v1535, 16
      %v1770 = vrot.slane %v1768, 5
      %v1771 = vsel %vm344, %v1766, %v1770
      %v1772 = vshrl.u32 %v1535, 16
      %v1774 = vrot.slane %v1772, 4
      %v1775 = vor.u32 %v1774, %v1770
      %v1776 = vrot.slane %v1775, 4
      %v1778 = vshll.u32 %v1558, 16
      %v1780 = vrot.slane %v1778, 5
      %v1781 = vsel %vm344, %v1776, %v1780
      %v1783 = vshrl.u32 %v1536, 16
      %v1785 = vrot.slane %v1783, 4
      %v1786 = vshll.u32 %v1536, 16
      %v1788 = vrot.slane %v1786, 5
      %v1789 = vor.u32 %v1785, %v1788
      %v1790 = vrot.slane %v1789, 4
      %v1792 = vshll.u32 %v1537, 16
      %v1794 = vrot.slane %v1792, 5
      %v1795 = vsel %vm344, %v1790, %v1794
      %v1796 = vshrl.u32 %v1537, 16
      %v1798 = vrot.slane %v1796, 4
      %v1799 = vor.u32 %v1798, %v1794
      %v1800 = vrot.slane %v1799, 4
      %v1802 = vshll.u32 %v1559, 16
      %v1804 = vrot.slane %v1802, 5
      %v1805 = vsel %vm344, %v1800, %v1804
      %v1807 = vshrl.u32 %v1538, 16
      %v1809 = vrot.slane %v1807, 4
      %v1810 = vshll.u32 %v1538, 16
      %v1812 = vrot.slane %v1810, 5
      %v1813 = vor.u32 %v1809, %v1812
      %v1814 = vrot.slane %v1813, 4
      %v1816 = vshll.u32 %v1539, 16
      %v1818 = vrot.slane %v1816, 5
      %v1819 = vsel %vm344, %v1814, %v1818
      %v1820 = vshrl.u32 %v1539, 16
      %v1822 = vrot.slane %v1820, 4
      %v1823 = vor.u32 %v1822, %v1818
      %v1824 = vrot.slane %v1823, 4
      %v1826 = vshll.u32 %v1560, 16
      %v1828 = vrot.slane %v1826, 5
      %v1829 = vsel %vm344, %v1824, %v1828
      %v1831 = vshrl.u32 %v1540, 16
      %v1833 = vrot.slane %v1831, 4
      %v1834 = vshll.u32 %v1540, 16
      %v1836 = vrot.slane %v1834, 5
      %v1837 = vor.u32 %v1833, %v1836
      %v1838 = vrot.slane %v1837, 4
      %v1840 = vshll.u32 %v1541, 16
      %v1842 = vrot.slane %v1840, 5
      %v1843 = vsel %vm344, %v1838, %v1842
      %v1844 = vshrl.u32 %v1541, 16
      %v1846 = vrot.slane %v1844, 4
      %v1847 = vor.u32 %v1846, %v1842
      %v1848 = vrot.slane %v1847, 4
      %v1850 = vshll.u32 %v1561, 16
      %v1852 = vrot.slane %v1850, 5
      %v1853 = vsel %vm344, %v1848, %v1852
      %v1855 = vshrl.u32 %v1542, 16
      %v1857 = vrot.slane %v1855, 4
      %v1858 = vshll.u32 %v1542, 16
      %v1860 = vrot.slane %v1858, 5
      %v1861 = vor.u32 %v1857, %v1860
      %v1862 = vrot.slane %v1861, 4
      %v1864 = vshll.u32 %v1543, 16
      %v1866 = vrot.slane %v1864, 5
      %v1867 = vsel %vm344, %v1862, %v1866
      %v1868 = vshrl.u32 %v1543, 16
      %v1870 = vrot.slane %v1868, 4
      %v1871 = vor.u32 %v1870, %v1866
      %v1872 = vrot.slane %v1871, 4
      %v1874 = vshll.u32 %v1562, 16
      %v1876 = vrot.slane %v1874, 5
      %v1877 = vsel %vm344, %v1872, %v1876
      %v1879 = vshrl.u32 %v1544, 16
      %v1881 = vrot.slane %v1879, 4
      %v1882 = vshll.u32 %v1544, 16
      %v1884 = vrot.slane %v1882, 5
      %v1885 = vor.u32 %v1881, %v1884
      %v1886 = vrot.slane %v1885, 4
      %v1888 = vshll.u32 %v1545, 16
      %v1890 = vrot.slane %v1888, 5
      %v1891 = vsel %vm344, %v1886, %v1890
      %v1892 = vshrl.u32 %v1545, 16
      %v1894 = vrot.slane %v1892, 4
      %v1895 = vor.u32 %v1894, %v1890
      %v1896 = vrot.slane %v1895, 4
      %v1898 = vshll.u32 %v1563, 16
      %v1900 = vrot.slane %v1898, 5
      %v1901 = vsel %vm344, %v1896, %v1900
      %v1903 = vshrl.u32 %v1546, 16
      %v1905 = vrot.slane %v1903, 4
      %v1906 = vshll.u32 %v1546, 16
      %v1908 = vrot.slane %v1906, 5
      %v1909 = vor.u32 %v1905, %v1908
      %v1910 = vrot.slane %v1909, 4
      %v1912 = vshll.u32 %v1547, 16
      %v1914 = vrot.slane %v1912, 5
      %v1915 = vsel %vm344, %v1910, %v1914
      %v1916 = vshrl.u32 %v1547, 16
      %v1918 = vrot.slane %v1916, 4
      %v1919 = vor.u32 %v1918, %v1914
      %v1920 = vrot.slane %v1919, 4
      %v1922 = vshll.u32 %v1564, 16
      %v1924 = vrot.slane %v1922, 5
      %v1925 = vsel %vm344, %v1920, %v1924
      %v1927 = vshrl.u32 %v1548, 16
      %v1929 = vrot.slane %v1927, 4
      %v1930 = vshll.u32 %v1548, 16
      %v1932 = vrot.slane %v1930, 5
      %v1933 = vor.u32 %v1929, %v1932
      %v1934 = vrot.slane %v1933, 4
      %v1936 = vshll.u32 %v1549, 16
      %v1938 = vrot.slane %v1936, 5
      %v1939 = vsel %vm344, %v1934, %v1938
      %v1940 = vshrl.u32 %v1549, 16
      %v1942 = vrot.slane %v1940, 4
      %v1943 = vor.u32 %v1942, %v1938
      %v1944 = vrot.slane %v1943, 4
      %v1946 = vshll.u32 %v1565, 16
      %v1948 = vrot.slane %v1946, 5
      %v1949 = vsel %vm344, %v1944, %v1948
      %v1950 = vld [vmem:[%s1517] sm:$0xe]
      %v1951 = vld [vmem:[%s1517 + $0xc] sm:$0xe]
      %v1952 = vld [vmem:[%s1517 + $0x18] sm:$0xe]
      %v1953 = vld [vmem:[%s1517 + $0x24] sm:$0xe]
      %v1954 = vld [vmem:[%s1517 + $0x30] sm:$0xe]
      %v1955 = vld [vmem:[%s1517 + $0x3c] sm:$0xe]
      %v1956 = vld [vmem:[%s1517 + $0x48] sm:$0xe]
      %v1957 = vld [vmem:[%s1517 + $0x54] sm:$0xe]
      %v1958 = vld [vmem:[%s1517 + $0x60] sm:$0xe]
      %v1959 = vld [vmem:[%s1517 + $0x6c] sm:$0xe]
      %v1960 = vld [vmem:[%s1517 + $0x78] sm:$0xe]
      %v1961 = vld [vmem:[%s1517 + $0x84] sm:$0xe]
      %v1962 = vld [vmem:[%s1517 + $0x90] sm:$0xe]
      %v1963 = vld [vmem:[%s1517 + $0x9c] sm:$0xe]
      %v1964 = vld [vmem:[%s1517 + $0xa8] sm:$0xe]
      %v1965 = vld [vmem:[%s1517 + $0xb4] sm:$0xe]
      %v2014 = vrot.slane %v1950, 5
      %v2015 = vrot.slane %v2014, 4
      %v2016 = vrot.slane %v1519, 5
      %v2017 = vsel %vm795, %v2015, %v2016
      %v2018 = vrot.slane %v2016, 4
      %v2019 = vrot.slane %v1550, 5
      %v2020 = vsel %vm795, %v2018, %v2019
      %v2021 = vrot.slane %v1951, 5
      %v2022 = vrot.slane %v2021, 4
      %v2023 = vrot.slane %v1521, 5
      %v2024 = vsel %vm795, %v2022, %v2023
      %v2025 = vrot.slane %v2023, 4
      %v2026 = vrot.slane %v1551, 5
      %v2027 = vsel %vm795, %v2025, %v2026
      %v2028 = vrot.slane %v1952, 5
      %v2029 = vrot.slane %v2028, 4
      %v2030 = vrot.slane %v1523, 5
      %v2031 = vsel %vm795, %v2029, %v2030
      %v2032 = vrot.slane %v2030, 4
      %v2033 = vrot.slane %v1552, 5
      %v2034 = vsel %vm795, %v2032, %v2033
      %v2035 = vrot.slane %v1953, 5
      %v2036 = vrot.slane %v2035, 4
      %v2037 = vrot.slane %v1525, 5
      %v2038 = vsel %vm795, %v2036, %v2037
      %v2039 = vrot.slane %v2037, 4
      %v2040 = vrot.slane %v1553, 5
      %v2041 = vsel %vm795, %v2039, %v2040
      %v2042 = vrot.slane %v1954, 5
      %v2043 = vrot.slane %v2042, 4
      %v2044 = vrot.slane %v1527, 5
      %v2045 = vsel %vm795, %v2043, %v2044
      %v2046 = vrot.slane %v2044, 4
      %v2047 = vrot.slane %v1554, 5
      %v2048 = vsel %vm795, %v2046, %v2047
      %v2049 = vrot.slane %v1955, 5
      %v2050 = vrot.slane %v2049, 4
      %v2051 = vrot.slane %v1529, 5
      %v2052 = vsel %vm795, %v2050, %v2051
      %v2053 = vrot.slane %v2051, 4
      %v2054 = vrot.slane %v1555, 5
      %v2055 = vsel %vm795, %v2053, %v2054
      %v2056 = vrot.slane %v1956, 5
      %v2057 = vrot.slane %v2056, 4
      %v2058 = vrot.slane %v1531, 5
      %v2059 = vsel %vm795, %v2057, %v2058
      %v2060 = vrot.slane %v2058, 4
      %v2061 = vrot.slane %v1556, 5
      %v2062 = vsel %vm795, %v2060, %v2061
      %v2063 = vrot.slane %v1957, 5
      %v2064 = vrot.slane %v2063, 4
      %v2065 = vrot.slane %v1533, 5
      %v2066 = vsel %vm795, %v2064, %v2065
      %v2067 = vrot.slane %v2065, 4
      %v2068 = vrot.slane %v1557, 5
      %v2069 = vsel %vm795, %v2067, %v2068
      %v2070 = vrot.slane %v1958, 5
      %v2071 = vrot.slane %v2070, 4
      %v2072 = vrot.slane %v1535, 5
      %v2073 = vsel %vm795, %v2071, %v2072
      %v2074 = vrot.slane %v2072, 4
      %v2075 = vrot.slane %v1558, 5
      %v2076 = vsel %vm795, %v2074, %v2075
      %v2077 = vrot.slane %v1959, 5
      %v2078 = vrot.slane %v2077, 4
      %v2079 = vrot.slane %v1537, 5
      %v2080 = vsel %vm795, %v2078, %v2079
      %v2081 = vrot.slane %v2079, 4
      %v2082 = vrot.slane %v1559, 5
      %v2083 = vsel %vm795, %v2081, %v2082
      %v2084 = vrot.slane %v1960, 5
      %v2085 = vrot.slane %v2084, 4
      %v2086 = vrot.slane %v1539, 5
      %v2087 = vsel %vm795, %v2085, %v2086
      %v2088 = vrot.slane %v2086, 4
      %v2089 = vrot.slane %v1560, 5
      %v2090 = vsel %vm795, %v2088, %v2089
      %v2091 = vrot.slane %v1961, 5
      %v2092 = vrot.slane %v2091, 4
      %v2093 = vrot.slane %v1541, 5
      %v2094 = vsel %vm795, %v2092, %v2093
      %v2095 = vrot.slane %v2093, 4
      %v2096 = vrot.slane %v1561, 5
      %v2097 = vsel %vm795, %v2095, %v2096
      %v2098 = vrot.slane %v1962, 5
      %v2099 = vrot.slane %v2098, 4
      %v2100 = vrot.slane %v1543, 5
      %v2101 = vsel %vm795, %v2099, %v2100
      %v2102 = vrot.slane %v2100, 4
      %v2103 = vrot.slane %v1562, 5
      %v2104 = vsel %vm795, %v2102, %v2103
      %v2105 = vrot.slane %v1963, 5
      %v2106 = vrot.slane %v2105, 4
      %v2107 = vrot.slane %v1545, 5
      %v2108 = vsel %vm795, %v2106, %v2107
      %v2109 = vrot.slane %v2107, 4
      %v2110 = vrot.slane %v1563, 5
      %v2111 = vsel %vm795, %v2109, %v2110
      %v2112 = vrot.slane %v1964, 5
      %v2113 = vrot.slane %v2112, 4
      %v2114 = vrot.slane %v1547, 5
      %v2115 = vsel %vm795, %v2113, %v2114
      %v2116 = vrot.slane %v2114, 4
      %v2117 = vrot.slane %v1564, 5
      %v2118 = vsel %vm795, %v2116, %v2117
      %v2119 = vrot.slane %v1965, 5
      %v2120 = vrot.slane %v2119, 4
      %v2121 = vrot.slane %v1549, 5
      %v2122 = vsel %vm795, %v2120, %v2121
      %v2123 = vrot.slane %v2121, 4
      %v2124 = vrot.slane %v1565, 5
      %v2125 = vsel %vm795, %v2123, %v2124
      %v2142 = vunpack.c.l.b16 %v294
      %v2143 = vunpack.c.l.b16 %v295
      %v2144 = vunpack.c.l.b16 %v296
      %v2145 = vunpack.c.l.b16 %v297
      %v2146 = vunpack.c.l.b16 %v298
      %v2147 = vunpack.c.l.b16 %v299
      %v2148 = vunpack.c.l.b16 %v300
      %v2149 = vunpack.c.l.b16 %v301
      %v2150 = vunpack.c.l.b16 %v302
      %v2151 = vunpack.c.l.b16 %v303
      %v2152 = vunpack.c.l.b16 %v304
      %v2153 = vunpack.c.l.b16 %v305
      %v2154 = vunpack.c.l.b16 %v306
      %v2155 = vunpack.c.l.b16 %v307
      %v2156 = vunpack.c.l.b16 %v308
      %v2157 = vunpack.c.l.b16 %v309
      %v2158 = vunpack.c.l.b16 %v310
      %v2159 = vunpack.c.l.b16 %v311
      %v2160 = vunpack.c.l.b16 %v312
      %v2161 = vunpack.c.l.b16 %v313
      %v2162 = vunpack.c.l.b16 %v314
      %v2163 = vunpack.c.l.b16 %v315
      %v2164 = vunpack.c.l.b16 %v316
      %v2165 = vunpack.c.l.b16 %v317
      %v2166 = vunpack.c.l.b16 %v318
      %v2167 = vunpack.c.l.b16 %v319
      %v2168 = vunpack.c.l.b16 %v320
      %v2169 = vunpack.c.l.b16 %v321
      %v2170 = vunpack.c.l.b16 %v322
      %v2171 = vunpack.c.l.b16 %v323
      %v2172 = vunpack.c.l.b16 %v324
      %v2173 = vunpack.c.l.b16 %v325
      %v2174 = vpack.c.b16 %v2143, %v2142
      %v2175 = vpack.c.b16 %v2145, %v2144
      %v2176 = vpack.c.b16 %v2147, %v2146
      %v2177 = vpack.c.b16 %v2149, %v2148
      %v2178 = vpack.c.b16 %v2151, %v2150
      %v2179 = vpack.c.b16 %v2153, %v2152
      %v2180 = vpack.c.b16 %v2155, %v2154
      %v2181 = vpack.c.b16 %v2157, %v2156
      %v2182 = vpack.c.b16 %v2159, %v2158
      %v2183 = vpack.c.b16 %v2161, %v2160
      %v2184 = vpack.c.b16 %v2163, %v2162
      %v2185 = vpack.c.b16 %v2165, %v2164
      %v2186 = vpack.c.b16 %v2167, %v2166
      %v2187 = vpack.c.b16 %v2169, %v2168
      %v2188 = vpack.c.b16 %v2171, %v2170
      %v2189 = vpack.c.b16 %v2173, %v2172
      %v2190 = vunpack.c.l.b16 %v358
      %v2191 = vunpack.c.l.b16 %v368
      %v2192 = vunpack.c.l.b16 %v382
      %v2193 = vunpack.c.l.b16 %v392
      %v2194 = vunpack.c.l.b16 %v406
      %v2195 = vunpack.c.l.b16 %v416
      %v2196 = vunpack.c.l.b16 %v430
      %v2197 = vunpack.c.l.b16 %v440
      %v2198 = vunpack.c.l.b16 %v454
      %v2199 = vunpack.c.l.b16 %v464
      %v2200 = vunpack.c.l.b16 %v478
      %v2201 = vunpack.c.l.b16 %v488
      %v2202 = vunpack.c.l.b16 %v502
      %v2203 = vunpack.c.l.b16 %v512
      %v2204 = vunpack.c.l.b16 %v526
      %v2205 = vunpack.c.l.b16 %v536
      %v2206 = vunpack.c.l.b16 %v550
      %v2207 = vunpack.c.l.b16 %v560
      %v2208 = vunpack.c.l.b16 %v574
      %v2209 = vunpack.c.l.b16 %v584
      %v2210 = vunpack.c.l.b16 %v598
      %v2211 = vunpack.c.l.b16 %v608
      %v2212 = vunpack.c.l.b16 %v622
      %v2213 = vunpack.c.l.b16 %v632
      %v2214 = vunpack.c.l.b16 %v646
      %v2215 = vunpack.c.l.b16 %v656
      %v2216 = vunpack.c.l.b16 %v670
      %v2217 = vunpack.c.l.b16 %v680
      %v2218 = vunpack.c.l.b16 %v694
      %v2219 = vunpack.c.l.b16 %v704
      %v2220 = vunpack.c.l.b16 %v718
      %v2221 = vunpack.c.l.b16 %v728
      %v2222 = vpack.c.b16 %v2191, %v2190
      %v2223 = vpack.c.b16 %v2193, %v2192
      %v2224 = vpack.c.b16 %v2195, %v2194
      %v2225 = vpack.c.b16 %v2197, %v2196
      %v2226 = vpack.c.b16 %v2199, %v2198
      %v2227 = vpack.c.b16 %v2201, %v2200
      %v2228 = vpack.c.b16 %v2203, %v2202
      %v2229 = vpack.c.b16 %v2205, %v2204
      %v2230 = vpack.c.b16 %v2207, %v2206
      %v2231 = vpack.c.b16 %v2209, %v2208
      %v2232 = vpack.c.b16 %v2211, %v2210
      %v2233 = vpack.c.b16 %v2213, %v2212
      %v2234 = vpack.c.b16 %v2215, %v2214
      %v2235 = vpack.c.b16 %v2217, %v2216
      %v2236 = vpack.c.b16 %v2219, %v2218
      %v2237 = vpack.c.b16 %v2221, %v2220
      %2238 = vrot.lane.b32.xlu0 %v2222, 8
      %v2239 = vpop.permute.xlu0 %2238
      %2240 = vrot.lane.b32.xlu0 %v2223, 8
      %v2241 = vpop.permute.xlu0 %2240
      %2242 = vrot.lane.b32.xlu0 %v2224, 8
      %v2243 = vpop.permute.xlu0 %2242
      %2244 = vrot.lane.b32.xlu0 %v2225, 8
      %v2245 = vpop.permute.xlu0 %2244
      %2246 = vrot.lane.b32.xlu0 %v2226, 8
      %v2247 = vpop.permute.xlu0 %2246
      %2248 = vrot.lane.b32.xlu0 %v2227, 8
      %v2249 = vpop.permute.xlu0 %2248
      %2250 = vrot.lane.b32.xlu0 %v2228, 8
      %v2251 = vpop.permute.xlu0 %2250
      %2252 = vrot.lane.b32.xlu0 %v2229, 8
      %v2253 = vpop.permute.xlu0 %2252
      %2254 = vrot.lane.b32.xlu0 %v2230, 8
      %v2255 = vpop.permute.xlu0 %2254
      %2256 = vrot.lane.b32.xlu0 %v2231, 8
      %v2257 = vpop.permute.xlu0 %2256
      %2258 = vrot.lane.b32.xlu0 %v2232, 8
      %v2259 = vpop.permute.xlu0 %2258
      %2260 = vrot.lane.b32.xlu0 %v2233, 8
      %v2261 = vpop.permute.xlu0 %2260
      %2262 = vrot.lane.b32.xlu0 %v2234, 8
      %v2263 = vpop.permute.xlu0 %2262
      %2264 = vrot.lane.b32.xlu0 %v2235, 8
      %v2265 = vpop.permute.xlu0 %2264
      %2266 = vrot.lane.b32.xlu0 %v2236, 8
      %v2267 = vpop.permute.xlu0 %2266
      %2268 = vrot.lane.b32.xlu0 %v2237, 8
      %v2269 = vpop.permute.xlu0 %2268
      %v2270 = vunpack.c.l.b16 %v799
      %v2271 = vunpack.c.l.b16 %v802
      %v2272 = vunpack.c.l.b16 %v806
      %v2273 = vunpack.c.l.b16 %v809
      %v2274 = vunpack.c.l.b16 %v813
      %v2275 = vunpack.c.l.b16 %v816
      %v2276 = vunpack.c.l.b16 %v820
      %v2277 = vunpack.c.l.b16 %v823
      %v2278 = vunpack.c.l.b16 %v827
      %v2279 = vunpack.c.l.b16 %v830
      %v2280 = vunpack.c.l.b16 %v834
      %v2281 = vunpack.c.l.b16 %v837
      %v2282 = vunpack.c.l.b16 %v841
      %v2283 = vunpack.c.l.b16 %v844
      %v2284 = vunpack.c.l.b16 %v848
      %v2285 = vunpack.c.l.b16 %v851
      %v2286 = vunpack.c.l.b16 %v855
      %v2287 = vunpack.c.l.b16 %v858
      %v2288 = vunpack.c.l.b16 %v862
      %v2289 = vunpack.c.l.b16 %v865
      %v2290 = vunpack.c.l.b16 %v869
      %v2291 = vunpack.c.l.b16 %v872
      %v2292 = vunpack.c.l.b16 %v876
      %v2293 = vunpack.c.l.b16 %v879
      %v2294 = vunpack.c.l.b16 %v883
      %v2295 = vunpack.c.l.b16 %v886
      %v2296 = vunpack.c.l.b16 %v890
      %v2297 = vunpack.c.l.b16 %v893
      %v2298 = vunpack.c.l.b16 %v897
      %v2299 = vunpack.c.l.b16 %v900
      %v2300 = vunpack.c.l.b16 %v904
      %v2301 = vunpack.c.l.b16 %v907
      %v2302 = vpack.c.b16 %v2271, %v2270
      %v2303 = vpack.c.b16 %v2273, %v2272
      %v2304 = vpack.c.b16 %v2275, %v2274
      %v2305 = vpack.c.b16 %v2277, %v2276
      %v2306 = vpack.c.b16 %v2279, %v2278
      %v2307 = vpack.c.b16 %v2281, %v2280
      %v2308 = vpack.c.b16 %v2283, %v2282
      %v2309 = vpack.c.b16 %v2285, %v2284
      %v2310 = vpack.c.b16 %v2287, %v2286
      %v2311 = vpack.c.b16 %v2289, %v2288
      %v2312 = vpack.c.b16 %v2291, %v2290
      %v2313 = vpack.c.b16 %v2293, %v2292
      %v2314 = vpack.c.b16 %v2295, %v2294
      %v2315 = vpack.c.b16 %v2297, %v2296
      %v2316 = vpack.c.b16 %v2299, %v2298
      %v2317 = vpack.c.b16 %v2301, %v2300
      %2318 = vrot.lane.b32.xlu0 %v2302, 16
      %v2319 = vpop.permute.xlu0 %2318
      %2320 = vrot.lane.b32.xlu0 %v2303, 16
      %v2321 = vpop.permute.xlu0 %2320
      %2322 = vrot.lane.b32.xlu0 %v2304, 16
      %v2323 = vpop.permute.xlu0 %2322
      %2324 = vrot.lane.b32.xlu0 %v2305, 16
      %v2325 = vpop.permute.xlu0 %2324
      %2326 = vrot.lane.b32.xlu0 %v2306, 16
      %v2327 = vpop.permute.xlu0 %2326
      %2328 = vrot.lane.b32.xlu0 %v2307, 16
      %v2329 = vpop.permute.xlu0 %2328
      %2330 = vrot.lane.b32.xlu0 %v2308, 16
      %v2331 = vpop.permute.xlu0 %2330
      %2332 = vrot.lane.b32.xlu0 %v2309, 16
      %v2333 = vpop.permute.xlu0 %2332
      %2334 = vrot.lane.b32.xlu0 %v2310, 16
      %v2335 = vpop.permute.xlu0 %2334
      %2336 = vrot.lane.b32.xlu0 %v2311, 16
      %v2337 = vpop.permute.xlu0 %2336
      %2338 = vrot.lane.b32.xlu0 %v2312, 16
      %v2339 = vpop.permute.xlu0 %2338
      %2340 = vrot.lane.b32.xlu0 %v2313, 16
      %v2341 = vpop.permute.xlu0 %2340
      %2342 = vrot.lane.b32.xlu0 %v2314, 16
      %v2343 = vpop.permute.xlu0 %2342
      %2344 = vrot.lane.b32.xlu0 %v2315, 16
      %v2345 = vpop.permute.xlu0 %2344
      %2346 = vrot.lane.b32.xlu0 %v2316, 16
      %v2347 = vpop.permute.xlu0 %2346
      %2348 = vrot.lane.b32.xlu0 %v2317, 16
      %v2349 = vpop.permute.xlu0 %2348
      %v2366 = vunpack.c.l.b16 %v909
      %v2367 = vunpack.c.l.b16 %v910
      %v2368 = vunpack.c.l.b16 %v911
      %v2369 = vunpack.c.l.b16 %v912
      %v2370 = vunpack.c.l.b16 %v913
      %v2371 = vunpack.c.l.b16 %v914
      %v2372 = vunpack.c.l.b16 %v915
      %v2373 = vunpack.c.l.b16 %v916
      %v2374 = vunpack.c.l.b16 %v917
      %v2375 = vunpack.c.l.b16 %v918
      %v2376 = vunpack.c.l.b16 %v919
      %v2377 = vunpack.c.l.b16 %v920
      %v2378 = vunpack.c.l.b16 %v921
      %v2379 = vunpack.c.l.b16 %v922
      %v2380 = vunpack.c.l.b16 %v923
      %v2381 = vunpack.c.l.b16 %v924
      %v2382 = vunpack.c.l.b16 %v925
      %v2383 = vunpack.c.l.b16 %v926
      %v2384 = vunpack.c.l.b16 %v927
      %v2385 = vunpack.c.l.b16 %v928
      %v2386 = vunpack.c.l.b16 %v929
      %v2387 = vunpack.c.l.b16 %v930
      %v2388 = vunpack.c.l.b16 %v931
      %v2389 = vunpack.c.l.b16 %v932
      %v2390 = vunpack.c.l.b16 %v933
      %v2391 = vunpack.c.l.b16 %v934
      %v2392 = vunpack.c.l.b16 %v935
      %v2393 = vunpack.c.l.b16 %v936
      %v2394 = vunpack.c.l.b16 %v937
      %v2395 = vunpack.c.l.b16 %v938
      %v2396 = vunpack.c.l.b16 %v939
      %v2397 = vunpack.c.l.b16 %v940
      %v2398 = vpack.c.b16 %v2367, %v2366
      %v2399 = vpack.c.b16 %v2369, %v2368
      %v2400 = vpack.c.b16 %v2371, %v2370
      %v2401 = vpack.c.b16 %v2373, %v2372
      %v2402 = vpack.c.b16 %v2375, %v2374
      %v2403 = vpack.c.b16 %v2377, %v2376
      %v2404 = vpack.c.b16 %v2379, %v2378
      %v2405 = vpack.c.b16 %v2381, %v2380
      %v2406 = vpack.c.b16 %v2383, %v2382
      %v2407 = vpack.c.b16 %v2385, %v2384
      %v2408 = vpack.c.b16 %v2387, %v2386
      %v2409 = vpack.c.b16 %v2389, %v2388
      %v2410 = vpack.c.b16 %v2391, %v2390
      %v2411 = vpack.c.b16 %v2393, %v2392
      %v2412 = vpack.c.b16 %v2395, %v2394
      %v2413 = vpack.c.b16 %v2397, %v2396
      %2414 = vrot.lane.b32.xlu0 %v2398, 24
      %v2415 = vpop.permute.xlu0 %2414
      %2416 = vrot.lane.b32.xlu0 %v2399, 24
      %v2417 = vpop.permute.xlu0 %2416
      %2418 = vrot.lane.b32.xlu0 %v2400, 24
      %v2419 = vpop.permute.xlu0 %2418
      %2420 = vrot.lane.b32.xlu0 %v2401, 24
      %v2421 = vpop.permute.xlu0 %2420
      %2422 = vrot.lane.b32.xlu0 %v2402, 24
      %v2423 = vpop.permute.xlu0 %2422
      %2424 = vrot.lane.b32.xlu0 %v2403, 24
      %v2425 = vpop.permute.xlu0 %2424
      %2426 = vrot.lane.b32.xlu0 %v2404, 24
      %v2427 = vpop.permute.xlu0 %2426
      %2428 = vrot.lane.b32.xlu0 %v2405, 24
      %v2429 = vpop.permute.xlu0 %2428
      %2430 = vrot.lane.b32.xlu0 %v2406, 24
      %v2431 = vpop.permute.xlu0 %2430
      %2432 = vrot.lane.b32.xlu0 %v2407, 24
      %v2433 = vpop.permute.xlu0 %2432
      %2434 = vrot.lane.b32.xlu0 %v2408, 24
      %v2435 = vpop.permute.xlu0 %2434
      %2436 = vrot.lane.b32.xlu0 %v2409, 24
      %v2437 = vpop.permute.xlu0 %2436
      %2438 = vrot.lane.b32.xlu0 %v2410, 24
      %v2439 = vpop.permute.xlu0 %2438
      %2440 = vrot.lane.b32.xlu0 %v2411, 24
      %v2441 = vpop.permute.xlu0 %2440
      %2442 = vrot.lane.b32.xlu0 %v2412, 24
      %v2443 = vpop.permute.xlu0 %2442
      %2444 = vrot.lane.b32.xlu0 %v2413, 24
      %v2445 = vpop.permute.xlu0 %2444
      %v2446 = vunpack.c.l.b16 %v970
      %v2447 = vunpack.c.l.b16 %v980
      %v2448 = vunpack.c.l.b16 %v994
      %v2449 = vunpack.c.l.b16 %v1004
      %v2450 = vunpack.c.l.b16 %v1018
      %v2451 = vunpack.c.l.b16 %v1028
      %v2452 = vunpack.c.l.b16 %v1042
      %v2453 = vunpack.c.l.b16 %v1052
      %v2454 = vunpack.c.l.b16 %v1066
      %v2455 = vunpack.c.l.b16 %v1076
      %v2456 = vunpack.c.l.b16 %v1090
      %v2457 = vunpack.c.l.b16 %v1100
      %v2458 = vunpack.c.l.b16 %v1114
      %v2459 = vunpack.c.l.b16 %v1124
      %v2460 = vunpack.c.l.b16 %v1138
      %v2461 = vunpack.c.l.b16 %v1148
      %v2462 = vunpack.c.l.b16 %v1162
      %v2463 = vunpack.c.l.b16 %v1172
      %v2464 = vunpack.c.l.b16 %v1186
      %v2465 = vunpack.c.l.b16 %v1196
      %v2466 = vunpack.c.l.b16 %v1210
      %v2467 = vunpack.c.l.b16 %v1220
      %v2468 = vunpack.c.l.b16 %v1234
      %v2469 = vunpack.c.l.b16 %v1244
      %v2470 = vunpack.c.l.b16 %v1258
      %v2471 = vunpack.c.l.b16 %v1268
      %v2472 = vunpack.c.l.b16 %v1282
      %v2473 = vunpack.c.l.b16 %v1292
      %v2474 = vunpack.c.l.b16 %v1306
      %v2475 = vunpack.c.l.b16 %v1316
      %v2476 = vunpack.c.l.b16 %v1330
      %v2477 = vunpack.c.l.b16 %v1340
      %v2478 = vpack.c.b16 %v2447, %v2446
      %v2479 = vpack.c.b16 %v2449, %v2448
      %v2480 = vpack.c.b16 %v2451, %v2450
      %v2481 = vpack.c.b16 %v2453, %v2452
      %v2482 = vpack.c.b16 %v2455, %v2454
      %v2483 = vpack.c.b16 %v2457, %v2456
      %v2484 = vpack.c.b16 %v2459, %v2458
      %v2485 = vpack.c.b16 %v2461, %v2460
      %v2486 = vpack.c.b16 %v2463, %v2462
      %v2487 = vpack.c.b16 %v2465, %v2464
      %v2488 = vpack.c.b16 %v2467, %v2466
      %v2489 = vpack.c.b16 %v2469, %v2468
      %v2490 = vpack.c.b16 %v2471, %v2470
      %v2491 = vpack.c.b16 %v2473, %v2472
      %v2492 = vpack.c.b16 %v2475, %v2474
      %v2493 = vpack.c.b16 %v2477, %v2476
      %2494 = vrot.lane.b32.xlu0 %v2478, 32
      %v2495 = vpop.permute.xlu0 %2494
      %2496 = vrot.lane.b32.xlu0 %v2479, 32
      %v2497 = vpop.permute.xlu0 %2496
      %2498 = vrot.lane.b32.xlu0 %v2480, 32
      %v2499 = vpop.permute.xlu0 %2498
      %2500 = vrot.lane.b32.xlu0 %v2481, 32
      %v2501 = vpop.permute.xlu0 %2500
      %2502 = vrot.lane.b32.xlu0 %v2482, 32
      %v2503 = vpop.permute.xlu0 %2502
      %2504 = vrot.lane.b32.xlu0 %v2483, 32
      %v2505 = vpop.permute.xlu0 %2504
      %2506 = vrot.lane.b32.xlu0 %v2484, 32
      %v2507 = vpop.permute.xlu0 %2506
      %2508 = vrot.lane.b32.xlu0 %v2485, 32
      %v2509 = vpop.permute.xlu0 %2508
      %2510 = vrot.lane.b32.xlu0 %v2486, 32
      %v2511 = vpop.permute.xlu0 %2510
      %2512 = vrot.lane.b32.xlu0 %v2487, 32
      %v2513 = vpop.permute.xlu0 %2512
      %2514 = vrot.lane.b32.xlu0 %v2488, 32
      %v2515 = vpop.permute.xlu0 %2514
      %2516 = vrot.lane.b32.xlu0 %v2489, 32
      %v2517 = vpop.permute.xlu0 %2516
      %2518 = vrot.lane.b32.xlu0 %v2490, 32
      %v2519 = vpop.permute.xlu0 %2518
      %2520 = vrot.lane.b32.xlu0 %v2491, 32
      %v2521 = vpop.permute.xlu0 %2520
      %2522 = vrot.lane.b32.xlu0 %v2492, 32
      %v2523 = vpop.permute.xlu0 %2522
      %2524 = vrot.lane.b32.xlu0 %v2493, 32
      %v2525 = vpop.permute.xlu0 %2524
      %v2526 = vunpack.c.l.b16 %v1408
      %v2527 = vunpack.c.l.b16 %v1411
      %v2528 = vunpack.c.l.b16 %v1415
      %v2529 = vunpack.c.l.b16 %v1418
      %v2530 = vunpack.c.l.b16 %v1422
      %v2531 = vunpack.c.l.b16 %v1425
      %v2532 = vunpack.c.l.b16 %v1429
      %v2533 = vunpack.c.l.b16 %v1432
      %v2534 = vunpack.c.l.b16 %v1436
      %v2535 = vunpack.c.l.b16 %v1439
      %v2536 = vunpack.c.l.b16 %v1443
      %v2537 = vunpack.c.l.b16 %v1446
      %v2538 = vunpack.c.l.b16 %v1450
      %v2539 = vunpack.c.l.b16 %v1453
      %v2540 = vunpack.c.l.b16 %v1457
      %v2541 = vunpack.c.l.b16 %v1460
      %v2542 = vunpack.c.l.b16 %v1464
      %v2543 = vunpack.c.l.b16 %v1467
      %v2544 = vunpack.c.l.b16 %v1471
      %v2545 = vunpack.c.l.b16 %v1474
      %v2546 = vunpack.c.l.b16 %v1478
      %v2547 = vunpack.c.l.b16 %v1481
      %v2548 = vunpack.c.l.b16 %v1485
      %v2549 = vunpack.c.l.b16 %v1488
      %v2550 = vunpack.c.l.b16 %v1492
      %v2551 = vunpack.c.l.b16 %v1495
      %v2552 = vunpack.c.l.b16 %v1499
      %v2553 = vunpack.c.l.b16 %v1502
      %v2554 = vunpack.c.l.b16 %v1506
      %v2555 = vunpack.c.l.b16 %v1509
      %v2556 = vunpack.c.l.b16 %v1513
      %v2557 = vunpack.c.l.b16 %v1516
      %v2558 = vpack.c.b16 %v2527, %v2526
      %v2559 = vpack.c.b16 %v2529, %v2528
      %v2560 = vpack.c.b16 %v2531, %v2530
      %v2561 = vpack.c.b16 %v2533, %v2532
      %v2562 = vpack.c.b16 %v2535, %v2534
      %v2563 = vpack.c.b16 %v2537, %v2536
      %v2564 = vpack.c.b16 %v2539, %v2538
      %v2565 = vpack.c.b16 %v2541, %v2540
      %v2566 = vpack.c.b16 %v2543, %v2542
      %v2567 = vpack.c.b16 %v2545, %v2544
      %v2568 = vpack.c.b16 %v2547, %v2546
      %v2569 = vpack.c.b16 %v2549, %v2548
      %v2570 = vpack.c.b16 %v2551, %v2550
      %v2571 = vpack.c.b16 %v2553, %v2552
      %v2572 = vpack.c.b16 %v2555, %v2554
      %v2573 = vpack.c.b16 %v2557, %v2556
      %2574 = vrot.lane.b32.xlu0 %v2558, 40
      %v2575 = vpop.permute.xlu0 %2574
      %2576 = vrot.lane.b32.xlu0 %v2559, 40
      %v2577 = vpop.permute.xlu0 %2576
      %2578 = vrot.lane.b32.xlu0 %v2560, 40
      %v2579 = vpop.permute.xlu0 %2578
      %2580 = vrot.lane.b32.xlu0 %v2561, 40
      %v2581 = vpop.permute.xlu0 %2580
      %2582 = vrot.lane.b32.xlu0 %v2562, 40
      %v2583 = vpop.permute.xlu0 %2582
      %2584 = vrot.lane.b32.xlu0 %v2563, 40
      %v2585 = vpop.permute.xlu0 %2584
      %2586 = vrot.lane.b32.xlu0 %v2564, 40
      %v2587 = vpop.permute.xlu0 %2586
      %2588 = vrot.lane.b32.xlu0 %v2565, 40
      %v2589 = vpop.permute.xlu0 %2588
      %2590 = vrot.lane.b32.xlu0 %v2566, 40
      %v2591 = vpop.permute.xlu0 %2590
      %2592 = vrot.lane.b32.xlu0 %v2567, 40
      %v2593 = vpop.permute.xlu0 %2592
      %2594 = vrot.lane.b32.xlu0 %v2568, 40
      %v2595 = vpop.permute.xlu0 %2594
      %2596 = vrot.lane.b32.xlu0 %v2569, 40
      %v2597 = vpop.permute.xlu0 %2596
      %2598 = vrot.lane.b32.xlu0 %v2570, 40
      %v2599 = vpop.permute.xlu0 %2598
      %2600 = vrot.lane.b32.xlu0 %v2571, 40
      %v2601 = vpop.permute.xlu0 %2600
      %2602 = vrot.lane.b32.xlu0 %v2572, 40
      %v2603 = vpop.permute.xlu0 %2602
      %2604 = vrot.lane.b32.xlu0 %v2573, 40
      %v2605 = vpop.permute.xlu0 %2604
      %v2622 = vunpack.c.l.b16 %v1518
      %v2623 = vunpack.c.l.b16 %v1519
      %v2624 = vunpack.c.l.b16 %v1520
      %v2625 = vunpack.c.l.b16 %v1521
      %v2626 = vunpack.c.l.b16 %v1522
      %v2627 = vunpack.c.l.b16 %v1523
      %v2628 = vunpack.c.l.b16 %v1524
      %v2629 = vunpack.c.l.b16 %v1525
      %v2630 = vunpack.c.l.b16 %v1526
      %v2631 = vunpack.c.l.b16 %v1527
      %v2632 = vunpack.c.l.b16 %v1528
      %v2633 = vunpack.c.l.b16 %v1529
      %v2634 = vunpack.c.l.b16 %v1530
      %v2635 = vunpack.c.l.b16 %v1531
      %v2636 = vunpack.c.l.b16 %v1532
      %v2637 = vunpack.c.l.b16 %v1533
      %v2638 = vunpack.c.l.b16 %v1534
      %v2639 = vunpack.c.l.b16 %v1535
      %v2640 = vunpack.c.l.b16 %v1536
      %v2641 = vunpack.c.l.b16 %v1537
      %v2642 = vunpack.c.l.b16 %v1538
      %v2643 = vunpack.c.l.b16 %v1539
      %v2644 = vunpack.c.l.b16 %v1540
      %v2645 = vunpack.c.l.b16 %v1541
      %v2646 = vunpack.c.l.b16 %v1542
      %v2647 = vunpack.c.l.b16 %v1543
      %v2648 = vunpack.c.l.b16 %v1544
      %v2649 = vunpack.c.l.b16 %v1545
      %v2650 = vunpack.c.l.b16 %v1546
      %v2651 = vunpack.c.l.b16 %v1547
      %v2652 = vunpack.c.l.b16 %v1548
      %v2653 = vunpack.c.l.b16 %v1549
      %v2654 = vpack.c.b16 %v2623, %v2622
      %v2655 = vpack.c.b16 %v2625, %v2624
      %v2656 = vpack.c.b16 %v2627, %v2626
      %v2657 = vpack.c.b16 %v2629, %v2628
      %v2658 = vpack.c.b16 %v2631, %v2630
      %v2659 = vpack.c.b16 %v2633, %v2632
      %v2660 = vpack.c.b16 %v2635, %v2634
      %v2661 = vpack.c.b16 %v2637, %v2636
      %v2662 = vpack.c.b16 %v2639, %v2638
      %v2663 = vpack.c.b16 %v2641, %v2640
      %v2664 = vpack.c.b16 %v2643, %v2642
      %v2665 = vpack.c.b16 %v2645, %v2644
      %v2666 = vpack.c.b16 %v2647, %v2646
      %v2667 = vpack.c.b16 %v2649, %v2648
      %v2668 = vpack.c.b16 %v2651, %v2650
      %v2669 = vpack.c.b16 %v2653, %v2652
      %2670 = vrot.lane.b32.xlu0 %v2654, 48
      %v2671 = vpop.permute.xlu0 %2670
      %2672 = vrot.lane.b32.xlu0 %v2655, 48
      %v2673 = vpop.permute.xlu0 %2672
      %2674 = vrot.lane.b32.xlu0 %v2656, 48
      %v2675 = vpop.permute.xlu0 %2674
      %2676 = vrot.lane.b32.xlu0 %v2657, 48
      %v2677 = vpop.permute.xlu0 %2676
      %2678 = vrot.lane.b32.xlu0 %v2658, 48
      %v2679 = vpop.permute.xlu0 %2678
      %2680 = vrot.lane.b32.xlu0 %v2659, 48
      %v2681 = vpop.permute.xlu0 %2680
      %2682 = vrot.lane.b32.xlu0 %v2660, 48
      %v2683 = vpop.permute.xlu0 %2682
      %2684 = vrot.lane.b32.xlu0 %v2661, 48
      %v2685 = vpop.permute.xlu0 %2684
      %2686 = vrot.lane.b32.xlu0 %v2662, 48
      %v2687 = vpop.permute.xlu0 %2686
      %2688 = vrot.lane.b32.xlu0 %v2663, 48
      %v2689 = vpop.permute.xlu0 %2688
      %2690 = vrot.lane.b32.xlu0 %v2664, 48
      %v2691 = vpop.permute.xlu0 %2690
      %2692 = vrot.lane.b32.xlu0 %v2665, 48
      %v2693 = vpop.permute.xlu0 %2692
      %2694 = vrot.lane.b32.xlu0 %v2666, 48
      %v2695 = vpop.permute.xlu0 %2694
      %2696 = vrot.lane.b32.xlu0 %v2667, 48
      %v2697 = vpop.permute.xlu0 %2696
      %2698 = vrot.lane.b32.xlu0 %v2668, 48
      %v2699 = vpop.permute.xlu0 %2698
      %2700 = vrot.lane.b32.xlu0 %v2669, 48
      %v2701 = vpop.permute.xlu0 %2700
      %v2702 = vunpack.c.l.b16 %v1579
      %v2703 = vunpack.c.l.b16 %v1589
      %v2704 = vunpack.c.l.b16 %v1603
      %v2705 = vunpack.c.l.b16 %v1613
      %v2706 = vunpack.c.l.b16 %v1627
      %v2707 = vunpack.c.l.b16 %v1637
      %v2708 = vunpack.c.l.b16 %v1651
      %v2709 = vunpack.c.l.b16 %v1661
      %v2710 = vunpack.c.l.b16 %v1675
      %v2711 = vunpack.c.l.b16 %v1685
      %v2712 = vunpack.c.l.b16 %v1699
      %v2713 = vunpack.c.l.b16 %v1709
      %v2714 = vunpack.c.l.b16 %v1723
      %v2715 = vunpack.c.l.b16 %v1733
      %v2716 = vunpack.c.l.b16 %v1747
      %v2717 = vunpack.c.l.b16 %v1757
      %v2718 = vunpack.c.l.b16 %v1771
      %v2719 = vunpack.c.l.b16 %v1781
      %v2720 = vunpack.c.l.b16 %v1795
      %v2721 = vunpack.c.l.b16 %v1805
      %v2722 = vunpack.c.l.b16 %v1819
      %v2723 = vunpack.c.l.b16 %v1829
      %v2724 = vunpack.c.l.b16 %v1843
      %v2725 = vunpack.c.l.b16 %v1853
      %v2726 = vunpack.c.l.b16 %v1867
      %v2727 = vunpack.c.l.b16 %v1877
      %v2728 = vunpack.c.l.b16 %v1891
      %v2729 = vunpack.c.l.b16 %v1901
      %v2730 = vunpack.c.l.b16 %v1915
      %v2731 = vunpack.c.l.b16 %v1925
      %v2732 = vunpack.c.l.b16 %v1939
      %v2733 = vunpack.c.l.b16 %v1949
      %v2734 = vpack.c.b16 %v2703, %v2702
      %v2735 = vpack.c.b16 %v2705, %v2704
      %v2736 = vpack.c.b16 %v2707, %v2706
      %v2737 = vpack.c.b16 %v2709, %v2708
      %v2738 = vpack.c.b16 %v2711, %v2710
      %v2739 = vpack.c.b16 %v2713, %v2712
      %v2740 = vpack.c.b16 %v2715, %v2714
      %v2741 = vpack.c.b16 %v2717, %v2716
      %v2742 = vpack.c.b16 %v2719, %v2718
      %v2743 = vpack.c.b16 %v2721, %v2720
      %v2744 = vpack.c.b16 %v2723, %v2722
      %v2745 = vpack.c.b16 %v2725, %v2724
      %v2746 = vpack.c.b16 %v2727, %v2726
      %v2747 = vpack.c.b16 %v2729, %v2728
      %v2748 = vpack.c.b16 %v2731, %v2730
      %v2749 = vpack.c.b16 %v2733, %v2732
      %2750 = vrot.lane.b32.xlu0 %v2734, 56
      %v2751 = vpop.permute.xlu0 %2750
      %2752 = vrot.lane.b32.xlu0 %v2735, 56
      %v2753 = vpop.permute.xlu0 %2752
      %2754 = vrot.lane.b32.xlu0 %v2736, 56
      %v2755 = vpop.permute.xlu0 %2754
      %2756 = vrot.lane.b32.xlu0 %v2737, 56
      %v2757 = vpop.permute.xlu0 %2756
      %2758 = vrot.lane.b32.xlu0 %v2738, 56
      %v2759 = vpop.permute.xlu0 %2758
      %2760 = vrot.lane.b32.xlu0 %v2739, 56
      %v2761 = vpop.permute.xlu0 %2760
      %2762 = vrot.lane.b32.xlu0 %v2740, 56
      %v2763 = vpop.permute.xlu0 %2762
      %2764 = vrot.lane.b32.xlu0 %v2741, 56
      %v2765 = vpop.permute.xlu0 %2764
      %2766 = vrot.lane.b32.xlu0 %v2742, 56
      %v2767 = vpop.permute.xlu0 %2766
      %2768 = vrot.lane.b32.xlu0 %v2743, 56
      %v2769 = vpop.permute.xlu0 %2768
      %2770 = vrot.lane.b32.xlu0 %v2744, 56
      %v2771 = vpop.permute.xlu0 %2770
      %2772 = vrot.lane.b32.xlu0 %v2745, 56
      %v2773 = vpop.permute.xlu0 %2772
      %2774 = vrot.lane.b32.xlu0 %v2746, 56
      %v2775 = vpop.permute.xlu0 %2774
      %2776 = vrot.lane.b32.xlu0 %v2747, 56
      %v2777 = vpop.permute.xlu0 %2776
      %2778 = vrot.lane.b32.xlu0 %v2748, 56
      %v2779 = vpop.permute.xlu0 %2778
      %2780 = vrot.lane.b32.xlu0 %v2749, 56
      %v2781 = vpop.permute.xlu0 %2780
      %v2782 = vunpack.c.l.b16 %v2017
      %v2783 = vunpack.c.l.b16 %v2020
      %v2784 = vunpack.c.l.b16 %v2024
      %v2785 = vunpack.c.l.b16 %v2027
      %v2786 = vunpack.c.l.b16 %v2031
      %v2787 = vunpack.c.l.b16 %v2034
      %v2788 = vunpack.c.l.b16 %v2038
      %v2789 = vunpack.c.l.b16 %v2041
      %v2790 = vunpack.c.l.b16 %v2045
      %v2791 = vunpack.c.l.b16 %v2048
      %v2792 = vunpack.c.l.b16 %v2052
      %v2793 = vunpack.c.l.b16 %v2055
      %v2794 = vunpack.c.l.b16 %v2059
      %v2795 = vunpack.c.l.b16 %v2062
      %v2796 = vunpack.c.l.b16 %v2066
      %v2797 = vunpack.c.l.b16 %v2069
      %v2798 = vunpack.c.l.b16 %v2073
      %v2799 = vunpack.c.l.b16 %v2076
      %v2800 = vunpack.c.l.b16 %v2080
      %v2801 = vunpack.c.l.b16 %v2083
      %v2802 = vunpack.c.l.b16 %v2087
      %v2803 = vunpack.c.l.b16 %v2090
      %v2804 = vunpack.c.l.b16 %v2094
      %v2805 = vunpack.c.l.b16 %v2097
      %v2806 = vunpack.c.l.b16 %v2101
      %v2807 = vunpack.c.l.b16 %v2104
      %v2808 = vunpack.c.l.b16 %v2108
      %v2809 = vunpack.c.l.b16 %v2111
      %v2810 = vunpack.c.l.b16 %v2115
      %v2811 = vunpack.c.l.b16 %v2118
      %v2812 = vunpack.c.l.b16 %v2122
      %v2813 = vunpack.c.l.b16 %v2125
      %v2814 = vpack.c.b16 %v2783, %v2782
      %v2815 = vpack.c.b16 %v2785, %v2784
      %v2816 = vpack.c.b16 %v2787, %v2786
      %v2817 = vpack.c.b16 %v2789, %v2788
      %v2818 = vpack.c.b16 %v2791, %v2790
      %v2819 = vpack.c.b16 %v2793, %v2792
      %v2820 = vpack.c.b16 %v2795, %v2794
      %v2821 = vpack.c.b16 %v2797, %v2796
      %v2822 = vpack.c.b16 %v2799, %v2798
      %v2823 = vpack.c.b16 %v2801, %v2800
      %v2824 = vpack.c.b16 %v2803, %v2802
      %v2825 = vpack.c.b16 %v2805, %v2804
      %v2826 = vpack.c.b16 %v2807, %v2806
      %v2827 = vpack.c.b16 %v2809, %v2808
      %v2828 = vpack.c.b16 %v2811, %v2810
      %v2829 = vpack.c.b16 %v2813, %v2812
      %2830 = vrot.lane.b32.xlu0 %v2814, 64
      %v2831 = vpop.permute.xlu0 %2830
      %2832 = vrot.lane.b32.xlu0 %v2815, 64
      %v2833 = vpop.permute.xlu0 %2832
      %2834 = vrot.lane.b32.xlu0 %v2816, 64
      %v2835 = vpop.permute.xlu0 %2834
      %2836 = vrot.lane.b32.xlu0 %v2817, 64
      %v2837 = vpop.permute.xlu0 %2836
      %2838 = vrot.lane.b32.xlu0 %v2818, 64
      %v2839 = vpop.permute.xlu0 %2838
      %2840 = vrot.lane.b32.xlu0 %v2819, 64
      %v2841 = vpop.permute.xlu0 %2840
      %2842 = vrot.lane.b32.xlu0 %v2820, 64
      %v2843 = vpop.permute.xlu0 %2842
      %2844 = vrot.lane.b32.xlu0 %v2821, 64
      %v2845 = vpop.permute.xlu0 %2844
      %2846 = vrot.lane.b32.xlu0 %v2822, 64
      %v2847 = vpop.permute.xlu0 %2846
      %2848 = vrot.lane.b32.xlu0 %v2823, 64
      %v2849 = vpop.permute.xlu0 %2848
      %2850 = vrot.lane.b32.xlu0 %v2824, 64
      %v2851 = vpop.permute.xlu0 %2850
      %2852 = vrot.lane.b32.xlu0 %v2825, 64
      %v2853 = vpop.permute.xlu0 %2852
      %2854 = vrot.lane.b32.xlu0 %v2826, 64
      %v2855 = vpop.permute.xlu0 %2854
      %2856 = vrot.lane.b32.xlu0 %v2827, 64
      %v2857 = vpop.permute.xlu0 %2856
      %2858 = vrot.lane.b32.xlu0 %v2828, 64
      %v2859 = vpop.permute.xlu0 %2858
      %2860 = vrot.lane.b32.xlu0 %v2829, 64
      %v2861 = vpop.permute.xlu0 %2860
      %vm2862 = vcmask 64512
      %v2865 = vsel %vm2862, %v2174, %v2239
      %v2868 = vsel %vm2862, %v2175, %v2241
      %v2871 = vsel %vm2862, %v2176, %v2243
      %v2874 = vsel %vm2862, %v2177, %v2245
      %v2877 = vsel %vm2862, %v2178, %v2247
      %v2880 = vsel %vm2862, %v2179, %v2249
      %v2883 = vsel %vm2862, %v2180, %v2251
      %v2886 = vsel %vm2862, %v2181, %v2253
      %v2889 = vsel %vm2862, %v2182, %v2255
      %v2892 = vsel %vm2862, %v2183, %v2257
      %v2895 = vsel %vm2862, %v2184, %v2259
      %v2898 = vsel %vm2862, %v2185, %v2261
      %v2901 = vsel %vm2862, %v2186, %v2263
      %v2904 = vsel %vm2862, %v2187, %v2265
      %v2907 = vsel %vm2862, %v2188, %v2267
      %v2910 = vsel %vm2862, %v2189, %v2269
      %vm2911 = vcmask 130048
      %v2913 = vsel %vm2911, %v2865, %v2319
      %v2915 = vsel %vm2911, %v2868, %v2321
      %v2917 = vsel %vm2911, %v2871, %v2323
      %v2919 = vsel %vm2911, %v2874, %v2325
      %v2921 = vsel %vm2911, %v2877, %v2327
      %v2923 = vsel %vm2911, %v2880, %v2329
      %v2925 = vsel %vm2911, %v2883, %v2331
      %v2927 = vsel %vm2911, %v2886, %v2333
      %v2929 = vsel %vm2911, %v2889, %v2335
      %v2931 = vsel %vm2911, %v2892, %v2337
      %v2933 = vsel %vm2911, %v2895, %v2339
      %v2935 = vsel %vm2911, %v2898, %v2341
      %v2937 = vsel %vm2911, %v2901, %v2343
      %v2939 = vsel %vm2911, %v2904, %v2345
      %v2941 = vsel %vm2911, %v2907, %v2347
      %v2943 = vsel %vm2911, %v2910, %v2349
      %vm2944 = vcmask 195584
      %v2946 = vsel %vm2944, %v2913, %v2415
      %v2948 = vsel %vm2944, %v2915, %v2417
      %v2950 = vsel %vm2944, %v2917, %v2419
      %v2952 = vsel %vm2944, %v2919, %v2421
      %v2954 = vsel %vm2944, %v2921, %v2423
      %v2956 = vsel %vm2944, %v2923, %v2425
      %v2958 = vsel %vm2944, %v2925, %v2427
      %v2960 = vsel %vm2944, %v2927, %v2429
      %v2962 = vsel %vm2944, %v2929, %v2431
      %v2964 = vsel %vm2944, %v2931, %v2433
      %v2966 = vsel %vm2944, %v2933, %v2435
      %v2968 = vsel %vm2944, %v2935, %v2437
      %v2970 = vsel %vm2944, %v2937, %v2439
      %v2972 = vsel %vm2944, %v2939, %v2441
      %v2974 = vsel %vm2944, %v2941, %v2443
      %v2976 = vsel %vm2944, %v2943, %v2445
      %vm2977 = vcmask 261120
      %v2979 = vsel %vm2977, %v2946, %v2495
      %v2981 = vsel %vm2977, %v2948, %v2497
      %v2983 = vsel %vm2977, %v2950, %v2499
      %v2985 = vsel %vm2977, %v2952, %v2501
      %v2987 = vsel %vm2977, %v2954, %v2503
      %v2989 = vsel %vm2977, %v2956, %v2505
      %v2991 = vsel %vm2977, %v2958, %v2507
      %v2993 = vsel %vm2977, %v2960, %v2509
      %v2995 = vsel %vm2977, %v2962, %v2511
      %v2997 = vsel %vm2977, %v2964, %v2513
      %v2999 = vsel %vm2977, %v2966, %v2515
      %v3001 = vsel %vm2977, %v2968, %v2517
      %v3003 = vsel %vm2977, %v2970, %v2519
      %v3005 = vsel %vm2977, %v2972, %v2521
      %v3007 = vsel %vm2977, %v2974, %v2523
      %v3009 = vsel %vm2977, %v2976, %v2525
      %vm3010 = vcmask 326656
      %v3012 = vsel %vm3010, %v2979, %v2575
      %v3014 = vsel %vm3010, %v2981, %v2577
      %v3016 = vsel %vm3010, %v2983, %v2579
      %v3018 = vsel %vm3010, %v2985, %v2581
      %v3020 = vsel %vm3010, %v2987, %v2583
      %v3022 = vsel %vm3010, %v2989, %v2585
      %v3024 = vsel %vm3010, %v2991, %v2587
      %v3026 = vsel %vm3010, %v2993, %v2589
      %v3028 = vsel %vm3010, %v2995, %v2591
      %v3030 = vsel %vm3010, %v2997, %v2593
      %v3032 = vsel %vm3010, %v2999, %v2595
      %v3034 = vsel %vm3010, %v3001, %v2597
      %v3036 = vsel %vm3010, %v3003, %v2599
      %v3038 = vsel %vm3010, %v3005, %v2601
      %v3040 = vsel %vm3010, %v3007, %v2603
      %v3042 = vsel %vm3010, %v3009, %v2605
      %vm3043 = vcmask 392192
      %v3045 = vsel %vm3043, %v3012, %v2671
      %v3047 = vsel %vm3043, %v3014, %v2673
      %v3049 = vsel %vm3043, %v3016, %v2675
      %v3051 = vsel %vm3043, %v3018, %v2677
      %v3053 = vsel %vm3043, %v3020, %v2679
      %v3055 = vsel %vm3043, %v3022, %v2681
      %v3057 = vsel %vm3043, %v3024, %v2683
      %v3059 = vsel %vm3043, %v3026, %v2685
      %v3061 = vsel %vm3043, %v3028, %v2687
      %v3063 = vsel %vm3043, %v3030, %v2689
      %v3065 = vsel %vm3043, %v3032, %v2691
      %v3067 = vsel %vm3043, %v3034, %v2693
      %v3069 = vsel %vm3043, %v3036, %v2695
      %v3071 = vsel %vm3043, %v3038, %v2697
      %v3073 = vsel %vm3043, %v3040, %v2699
      %v3075 = vsel %vm3043, %v3042, %v2701
      %vm3076 = vcmask 457728
      %v3078 = vsel %vm3076, %v3045, %v2751
      %v3080 = vsel %vm3076, %v3047, %v2753
      %v3082 = vsel %vm3076, %v3049, %v2755
      %v3084 = vsel %vm3076, %v3051, %v2757
      %v3086 = vsel %vm3076, %v3053, %v2759
      %v3088 = vsel %vm3076, %v3055, %v2761
      %v3090 = vsel %vm3076, %v3057, %v2763
      %v3092 = vsel %vm3076, %v3059, %v2765
      %v3094 = vsel %vm3076, %v3061, %v2767
      %v3096 = vsel %vm3076, %v3063, %v2769
      %v3098 = vsel %vm3076, %v3065, %v2771
      %v3100 = vsel %vm3076, %v3067, %v2773
      %v3102 = vsel %vm3076, %v3069, %v2775
      %v3104 = vsel %vm3076, %v3071, %v2777
      %v3106 = vsel %vm3076, %v3073, %v2779
      %v3108 = vsel %vm3076, %v3075, %v2781
      %vm3109 = vcmask 523264
      %v3111 = vsel %vm3109, %v3078, %v2831
      %v3113 = vsel %vm3109, %v3080, %v2833
      %v3115 = vsel %vm3109, %v3082, %v2835
      %v3117 = vsel %vm3109, %v3084, %v2837
      %v3119 = vsel %vm3109, %v3086, %v2839
      %v3121 = vsel %vm3109, %v3088, %v2841
      %v3123 = vsel %vm3109, %v3090, %v2843
      %v3125 = vsel %vm3109, %v3092, %v2845
      %v3127 = vsel %vm3109, %v3094, %v2847
      %v3129 = vsel %vm3109, %v3096, %v2849
      %v3131 = vsel %vm3109, %v3098, %v2851
      %v3133 = vsel %vm3109, %v3100, %v2853
      %v3135 = vsel %vm3109, %v3102, %v2855
      %v3137 = vsel %vm3109, %v3104, %v2857
      %v3139 = vsel %vm3109, %v3106, %v2859
      %v3141 = vsel %vm3109, %v3108, %v2861
      %v3142 = vld [vmem:[%s275] sm:$0xf]
      %v3143 = vld [vmem:[%s275 + $0x4] sm:$0xf]
      %v3144 = vld [vmem:[%s275 + $0x8] sm:$0xf]
      %v3145 = vld [vmem:[%s275 + $0xc] sm:$0xf]
      %v3146 = vld [vmem:[%s275 + $0x10] sm:$0xf]
      %v3147 = vld [vmem:[%s275 + $0x14] sm:$0xf]
      %v3148 = vld [vmem:[%s275 + $0x18] sm:$0xf]
      %v3149 = vld [vmem:[%s275 + $0x1c] sm:$0xf]
      %v3150 = vld [vmem:[%s275 + $0x20] sm:$0xf]
      %v3151 = vld [vmem:[%s278] sm:$0x1]
      %v3153 = vlaneseq
      %v3154 = vshrl.u32 %v3153, 7
      %v3155 = vsub.s32 0, %v3154
      %v3156 = vrot.slane %v3151, %v3155
      %v3167 = vunpack.c.l.b16 %v3142
      %v3168 = vunpack.c.l.b16 %v3143
      %v3169 = vunpack.c.l.b16 %v3144
      %v3170 = vunpack.c.l.b16 %v3145
      %v3171 = vunpack.c.l.b16 %v3146
      %v3172 = vunpack.c.l.b16 %v3147
      %v3173 = vunpack.c.l.b16 %v3148
      %v3174 = vunpack.c.l.b16 %v3149
      %v3175 = vunpack.c.l.b16 %v3150
      %v3176 = vpack.c.b16 %v3168, %v3167
      %v3177 = vpack.c.b16 %v3170, %v3169
      %v3178 = vpack.c.b16 %v3172, %v3171
      %v3179 = vpack.c.b16 %v3174, %v3173
      %v3180 = vpack.c.b16 %v3175, %v3175
      %vm3185 = vcmask 588800
      %v3186 = vsel %vm3185, %v3111, 0
      %v3188 = vsel %vm3185, %v3113, 0
      %v3190 = vsel %vm3185, %v3115, 0
      %v3192 = vsel %vm3185, %v3117, 0
      %v3194 = vsel %vm3185, %v3119, 0
      %v3196 = vsel %vm3185, %v3121, 0
      %v3198 = vsel %vm3185, %v3123, 0
      %v3200 = vsel %vm3185, %v3125, 0
      %v3202 = vsel %vm3185, %v3127, 0
      %v3204 = vsel %vm3185, %v3129, 0
      %v3206 = vsel %vm3185, %v3131, 0
      %v3208 = vsel %vm3185, %v3133, 0
      %v3210 = vsel %vm3185, %v3135, 0
      %v3212 = vsel %vm3185, %v3137, 0
      %v3214 = vsel %vm3185, %v3139, 0
      %v3216 = vsel %vm3185, %v3141, 0
      %vm3218 = vcmask 1043456
      %v3220 = vsel %vm3218, %v3180, 0
      %3222 = vmatprep.subr.bf16.mxu0 0
      %3223 = vmatpush1.bf16.msra.mxu0 %v3176
      %3224 = vmatprep.subr.bf16.mxu0 0
      %3225 = vmatpush1.bf16.msra.mxu0 %v3177
      %3226 = vmatprep.subr.bf16.mxu0 0
      %3227 = vmatpush1.bf16.msra.mxu0 %v3178
      %3228 = vmatprep.subr.bf16.mxu0 0
      %3229 = vmatpush1.bf16.msra.mxu0 %v3179
      %3230 = vmatprep.subr.bf16.mxu0 0
      %3231 = vmatpush1.bf16.msra.mxu0 %v3220
      %3232 = vmatprep.subr.bf16.mxu0 0
      %3233 = vmatpush1.bf16.msra.mxu0 0
      %3234 = vmatprep.subr.bf16.mxu0 0
      %3235 = vmatpush1.bf16.msra.mxu0 0
      %3236 = vmatprep.subr.bf16.mxu0 0
      %3237 = vmatpush1.bf16.msra.mxu0 0
      %3238 = vmatprep.subr.bf16.mxu0 0
      %3239 = vmatpush1.bf16.msra.mxu0 0
      %3240 = vmatprep.subr.bf16.mxu0 0
      %3241 = vmatpush1.bf16.msra.mxu0 0
      %3242 = vmatprep.subr.bf16.mxu0 0
      %3243 = vmatpush1.bf16.msra.mxu0 0
      %3244 = vmatprep.subr.bf16.mxu0 0
      %3245 = vmatpush1.bf16.msra.mxu0 0
      %3246 = vmatprep.subr.bf16.mxu0 0
      %3247 = vmatpush1.bf16.msra.mxu0 0
      %3248 = vmatprep.subr.bf16.mxu0 0
      %3249 = vmatpush1.bf16.msra.mxu0 0
      %3250 = vmatprep.subr.bf16.mxu0 0
      %3251 = vmatpush1.bf16.msra.mxu0 0
      %3252 = vmatprep.subr.bf16.mxu0 0
      %3253 = vmatpush1.bf16.msra.mxu0 0
      %3254 = vmatprep.mubr.bf16.mxu0 0
      %3255 = vmatmul.mubr.bf16.gmra.mrb[0].mxu0 %v3186
      %v3256 = vpop.f32.mrb[0].mxu0
      %v3257 = vadd.f32 %v3156, %v3256
      %v3258 = vpop.f32.mrb[0].mxu0
      %v3259 = vpop.f32.mrb[0].mxu0
      %v3260 = vadd.f32 %v3156, %v3259
      %v3261 = vpop.f32.mrb[0].mxu0
      %3262 = vmatprep.mubr.bf16.mxu0 0
      %3263 = vmatmul.mubr.bf16.gmra.mrb[0].mxu0 %v3188
      %v3264 = vpop.f32.mrb[0].mxu0
      %v3265 = vadd.f32 %v3156, %v3264
      %v3266 = vpop.f32.mrb[0].mxu0
      %v3267 = vpop.f32.mrb[0].mxu0
      %v3268 = vadd.f32 %v3156, %v3267
      %v3269 = vpop.f32.mrb[0].mxu0
      %3270 = vmatprep.mubr.bf16.mxu0 0
      %3271 = vmatmul.mubr.bf16.gmra.mrb[0].mxu0 %v3190
      %v3272 = vpop.f32.mrb[0].mxu0
      %v3273 = vadd.f32 %v3156, %v3272
      %v3274 = vpop.f32.mrb[0].mxu0
      %v3275 = vpop.f32.mrb[0].mxu0
      %v3276 = vadd.f32 %v3156, %v3275
      %v3277 = vpop.f32.mrb[0].mxu0
      %3278 = vmatprep.mubr.bf16.mxu0 0
      %3279 = vmatmul.mubr.bf16.gmra.mrb[0].mxu0 %v3192
      %v3280 = vpop.f32.mrb[0].mxu0
      %v3281 = vadd.f32 %v3156, %v3280
      %v3282 = vpop.f32.mrb[0].mxu0
      %v3283 = vpop.f32.mrb[0].mxu0
      %v3284 = vadd.f32 %v3156, %v3283
      %v3285 = vpop.f32.mrb[0].mxu0
      %3286 = vmatprep.mubr.bf16.mxu0 0
      %3287 = vmatmul.mubr.bf16.gmra.mrb[0].mxu0 %v3194
      %v3288 = vpop.f32.mrb[0].mxu0
      %v3289 = vadd.f32 %v3156, %v3288
      %v3290 = vpop.f32.mrb[0].mxu0
      %v3291 = vpop.f32.mrb[0].mxu0
      %v3292 = vadd.f32 %v3156, %v3291
      %v3293 = vpop.f32.mrb[0].mxu0
      %3294 = vmatprep.mubr.bf16.mxu0 0
      %3295 = vmatmul.mubr.bf16.gmra.mrb[0].mxu0 %v3196
      %v3296 = vpop.f32.mrb[0].mxu0
      %v3297 = vadd.f32 %v3156, %v3296
      %v3298 = vpop.f32.mrb[0].mxu0
      %v3299 = vpop.f32.mrb[0].mxu0
      %v3300 = vadd.f32 %v3156, %v3299
      %v3301 = vpop.f32.mrb[0].mxu0
      %3302 = vmatprep.mubr.bf16.mxu0 0
      %3303 = vmatmul.mubr.bf16.gmra.mrb[0].mxu0 %v3198
      %v3304 = vpop.f32.mrb[0].mxu0
      %v3305 = vadd.f32 %v3156, %v3304
      %v3306 = vpop.f32.mrb[0].mxu0
      %v3307 = vpop.f32.mrb[0].mxu0
      %v3308 = vadd.f32 %v3156, %v3307
      %v3309 = vpop.f32.mrb[0].mxu0
      %3310 = vmatprep.mubr.bf16.mxu0 0
      %3311 = vmatmul.mubr.bf16.gmra.mrb[0].mxu0 %v3200
      %v3312 = vpop.f32.mrb[0].mxu0
      %v3313 = vadd.f32 %v3156, %v3312
      %v3314 = vpop.f32.mrb[0].mxu0
      %v3315 = vpop.f32.mrb[0].mxu0
      %v3316 = vadd.f32 %v3156, %v3315
      %v3317 = vpop.f32.mrb[0].mxu0
      %3318 = vmatprep.mubr.bf16.mxu0 0
      %3319 = vmatmul.mubr.bf16.gmra.mrb[0].mxu0 %v3202
      %v3320 = vpop.f32.mrb[0].mxu0
      %v3321 = vadd.f32 %v3156, %v3320
      %v3322 = vpop.f32.mrb[0].mxu0
      %v3323 = vpop.f32.mrb[0].mxu0
      %v3324 = vadd.f32 %v3156, %v3323
      %v3325 = vpop.f32.mrb[0].mxu0
      %3326 = vmatprep.mubr.bf16.mxu0 0
      %3327 = vmatmul.mubr.bf16.gmra.mrb[0].mxu0 %v3204
      %v3328 = vpop.f32.mrb[0].mxu0
      %v3329 = vadd.f32 %v3156, %v3328
      %v3330 = vpop.f32.mrb[0].mxu0
      %v3331 = vpop.f32.mrb[0].mxu0
      %v3332 = vadd.f32 %v3156, %v3331
      %v3333 = vpop.f32.mrb[0].mxu0
      %3334 = vmatprep.mubr.bf16.mxu0 0
      %3335 = vmatmul.mubr.bf16.gmra.mrb[0].mxu0 %v3206
      %v3336 = vpop.f32.mrb[0].mxu0
      %v3337 = vadd.f32 %v3156, %v3336
      %v3338 = vpop.f32.mrb[0].mxu0
      %v3339 = vpop.f32.mrb[0].mxu0
      %v3340 = vadd.f32 %v3156, %v3339
      %v3341 = vpop.f32.mrb[0].mxu0
      %3342 = vmatprep.mubr.bf16.mxu0 0
      %3343 = vmatmul.mubr.bf16.gmra.mrb[0].mxu0 %v3208
      %v3344 = vpop.f32.mrb[0].mxu0
      %v3345 = vadd.f32 %v3156, %v3344
      %v3346 = vpop.f32.mrb[0].mxu0
      %v3347 = vpop.f32.mrb[0].mxu0
      %v3348 = vadd.f32 %v3156, %v3347
      %v3349 = vpop.f32.mrb[0].mxu0
      %3350 = vmatprep.mubr.bf16.mxu0 0
      %3351 = vmatmul.mubr.bf16.gmra.mrb[0].mxu0 %v3210
      %v3352 = vpop.f32.mrb[0].mxu0
      %v3353 = vadd.f32 %v3156, %v3352
      %v3354 = vpop.f32.mrb[0].mxu0
      %v3355 = vpop.f32.mrb[0].mxu0
      %v3356 = vadd.f32 %v3156, %v3355
      %v3357 = vpop.f32.mrb[0].mxu0
      %3358 = vmatprep.mubr.bf16.mxu0 0
      %3359 = vmatmul.mubr.bf16.gmra.mrb[0].mxu0 %v3212
      %v3360 = vpop.f32.mrb[0].mxu0
      %v3361 = vadd.f32 %v3156, %v3360
      %v3362 = vpop.f32.mrb[0].mxu0
      %v3363 = vpop.f32.mrb[0].mxu0
      %v3364 = vadd.f32 %v3156, %v3363
      %v3365 = vpop.f32.mrb[0].mxu0
      %3366 = vmatprep.mubr.bf16.mxu0 0
      %3367 = vmatmul.mubr.bf16.gmra.mrb[0].mxu0 %v3214
      %v3368 = vpop.f32.mrb[0].mxu0
      %v3369 = vadd.f32 %v3156, %v3368
      %v3370 = vpop.f32.mrb[0].mxu0
      %v3371 = vpop.f32.mrb[0].mxu0
      %v3372 = vadd.f32 %v3156, %v3371
      %v3373 = vpop.f32.mrb[0].mxu0
      %3374 = vmatprep.mubr.bf16.mxu0 0
      %3375 = vmatmul.mubr.bf16.gmra.mrb[0].mxu0 %v3216
      %v3376 = vpop.f32.mrb[0].mxu0
      %v3377 = vadd.f32 %v3156, %v3376
      %v3378 = vpop.f32.mrb[0].mxu0
      %v3379 = vpop.f32.mrb[0].mxu0
      %v3380 = vadd.f32 %v3156, %v3379
      %v3381 = vpop.f32.mrb[0].mxu0
      %3382 = vdwg.mxu0
      %v3383 = vpack.c.bf16 %v3260, %v3257
      %v3384 = vpack.c.bf16 %v3268, %v3265
      %v3385 = vpack.c.bf16 %v3276, %v3273
      %v3386 = vpack.c.bf16 %v3284, %v3281
      %v3387 = vpack.c.bf16 %v3292, %v3289
      %v3388 = vpack.c.bf16 %v3300, %v3297
      %v3389 = vpack.c.bf16 %v3308, %v3305
      %v3390 = vpack.c.bf16 %v3316, %v3313
      %v3391 = vpack.c.bf16 %v3324, %v3321
      %v3392 = vpack.c.bf16 %v3332, %v3329
      %v3393 = vpack.c.bf16 %v3340, %v3337
      %v3394 = vpack.c.bf16 %v3348, %v3345
      %v3395 = vpack.c.bf16 %v3356, %v3353
      %v3396 = vpack.c.bf16 %v3364, %v3361
      %v3397 = vpack.c.bf16 %v3372, %v3369
      %v3398 = vpack.c.bf16 %v3380, %v3377
      %v3415 = vunpack.c.l.b16 %v3383
      %v3416 = vunpack.c.h.b16 %v3383
      %v3417 = vunpack.c.l.b16 %v3384
      %v3418 = vunpack.c.h.b16 %v3384
      %v3419 = vunpack.c.l.b16 %v3385
      %v3420 = vunpack.c.h.b16 %v3385
      %v3421 = vunpack.c.l.b16 %v3386
      %v3422 = vunpack.c.h.b16 %v3386
      %v3423 = vunpack.c.l.b16 %v3387
      %v3424 = vunpack.c.h.b16 %v3387
      %v3425 = vunpack.c.l.b16 %v3388
      %v3426 = vunpack.c.h.b16 %v3388
      %v3427 = vunpack.c.l.b16 %v3389
      %v3428 = vunpack.c.h.b16 %v3389
      %v3429 = vunpack.c.l.b16 %v3390
      %v3430 = vunpack.c.h.b16 %v3390
      %v3431 = vunpack.c.l.b16 %v3391
      %v3432 = vunpack.c.h.b16 %v3391
      %v3433 = vunpack.c.l.b16 %v3392
      %v3434 = vunpack.c.h.b16 %v3392
      %v3435 = vunpack.c.l.b16 %v3393
      %v3436 = vunpack.c.h.b16 %v3393
      %v3437 = vunpack.c.l.b16 %v3394
      %v3438 = vunpack.c.h.b16 %v3394
      %v3439 = vunpack.c.l.b16 %v3395
      %v3440 = vunpack.c.h.b16 %v3395
      %v3441 = vunpack.c.l.b16 %v3396
      %v3442 = vunpack.c.h.b16 %v3396
      %v3443 = vunpack.c.l.b16 %v3397
      %v3444 = vunpack.c.h.b16 %v3397
      %v3445 = vunpack.c.l.b16 %v3398
      %v3446 = vunpack.c.h.b16 %v3398
      %v3447 = vpack.c.b16 %v3415, %v3415
      %v3448 = vpack.c.b16 %v3416, %v3416
      %v3449 = vpack.c.b16 %v3417, %v3417
      %v3450 = vpack.c.b16 %v3418, %v3418
      %v3451 = vpack.c.b16 %v3419, %v3419
      %v3452 = vpack.c.b16 %v3420, %v3420
      %v3453 = vpack.c.b16 %v3421, %v3421
      %v3454 = vpack.c.b16 %v3422, %v3422
      %v3455 = vpack.c.b16 %v3423, %v3423
      %v3456 = vpack.c.b16 %v3424, %v3424
      %v3457 = vpack.c.b16 %v3425, %v3425
      %v3458 = vpack.c.b16 %v3426, %v3426
      %v3459 = vpack.c.b16 %v3427, %v3427
      %v3460 = vpack.c.b16 %v3428, %v3428
      %v3461 = vpack.c.b16 %v3429, %v3429
      %v3462 = vpack.c.b16 %v3430, %v3430
      %v3463 = vpack.c.b16 %v3431, %v3431
      %v3464 = vpack.c.b16 %v3432, %v3432
      %v3465 = vpack.c.b16 %v3433, %v3433
      %v3466 = vpack.c.b16 %v3434, %v3434
      %v3467 = vpack.c.b16 %v3435, %v3435
      %v3468 = vpack.c.b16 %v3436, %v3436
      %v3469 = vpack.c.b16 %v3437, %v3437
      %v3470 = vpack.c.b16 %v3438, %v3438
      %v3471 = vpack.c.b16 %v3439, %v3439
      %v3472 = vpack.c.b16 %v3440, %v3440
      %v3473 = vpack.c.b16 %v3441, %v3441
      %v3474 = vpack.c.b16 %v3442, %v3442
      %v3475 = vpack.c.b16 %v3443, %v3443
      %v3476 = vpack.c.b16 %v3444, %v3444
      %v3477 = vpack.c.b16 %v3445, %v3445
      %v3478 = vpack.c.b16 %v3446, %v3446
      %vm3511 = vcmask 60416
      %3512 = vst.msk [vmem:[%s286] sm:$0xf] %vm3511, %v3447
      %3513 = vst.msk [vmem:[%s286 + $0x4] sm:$0xf] %vm3511, %v3448
      %3514 = vst.msk [vmem:[%s286 + $0x8] sm:$0xf] %vm3511, %v3449
      %3515 = vst.msk [vmem:[%s286 + $0xc] sm:$0xf] %vm3511, %v3450
      %3516 = vst.msk [vmem:[%s286 + $0x10] sm:$0xf] %vm3511, %v3451
      %3517 = vst.msk [vmem:[%s286 + $0x14] sm:$0xf] %vm3511, %v3452
      %3518 = vst.msk [vmem:[%s286 + $0x18] sm:$0xf] %vm3511, %v3453
      %3519 = vst.msk [vmem:[%s286 + $0x1c] sm:$0xf] %vm3511, %v3454
      %3520 = vst.msk [vmem:[%s286 + $0x20] sm:$0xf] %vm3511, %v3455
      %3521 = vst.msk [vmem:[%s286 + $0x24] sm:$0xf] %vm3511, %v3456
      %3522 = vst.msk [vmem:[%s286 + $0x28] sm:$0xf] %vm3511, %v3457
      %3523 = vst.msk [vmem:[%s286 + $0x2c] sm:$0xf] %vm3511, %v3458
      %3524 = vst.msk [vmem:[%s286 + $0x30] sm:$0xf] %vm3511, %v3459
      %3525 = vst.msk [vmem:[%s286 + $0x34] sm:$0xf] %vm3511, %v3460
      %3526 = vst.msk [vmem:[%s286 + $0x38] sm:$0xf] %vm3511, %v3461
      %3527 = vst.msk [vmem:[%s286 + $0x3c] sm:$0xf] %vm3511, %v3462
      %3528 = vst.msk [vmem:[%s286 + $0x40] sm:$0xf] %vm3511, %v3463
      %3529 = vst.msk [vmem:[%s286 + $0x44] sm:$0xf] %vm3511, %v3464
      %3530 = vst.msk [vmem:[%s286 + $0x48] sm:$0xf] %vm3511, %v3465
      %3531 = vst.msk [vmem:[%s286 + $0x4c] sm:$0xf] %vm3511, %v3466
      %3532 = vst.msk [vmem:[%s286 + $0x50] sm:$0xf] %vm3511, %v3467
      %3533 = vst.msk [vmem:[%s286 + $0x54] sm:$0xf] %vm3511, %v3468
      %3534 = vst.msk [vmem:[%s286 + $0x58] sm:$0xf] %vm3511, %v3469
      %3535 = vst.msk [vmem:[%s286 + $0x5c] sm:$0xf] %vm3511, %v3470
      %3536 = vst.msk [vmem:[%s286 + $0x60] sm:$0xf] %vm3511, %v3471
      %3537 = vst.msk [vmem:[%s286 + $0x64] sm:$0xf] %vm3511, %v3472
      %3538 = vst.msk [vmem:[%s286 + $0x68] sm:$0xf] %vm3511, %v3473
      %3539 = vst.msk [vmem:[%s286 + $0x6c] sm:$0xf] %vm3511, %v3474
      %3540 = vst.msk [vmem:[%s286 + $0x70] sm:$0xf] %vm3511, %v3475
      %3541 = vst.msk [vmem:[%s286 + $0x74] sm:$0xf] %vm3511, %v3476
      %3542 = vst.msk [vmem:[%s286 + $0x78] sm:$0xf] %vm3511, %v3477
      %3543 = vst.msk [vmem:[%s286 + $0x7c] sm:$0xf] %vm3511, %v3478
      %p3544 = scmp.eq.s32.totalorder %s22, 0
      // Predicated region
      $region33: #{residual_block_forward.6} parent=31 // pred_check
        %p3545 = pneg %p3544
      $region34: #{residual_block_forward.6} parent=31 // pred_check_branch
        %3547 = sbr.rel (%p3545) target = $region36
      $region35: #{residual_block_forward.6} parent=31 // pred_region
        %vm3548 = vcmask 57344
        %3549 = vst.msk [vmem:[%s289] sm:$0x1] %vm3548, 0.0
        %3550 = vst.msk [vmem:[%s292] sm:$0x1] %vm3548, 0.0
      $region36: #{residual_block_forward.6} parent=31 // pred_fallthru
        _
      %v3551 = vld [vmem:[%s289] sm:$0x1]
      %v3552 = vsel %vm2862, %v3257, 0.0
      %v3553 = vsel %vm2862, %v3260, 0.0
      %v3554 = vadd.f32 %v3552, %v3553
      %v3555 = vsel %vm2862, %v3265, 0.0
      %v3556 = vadd.f32 %v3554, %v3555
      %v3557 = vsel %vm2862, %v3268, 0.0
      %v3558 = vadd.f32 %v3556, %v3557
      %v3559 = vsel %vm2862, %v3273, 0.0
      %v3560 = vadd.f32 %v3558, %v3559
      %v3561 = vsel %vm2862, %v3276, 0.0
      %v3562 = vadd.f32 %v3560, %v3561
      %v3563 = vsel %vm2862, %v3281, 0.0
      %v3564 = vadd.f32 %v3562, %v3563
      %v3565 = vsel %vm2862, %v3284, 0.0
      %v3566 = vadd.f32 %v3564, %v3565
      %v3567 = vsel %vm2862, %v3289, 0.0
      %v3568 = vadd.f32 %v3566, %v3567
      %v3569 = vsel %vm2862, %v3292, 0.0
      %v3570 = vadd.f32 %v3568, %v3569
      %v3571 = vsel %vm2862, %v3297, 0.0
      %v3572 = vadd.f32 %v3570, %v3571
      %v3573 = vsel %vm2862, %v3300, 0.0
      %v3574 = vadd.f32 %v3572, %v3573
      %v3575 = vsel %vm2862, %v3305, 0.0
      %v3576 = vadd.f32 %v3574, %v3575
      %v3577 = vsel %vm2862, %v3308, 0.0
      %v3578 = vadd.f32 %v3576, %v3577
      %v3579 = vsel %vm2862, %v3313, 0.0
      %v3580 = vadd.f32 %v3578, %v3579
      %v3581 = vsel %vm2862, %v3316, 0.0
      %v3582 = vadd.f32 %v3580, %v3581
      %v3583 = vsel %vm2862, %v3321, 0.0
      %v3584 = vadd.f32 %v3582, %v3583
      %v3585 = vsel %vm2862, %v3324, 0.0
      %v3586 = vadd.f32 %v3584, %v3585
      %v3587 = vsel %vm2862, %v3329, 0.0
      %v3588 = vadd.f32 %v3586, %v3587
      %v3589 = vsel %vm2862, %v3332, 0.0
      %v3590 = vadd.f32 %v3588, %v3589
      %v3591 = vsel %vm2862, %v3337, 0.0
      %v3592 = vadd.f32 %v3590, %v3591
      %v3593 = vsel %vm2862, %v3340, 0.0
      %v3594 = vadd.f32 %v3592, %v3593
      %v3595 = vsel %vm2862, %v3345, 0.0
      %v3596 = vadd.f32 %v3594, %v3595
      %v3597 = vsel %vm2862, %v3348, 0.0
      %v3598 = vadd.f32 %v3596, %v3597
      %v3599 = vsel %vm2862, %v3353, 0.0
      %v3600 = vadd.f32 %v3598, %v3599
      %v3601 = vsel %vm2862, %v3356, 0.0
      %v3602 = vadd.f32 %v3600, %v3601
      %v3603 = vsel %vm2862, %v3361, 0.0
      %v3604 = vadd.f32 %v3602, %v3603
      %v3605 = vsel %vm2862, %v3364, 0.0
      %v3606 = vadd.f32 %v3604, %v3605
      %v3607 = vsel %vm2862, %v3369, 0.0
      %v3608 = vadd.f32 %v3606, %v3607
      %v3609 = vsel %vm2862, %v3372, 0.0
      %v3610 = vadd.f32 %v3608, %v3609
      %v3611 = vsel %vm2862, %v3377, 0.0
      %v3612 = vadd.f32 %v3610, %v3611
      %v3613 = vsel %vm2862, %v3380, 0.0
      %v3614 = vadd.f32 %v3612, %v3613
      %v3615 = vrot.slane %v3614, 4
      %v3616 = vadd.f32 %v3614, %v3615
      %v3617 = vrot.slane %v3616, 2
      %v3618 = vadd.f32 %v3616, %v3617
      %v3619 = vrot.slane %v3618, 1
      %v3620 = vadd.f32 %v3618, %v3619
      %v3621 = vadd.f32 %v3551, %v3620
      %vm3622 = vcmask 57344
      %3623 = vst.msk [vmem:[%s289] sm:$0x1] %vm3622, %v3621
      %v3624 = vld [vmem:[%s292] sm:$0x1]
      %v3625 = vmul.f32 %v3257, %v3257
      %v3626 = vmul.f32 %v3260, %v3260
      %v3627 = vmul.f32 %v3265, %v3265
      %v3628 = vmul.f32 %v3268, %v3268
      %v3629 = vmul.f32 %v3273, %v3273
      %v3630 = vmul.f32 %v3276, %v3276
      %v3631 = vmul.f32 %v3281, %v3281
      %v3632 = vmul.f32 %v3284, %v3284
      %v3633 = vmul.f32 %v3289, %v3289
      %v3634 = vmul.f32 %v3292, %v3292
      %v3635 = vmul.f32 %v3297, %v3297
      %v3636 = vmul.f32 %v3300, %v3300
      %v3637 = vmul.f32 %v3305, %v3305
      %v3638 = vmul.f32 %v3308, %v3308
      %v3639 = vmul.f32 %v3313, %v3313
      %v3640 = vmul.f32 %v3316, %v3316
      %v3641 = vmul.f32 %v3321, %v3321
      %v3642 = vmul.f32 %v3324, %v3324
      %v3643 = vmul.f32 %v3329, %v3329
      %v3644 = vmul.f32 %v3332, %v3332
      %v3645 = vmul.f32 %v3337, %v3337
      %v3646 = vmul.f32 %v3340, %v3340
      %v3647 = vmul.f32 %v3345, %v3345
      %v3648 = vmul.f32 %v3348, %v3348
      %v3649 = vmul.f32 %v3353, %v3353
      %v3650 = vmul.f32 %v3356, %v3356
      %v3651 = vmul.f32 %v3361, %v3361
      %v3652 = vmul.f32 %v3364, %v3364
      %v3653 = vmul.f32 %v3369, %v3369
      %v3654 = vmul.f32 %v3372, %v3372
      %v3655 = vmul.f32 %v3377, %v3377
      %v3656 = vmul.f32 %v3380, %v3380
      %v3657 = vsel %vm2862, %v3625, 0.0
      %v3658 = vsel %vm2862, %v3626, 0.0
      %v3659 = vadd.f32 %v3657, %v3658
      %v3660 = vsel %vm2862, %v3627, 0.0
      %v3661 = vadd.f32 %v3659, %v3660
      %v3662 = vsel %vm2862, %v3628, 0.0
      %v3663 = vadd.f32 %v3661, %v3662
      %v3664 = vsel %vm2862, %v3629, 0.0
      %v3665 = vadd.f32 %v3663, %v3664
      %v3666 = vsel %vm2862, %v3630, 0.0
      %v3667 = vadd.f32 %v3665, %v3666
      %v3668 = vsel %vm2862, %v3631, 0.0
      %v3669 = vadd.f32 %v3667, %v3668
      %v3670 = vsel %vm2862, %v3632, 0.0
      %v3671 = vadd.f32 %v3669, %v3670
      %v3672 = vsel %vm2862, %v3633, 0.0
      %v3673 = vadd.f32 %v3671, %v3672
      %v3674 = vsel %vm2862, %v3634, 0.0
      %v3675 = vadd.f32 %v3673, %v3674
      %v3676 = vsel %vm2862, %v3635, 0.0
      %v3677 = vadd.f32 %v3675, %v3676
      %v3678 = vsel %vm2862, %v3636, 0.0
      %v3679 = vadd.f32 %v3677, %v3678
      %v3680 = vsel %vm2862, %v3637, 0.0
      %v3681 = vadd.f32 %v3679, %v3680
      %v3682 = vsel %vm2862, %v3638, 0.0
      %v3683 = vadd.f32 %v3681, %v3682
      %v3684 = vsel %vm2862, %v3639, 0.0
      %v3685 = vadd.f32 %v3683, %v3684
      %v3686 = vsel %vm2862, %v3640, 0.0
      %v3687 = vadd.f32 %v3685, %v3686
      %v3688 = vsel %vm2862, %v3641, 0.0
      %v3689 = vadd.f32 %v3687, %v3688
      %v3690 = vsel %vm2862, %v3642, 0.0
      %v3691 = vadd.f32 %v3689, %v3690
      %v3692 = vsel %vm2862, %v3643, 0.0
      %v3693 = vadd.f32 %v3691, %v3692
      %v3694 = vsel %vm2862, %v3644, 0.0
      %v3695 = vadd.f32 %v3693, %v3694
      %v3696 = vsel %vm2862, %v3645, 0.0
      %v3697 = vadd.f32 %v3695, %v3696
      %v3698 = vsel %vm2862, %v3646, 0.0
      %v3699 = vadd.f32 %v3697, %v3698
      %v3700 = vsel %vm2862, %v3647, 0.0
      %v3701 = vadd.f32 %v3699, %v3700
      %v3702 = vsel %vm2862, %v3648, 0.0
      %v3703 = vadd.f32 %v3701, %v3702
      %v3704 = vsel %vm2862, %v3649, 0.0
      %v3705 = vadd.f32 %v3703, %v3704
      %v3706 = vsel %vm2862, %v3650, 0.0
      %v3707 = vadd.f32 %v3705, %v3706
      %v3708 = vsel %vm2862, %v3651, 0.0
      %v3709 = vadd.f32 %v3707, %v3708
      %v3710 = vsel %vm2862, %v3652, 0.0
      %v3711 = vadd.f32 %v3709, %v3710
      %v3712 = vsel %vm2862, %v3653, 0.0
      %v3713 = vadd.f32 %v3711, %v3712
      %v3714 = vsel %vm2862, %v3654, 0.0
      %v3715 = vadd.f32 %v3713, %v3714
      %v3716 = vsel %vm2862, %v3655, 0.0
      %v3717 = vadd.f32 %v3715, %v3716
      %v3718 = vsel %vm2862, %v3656, 0.0
      %v3719 = vadd.f32 %v3717, %v3718
      %v3720 = vrot.slane %v3719, 4
      %v3721 = vadd.f32 %v3719, %v3720
      %v3722 = vrot.slane %v3721, 2
      %v3723 = vadd.f32 %v3721, %v3722
      %v3724 = vrot.slane %v3723, 1
      %v3725 = vadd.f32 %v3723, %v3724
      %v3726 = vadd.f32 %v3624, %v3725
      %3727 = vst.msk [vmem:[%s292] sm:$0x1] %vm3622, %v3726
      %p3728 = scmp.lt.s32.totalorder %s22, 1
      %s3729 = scalar_select %p3728, %s22, 1
      %p3730 = scmp.lt.s32.totalorder %s21, 0
      %s3731 = scalar_select %p3730, %s21, 0
      %s3732 = smul.addr %s3729, 32
      %s3733 = sadd.s32 %s3731, %s3732
      %s3734 = smul.addr %s3733, 4
      %s3735 = scalar_lea.vmem %s3, %s3734
      %p3736 = scmp.lt.s32.totalorder %s21, 0
      %s3737 = scalar_select %p3736, %s21, 0
      %s3738 = scalar_lea.vmem %s4, %s3737
      %p3739 = scmp.lt.s32.totalorder %s21, 0
      %s3740 = scalar_select %p3739, %s21, 0
      %s3741 = scalar_lea.vmem %s5, %s3740
      // Predicated region
      $region37: #{residual_block_forward.6} parent=31 // pred_check
        %p3742 = pneg %p127
      $region38: #{residual_block_forward.6} parent=31 // pred_check_branch
        %3744 = sbr.rel (%p3742) target = $region40
      $region39: #{residual_block_forward.6} parent=31 // pred_region
        _
      $region40: #{residual_block_forward.6} parent=31 // pred_fallthru
        _
      // Predicated region
      $region41: #{residual_block_forward.6} parent=31 // pred_check
        %p3745 = pneg %p153
      $region42: #{residual_block_forward.6} parent=31 // pred_check_branch
        %3747 = sbr.rel (%p3745) target = $region44
      $region43: #{residual_block_forward.6} parent=31 // pred_region
        _
      $region44: #{residual_block_forward.6} parent=31 // pred_fallthru
        _
      // Predicated region
      $region45: #{residual_block_forward.6} parent=31 // pred_check
        %p3748 = pneg %p179
      $region46: #{residual_block_forward.6} parent=31 // pred_check_branch
        %3750 = sbr.rel (%p3748) target = $region48
      $region47: #{residual_block_forward.6} parent=31 // pred_region
        _
      $region48: #{residual_block_forward.6} parent=31 // pred_fallthru
        _
      // Predicated region
      $region49: #{residual_block_forward.6} parent=31 // pred_check
        %p3751 = pneg %p153
      $region50: #{residual_block_forward.6} parent=31 // pred_check_branch
        %3753 = sbr.rel (%p3751) target = $region52
      $region51: #{residual_block_forward.6} parent=31 // pred_region
        %p3754 = scmp.lt.s32.totalorder %s21, 0
        %s3755 = scalar_select %p3754, %s21, 0
        %s3756 = scalar_lea.vmem %s4, %s3755
      $region52: #{residual_block_forward.6} parent=31 // pred_fallthru
        _
      // Predicated region
      $region53: #{residual_block_forward.6} parent=31 // pred_check
        %p3757 = pneg %p179
      $region54: #{residual_block_forward.6} parent=31 // pred_check_branch
        %3759 = sbr.rel (%p3757) target = $region56
      $region55: #{residual_block_forward.6} parent=31 // pred_region
        %p3760 = scmp.lt.s32.totalorder %s21, 0
        %s3761 = scalar_select %p3760, %s21, 0
        %s3762 = scalar_lea.vmem %s5, %s3761
      $region56: #{residual_block_forward.6} parent=31 // pred_fallthru
        _
    $region32: #{residual_block_forward.6} parent=5 // pred_fallthru
      _
    %p3763 = scmp.le.s32.totalorder 2, %s12
    // Predicated region
    $region57: #{residual_block_forward.6} parent=5 // pred_check
      %p3764 = pneg %p3763
    $region58: #{residual_block_forward.6} parent=5 // pred_check_branch
      %3766 = sbr.rel (%p3764) target = $region60
    $region59: #{residual_block_forward.6} parent=5 // pred_region
      %s3767 = ssub.s32 %s12, 2
      // Predicated region
      $region61: #{residual_block_forward.6} parent=59 // pred_check
        %p3768 = pneg %p133
      $region62: #{residual_block_forward.6} parent=59 // pred_check_branch
        %3770 = sbr.rel (%p3768) target = $region64
      $region63: #{residual_block_forward.6} parent=59 // pred_region
        %p3771 = scmp.lt.s32.totalorder %s24, 1
        %s3772 = scalar_select %p3771, %s24, 1
        %p3773 = scmp.lt.s32.totalorder %s23, 0
        %s3774 = scalar_select %p3773, %s23, 0
        %s3775 = smul.addr %s3772, 32
        %s3776 = sadd.s32 %s3774, %s3775
        %s3777 = smul.addr %s3776, 4
        %s3778 = scalar_lea.vmem %s3, %s3777
      $region64: #{residual_block_forward.6} parent=59 // pred_fallthru
        _
    $region60: #{residual_block_forward.6} parent=5 // pred_fallthru
      _
  $region6: #{residual_block_forward.6} parent=0 // loop_footer
    %s16 = sadd.s32 1, %s12
  $region7: #{residual_block_forward.6} parent=0 // loop_footer_branch
    %11 = sbr.rel target = $region3
  $region8: #{residual_block_forward.6} parent=0 // loop_exit
    _

</llo_original>
